<compile_context>
chip_gen: v7x
topology: tpu7x:2x2x1
jax: 0.10.0
libtpu: 0.0.40
codegen_flags: <defaults>
</compile_context>

<pallas_src>
import functools

import jax
import jax.numpy as jnp
from jax import lax
from jax.experimental import pallas as pl
from jax.experimental.pallas import tpu as pltpu


# ---------------------------------------------------------------------------
# Fused ASPP kernel: one grid step = one (tile_h*W, 256) output tile of image n
# ---------------------------------------------------------------------------
def _aspp_fused_kernel(x_ref, wtap_ref, bscale_ref, bbias_ref, wproj_ref,
                       pscale_ref, pbias_ref, o_ref, pacc_ref, *,
                       tile_h, width, channels, branch_taps, compute_dtype):
    """Refs:
      x_ref      (1, Hpad, Wpad, C)  padded input, VMEM-resident per image
      wtap_ref   (n_taps, C, 256)    stacked per-tap conv weights (resident)
      bscale_ref (4, 256)            folded BN scale, spatial branches
      bbias_ref  (4, 256)            folded BN bias,  spatial branches
      wproj_ref  (4, 256, 256)       projection weight slice per spatial branch
      pscale_ref (1, 256)            projection BN scale
      pbias_ref  (1, 1, 256)         per-image projection bias (pool folded in)
      o_ref      (1, tile_m, 256)    output tile
      pacc_ref   (tile_m, 256) f32   projection accumulator (VMEM scratch)
    """
    tile_m = tile_h * width
    h0 = pl.multiple_of(pl.program_id(1) * tile_h, tile_h)

    for b, taps in enumerate(branch_taps):          # 4 spatial branches
        bacc = None
        for (t, roff, coff) in taps:                # 1 tap (1x1) or 9 taps (3x3)
            xwin = x_ref[0, pl.ds(h0 + roff, tile_h), coff:coff + width, :]
            xm = xwin.reshape(tile_m, channels)
            part = jnp.dot(xm, wtap_ref[t], preferred_element_type=jnp.float32)
            bacc = part if bacc is None else bacc + part
        # Branch BN + ReLU, then fold through this branch's projection slice.
        yb = jnp.maximum(bacc * bscale_ref[b] + bbias_ref[b], 0.0)
        contrib = jnp.dot(yb.astype(compute_dtype), wproj_ref[b],
                          preferred_element_type=jnp.float32)
        if b == 0:
            pacc_ref[...] = contrib
        else:
            pacc_ref[...] += contrib

    # Projection BN (+ pooled-branch contribution baked into pbias) + ReLU.
    y = pacc_ref[...] * pscale_ref[0] + pbias_ref[0, 0]
    o_ref[0] = jnp.maximum(y, 0.0).astype(o_ref.dtype)


def _pick_tile_h(H, W, target_rows):
    """Largest divisor t of H with (t*W) % 8 == 0 and t*W <= target_rows."""
    ok = [t for t in range(1, H + 1) if H % t == 0 and (t * W) % 8 == 0]
    if not ok:
        return H                                    # full-image block is always legal
    fitting = [t for t in ok if t * W <= max(target_rows, W)]
    return max(fitting) if fitting else min(ok)


def fold_bn(gamma, beta, mean, var, eps=1e-5):
    scale = gamma / jnp.sqrt(var + eps)
    bias = beta - mean * scale
    return scale, bias


# ---------------------------------------------------------------------------
# ASPP forward (NHWC) — one fused pallas_call
# ---------------------------------------------------------------------------
def aspp_forward(x_nhwc, params, dilations, *, tile_rows=128,
                 compute_dtype=jnp.float32):
    N, H, W, C = x_nhwc.shape
    w0, s0, b0 = params["branch0"]                 # (C, Cout), (Cout,), (Cout,)
    Cout = w0.shape[-1]
    dmax = max(dilations)
    Hp, Wp = H + 2 * dmax, W + 2 * dmax

    # --- stack per-tap conv weights and per-branch BN params (static layout) ---
    wtaps = [w0.reshape(1, C, Cout)]
    bscales, bbiases = [s0], [b0]
    branch_taps = [((0, dmax, dmax),)]             # branch0: single centered tap
    tap_idx = 1
    for name, d in zip(("branch1", "branch2", "branch3"), dilations):
        wb, sb, bb = params[name]                  # (9*C, Cout)
        wtaps.append(wb.reshape(9, C, Cout))
        bscales.append(sb)
        bbiases.append(bb)
        taps = []
        for dy in range(3):
            for dx in range(3):
                taps.append((tap_idx + dy * 3 + dx,
                             (dmax - d) + dy * d,
                             (dmax - d) + dx * d))
        branch_taps.append(tuple(taps))
        tap_idx += 9
    branch_taps = tuple(branch_taps)

    wtap = jnp.concatenate(wtaps, axis=0).astype(compute_dtype)   # (n_taps, C, Cout)
    n_taps = wtap.shape[0]
    bscale = jnp.stack(bscales)                                   # (4, Cout) f32
    bbias = jnp.stack(bbiases)                                    # (4, Cout) f32

    # --- projection weight split; pooling branch folded into per-image bias ---
    wproj, sproj, bproj = params["project"]                       # (5*Cout, Cout)
    wproj_sp = wproj[:4 * Cout].reshape(4, Cout, Cout).astype(compute_dtype)
    wproj_pool = wproj[4 * Cout:]                                 # (Cout, Cout) f32

    wpool, spool, bpool = params["pool"]
    pooled = jnp.mean(x_nhwc, axis=(1, 2))                        # (N, C)
    pooled = jnp.maximum(
        jnp.dot(pooled, wpool, precision=lax.Precision.HIGHEST) * spool + bpool,
        0.0)                                                      # (N, Cout)
    bias_img = (bproj[None, :]
                + jnp.dot(pooled, wproj_pool,
                          precision=lax.Precision.HIGHEST) * sproj[None, :])
    bias_img = bias_img.reshape(N, 1, Cout)                       # (N, 1, Cout)
    pscale = sproj.reshape(1, Cout)

    # --- padded input: replaces per-branch padding AND the (M, 9C) im2col ---
    xp = jnp.pad(x_nhwc.astype(compute_dtype),
                 ((0, 0), (dmax, dmax), (dmax, dmax), (0, 0)))

    tile_h = _pick_tile_h(H, W, tile_rows)
    tile_m = tile_h * W
    grid = (N, H // tile_h)

    itemsize = jnp.dtype(compute_dtype).itemsize
    flops = 2 * N * H * W * (n_taps * C * Cout + 4 * Cout * Cout)
    bytes_accessed = (N * Hp * Wp * C * itemsize
                      + (n_taps * C * Cout + 4 * Cout * Cout) * itemsize
                      + N * H * W * Cout * 4
                      + (8 * Cout + Cout + N * Cout) * 4)

    kernel = functools.partial(
        _aspp_fused_kernel, tile_h=tile_h, width=W, channels=C,
        branch_taps=branch_taps, compute_dtype=compute_dtype)

    out = pl.pallas_call(
        kernel,
        out_shape=jax.ShapeDtypeStruct((N, H * W, Cout), jnp.float32),
        grid_spec=pltpu.PrefetchScalarGridSpec(
            num_scalar_prefetch=0,
            grid=grid,
            in_specs=[
                # Padded activations: index constant along h -> DMA'd once/image.
                pl.BlockSpec((1, Hp, Wp, C), lambda n, h: (n, 0, 0, 0)),
                # Weights / BN params: constant index maps -> fetched once, resident.
                pl.BlockSpec((n_taps, C, Cout), lambda n, h: (0, 0, 0)),
                pl.BlockSpec((4, Cout), lambda n, h: (0, 0)),
                pl.BlockSpec((4, Cout), lambda n, h: (0, 0)),
                pl.BlockSpec((4, Cout, Cout), lambda n, h: (0, 0, 0)),
                pl.BlockSpec((1, Cout), lambda n, h: (0, 0)),
                # Per-image projection bias (pooling branch folded in).
                pl.BlockSpec((1, 1, Cout), lambda n, h: (n, 0, 0)),
            ],
            out_specs=pl.BlockSpec((1, tile_m, Cout), lambda n, h: (n, h, 0)),
            scratch_shapes=[pltpu.VMEM((tile_m, Cout), jnp.float32)],
        ),
        compiler_params=pltpu.CompilerParams(
            dimension_semantics=("parallel", "parallel")),
        cost_estimate=pl.CostEstimate(flops=flops, transcendentals=0,
                                      bytes_accessed=bytes_accessed),
    )(xp, wtap, bscale, bbias, wproj_sp, pscale, bias_img)

    return out.reshape(N, H, W, Cout)


# ---------------------------------------------------------------------------
# Parameters (deterministic) and pure-JAX reference
# ---------------------------------------------------------------------------
def init_aspp_raw_params(key, in_channels, out_channels=256):
    keys = iter(jax.random.split(key, 16))

    def conv_w(kh, kw, cin, cout):
        fan_in = kh * kw * cin
        bound = 1.0 / float(fan_in) ** 0.5
        return jax.random.uniform(next(keys), (kh, kw, cin, cout),
                                  jnp.float32, -bound, bound)

    def bn(c):
        k1, k2, k3, k4 = jax.random.split(next(keys), 4)
        gamma = jax.random.uniform(k1, (c,), jnp.float32, 0.5, 1.5)
        beta = jax.random.uniform(k2, (c,), jnp.float32, -0.5, 0.5)
        mean = 0.1 * jax.random.normal(k3, (c,), jnp.float32)
        var = jax.random.uniform(k4, (c,), jnp.float32, 0.5, 1.5)
        return gamma, beta, mean, var

    raw = {}
    raw["branch0"] = (conv_w(1, 1, in_channels, out_channels),) + bn(out_channels)
    raw["branch1"] = (conv_w(3, 3, in_channels, out_channels),) + bn(out_channels)
    raw["branch2"] = (conv_w(3, 3, in_channels, out_channels),) + bn(out_channels)
    raw["branch3"] = (conv_w(3, 3, in_channels, out_channels),) + bn(out_channels)
    raw["pool"] = (conv_w(1, 1, in_channels, out_channels),) + bn(out_channels)
    raw["project"] = (conv_w(1, 1, 5 * out_channels, out_channels),) + bn(out_channels)
    return raw


def kernel_params_from_raw(raw):
    params = {}
    for name, (w_hwio, gamma, beta, mean, var) in raw.items():
        kh, kw, cin, cout = w_hwio.shape
        w2d = w_hwio.reshape(kh * kw * cin, cout)   # HWIO row order (dy, dx, cin)
        scale, bias = fold_bn(gamma, beta, mean, var)
        params[name] = (w2d, scale, bias)
    return params


def _conv2d_ref(x, w_hwio, dilation=1, padding=0):
    return lax.conv_general_dilated(
        x, w_hwio, window_strides=(1, 1),
        padding=((padding, padding), (padding, padding)),
        rhs_dilation=(dilation, dilation),
        dimension_numbers=("NHWC", "HWIO", "NHWC"),
        precision=lax.Precision.HIGHEST)


def aspp_reference(x_nhwc, raw, dilations):
    N, H, W, _ = x_nhwc.shape

    def bn_relu(y, gamma, beta, mean, var, eps=1e-5):
        y = (y - mean) / jnp.sqrt(var + eps) * gamma + beta
        return jnp.maximum(y, 0.0)

    res = []
    w, g, bt, mu, var = raw["branch0"]
    res.append(bn_relu(_conv2d_ref(x_nhwc, w), g, bt, mu, var))
    for name, d in zip(("branch1", "branch2", "branch3"), dilations):
        w, g, bt, mu, var = raw[name]
        res.append(bn_relu(_conv2d_ref(x_nhwc, w, dilation=d, padding=d),
                           g, bt, mu, var))
    w, g, bt, mu, var = raw["pool"]
    pooled = jnp.mean(x_nhwc, axis=(1, 2), keepdims=True)        # (N,1,1,C)
    p = bn_relu(_conv2d_ref(pooled, w), g, bt, mu, var)           # (N,1,1,256)
    res.append(jnp.broadcast_to(p, (N, H, W, p.shape[-1])))       # bilinear of 1x1 = broadcast
    cat = jnp.concatenate(res, axis=-1)
    w, g, bt, mu, var = raw["project"]
    # TODO(synk): Dropout(0.5) is training-only; inference forward is identity.
    return bn_relu(_conv2d_ref(cat, w), g, bt, mu, var)


if __name__ == "__main__":
    key = jax.random.PRNGKey(0)
    kx, kp = jax.random.split(key)

    # Small shapes consistent with ASPP: NHWC input, 32 in-channels, 16x16 map.
    N, H, W, C_in = 2, 16, 16, 32
    atrous_rates = (2, 4, 6)
    x = jax.random.normal(kx, (N, H, W, C_in), dtype=jnp.float32)

    raw = init_aspp_raw_params(kp, C_in)
    params = kernel_params_from_raw(raw)

    fwd = jax.jit(functools.partial(aspp_forward, dilations=atrous_rates))
    out = jax.block_until_ready(fwd(x, params))

    ref = aspp_reference(x, raw, atrous_rates)
    assert out.shape == (N, H, W, 256), out.shape
    max_err = float(jnp.max(jnp.abs(out - ref)))
    assert jnp.allclose(out, ref, atol=2e-3, rtol=2e-3), max_err

    print("KERNEL_OK")
</pallas_src>

<mosaic_0001>
module attributes {stable_mosaic.version = 11 : i64} {
  func.func @_aspp_fused_kernel(%arg0: i32, %arg1: i32, %arg2: memref<1x28x28x32xf32, #tpu.memory_space<vmem>>, %arg3: memref<28x32x256xf32, #tpu.memory_space<vmem>>, %arg4: memref<4x256xf32, #tpu.memory_space<vmem>>, %arg5: memref<4x256xf32, #tpu.memory_space<vmem>>, %arg6: memref<4x256x256xf32, #tpu.memory_space<vmem>>, %arg7: memref<1x256xf32, #tpu.memory_space<vmem>>, %arg8: memref<1x1x256xf32, #tpu.memory_space<vmem>>, %arg9: memref<1x128x256xf32, #tpu.memory_space<vmem>>, %arg10: memref<128x256xf32, #tpu.memory_space<vmem>>) attributes {dimension_semantics = [#tpu.dimension_semantics<parallel>, #tpu.dimension_semantics<parallel>], iteration_bounds = array<i64: 2, 2>, scalar_prefetch = 0 : i64, scratch_operands = 1 : i64, tpu.core_type = #tpu.core_type<tc>, window_params = [{transform_indices = @transform_0, window_bounds = array<i64: 1, 28, 28, 32>}, {pipeline_mode = #tpu.pipeline_mode<synchronous>, transform_indices = @transform_1, window_bounds = array<i64: 28, 32, 256>}, {pipeline_mode = #tpu.pipeline_mode<synchronous>, transform_indices = @transform_2, window_bounds = array<i64: 4, 256>}, {pipeline_mode = #tpu.pipeline_mode<synchronous>, transform_indices = @transform_3, window_bounds = array<i64: 4, 256>}, {pipeline_mode = #tpu.pipeline_mode<synchronous>, transform_indices = @transform_4, window_bounds = array<i64: 4, 256, 256>}, {pipeline_mode = #tpu.pipeline_mode<synchronous>, transform_indices = @transform_5, window_bounds = array<i64: 1, 256>}, {transform_indices = @transform_6, window_bounds = array<i64: 1, 1, 256>}, {transform_indices = @transform_7, window_bounds = array<i64: 1, 128, 256>}]} {
    %c8_i32 = arith.constant 8 : i32
    %0 = arith.muli %arg1, %c8_i32 : i32
    %1 = tpu.assume_multiple %0, 8 : i32
    %c6_i32 = arith.constant 6 : i32
    %2 = arith.addi %1, %c6_i32 : i32
    %c0 = arith.constant 0 : index
    %3 = arith.index_cast %2 : i32 to index
    %c6 = arith.constant 6 : index
    %c0_0 = arith.constant 0 : index
    %4 = vector.load %arg2[%c0, %3, %c6, %c0_0] : memref<1x28x28x32xf32, #tpu.memory_space<vmem>>, vector<1x8x16x32xf32>
    %5 = vector.shape_cast %4 : vector<1x8x16x32xf32> to vector<8x16x32xf32>
    %6 = vector.shape_cast %5 : vector<8x16x32xf32> to vector<128x32xf32>
    %c0_1 = arith.constant 0 : index
    %c0_2 = arith.constant 0 : index
    %c0_3 = arith.constant 0 : index
    %7 = vector.load %arg3[%c0_1, %c0_2, %c0_3] : memref<28x32x256xf32, #tpu.memory_space<vmem>>, vector<1x32x256xf32>
    %8 = vector.shape_cast %7 : vector<1x32x256xf32> to vector<32x256xf32>
    %cst = arith.constant dense<0.000000e+00> : vector<128x256xf32>
    %9 = tpu.matmul %6, %8, %cst {dimension_numbers = #tpu.dot_dimension_numbers<[1], [0], [0], [1], [0, 0, 1, 1], [], []>} : vector<128x32xf32>, vector<32x256xf32>, vector<128x256xf32> -> vector<128x256xf32>
    %c0_4 = arith.constant 0 : index
    %c0_5 = arith.constant 0 : index
    %10 = vector.load %arg4[%c0_4, %c0_5] : memref<4x256xf32, #tpu.memory_space<vmem>>, vector<1x256xf32>
    %11 = vector.shape_cast %10 : vector<1x256xf32> to vector<256xf32>
    %12 = vector.shape_cast %11 : vector<256xf32> to vector<1x256xf32>
    %13 = vector.broadcast %12 : vector<1x256xf32> to vector<128x256xf32>
    %14 = arith.mulf %9, %13 : vector<128x256xf32>
    %c0_6 = arith.constant 0 : index
    %c0_7 = arith.constant 0 : index
    %15 = vector.load %arg5[%c0_6, %c0_7] : memref<4x256xf32, #tpu.memory_space<vmem>>, vector<1x256xf32>
    %16 = vector.shape_cast %15 : vector<1x256xf32> to vector<256xf32>
    %17 = vector.shape_cast %16 : vector<256xf32> to vector<1x256xf32>
    %18 = vector.broadcast %17 : vector<1x256xf32> to vector<128x256xf32>
    %19 = arith.addf %14, %18 : vector<128x256xf32>
    %cst_8 = arith.constant 0.000000e+00 : f32
    %20 = vector.broadcast %cst_8 : f32 to vector<128x256xf32>
    %21 = arith.maximumf %19, %20 : vector<128x256xf32>
    %c0_9 = arith.constant 0 : index
    %c0_10 = arith.constant 0 : index
    %c0_11 = arith.constant 0 : index
    %22 = vector.load %arg6[%c0_9, %c0_10, %c0_11] : memref<4x256x256xf32, #tpu.memory_space<vmem>>, vector<1x256x256xf32>
    %23 = vector.shape_cast %22 : vector<1x256x256xf32> to vector<256x256xf32>
    %cst_12 = arith.constant dense<0.000000e+00> : vector<128x256xf32>
    %24 = tpu.matmul %21, %23, %cst_12 {dimension_numbers = #tpu.dot_dimension_numbers<[1], [0], [0], [1], [0, 0, 1, 1], [], []>} : vector<128x256xf32>, vector<256x256xf32>, vector<128x256xf32> -> vector<128x256xf32>
    %c0_13 = arith.constant 0 : index
    %c0_14 = arith.constant 0 : index
    %25 = vector.load %arg10[%c0_13, %c0_14] : memref<128x256xf32, #tpu.memory_space<vmem>>, vector<128x256xf32>
    tpu.vector_store %arg10[%c0_13, %c0_14], %24 {strides = array<i32>} : memref<128x256xf32, #tpu.memory_space<vmem>>, vector<128x256xf32>,
    %c4_i32 = arith.constant 4 : i32
    %26 = arith.addi %1, %c4_i32 : i32
    %c0_15 = arith.constant 0 : index
    %27 = arith.index_cast %26 : i32 to index
    %c4 = arith.constant 4 : index
    %c0_16 = arith.constant 0 : index
    %28 = vector.load %arg2[%c0_15, %27, %c4, %c0_16] : memref<1x28x28x32xf32, #tpu.memory_space<vmem>>, vector<1x8x16x32xf32>
    %29 = vector.shape_cast %28 : vector<1x8x16x32xf32> to vector<8x16x32xf32>
    %30 = vector.shape_cast %29 : vector<8x16x32xf32> to vector<128x32xf32>
    %c1 = arith.constant 1 : index
    %c0_17 = arith.constant 0 : index
    %c0_18 = arith.constant 0 : index
    %31 = vector.load %arg3[%c1, %c0_17, %c0_18] : memref<28x32x256xf32, #tpu.memory_space<vmem>>, vector<1x32x256xf32>
    %32 = vector.shape_cast %31 : vector<1x32x256xf32> to vector<32x256xf32>
    %cst_19 = arith.constant dense<0.000000e+00> : vector<128x256xf32>
    %33 = tpu.matmul %30, %32, %cst_19 {dimension_numbers = #tpu.dot_dimension_numbers<[1], [0], [0], [1], [0, 0, 1, 1], [], []>} : vector<128x32xf32>, vector<32x256xf32>, vector<128x256xf32> -> vector<128x256xf32>
    %c4_i32_20 = arith.constant 4 : i32
    %34 = arith.addi %1, %c4_i32_20 : i32
    %c0_21 = arith.constant 0 : index
    %35 = arith.index_cast %34 : i32 to index
    %c6_22 = arith.constant 6 : index
    %c0_23 = arith.constant 0 : index
    %36 = vector.load %arg2[%c0_21, %35, %c6_22, %c0_23] : memref<1x28x28x32xf32, #tpu.memory_space<vmem>>, vector<1x8x16x32xf32>
    %37 = vector.shape_cast %36 : vector<1x8x16x32xf32> to vector<8x16x32xf32>
    %38 = vector.shape_cast %37 : vector<8x16x32xf32> to vector<128x32xf32>
    %c2 = arith.constant 2 : index
    %c0_24 = arith.constant 0 : index
    %c0_25 = arith.constant 0 : index
    %39 = vector.load %arg3[%c2, %c0_24, %c0_25] : memref<28x32x256xf32, #tpu.memory_space<vmem>>, vector<1x32x256xf32>
    %40 = vector.shape_cast %39 : vector<1x32x256xf32> to vector<32x256xf32>
    %cst_26 = arith.constant dense<0.000000e+00> : vector<128x256xf32>
    %41 = tpu.matmul %38, %40, %cst_26 {dimension_numbers = #tpu.dot_dimension_numbers<[1], [0], [0], [1], [0, 0, 1, 1], [], []>} : vector<128x32xf32>, vector<32x256xf32>, vector<128x256xf32> -> vector<128x256xf32>
    %42 = arith.addf %33, %41 : vector<128x256xf32>
    %c4_i32_27 = arith.constant 4 : i32
    %43 = arith.addi %1, %c4_i32_27 : i32
    %c0_28 = arith.constant 0 : index
    %44 = arith.index_cast %43 : i32 to index
    %c8 = arith.constant 8 : index
    %c0_29 = arith.constant 0 : index
    %45 = vector.load %arg2[%c0_28, %44, %c8, %c0_29] : memref<1x28x28x32xf32, #tpu.memory_space<vmem>>, vector<1x8x16x32xf32>
    %46 = vector.shape_cast %45 : vector<1x8x16x32xf32> to vector<8x16x32xf32>
    %47 = vector.shape_cast %46 : vector<8x16x32xf32> to vector<128x32xf32>
    %c3 = arith.constant 3 : index
    %c0_30 = arith.constant 0 : index
    %c0_31 = arith.constant 0 : index
    %48 = vector.load %arg3[%c3, %c0_30, %c0_31] : memref<28x32x256xf32, #tpu.memory_space<vmem>>, vector<1x32x256xf32>
    %49 = vector.shape_cast %48 : vector<1x32x256xf32> to vector<32x256xf32>
    %cst_32 = arith.constant dense<0.000000e+00> : vector<128x256xf32>
    %50 = tpu.matmul %47, %49, %cst_32 {dimension_numbers = #tpu.dot_dimension_numbers<[1], [0], [0], [1], [0, 0, 1, 1], [], []>} : vector<128x32xf32>, vector<32x256xf32>, vector<128x256xf32> -> vector<128x256xf32>
    %51 = arith.addf %42, %50 : vector<128x256xf32>
    %c6_i32_33 = arith.constant 6 : i32
    %52 = arith.addi %1, %c6_i32_33 : i32
    %c0_34 = arith.constant 0 : index
    %53 = arith.index_cast %52 : i32 to index
    %c4_35 = arith.constant 4 : index
    %c0_36 = arith.constant 0 : index
    %54 = vector.load %arg2[%c0_34, %53, %c4_35, %c0_36] : memref<1x28x28x32xf32, #tpu.memory_space<vmem>>, vector<1x8x16x32xf32>
    %55 = vector.shape_cast %54 : vector<1x8x16x32xf32> to vector<8x16x32xf32>
    %56 = vector.shape_cast %55 : vector<8x16x32xf32> to vector<128x32xf32>
    %c4_37 = arith.constant 4 : index
    %c0_38 = arith.constant 0 : index
    %c0_39 = arith.constant 0 : index
    %57 = vector.load %arg3[%c4_37, %c0_38, %c0_39] : memref<28x32x256xf32, #tpu.memory_space<vmem>>, vector<1x32x256xf32>
    %58 = vector.shape_cast %57 : vector<1x32x256xf32> to vector<32x256xf32>
    %cst_40 = arith.constant dense<0.000000e+00> : vector<128x256xf32>
    %59 = tpu.matmul %56, %58, %cst_40 {dimension_numbers = #tpu.dot_dimension_numbers<[1], [0], [0], [1], [0, 0, 1, 1], [], []>} : vector<128x32xf32>, vector<32x256xf32>, vector<128x256xf32> -> vector<128x256xf32>
    %60 = arith.addf %51, %59 : vector<128x256xf32>
    %c6_i32_41 = arith.constant 6 : i32
    %61 = arith.addi %1, %c6_i32_41 : i32
    %c0_42 = arith.constant 0 : index
    %62 = arith.index_cast %61 : i32 to index
    %c6_43 = arith.constant 6 : index
    %c0_44 = arith.constant 0 : index
    %63 = vector.load %arg2[%c0_42, %62, %c6_43, %c0_44] : memref<1x28x28x32xf32, #tpu.memory_space<vmem>>, vector<1x8x16x32xf32>
    %64 = vector.shape_cast %63 : vector<1x8x16x32xf32> to vector<8x16x32xf32>
    %65 = vector.shape_cast %64 : vector<8x16x32xf32> to vector<128x32xf32>
    %c5 = arith.constant 5 : index
    %c0_45 = arith.constant 0 : index
    %c0_46 = arith.constant 0 : index
    %66 = vector.load %arg3[%c5, %c0_45, %c0_46] : memref<28x32x256xf32, #tpu.memory_space<vmem>>, vector<1x32x256xf32>
    %67 = vector.shape_cast %66 : vector<1x32x256xf32> to vector<32x256xf32>
    %cst_47 = arith.constant dense<0.000000e+00> : vector<128x256xf32>
    %68 = tpu.matmul %65, %67, %cst_47 {dimension_numbers = #tpu.dot_dimension_numbers<[1], [0], [0], [1], [0, 0, 1, 1], [], []>} : vector<128x32xf32>, vector<32x256xf32>, vector<128x256xf32> -> vector<128x256xf32>
    %69 = arith.addf %60, %68 : vector<128x256xf32>
    %c6_i32_48 = arith.constant 6 : i32
    %70 = arith.addi %1, %c6_i32_48 : i32
    %c0_49 = arith.constant 0 : index
    %71 = arith.index_cast %70 : i32 to index
    %c8_50 = arith.constant 8 : index
    %c0_51 = arith.constant 0 : index
    %72 = vector.load %arg2[%c0_49, %71, %c8_50, %c0_51] : memref<1x28x28x32xf32, #tpu.memory_space<vmem>>, vector<1x8x16x32xf32>
    %73 = vector.shape_cast %72 : vector<1x8x16x32xf32> to vector<8x16x32xf32>
    %74 = vector.shape_cast %73 : vector<8x16x32xf32> to vector<128x32xf32>
    %c6_52 = arith.constant 6 : index
    %c0_53 = arith.constant 0 : index
    %c0_54 = arith.constant 0 : index
    %75 = vector.load %arg3[%c6_52, %c0_53, %c0_54] : memref<28x32x256xf32, #tpu.memory_space<vmem>>, vector<1x32x256xf32>
    %76 = vector.shape_cast %75 : vector<1x32x256xf32> to vector<32x256xf32>
    %cst_55 = arith.constant dense<0.000000e+00> : vector<128x256xf32>
    %77 = tpu.matmul %74, %76, %cst_55 {dimension_numbers = #tpu.dot_dimension_numbers<[1], [0], [0], [1], [0, 0, 1, 1], [], []>} : vector<128x32xf32>, vector<32x256xf32>, vector<128x256xf32> -> vector<128x256xf32>
    %78 = arith.addf %69, %77 : vector<128x256xf32>
    %c8_i32_56 = arith.constant 8 : i32
    %79 = arith.addi %1, %c8_i32_56 : i32
    %c0_57 = arith.constant 0 : index
    %80 = arith.index_cast %79 : i32 to index
    %c4_58 = arith.constant 4 : index
    %c0_59 = arith.constant 0 : index
    %81 = vector.load %arg2[%c0_57, %80, %c4_58, %c0_59] : memref<1x28x28x32xf32, #tpu.memory_space<vmem>>, vector<1x8x16x32xf32>
    %82 = vector.shape_cast %81 : vector<1x8x16x32xf32> to vector<8x16x32xf32>
    %83 = vector.shape_cast %82 : vector<8x16x32xf32> to vector<128x32xf32>
    %c7 = arith.constant 7 : index
    %c0_60 = arith.constant 0 : index
    %c0_61 = arith.constant 0 : index
    %84 = vector.load %arg3[%c7, %c0_60, %c0_61] : memref<28x32x256xf32, #tpu.memory_space<vmem>>, vector<1x32x256xf32>
    %85 = vector.shape_cast %84 : vector<1x32x256xf32> to vector<32x256xf32>
    %cst_62 = arith.constant dense<0.000000e+00> : vector<128x256xf32>
    %86 = tpu.matmul %83, %85, %cst_62 {dimension_numbers = #tpu.dot_dimension_numbers<[1], [0], [0], [1], [0, 0, 1, 1], [], []>} : vector<128x32xf32>, vector<32x256xf32>, vector<128x256xf32> -> vector<128x256xf32>
    %87 = arith.addf %78, %86 : vector<128x256xf32>
    %c8_i32_63 = arith.constant 8 : i32
    %88 = arith.addi %1, %c8_i32_63 : i32
    %c0_64 = arith.constant 0 : index
    %89 = arith.index_cast %88 : i32 to index
    %c6_65 = arith.constant 6 : index
    %c0_66 = arith.constant 0 : index
    %90 = vector.load %arg2[%c0_64, %89, %c6_65, %c0_66] : memref<1x28x28x32xf32, #tpu.memory_space<vmem>>, vector<1x8x16x32xf32>
    %91 = vector.shape_cast %90 : vector<1x8x16x32xf32> to vector<8x16x32xf32>
    %92 = vector.shape_cast %91 : vector<8x16x32xf32> to vector<128x32xf32>
    %c8_67 = arith.constant 8 : index
    %c0_68 = arith.constant 0 : index
    %c0_69 = arith.constant 0 : index
    %93 = vector.load %arg3[%c8_67, %c0_68, %c0_69] : memref<28x32x256xf32, #tpu.memory_space<vmem>>, vector<1x32x256xf32>
    %94 = vector.shape_cast %93 : vector<1x32x256xf32> to vector<32x256xf32>
    %cst_70 = arith.constant dense<0.000000e+00> : vector<128x256xf32>
    %95 = tpu.matmul %92, %94, %cst_70 {dimension_numbers = #tpu.dot_dimension_numbers<[1], [0], [0], [1], [0, 0, 1, 1], [], []>} : vector<128x32xf32>, vector<32x256xf32>, vector<128x256xf32> -> vector<128x256xf32>
    %96 = arith.addf %87, %95 : vector<128x256xf32>
    %c8_i32_71 = arith.constant 8 : i32
    %97 = arith.addi %1, %c8_i32_71 : i32
    %c0_72 = arith.constant 0 : index
    %98 = arith.index_cast %97 : i32 to index
    %c8_73 = arith.constant 8 : index
    %c0_74 = arith.constant 0 : index
    %99 = vector.load %arg2[%c0_72, %98, %c8_73, %c0_74] : memref<1x28x28x32xf32, #tpu.memory_space<vmem>>, vector<1x8x16x32xf32>
    %100 = vector.shape_cast %99 : vector<1x8x16x32xf32> to vector<8x16x32xf32>
    %101 = vector.shape_cast %100 : vector<8x16x32xf32> to vector<128x32xf32>
    %c9 = arith.constant 9 : index
    %c0_75 = arith.constant 0 : index
    %c0_76 = arith.constant 0 : index
    %102 = vector.load %arg3[%c9, %c0_75, %c0_76] : memref<28x32x256xf32, #tpu.memory_space<vmem>>, vector<1x32x256xf32>
    %103 = vector.shape_cast %102 : vector<1x32x256xf32> to vector<32x256xf32>
    %cst_77 = arith.constant dense<0.000000e+00> : vector<128x256xf32>
    %104 = tpu.matmul %101, %103, %cst_77 {dimension_numbers = #tpu.dot_dimension_numbers<[1], [0], [0], [1], [0, 0, 1, 1], [], []>} : vector<128x32xf32>, vector<32x256xf32>, vector<128x256xf32> -> vector<128x256xf32>
    %105 = arith.addf %96, %104 : vector<128x256xf32>
    %c1_78 = arith.constant 1 : index
    %c0_79 = arith.constant 0 : index
    %106 = vector.load %arg4[%c1_78, %c0_79] : memref<4x256xf32, #tpu.memory_space<vmem>>, vector<1x256xf32>
    %107 = vector.shape_cast %106 : vector<1x256xf32> to vector<256xf32>
    %108 = vector.shape_cast %107 : vector<256xf32> to vector<1x256xf32>
    %109 = vector.broadcast %108 : vector<1x256xf32> to vector<128x256xf32>
    %110 = arith.mulf %105, %109 : vector<128x256xf32>
    %c1_80 = arith.constant 1 : index
    %c0_81 = arith.constant 0 : index
    %111 = vector.load %arg5[%c1_80, %c0_81] : memref<4x256xf32, #tpu.memory_space<vmem>>, vector<1x256xf32>
    %112 = vector.shape_cast %111 : vector<1x256xf32> to vector<256xf32>
    %113 = vector.shape_cast %112 : vector<256xf32> to vector<1x256xf32>
    %114 = vector.broadcast %113 : vector<1x256xf32> to vector<128x256xf32>
    %115 = arith.addf %110, %114 : vector<128x256xf32>
    %cst_82 = arith.constant 0.000000e+00 : f32
    %116 = vector.broadcast %cst_82 : f32 to vector<128x256xf32>
    %117 = arith.maximumf %115, %116 : vector<128x256xf32>
    %c1_83 = arith.constant 1 : index
    %c0_84 = arith.constant 0 : index
    %c0_85 = arith.constant 0 : index
    %118 = vector.load %arg6[%c1_83, %c0_84, %c0_85] : memref<4x256x256xf32, #tpu.memory_space<vmem>>, vector<1x256x256xf32>
    %119 = vector.shape_cast %118 : vector<1x256x256xf32> to vector<256x256xf32>
    %cst_86 = arith.constant dense<0.000000e+00> : vector<128x256xf32>
    %120 = tpu.matmul %117, %119, %cst_86 {dimension_numbers = #tpu.dot_dimension_numbers<[1], [0], [0], [1], [0, 0, 1, 1], [], []>} : vector<128x256xf32>, vector<256x256xf32>, vector<128x256xf32> -> vector<128x256xf32>
    %c0_87 = arith.constant 0 : index
    %c0_88 = arith.constant 0 : index
    %121 = vector.load %arg10[%c0_87, %c0_88] : memref<128x256xf32, #tpu.memory_space<vmem>>, vector<128x256xf32>
    %122 = arith.addf %121, %120 : vector<128x256xf32>
    %c0_89 = arith.constant 0 : index
    %c0_90 = arith.constant 0 : index
    %123 = vector.load %arg10[%c0_89, %c0_90] : memref<128x256xf32, #tpu.memory_space<vmem>>, vector<128x256xf32>
    tpu.vector_store %arg10[%c0_89, %c0_90], %122 {strides = array<i32>} : memref<128x256xf32, #tpu.memory_space<vmem>>, vector<128x256xf32>,
    %c2_i32 = arith.constant 2 : i32
    %124 = arith.addi %1, %c2_i32 : i32
    %c0_91 = arith.constant 0 : index
    %125 = arith.index_cast %124 : i32 to index
    %c2_92 = arith.constant 2 : index
    %c0_93 = arith.constant 0 : index
    %126 = vector.load %arg2[%c0_91, %125, %c2_92, %c0_93] : memref<1x28x28x32xf32, #tpu.memory_space<vmem>>, vector<1x8x16x32xf32>
    %127 = vector.shape_cast %126 : vector<1x8x16x32xf32> to vector<8x16x32xf32>
    %128 = vector.shape_cast %127 : vector<8x16x32xf32> to vector<128x32xf32>
    %c10 = arith.constant 10 : index
    %c0_94 = arith.constant 0 : index
    %c0_95 = arith.constant 0 : index
    %129 = vector.load %arg3[%c10, %c0_94, %c0_95] : memref<28x32x256xf32, #tpu.memory_space<vmem>>, vector<1x32x256xf32>
    %130 = vector.shape_cast %129 : vector<1x32x256xf32> to vector<32x256xf32>
    %cst_96 = arith.constant dense<0.000000e+00> : vector<128x256xf32>
    %131 = tpu.matmul %128, %130, %cst_96 {dimension_numbers = #tpu.dot_dimension_numbers<[1], [0], [0], [1], [0, 0, 1, 1], [], []>} : vector<128x32xf32>, vector<32x256xf32>, vector<128x256xf32> -> vector<128x256xf32>
    %c2_i32_97 = arith.constant 2 : i32
    %132 = arith.addi %1, %c2_i32_97 : i32
    %c0_98 = arith.constant 0 : index
    %133 = arith.index_cast %132 : i32 to index
    %c6_99 = arith.constant 6 : index
    %c0_100 = arith.constant 0 : index
    %134 = vector.load %arg2[%c0_98, %133, %c6_99, %c0_100] : memref<1x28x28x32xf32, #tpu.memory_space<vmem>>, vector<1x8x16x32xf32>
    %135 = vector.shape_cast %134 : vector<1x8x16x32xf32> to vector<8x16x32xf32>
    %136 = vector.shape_cast %135 : vector<8x16x32xf32> to vector<128x32xf32>
    %c11 = arith.constant 11 : index
    %c0_101 = arith.constant 0 : index
    %c0_102 = arith.constant 0 : index
    %137 = vector.load %arg3[%c11, %c0_101, %c0_102] : memref<28x32x256xf32, #tpu.memory_space<vmem>>, vector<1x32x256xf32>
    %138 = vector.shape_cast %137 : vector<1x32x256xf32> to vector<32x256xf32>
    %cst_103 = arith.constant dense<0.000000e+00> : vector<128x256xf32>
    %139 = tpu.matmul %136, %138, %cst_103 {dimension_numbers = #tpu.dot_dimension_numbers<[1], [0], [0], [1], [0, 0, 1, 1], [], []>} : vector<128x32xf32>, vector<32x256xf32>, vector<128x256xf32> -> vector<128x256xf32>
    %140 = arith.addf %131, %139 : vector<128x256xf32>
    %c2_i32_104 = arith.constant 2 : i32
    %141 = arith.addi %1, %c2_i32_104 : i32
    %c0_105 = arith.constant 0 : index
    %142 = arith.index_cast %141 : i32 to index
    %c10_106 = arith.constant 10 : index
    %c0_107 = arith.constant 0 : index
    %143 = vector.load %arg2[%c0_105, %142, %c10_106, %c0_107] : memref<1x28x28x32xf32, #tpu.memory_space<vmem>>, vector<1x8x16x32xf32>
    %144 = vector.shape_cast %143 : vector<1x8x16x32xf32> to vector<8x16x32xf32>
    %145 = vector.shape_cast %144 : vector<8x16x32xf32> to vector<128x32xf32>
    %c12 = arith.constant 12 : index
    %c0_108 = arith.constant 0 : index
    %c0_109 = arith.constant 0 : index
    %146 = vector.load %arg3[%c12, %c0_108, %c0_109] : memref<28x32x256xf32, #tpu.memory_space<vmem>>, vector<1x32x256xf32>
    %147 = vector.shape_cast %146 : vector<1x32x256xf32> to vector<32x256xf32>
    %cst_110 = arith.constant dense<0.000000e+00> : vector<128x256xf32>
    %148 = tpu.matmul %145, %147, %cst_110 {dimension_numbers = #tpu.dot_dimension_numbers<[1], [0], [0], [1], [0, 0, 1, 1], [], []>} : vector<128x32xf32>, vector<32x256xf32>, vector<128x256xf32> -> vector<128x256xf32>
    %149 = arith.addf %140, %148 : vector<128x256xf32>
    %c6_i32_111 = arith.constant 6 : i32
    %150 = arith.addi %1, %c6_i32_111 : i32
    %c0_112 = arith.constant 0 : index
    %151 = arith.index_cast %150 : i32 to index
    %c2_113 = arith.constant 2 : index
    %c0_114 = arith.constant 0 : index
    %152 = vector.load %arg2[%c0_112, %151, %c2_113, %c0_114] : memref<1x28x28x32xf32, #tpu.memory_space<vmem>>, vector<1x8x16x32xf32>
    %153 = vector.shape_cast %152 : vector<1x8x16x32xf32> to vector<8x16x32xf32>
    %154 = vector.shape_cast %153 : vector<8x16x32xf32> to vector<128x32xf32>
    %c13 = arith.constant 13 : index
    %c0_115 = arith.constant 0 : index
    %c0_116 = arith.constant 0 : index
    %155 = vector.load %arg3[%c13, %c0_115, %c0_116] : memref<28x32x256xf32, #tpu.memory_space<vmem>>, vector<1x32x256xf32>
    %156 = vector.shape_cast %155 : vector<1x32x256xf32> to vector<32x256xf32>
    %cst_117 = arith.constant dense<0.000000e+00> : vector<128x256xf32>
    %157 = tpu.matmul %154, %156, %cst_117 {dimension_numbers = #tpu.dot_dimension_numbers<[1], [0], [0], [1], [0, 0, 1, 1], [], []>} : vector<128x32xf32>, vector<32x256xf32>, vector<128x256xf32> -> vector<128x256xf32>
    %158 = arith.addf %149, %157 : vector<128x256xf32>
    %c6_i32_118 = arith.constant 6 : i32
    %159 = arith.addi %1, %c6_i32_118 : i32
    %c0_119 = arith.constant 0 : index
    %160 = arith.index_cast %159 : i32 to index
    %c6_120 = arith.constant 6 : index
    %c0_121 = arith.constant 0 : index
    %161 = vector.load %arg2[%c0_119, %160, %c6_120, %c0_121] : memref<1x28x28x32xf32, #tpu.memory_space<vmem>>, vector<1x8x16x32xf32>
    %162 = vector.shape_cast %161 : vector<1x8x16x32xf32> to vector<8x16x32xf32>
    %163 = vector.shape_cast %162 : vector<8x16x32xf32> to vector<128x32xf32>
    %c14 = arith.constant 14 : index
    %c0_122 = arith.constant 0 : index
    %c0_123 = arith.constant 0 : index
    %164 = vector.load %arg3[%c14, %c0_122, %c0_123] : memref<28x32x256xf32, #tpu.memory_space<vmem>>, vector<1x32x256xf32>
    %165 = vector.shape_cast %164 : vector<1x32x256xf32> to vector<32x256xf32>
    %cst_124 = arith.constant dense<0.000000e+00> : vector<128x256xf32>
    %166 = tpu.matmul %163, %165, %cst_124 {dimension_numbers = #tpu.dot_dimension_numbers<[1], [0], [0], [1], [0, 0, 1, 1], [], []>} : vector<128x32xf32>, vector<32x256xf32>, vector<128x256xf32> -> vector<128x256xf32>
    %167 = arith.addf %158, %166 : vector<128x256xf32>
    %c6_i32_125 = arith.constant 6 : i32
    %168 = arith.addi %1, %c6_i32_125 : i32
    %c0_126 = arith.constant 0 : index
    %169 = arith.index_cast %168 : i32 to index
    %c10_127 = arith.constant 10 : index
    %c0_128 = arith.constant 0 : index
    %170 = vector.load %arg2[%c0_126, %169, %c10_127, %c0_128] : memref<1x28x28x32xf32, #tpu.memory_space<vmem>>, vector<1x8x16x32xf32>
    %171 = vector.shape_cast %170 : vector<1x8x16x32xf32> to vector<8x16x32xf32>
    %172 = vector.shape_cast %171 : vector<8x16x32xf32> to vector<128x32xf32>
    %c15 = arith.constant 15 : index
    %c0_129 = arith.constant 0 : index
    %c0_130 = arith.constant 0 : index
    %173 = vector.load %arg3[%c15, %c0_129, %c0_130] : memref<28x32x256xf32, #tpu.memory_space<vmem>>, vector<1x32x256xf32>
    %174 = vector.shape_cast %173 : vector<1x32x256xf32> to vector<32x256xf32>
    %cst_131 = arith.constant dense<0.000000e+00> : vector<128x256xf32>
    %175 = tpu.matmul %172, %174, %cst_131 {dimension_numbers = #tpu.dot_dimension_numbers<[1], [0], [0], [1], [0, 0, 1, 1], [], []>} : vector<128x32xf32>, vector<32x256xf32>, vector<128x256xf32> -> vector<128x256xf32>
    %176 = arith.addf %167, %175 : vector<128x256xf32>
    %c10_i32 = arith.constant 10 : i32
    %177 = arith.addi %1, %c10_i32 : i32
    %c0_132 = arith.constant 0 : index
    %178 = arith.index_cast %177 : i32 to index
    %c2_133 = arith.constant 2 : index
    %c0_134 = arith.constant 0 : index
    %179 = vector.load %arg2[%c0_132, %178, %c2_133, %c0_134] : memref<1x28x28x32xf32, #tpu.memory_space<vmem>>, vector<1x8x16x32xf32>
    %180 = vector.shape_cast %179 : vector<1x8x16x32xf32> to vector<8x16x32xf32>
    %181 = vector.shape_cast %180 : vector<8x16x32xf32> to vector<128x32xf32>
    %c16 = arith.constant 16 : index
    %c0_135 = arith.constant 0 : index
    %c0_136 = arith.constant 0 : index
    %182 = vector.load %arg3[%c16, %c0_135, %c0_136] : memref<28x32x256xf32, #tpu.memory_space<vmem>>, vector<1x32x256xf32>
    %183 = vector.shape_cast %182 : vector<1x32x256xf32> to vector<32x256xf32>
    %cst_137 = arith.constant dense<0.000000e+00> : vector<128x256xf32>
    %184 = tpu.matmul %181, %183, %cst_137 {dimension_numbers = #tpu.dot_dimension_numbers<[1], [0], [0], [1], [0, 0, 1, 1], [], []>} : vector<128x32xf32>, vector<32x256xf32>, vector<128x256xf32> -> vector<128x256xf32>
    %185 = arith.addf %176, %184 : vector<128x256xf32>
    %c10_i32_138 = arith.constant 10 : i32
    %186 = arith.addi %1, %c10_i32_138 : i32
    %c0_139 = arith.constant 0 : index
    %187 = arith.index_cast %186 : i32 to index
    %c6_140 = arith.constant 6 : index
    %c0_141 = arith.constant 0 : index
    %188 = vector.load %arg2[%c0_139, %187, %c6_140, %c0_141] : memref<1x28x28x32xf32, #tpu.memory_space<vmem>>, vector<1x8x16x32xf32>
    %189 = vector.shape_cast %188 : vector<1x8x16x32xf32> to vector<8x16x32xf32>
    %190 = vector.shape_cast %189 : vector<8x16x32xf32> to vector<128x32xf32>
    %c17 = arith.constant 17 : index
    %c0_142 = arith.constant 0 : index
    %c0_143 = arith.constant 0 : index
    %191 = vector.load %arg3[%c17, %c0_142, %c0_143] : memref<28x32x256xf32, #tpu.memory_space<vmem>>, vector<1x32x256xf32>
    %192 = vector.shape_cast %191 : vector<1x32x256xf32> to vector<32x256xf32>
    %cst_144 = arith.constant dense<0.000000e+00> : vector<128x256xf32>
    %193 = tpu.matmul %190, %192, %cst_144 {dimension_numbers = #tpu.dot_dimension_numbers<[1], [0], [0], [1], [0, 0, 1, 1], [], []>} : vector<128x32xf32>, vector<32x256xf32>, vector<128x256xf32> -> vector<128x256xf32>
    %194 = arith.addf %185, %193 : vector<128x256xf32>
    %c10_i32_145 = arith.constant 10 : i32
    %195 = arith.addi %1, %c10_i32_145 : i32
    %c0_146 = arith.constant 0 : index
    %196 = arith.index_cast %195 : i32 to index
    %c10_147 = arith.constant 10 : index
    %c0_148 = arith.constant 0 : index
    %197 = vector.load %arg2[%c0_146, %196, %c10_147, %c0_148] : memref<1x28x28x32xf32, #tpu.memory_space<vmem>>, vector<1x8x16x32xf32>
    %198 = vector.shape_cast %197 : vector<1x8x16x32xf32> to vector<8x16x32xf32>
    %199 = vector.shape_cast %198 : vector<8x16x32xf32> to vector<128x32xf32>
    %c18 = arith.constant 18 : index
    %c0_149 = arith.constant 0 : index
    %c0_150 = arith.constant 0 : index
    %200 = vector.load %arg3[%c18, %c0_149, %c0_150] : memref<28x32x256xf32, #tpu.memory_space<vmem>>, vector<1x32x256xf32>
    %201 = vector.shape_cast %200 : vector<1x32x256xf32> to vector<32x256xf32>
    %cst_151 = arith.constant dense<0.000000e+00> : vector<128x256xf32>
    %202 = tpu.matmul %199, %201, %cst_151 {dimension_numbers = #tpu.dot_dimension_numbers<[1], [0], [0], [1], [0, 0, 1, 1], [], []>} : vector<128x32xf32>, vector<32x256xf32>, vector<128x256xf32> -> vector<128x256xf32>
    %203 = arith.addf %194, %202 : vector<128x256xf32>
    %c2_152 = arith.constant 2 : index
    %c0_153 = arith.constant 0 : index
    %204 = vector.load %arg4[%c2_152, %c0_153] : memref<4x256xf32, #tpu.memory_space<vmem>>, vector<1x256xf32>
    %205 = vector.shape_cast %204 : vector<1x256xf32> to vector<256xf32>
    %206 = vector.shape_cast %205 : vector<256xf32> to vector<1x256xf32>
    %207 = vector.broadcast %206 : vector<1x256xf32> to vector<128x256xf32>
    %208 = arith.mulf %203, %207 : vector<128x256xf32>
    %c2_154 = arith.constant 2 : index
    %c0_155 = arith.constant 0 : index
    %209 = vector.load %arg5[%c2_154, %c0_155] : memref<4x256xf32, #tpu.memory_space<vmem>>, vector<1x256xf32>
    %210 = vector.shape_cast %209 : vector<1x256xf32> to vector<256xf32>
    %211 = vector.shape_cast %210 : vector<256xf32> to vector<1x256xf32>
    %212 = vector.broadcast %211 : vector<1x256xf32> to vector<128x256xf32>
    %213 = arith.addf %208, %212 : vector<128x256xf32>
    %cst_156 = arith.constant 0.000000e+00 : f32
    %214 = vector.broadcast %cst_156 : f32 to vector<128x256xf32>
    %215 = arith.maximumf %213, %214 : vector<128x256xf32>
    %c2_157 = arith.constant 2 : index
    %c0_158 = arith.constant 0 : index
    %c0_159 = arith.constant 0 : index
    %216 = vector.load %arg6[%c2_157, %c0_158, %c0_159] : memref<4x256x256xf32, #tpu.memory_space<vmem>>, vector<1x256x256xf32>
    %217 = vector.shape_cast %216 : vector<1x256x256xf32> to vector<256x256xf32>
    %cst_160 = arith.constant dense<0.000000e+00> : vector<128x256xf32>
    %218 = tpu.matmul %215, %217, %cst_160 {dimension_numbers = #tpu.dot_dimension_numbers<[1], [0], [0], [1], [0, 0, 1, 1], [], []>} : vector<128x256xf32>, vector<256x256xf32>, vector<128x256xf32> -> vector<128x256xf32>
    %c0_161 = arith.constant 0 : index
    %c0_162 = arith.constant 0 : index
    %219 = vector.load %arg10[%c0_161, %c0_162] : memref<128x256xf32, #tpu.memory_space<vmem>>, vector<128x256xf32>
    %220 = arith.addf %219, %218 : vector<128x256xf32>
    %c0_163 = arith.constant 0 : index
    %c0_164 = arith.constant 0 : index
    %221 = vector.load %arg10[%c0_163, %c0_164] : memref<128x256xf32, #tpu.memory_space<vmem>>, vector<128x256xf32>
    tpu.vector_store %arg10[%c0_163, %c0_164], %220 {strides = array<i32>} : memref<128x256xf32, #tpu.memory_space<vmem>>, vector<128x256xf32>,
    %c0_i32 = arith.constant 0 : i32
    %222 = arith.addi %1, %c0_i32 : i32
    %c0_165 = arith.constant 0 : index
    %223 = arith.index_cast %222 : i32 to index
    %c0_166 = arith.constant 0 : index
    %c0_167 = arith.constant 0 : index
    %224 = vector.load %arg2[%c0_165, %223, %c0_166, %c0_167] : memref<1x28x28x32xf32, #tpu.memory_space<vmem>>, vector<1x8x16x32xf32>
    %225 = vector.shape_cast %224 : vector<1x8x16x32xf32> to vector<8x16x32xf32>
    %226 = vector.shape_cast %225 : vector<8x16x32xf32> to vector<128x32xf32>
    %c19 = arith.constant 19 : index
    %c0_168 = arith.constant 0 : index
    %c0_169 = arith.constant 0 : index
    %227 = vector.load %arg3[%c19, %c0_168, %c0_169] : memref<28x32x256xf32, #tpu.memory_space<vmem>>, vector<1x32x256xf32>
    %228 = vector.shape_cast %227 : vector<1x32x256xf32> to vector<32x256xf32>
    %cst_170 = arith.constant dense<0.000000e+00> : vector<128x256xf32>
    %229 = tpu.matmul %226, %228, %cst_170 {dimension_numbers = #tpu.dot_dimension_numbers<[1], [0], [0], [1], [0, 0, 1, 1], [], []>} : vector<128x32xf32>, vector<32x256xf32>, vector<128x256xf32> -> vector<128x256xf32>
    %c0_i32_171 = arith.constant 0 : i32
    %230 = arith.addi %1, %c0_i32_171 : i32
    %c0_172 = arith.constant 0 : index
    %231 = arith.index_cast %230 : i32 to index
    %c6_173 = arith.constant 6 : index
    %c0_174 = arith.constant 0 : index
    %232 = vector.load %arg2[%c0_172, %231, %c6_173, %c0_174] : memref<1x28x28x32xf32, #tpu.memory_space<vmem>>, vector<1x8x16x32xf32>
    %233 = vector.shape_cast %232 : vector<1x8x16x32xf32> to vector<8x16x32xf32>
    %234 = vector.shape_cast %233 : vector<8x16x32xf32> to vector<128x32xf32>
    %c20 = arith.constant 20 : index
    %c0_175 = arith.constant 0 : index
    %c0_176 = arith.constant 0 : index
    %235 = vector.load %arg3[%c20, %c0_175, %c0_176] : memref<28x32x256xf32, #tpu.memory_space<vmem>>, vector<1x32x256xf32>
    %236 = vector.shape_cast %235 : vector<1x32x256xf32> to vector<32x256xf32>
    %cst_177 = arith.constant dense<0.000000e+00> : vector<128x256xf32>
    %237 = tpu.matmul %234, %236, %cst_177 {dimension_numbers = #tpu.dot_dimension_numbers<[1], [0], [0], [1], [0, 0, 1, 1], [], []>} : vector<128x32xf32>, vector<32x256xf32>, vector<128x256xf32> -> vector<128x256xf32>
    %238 = arith.addf %229, %237 : vector<128x256xf32>
    %c0_i32_178 = arith.constant 0 : i32
    %239 = arith.addi %1, %c0_i32_178 : i32
    %c0_179 = arith.constant 0 : index
    %240 = arith.index_cast %239 : i32 to index
    %c12_180 = arith.constant 12 : index
    %c0_181 = arith.constant 0 : index
    %241 = vector.load %arg2[%c0_179, %240, %c12_180, %c0_181] : memref<1x28x28x32xf32, #tpu.memory_space<vmem>>, vector<1x8x16x32xf32>
    %242 = vector.shape_cast %241 : vector<1x8x16x32xf32> to vector<8x16x32xf32>
    %243 = vector.shape_cast %242 : vector<8x16x32xf32> to vector<128x32xf32>
    %c21 = arith.constant 21 : index
    %c0_182 = arith.constant 0 : index
    %c0_183 = arith.constant 0 : index
    %244 = vector.load %arg3[%c21, %c0_182, %c0_183] : memref<28x32x256xf32, #tpu.memory_space<vmem>>, vector<1x32x256xf32>
    %245 = vector.shape_cast %244 : vector<1x32x256xf32> to vector<32x256xf32>
    %cst_184 = arith.constant dense<0.000000e+00> : vector<128x256xf32>
    %246 = tpu.matmul %243, %245, %cst_184 {dimension_numbers = #tpu.dot_dimension_numbers<[1], [0], [0], [1], [0, 0, 1, 1], [], []>} : vector<128x32xf32>, vector<32x256xf32>, vector<128x256xf32> -> vector<128x256xf32>
    %247 = arith.addf %238, %246 : vector<128x256xf32>
    %c6_i32_185 = arith.constant 6 : i32
    %248 = arith.addi %1, %c6_i32_185 : i32
    %c0_186 = arith.constant 0 : index
    %249 = arith.index_cast %248 : i32 to index
    %c0_187 = arith.constant 0 : index
    %c0_188 = arith.constant 0 : index
    %250 = vector.load %arg2[%c0_186, %249, %c0_187, %c0_188] : memref<1x28x28x32xf32, #tpu.memory_space<vmem>>, vector<1x8x16x32xf32>
    %251 = vector.shape_cast %250 : vector<1x8x16x32xf32> to vector<8x16x32xf32>
    %252 = vector.shape_cast %251 : vector<8x16x32xf32> to vector<128x32xf32>
    %c22 = arith.constant 22 : index
    %c0_189 = arith.constant 0 : index
    %c0_190 = arith.constant 0 : index
    %253 = vector.load %arg3[%c22, %c0_189, %c0_190] : memref<28x32x256xf32, #tpu.memory_space<vmem>>, vector<1x32x256xf32>
    %254 = vector.shape_cast %253 : vector<1x32x256xf32> to vector<32x256xf32>
    %cst_191 = arith.constant dense<0.000000e+00> : vector<128x256xf32>
    %255 = tpu.matmul %252, %254, %cst_191 {dimension_numbers = #tpu.dot_dimension_numbers<[1], [0], [0], [1], [0, 0, 1, 1], [], []>} : vector<128x32xf32>, vector<32x256xf32>, vector<128x256xf32> -> vector<128x256xf32>
    %256 = arith.addf %247, %255 : vector<128x256xf32>
    %c6_i32_192 = arith.constant 6 : i32
    %257 = arith.addi %1, %c6_i32_192 : i32
    %c0_193 = arith.constant 0 : index
    %258 = arith.index_cast %257 : i32 to index
    %c6_194 = arith.constant 6 : index
    %c0_195 = arith.constant 0 : index
    %259 = vector.load %arg2[%c0_193, %258, %c6_194, %c0_195] : memref<1x28x28x32xf32, #tpu.memory_space<vmem>>, vector<1x8x16x32xf32>
    %260 = vector.shape_cast %259 : vector<1x8x16x32xf32> to vector<8x16x32xf32>
    %261 = vector.shape_cast %260 : vector<8x16x32xf32> to vector<128x32xf32>
    %c23 = arith.constant 23 : index
    %c0_196 = arith.constant 0 : index
    %c0_197 = arith.constant 0 : index
    %262 = vector.load %arg3[%c23, %c0_196, %c0_197] : memref<28x32x256xf32, #tpu.memory_space<vmem>>, vector<1x32x256xf32>
    %263 = vector.shape_cast %262 : vector<1x32x256xf32> to vector<32x256xf32>
    %cst_198 = arith.constant dense<0.000000e+00> : vector<128x256xf32>
    %264 = tpu.matmul %261, %263, %cst_198 {dimension_numbers = #tpu.dot_dimension_numbers<[1], [0], [0], [1], [0, 0, 1, 1], [], []>} : vector<128x32xf32>, vector<32x256xf32>, vector<128x256xf32> -> vector<128x256xf32>
    %265 = arith.addf %256, %264 : vector<128x256xf32>
    %c6_i32_199 = arith.constant 6 : i32
    %266 = arith.addi %1, %c6_i32_199 : i32
    %c0_200 = arith.constant 0 : index
    %267 = arith.index_cast %266 : i32 to index
    %c12_201 = arith.constant 12 : index
    %c0_202 = arith.constant 0 : index
    %268 = vector.load %arg2[%c0_200, %267, %c12_201, %c0_202] : memref<1x28x28x32xf32, #tpu.memory_space<vmem>>, vector<1x8x16x32xf32>
    %269 = vector.shape_cast %268 : vector<1x8x16x32xf32> to vector<8x16x32xf32>
    %270 = vector.shape_cast %269 : vector<8x16x32xf32> to vector<128x32xf32>
    %c24 = arith.constant 24 : index
    %c0_203 = arith.constant 0 : index
    %c0_204 = arith.constant 0 : index
    %271 = vector.load %arg3[%c24, %c0_203, %c0_204] : memref<28x32x256xf32, #tpu.memory_space<vmem>>, vector<1x32x256xf32>
    %272 = vector.shape_cast %271 : vector<1x32x256xf32> to vector<32x256xf32>
    %cst_205 = arith.constant dense<0.000000e+00> : vector<128x256xf32>
    %273 = tpu.matmul %270, %272, %cst_205 {dimension_numbers = #tpu.dot_dimension_numbers<[1], [0], [0], [1], [0, 0, 1, 1], [], []>} : vector<128x32xf32>, vector<32x256xf32>, vector<128x256xf32> -> vector<128x256xf32>
    %274 = arith.addf %265, %273 : vector<128x256xf32>
    %c12_i32 = arith.constant 12 : i32
    %275 = arith.addi %1, %c12_i32 : i32
    %c0_206 = arith.constant 0 : index
    %276 = arith.index_cast %275 : i32 to index
    %c0_207 = arith.constant 0 : index
    %c0_208 = arith.constant 0 : index
    %277 = vector.load %arg2[%c0_206, %276, %c0_207, %c0_208] : memref<1x28x28x32xf32, #tpu.memory_space<vmem>>, vector<1x8x16x32xf32>
    %278 = vector.shape_cast %277 : vector<1x8x16x32xf32> to vector<8x16x32xf32>
    %279 = vector.shape_cast %278 : vector<8x16x32xf32> to vector<128x32xf32>
    %c25 = arith.constant 25 : index
    %c0_209 = arith.constant 0 : index
    %c0_210 = arith.constant 0 : index
    %280 = vector.load %arg3[%c25, %c0_209, %c0_210] : memref<28x32x256xf32, #tpu.memory_space<vmem>>, vector<1x32x256xf32>
    %281 = vector.shape_cast %280 : vector<1x32x256xf32> to vector<32x256xf32>
    %cst_211 = arith.constant dense<0.000000e+00> : vector<128x256xf32>
    %282 = tpu.matmul %279, %281, %cst_211 {dimension_numbers = #tpu.dot_dimension_numbers<[1], [0], [0], [1], [0, 0, 1, 1], [], []>} : vector<128x32xf32>, vector<32x256xf32>, vector<128x256xf32> -> vector<128x256xf32>
    %283 = arith.addf %274, %282 : vector<128x256xf32>
    %c12_i32_212 = arith.constant 12 : i32
    %284 = arith.addi %1, %c12_i32_212 : i32
    %c0_213 = arith.constant 0 : index
    %285 = arith.index_cast %284 : i32 to index
    %c6_214 = arith.constant 6 : index
    %c0_215 = arith.constant 0 : index
    %286 = vector.load %arg2[%c0_213, %285, %c6_214, %c0_215] : memref<1x28x28x32xf32, #tpu.memory_space<vmem>>, vector<1x8x16x32xf32>
    %287 = vector.shape_cast %286 : vector<1x8x16x32xf32> to vector<8x16x32xf32>
    %288 = vector.shape_cast %287 : vector<8x16x32xf32> to vector<128x32xf32>
    %c26 = arith.constant 26 : index
    %c0_216 = arith.constant 0 : index
    %c0_217 = arith.constant 0 : index
    %289 = vector.load %arg3[%c26, %c0_216, %c0_217] : memref<28x32x256xf32, #tpu.memory_space<vmem>>, vector<1x32x256xf32>
    %290 = vector.shape_cast %289 : vector<1x32x256xf32> to vector<32x256xf32>
    %cst_218 = arith.constant dense<0.000000e+00> : vector<128x256xf32>
    %291 = tpu.matmul %288, %290, %cst_218 {dimension_numbers = #tpu.dot_dimension_numbers<[1], [0], [0], [1], [0, 0, 1, 1], [], []>} : vector<128x32xf32>, vector<32x256xf32>, vector<128x256xf32> -> vector<128x256xf32>
    %292 = arith.addf %283, %291 : vector<128x256xf32>
    %c12_i32_219 = arith.constant 12 : i32
    %293 = arith.addi %1, %c12_i32_219 : i32
    %c0_220 = arith.constant 0 : index
    %294 = arith.index_cast %293 : i32 to index
    %c12_221 = arith.constant 12 : index
    %c0_222 = arith.constant 0 : index
    %295 = vector.load %arg2[%c0_220, %294, %c12_221, %c0_222] : memref<1x28x28x32xf32, #tpu.memory_space<vmem>>, vector<1x8x16x32xf32>
    %296 = vector.shape_cast %295 : vector<1x8x16x32xf32> to vector<8x16x32xf32>
    %297 = vector.shape_cast %296 : vector<8x16x32xf32> to vector<128x32xf32>
    %c27 = arith.constant 27 : index
    %c0_223 = arith.constant 0 : index
    %c0_224 = arith.constant 0 : index
    %298 = vector.load %arg3[%c27, %c0_223, %c0_224] : memref<28x32x256xf32, #tpu.memory_space<vmem>>, vector<1x32x256xf32>
    %299 = vector.shape_cast %298 : vector<1x32x256xf32> to vector<32x256xf32>
    %cst_225 = arith.constant dense<0.000000e+00> : vector<128x256xf32>
    %300 = tpu.matmul %297, %299, %cst_225 {dimension_numbers = #tpu.dot_dimension_numbers<[1], [0], [0], [1], [0, 0, 1, 1], [], []>} : vector<128x32xf32>, vector<32x256xf32>, vector<128x256xf32> -> vector<128x256xf32>
    %301 = arith.addf %292, %300 : vector<128x256xf32>
    %c3_226 = arith.constant 3 : index
    %c0_227 = arith.constant 0 : index
    %302 = vector.load %arg4[%c3_226, %c0_227] : memref<4x256xf32, #tpu.memory_space<vmem>>, vector<1x256xf32>
    %303 = vector.shape_cast %302 : vector<1x256xf32> to vector<256xf32>
    %304 = vector.shape_cast %303 : vector<256xf32> to vector<1x256xf32>
    %305 = vector.broadcast %304 : vector<1x256xf32> to vector<128x256xf32>
    %306 = arith.mulf %301, %305 : vector<128x256xf32>
    %c3_228 = arith.constant 3 : index
    %c0_229 = arith.constant 0 : index
    %307 = vector.load %arg5[%c3_228, %c0_229] : memref<4x256xf32, #tpu.memory_space<vmem>>, vector<1x256xf32>
    %308 = vector.shape_cast %307 : vector<1x256xf32> to vector<256xf32>
    %309 = vector.shape_cast %308 : vector<256xf32> to vector<1x256xf32>
    %310 = vector.broadcast %309 : vector<1x256xf32> to vector<128x256xf32>
    %311 = arith.addf %306, %310 : vector<128x256xf32>
    %cst_230 = arith.constant 0.000000e+00 : f32
    %312 = vector.broadcast %cst_230 : f32 to vector<128x256xf32>
    %313 = arith.maximumf %311, %312 : vector<128x256xf32>
    %c3_231 = arith.constant 3 : index
    %c0_232 = arith.constant 0 : index
    %c0_233 = arith.constant 0 : index
    %314 = vector.load %arg6[%c3_231, %c0_232, %c0_233] : memref<4x256x256xf32, #tpu.memory_space<vmem>>, vector<1x256x256xf32>
    %315 = vector.shape_cast %314 : vector<1x256x256xf32> to vector<256x256xf32>
    %cst_234 = arith.constant dense<0.000000e+00> : vector<128x256xf32>
    %316 = tpu.matmul %313, %315, %cst_234 {dimension_numbers = #tpu.dot_dimension_numbers<[1], [0], [0], [1], [0, 0, 1, 1], [], []>} : vector<128x256xf32>, vector<256x256xf32>, vector<128x256xf32> -> vector<128x256xf32>
    %c0_235 = arith.constant 0 : index
    %c0_236 = arith.constant 0 : index
    %317 = vector.load %arg10[%c0_235, %c0_236] : memref<128x256xf32, #tpu.memory_space<vmem>>, vector<128x256xf32>
    %318 = arith.addf %317, %316 : vector<128x256xf32>
    %c0_237 = arith.constant 0 : index
    %c0_238 = arith.constant 0 : index
    %319 = vector.load %arg10[%c0_237, %c0_238] : memref<128x256xf32, #tpu.memory_space<vmem>>, vector<128x256xf32>
    tpu.vector_store %arg10[%c0_237, %c0_238], %318 {strides = array<i32>} : memref<128x256xf32, #tpu.memory_space<vmem>>, vector<128x256xf32>,
    %c0_239 = arith.constant 0 : index
    %c0_240 = arith.constant 0 : index
    %320 = vector.load %arg10[%c0_239, %c0_240] : memref<128x256xf32, #tpu.memory_space<vmem>>, vector<128x256xf32>
    %c0_241 = arith.constant 0 : index
    %c0_242 = arith.constant 0 : index
    %321 = vector.load %arg7[%c0_241, %c0_242] : memref<1x256xf32, #tpu.memory_space<vmem>>, vector<1x256xf32>
    %322 = vector.shape_cast %321 : vector<1x256xf32> to vector<256xf32>
    %323 = vector.shape_cast %322 : vector<256xf32> to vector<1x256xf32>
    %324 = vector.broadcast %323 : vector<1x256xf32> to vector<128x256xf32>
    %325 = arith.mulf %320, %324 : vector<128x256xf32>
    %c0_243 = arith.constant 0 : index
    %c0_244 = arith.constant 0 : index
    %c0_245 = arith.constant 0 : index
    %326 = vector.load %arg8[%c0_243, %c0_244, %c0_245] : memref<1x1x256xf32, #tpu.memory_space<vmem>>, vector<1x1x256xf32>
    %327 = vector.shape_cast %326 : vector<1x1x256xf32> to vector<256xf32>
    %328 = vector.shape_cast %327 : vector<256xf32> to vector<1x256xf32>
    %329 = vector.broadcast %328 : vector<1x256xf32> to vector<128x256xf32>
    %330 = arith.addf %325, %329 : vector<128x256xf32>
    %cst_246 = arith.constant 0.000000e+00 : f32
    %331 = vector.broadcast %cst_246 : f32 to vector<128x256xf32>
    %332 = arith.maximumf %330, %331 : vector<128x256xf32>
    %c0_247 = arith.constant 0 : index
    %c0_248 = arith.constant 0 : index
    %c0_249 = arith.constant 0 : index
    %333 = vector.load %arg9[%c0_247, %c0_248, %c0_249] : memref<1x128x256xf32, #tpu.memory_space<vmem>>, vector<1x128x256xf32>
    %334 = vector.shape_cast %333 : vector<1x128x256xf32> to vector<128x256xf32>
    %335 = vector.shape_cast %332 : vector<128x256xf32> to vector<1x128x256xf32>
    tpu.vector_store %arg9[%c0_247, %c0_248, %c0_249], %335 {strides = array<i32>} : memref<1x128x256xf32, #tpu.memory_space<vmem>>, vector<1x128x256xf32>,
    return
  }
  func.func @transform_0(%arg0: i32, %arg1: i32) -> (i32, i32, i32, i32) {
    %c0_i32 = arith.constant 0 : i32
    %c0_i32_0 = arith.constant 0 : i32
    %c0_i32_1 = arith.constant 0 : i32
    %c0_i32_2 = arith.constant 0 : i32
    return %arg0, %c0_i32, %c0_i32_0, %c0_i32_1 : i32, i32, i32, i32
  }
  func.func @transform_1(%arg0: i32, %arg1: i32) -> (i32, i32, i32) {
    %c0_i32 = arith.constant 0 : i32
    %c0_i32_0 = arith.constant 0 : i32
    %c0_i32_1 = arith.constant 0 : i32
    %c0_i32_2 = arith.constant 0 : i32
    return %c0_i32, %c0_i32_0, %c0_i32_1 : i32, i32, i32
  }
  func.func @transform_2(%arg0: i32, %arg1: i32) -> (i32, i32) {
    %c0_i32 = arith.constant 0 : i32
    %c0_i32_0 = arith.constant 0 : i32
    %c0_i32_1 = arith.constant 0 : i32
    return %c0_i32, %c0_i32_0 : i32, i32
  }
  func.func @transform_3(%arg0: i32, %arg1: i32) -> (i32, i32) {
    %c0_i32 = arith.constant 0 : i32
    %c0_i32_0 = arith.constant 0 : i32
    %c0_i32_1 = arith.constant 0 : i32
    return %c0_i32, %c0_i32_0 : i32, i32
  }
  func.func @transform_4(%arg0: i32, %arg1: i32) -> (i32, i32, i32) {
    %c0_i32 = arith.constant 0 : i32
    %c0_i32_0 = arith.constant 0 : i32
    %c0_i32_1 = arith.constant 0 : i32
    %c0_i32_2 = arith.constant 0 : i32
    return %c0_i32, %c0_i32_0, %c0_i32_1 : i32, i32, i32
  }
  func.func @transform_5(%arg0: i32, %arg1: i32) -> (i32, i32) {
    %c0_i32 = arith.constant 0 : i32
    %c0_i32_0 = arith.constant 0 : i32
    %c0_i32_1 = arith.constant 0 : i32
    return %c0_i32, %c0_i32_0 : i32, i32
  }
  func.func @transform_6(%arg0: i32, %arg1: i32) -> (i32, i32, i32) {
    %c0_i32 = arith.constant 0 : i32
    %c0_i32_0 = arith.constant 0 : i32
    %c0_i32_1 = arith.constant 0 : i32
    return %arg0, %c0_i32, %c0_i32_0 : i32, i32, i32
  }
  func.func @transform_7(%arg0: i32, %arg1: i32) -> (i32, i32, i32) {
    %c0_i32 = arith.constant 0 : i32
    %c0_i32_0 = arith.constant 0 : i32
    return %arg0, %arg1, %c0_i32 : i32, i32, i32
  }
}

</mosaic_0001>

<llo_original>
// kernel: aspp_forward.1
$region0: #{aspp_forward.1}
  #allocation0 [shape = 'u32[]', space=smem, size = 0x4, offset = 0x4, fixed_abs, tag = 'smem constant byte address 0x4 - core index']
  #allocation1 [shape = 'u32[144,128]{1,0:T(1,128)}', space=vmem, size = 0x12000, scoped, tag = 'internal scratch']
  #allocation2 [shape = 'f32[128,256]{1,0:T(8,128)}', space=vmem, size = 0x20000, scoped, tag = 'scratch operand']
  %s0 = inlined_call_operand.vmem [shape: f32[2,28,28,32], index: 0, kind: input, shape index: {}]
  %s1 = inlined_call_operand.vmem [shape: f32[28,32,256], index: 1, kind: input, shape index: {}]
  %s2 = inlined_call_operand.vmem [shape: f32[4,256], index: 2, kind: input, shape index: {}]
  %s3 = inlined_call_operand.vmem [shape: f32[4,256], index: 3, kind: input, shape index: {}]
  %s4 = inlined_call_operand.vmem [shape: f32[4,256,256], index: 4, kind: input, shape index: {}]
  %s5 = inlined_call_operand.vmem [shape: f32[1,256], index: 5, kind: input, shape index: {}]
  %s6 = inlined_call_operand.vmem [shape: f32[2,1,256], index: 6, kind: input, shape index: {}]
  %s7 = inlined_call_operand.hbm [shape: f32[2,256,256], index: 7, kind: output, shape index: {}]
  %s8 = sld [smem:[#allocation0]]
  $region61: #{aspp_forward.1} parent=0
    _
  %s10 = ssub.s32 1, %s8
  %s11 = scalar_select 0, %s10, %s8
  $region1: #{aspp_forward.1} parent=0
    #allocation3 [shape = 'u8[262144]{0}', space=vmem, size = 0x40000, scoped, tag = 'output window, operand 0']
    #allocation4 [shape = 's32[2]{0}', space=sflag, size = 0x8, scoped, tag = 'scoped memory for aspp_forward.1']
    %12 = vsyncpa [#allocation4], 0
    %s13 = scalar_lea.sflag [#allocation4], 1
    %14 = vsyncpa %s13, 0
    loop: start=0, step=1, limit=6
    $region2: #{aspp_forward.1} parent=1 // loop_pre_header
      _
    $region3: #{aspp_forward.1} parent=1 // loop_header
      %s16 = sphi 0, %s20
      %p17 = scmp.ge.s32.totalorder %s16, 6
      %s23 = sphi 0, %s35
      %s24 = sphi 0, %s31
      %s25 = sphi 0, %s23
      %s26 = sphi 0, %s24
      %s27 = sphi 0, %s25
      %s28 = sphi 0, %s26
      %s38 = sphi 0, %s40
      %s41 = sphi 0, %s38
      %s42 = sphi 0, %s41
      %s58 = sphi 0, %s42
      %s62 = sphi 0, %s62
      %s64 = sphi 0, %s62
      %s65 = sphi 0, %s64
      %s79 = sphi 0, %s65
      %s83 = sphi 0, %s83
      %s85 = sphi 0, %s83
      %s86 = sphi 0, %s85
      %s100 = sphi 0, %s86
      %s104 = sphi 0, %s104
      %s106 = sphi 0, %s104
      %s107 = sphi 0, %s106
      %s121 = sphi 0, %s107
      %s125 = sphi 0, %s125
      %s127 = sphi 0, %s125
      %s128 = sphi 0, %s127
      %s142 = sphi 0, %s128
      %s146 = sphi 0, %s146
      %s148 = sphi 0, %s146
      %s149 = sphi 0, %s148
      %s163 = sphi 0, %s149
      %s169 = sphi 0, %s171
      %s172 = sphi 0, %s169
      %s173 = sphi 0, %s172
      %s189 = sphi 0, %s173
      %s197 = sphi 0, %s199
      %s200 = sphi 0, %s197
      %s201 = sphi 0, %s200
      %s217 = sphi 0, %s201
    $region4: #{aspp_forward.1} parent=1 // loop_header_branch
      %19 = sbr.rel (%p17) target = $region8
    $region5: #{aspp_forward.1} parent=1 // loop_body
      %s21 = ssub.s32 %s16, 1
      %s22 = ssub.s32 %s16, 2
      %s29 = sadd.s32 1, %s24
      %p30 = scmp.ge.s32.totalorder %s29, 2
      %s31 = scalar_select %p30, 0, %s29
      %s32 = sadd.s32 1, %s23
      %s33 = scalar_select %p30, %s32, %s23
      %p34 = scmp.ge.s32.totalorder %s33, 2
      %s35 = scalar_select %p34, 0, %s33
      %s36 = ssub.s32 %s23, %s35
      %p37 = scmp.eq.s32.totalorder %s36, 0
      %s39 = sadd.s32 %s38, 1
      %s40 = scalar_select %p37, %s38, %s39
      %p43 = pneg %p37
      %p44 = scmp.eq.s32.totalorder %s16, 3
      %p45 = por %p43, %p44
      %p46 = scmp.ne.s32.totalorder %s38, %s41
      %p47 = scmp.eq.s32.totalorder %s16, 0
      %p48 = por %p46, %p47
      %p49 = scmp.ne.s32.totalorder %s38, %s41
      %p50 = scmp.eq.s32.totalorder %s21, 3
      %p51 = por %p49, %p50
      %p52 = scmp.ne.s32.totalorder %s41, %s42
      %p53 = scmp.eq.s32.totalorder %s21, 0
      %p54 = por %p52, %p53
      %p55 = scmp.ne.s32.totalorder %s41, %s42
      %p56 = scmp.eq.s32.totalorder %s22, 3
      %p57 = por %p55, %p56
      %p59 = scmp.ne.s32.totalorder %s42, %s58
      %p60 = scmp.eq.s32.totalorder %s22, 0
      %p61 = por %p59, %p60
      %s63 = sadd.s32 %s62, 1
      %p66 = scmp.eq.s32.totalorder %s16, 3
      %p67 = scmp.ne.s32.totalorder %s62, %s64
      %p68 = scmp.eq.s32.totalorder %s16, 0
      %p69 = por %p67, %p68
      %p70 = scmp.ne.s32.totalorder %s62, %s64
      %p71 = scmp.eq.s32.totalorder %s21, 3
      %p72 = por %p70, %p71
      %p73 = scmp.ne.s32.totalorder %s64, %s65
      %p74 = scmp.eq.s32.totalorder %s21, 0
      %p75 = por %p73, %p74
      %p76 = scmp.ne.s32.totalorder %s64, %s65
      %p77 = scmp.eq.s32.totalorder %s22, 3
      %p78 = por %p76, %p77
      %p80 = scmp.ne.s32.totalorder %s65, %s79
      %p81 = scmp.eq.s32.totalorder %s22, 0
      %p82 = por %p80, %p81
      %s84 = sadd.s32 %s83, 1
      %p87 = scmp.eq.s32.totalorder %s16, 3
      %p88 = scmp.ne.s32.totalorder %s83, %s85
      %p89 = scmp.eq.s32.totalorder %s16, 0
      %p90 = por %p88, %p89
      %p91 = scmp.ne.s32.totalorder %s83, %s85
      %p92 = scmp.eq.s32.totalorder %s21, 3
      %p93 = por %p91, %p92
      %p94 = scmp.ne.s32.totalorder %s85, %s86
      %p95 = scmp.eq.s32.totalorder %s21, 0
      %p96 = por %p94, %p95
      %p97 = scmp.ne.s32.totalorder %s85, %s86
      %p98 = scmp.eq.s32.totalorder %s22, 3
      %p99 = por %p97, %p98
      %p101 = scmp.ne.s32.totalorder %s86, %s100
      %p102 = scmp.eq.s32.totalorder %s22, 0
      %p103 = por %p101, %p102
      %s105 = sadd.s32 %s104, 1
      %p108 = scmp.eq.s32.totalorder %s16, 3
      %p109 = scmp.ne.s32.totalorder %s104, %s106
      %p110 = scmp.eq.s32.totalorder %s16, 0
      %p111 = por %p109, %p110
      %p112 = scmp.ne.s32.totalorder %s104, %s106
      %p113 = scmp.eq.s32.totalorder %s21, 3
      %p114 = por %p112, %p113
      %p115 = scmp.ne.s32.totalorder %s106, %s107
      %p116 = scmp.eq.s32.totalorder %s21, 0
      %p117 = por %p115, %p116
      %p118 = scmp.ne.s32.totalorder %s106, %s107
      %p119 = scmp.eq.s32.totalorder %s22, 3
      %p120 = por %p118, %p119
      %p122 = scmp.ne.s32.totalorder %s107, %s121
      %p123 = scmp.eq.s32.totalorder %s22, 0
      %p124 = por %p122, %p123
      %s126 = sadd.s32 %s125, 1
      %p129 = scmp.eq.s32.totalorder %s16, 3
      %p130 = scmp.ne.s32.totalorder %s125, %s127
      %p131 = scmp.eq.s32.totalorder %s16, 0
      %p132 = por %p130, %p131
      %p133 = scmp.ne.s32.totalorder %s125, %s127
      %p134 = scmp.eq.s32.totalorder %s21, 3
      %p135 = por %p133, %p134
      %p136 = scmp.ne.s32.totalorder %s127, %s128
      %p137 = scmp.eq.s32.totalorder %s21, 0
      %p138 = por %p136, %p137
      %p139 = scmp.ne.s32.totalorder %s127, %s128
      %p140 = scmp.eq.s32.totalorder %s22, 3
      %p141 = por %p139, %p140
      %p143 = scmp.ne.s32.totalorder %s128, %s142
      %p144 = scmp.eq.s32.totalorder %s22, 0
      %p145 = por %p143, %p144
      %s147 = sadd.s32 %s146, 1
      %p150 = scmp.eq.s32.totalorder %s16, 3
      %p151 = scmp.ne.s32.totalorder %s146, %s148
      %p152 = scmp.eq.s32.totalorder %s16, 0
      %p153 = por %p151, %p152
      %p154 = scmp.ne.s32.totalorder %s146, %s148
      %p155 = scmp.eq.s32.totalorder %s21, 3
      %p156 = por %p154, %p155
      %p157 = scmp.ne.s32.totalorder %s148, %s149
      %p158 = scmp.eq.s32.totalorder %s21, 0
      %p159 = por %p157, %p158
      %p160 = scmp.ne.s32.totalorder %s148, %s149
      %p161 = scmp.eq.s32.totalorder %s22, 3
      %p162 = por %p160, %p161
      %p164 = scmp.ne.s32.totalorder %s149, %s163
      %p165 = scmp.eq.s32.totalorder %s22, 0
      %p166 = por %p164, %p165
      %s167 = ssub.s32 %s23, %s35
      %p168 = scmp.eq.s32.totalorder %s167, 0
      %s170 = sadd.s32 %s169, 1
      %s171 = scalar_select %p168, %s169, %s170
      %p174 = pneg %p168
      %p175 = scmp.eq.s32.totalorder %s16, 3
      %p176 = por %p174, %p175
      %p177 = scmp.ne.s32.totalorder %s169, %s172
      %p178 = scmp.eq.s32.totalorder %s16, 0
      %p179 = por %p177, %p178
      %p180 = scmp.ne.s32.totalorder %s169, %s172
      %p181 = scmp.eq.s32.totalorder %s21, 3
      %p182 = por %p180, %p181
      %p183 = scmp.ne.s32.totalorder %s172, %s173
      %p184 = scmp.eq.s32.totalorder %s21, 0
      %p185 = por %p183, %p184
      %p186 = scmp.ne.s32.totalorder %s172, %s173
      %p187 = scmp.eq.s32.totalorder %s22, 3
      %p188 = por %p186, %p187
      %p190 = scmp.ne.s32.totalorder %s173, %s189
      %p191 = scmp.eq.s32.totalorder %s22, 0
      %p192 = por %p190, %p191
      %s193 = ssub.s32 %s23, %s35
      %s194 = ssub.s32 %s24, %s31
      %s195 = sor.u32 %s193, %s194
      %p196 = scmp.eq.s32.totalorder %s195, 0
      %s198 = sadd.s32 %s197, 1
      %s199 = scalar_select %p196, %s197, %s198
      %p202 = pneg %p196
      %p203 = scmp.eq.s32.totalorder %s16, 3
      %p204 = por %p202, %p203
      %p205 = scmp.ne.s32.totalorder %s197, %s200
      %p206 = scmp.eq.s32.totalorder %s16, 0
      %p207 = por %p205, %p206
      %p208 = scmp.ne.s32.totalorder %s197, %s200
      %p209 = scmp.eq.s32.totalorder %s21, 3
      %p210 = por %p208, %p209
      %p211 = scmp.ne.s32.totalorder %s200, %s201
      %p212 = scmp.eq.s32.totalorder %s21, 0
      %p213 = por %p211, %p212
      %p214 = scmp.ne.s32.totalorder %s200, %s201
      %p215 = scmp.eq.s32.totalorder %s22, 3
      %p216 = por %p214, %p215
      %p218 = scmp.ne.s32.totalorder %s201, %s217
      %p219 = scmp.eq.s32.totalorder %s22, 0
      %p220 = por %p218, %p219
      %p221 = scmp.le.s32.totalorder 1, %s16
      %p222 = scmp.lt.s32.totalorder %s16, 5
      %p223 = pnand %p221, %p222
      %p224 = pneg %p223
      // Predicated region
      $region9: #{aspp_forward.1} parent=5 // pred_check
        _
      $region10: #{aspp_forward.1} parent=5 // pred_check_branch
        %226 = sbr.rel (%p223) target = $region12
      $region11: #{aspp_forward.1} parent=5 // pred_region
        %s227 = ssub.s32 %s16, 1
        // Predicated region
        $region13: #{aspp_forward.1} parent=11 // pred_check
          %p228 = pneg %p75
        $region14: #{aspp_forward.1} parent=11 // pred_check_branch
          %230 = sbr.rel (%p228) target = $region16
        $region15: #{aspp_forward.1} parent=11 // pred_region
          _
        $region16: #{aspp_forward.1} parent=11 // pred_fallthru
          _
        // Predicated region
        $region17: #{aspp_forward.1} parent=11 // pred_check
          %p231 = pneg %p96
        $region18: #{aspp_forward.1} parent=11 // pred_check_branch
          %233 = sbr.rel (%p231) target = $region20
        $region19: #{aspp_forward.1} parent=11 // pred_region
          _
        $region20: #{aspp_forward.1} parent=11 // pred_fallthru
          _
        // Predicated region
        $region21: #{aspp_forward.1} parent=11 // pred_check
          %p234 = pneg %p117
        $region22: #{aspp_forward.1} parent=11 // pred_check_branch
          %236 = sbr.rel (%p234) target = $region24
        $region23: #{aspp_forward.1} parent=11 // pred_region
          _
        $region24: #{aspp_forward.1} parent=11 // pred_fallthru
          _
        // Predicated region
        $region25: #{aspp_forward.1} parent=11 // pred_check
          %p237 = pneg %p138
        $region26: #{aspp_forward.1} parent=11 // pred_check_branch
          %239 = sbr.rel (%p237) target = $region28
        $region27: #{aspp_forward.1} parent=11 // pred_region
          _
        $region28: #{aspp_forward.1} parent=11 // pred_fallthru
          _
        // Predicated region
        $region29: #{aspp_forward.1} parent=11 // pred_check
          %p240 = pneg %p159
        $region30: #{aspp_forward.1} parent=11 // pred_check_branch
          %242 = sbr.rel (%p240) target = $region32
        $region31: #{aspp_forward.1} parent=11 // pred_region
          _
        $region32: #{aspp_forward.1} parent=11 // pred_fallthru
          _
      $region12: #{aspp_forward.1} parent=5 // pred_fallthru
        _
      %p243 = scmp.lt.s32.totalorder %s16, 4
      // Predicated region
      $region33: #{aspp_forward.1} parent=5 // pred_check
        %p244 = pneg %p243
      $region34: #{aspp_forward.1} parent=5 // pred_check_branch
        %246 = sbr.rel (%p244) target = $region36
      $region35: #{aspp_forward.1} parent=5 // pred_region
        // Predicated region
        $region37: #{aspp_forward.1} parent=35 // pred_check
          %p247 = pneg %p48
        $region38: #{aspp_forward.1} parent=35 // pred_check_branch
          %249 = sbr.rel (%p247) target = $region40
        $region39: #{aspp_forward.1} parent=35 // pred_region
          %p250 = scmp.lt.s32.totalorder %s23, 1
          %s251 = scalar_select %p250, %s23, 1
          %s252 = smul.addr %s251, 112
          %s253 = smul.addr %s252, 8
          %s254 = scalar_lea.vmem %s0, %s253
        $region40: #{aspp_forward.1} parent=35 // pred_fallthru
          _
        // Predicated region
        $region41: #{aspp_forward.1} parent=35 // pred_check
          %p255 = pneg %p179
        $region42: #{aspp_forward.1} parent=35 // pred_check_branch
          %257 = sbr.rel (%p255) target = $region44
        $region43: #{aspp_forward.1} parent=35 // pred_region
          %p258 = scmp.lt.s32.totalorder %s23, 1
          %s259 = scalar_select %p258, %s23, 1
          %s260 = smul.addr %s259, 2
          %s261 = scalar_lea.vmem %s6, %s260
        $region44: #{aspp_forward.1} parent=35 // pred_fallthru
          _
      $region36: #{aspp_forward.1} parent=5 // pred_fallthru
        _
      %p262 = scmp.le.s32.totalorder 1, %s16
      %p263 = scmp.lt.s32.totalorder %s16, 5
      %p264 = pnand %p262, %p263
      %p265 = pneg %p264
      // Predicated region
      $region45: #{aspp_forward.1} parent=5 // pred_check
        _
      $region46: #{aspp_forward.1} parent=5 // pred_check_branch
        %267 = sbr.rel (%p264) target = $region48
      $region47: #{aspp_forward.1} parent=5 // pred_region
        %s268 = ssub.s32 %s16, 1
        %p269 = scmp.lt.s32.totalorder %s25, 1
        %s270 = scalar_select %p269, %s25, 1
        %s271 = smul.addr %s270, 112
        %s272 = smul.addr %s271, 8
        %s273 = scalar_lea.vmem %s0, %s272
        %p274 = pneg %p54
        %p275 = pneg %p51
        %p276 = pneg %p75
        %p277 = pneg %p72
        %p278 = pneg %p96
        %p279 = pneg %p93
        %p280 = pneg %p117
        %p281 = pneg %p114
        %p282 = pneg %p138
        %p283 = pneg %p135
        %p284 = pneg %p159
        %p285 = pneg %p156
        %p286 = scmp.lt.s32.totalorder %s25, 1
        %s287 = scalar_select %p286, %s25, 1
        %s288 = smul.addr %s287, 2
        %s289 = scalar_lea.vmem %s6, %s288
        %p290 = pneg %p185
        %p291 = pneg %p182
        %p292 = pneg %p213
        %p293 = pneg %p210
        %s294 = sand.u32 %s200, 1
        %s295 = scalar_lea.sflag [#allocation4], %s294
        %s296 = sand.u32 %s200, 1
        %s297 = smul.addr %s296, 256
        %s298 = scalar_lea.vmem [#allocation3], %s297
        %p299 = scmp.lt.s32.totalorder %s25, 1
        %s300 = scalar_select %p299, %s25, 1
        %s301 = smul.addr %s300, 112
        %s302 = smul.addr %s301, 8
        %s303 = scalar_lea.vmem %s0, %s302
        %p304 = scmp.lt.s32.totalorder %s25, 1
        %s305 = scalar_select %p304, %s25, 1
        %s306 = smul.addr %s305, 2
        %s307 = scalar_lea.vmem %s6, %s306
        %s308 = smul.u32 16, %s26
        %s309 = smul.u32 %s26, 8
        %s310 = sadd.s32 %s309, 6
        %s311 = smul.u32 %s310, 32
        %s312 = scalar_lea.vmem %s303, %s311
        %v313 = vld [vmem:[%s312 + $0x6] sm:$0xff]
        %v314 = vld [vmem:[%s312 + $0xe] sm:$0xff]
        %v315 = vld [vmem:[%s312 + $0x26] sm:$0xff]
        %v316 = vld [vmem:[%s312 + $0x2e] sm:$0xff]
        %v317 = vld [vmem:[%s312 + $0x46] sm:$0xff]
        %v318 = vld [vmem:[%s312 + $0x4e] sm:$0xff]
        %v319 = vld [vmem:[%s312 + $0x66] sm:$0xff]
        %v320 = vld [vmem:[%s312 + $0x6e] sm:$0xff]
        %v321 = vld [vmem:[%s312 + $0x86] sm:$0xff]
        %v322 = vld [vmem:[%s312 + $0x8e] sm:$0xff]
        %v323 = vld [vmem:[%s312 + $0xa6] sm:$0xff]
        %v324 = vld [vmem:[%s312 + $0xae] sm:$0xff]
        %v325 = vld [vmem:[%s312 + $0xc6] sm:$0xff]
        %v326 = vld [vmem:[%s312 + $0xce] sm:$0xff]
        %v327 = vld [vmem:[%s312 + $0xe6] sm:$0xff]
        %v328 = vld [vmem:[%s312 + $0xee] sm:$0xff]
        %v329 = vld [vmem:[%s1] sm:$0xff]
        %v330 = vld [vmem:[%s1 + $0x8] sm:$0xff]
        %v331 = vld [vmem:[%s1 + $0x10] sm:$0xff]
        %v332 = vld [vmem:[%s1 + $0x18] sm:$0xff]
        %v333 = vld [vmem:[%s1 + $0x20] sm:$0xff]
        %v334 = vld [vmem:[%s1 + $0x28] sm:$0xff]
        %v335 = vld [vmem:[%s1 + $0x30] sm:$0xff]
        %v336 = vld [vmem:[%s1 + $0x38] sm:$0xff]
        %vm337 = vcmask 261120
        %v339 = vsel %vm337, %v313, 0
        %v342 = vsel %vm337, %v314, 0
        %v345 = vsel %vm337, %v315, 0
        %v348 = vsel %vm337, %v316, 0
        %v351 = vsel %vm337, %v317, 0
        %v354 = vsel %vm337, %v318, 0
        %v357 = vsel %vm337, %v319, 0
        %v360 = vsel %vm337, %v320, 0
        %v363 = vsel %vm337, %v321, 0
        %v366 = vsel %vm337, %v322, 0
        %v369 = vsel %vm337, %v323, 0
        %v372 = vsel %vm337, %v324, 0
        %v375 = vsel %vm337, %v325, 0
        %v378 = vsel %vm337, %v326, 0
        %v381 = vsel %vm337, %v327, 0
        %v384 = vsel %vm337, %v328, 0
        %386 = vmatprep.subr.mxu0 %v330
        %387 = vmatpush1.msra.mxu0 %v329
        %388 = vmatprep.subr.mxu0 %v332
        %389 = vmatpush1.msra.mxu0 %v331
        %390 = vmatprep.subr.mxu0 %v334
        %391 = vmatpush1.msra.mxu0 %v333
        %392 = vmatprep.subr.mxu0 %v336
        %393 = vmatpush1.msra.mxu0 %v335
        %394 = vmatprep.subr.mxu0 0.0
        %395 = vmatpush1.msra.mxu0 0.0
        %396 = vmatprep.subr.mxu0 0.0
        %397 = vmatpush1.msra.mxu0 0.0
        %398 = vmatprep.subr.mxu0 0.0
        %399 = vmatpush1.msra.mxu0 0.0
        %400 = vmatprep.subr.mxu0 0.0
        %401 = vmatpush1.msra.mxu0 0.0
        %402 = vmatprep.subr.mxu0 0.0
        %403 = vmatpush1.msra.mxu0 0.0
        %404 = vmatprep.subr.mxu0 0.0
        %405 = vmatpush1.msra.mxu0 0.0
        %406 = vmatprep.subr.mxu0 0.0
        %407 = vmatpush1.msra.mxu0 0.0
        %408 = vmatprep.subr.mxu0 0.0
        %409 = vmatpush1.msra.mxu0 0.0
        %410 = vmatprep.subr.mxu0 0.0
        %411 = vmatpush1.msra.mxu0 0.0
        %412 = vmatprep.subr.mxu0 0.0
        %413 = vmatpush1.msra.mxu0 0.0
        %414 = vmatprep.subr.mxu0 0.0
        %415 = vmatpush1.msra.mxu0 0.0
        %416 = vmatprep.subr.mxu0 0.0
        %417 = vmatpush1.msra.mxu0 0.0
        %418 = vmatprep.subr.mxu0 0.0
        %419 = vmatpush1.msra.mxu0 0.0
        %420 = vmatprep.subr.mxu0 0.0
        %421 = vmatpush1.msra.mxu0 0.0
        %422 = vmatprep.subr.mxu0 0.0
        %423 = vmatpush1.msra.mxu0 0.0
        %424 = vmatprep.subr.mxu0 0.0
        %425 = vmatpush1.msra.mxu0 0.0
        %426 = vmatprep.subr.mxu0 0.0
        %427 = vmatpush1.msra.mxu0 0.0
        %428 = vmatprep.subr.mxu0 0.0
        %429 = vmatpush1.msra.mxu0 0.0
        %430 = vmatprep.subr.mxu0 0.0
        %431 = vmatpush1.msra.mxu0 0.0
        %432 = vmatprep.subr.mxu0 0.0
        %433 = vmatpush1.msra.mxu0 0.0
        %434 = vmatprep.subr.mxu0 0.0
        %435 = vmatpush1.msra.mxu0 0.0
        %436 = vmatprep.subr.mxu0 0.0
        %437 = vmatpush1.msra.mxu0 0.0
        %438 = vmatprep.subr.mxu0 0.0
        %439 = vmatpush1.msra.mxu0 0.0
        %440 = vmatprep.subr.mxu0 0.0
        %441 = vmatpush1.msra.mxu0 0.0
        %442 = vmatprep.subr.mxu0 0.0
        %443 = vmatpush1.msra.mxu0 0.0
        %444 = vmatprep.subr.mxu0 0.0
        %445 = vmatpush1.msra.mxu0 0.0
        %446 = vmatprep.subr.mxu0 0.0
        %447 = vmatpush1.msra.mxu0 0.0
        %448 = vmatprep.subr.mxu0 0.0
        %449 = vmatpush1.msra.mxu0 0.0
        %450 = vmatprep.mubr.f32.mxu0 0.0
        %451 = vmatmul.mubr.f32.gmra.mrb[0].mxu0 %v339
        %v452 = vpop.f32.mrb[0].mxu0
        %v453 = vadd.f32 0.0, %v452
        %v454 = vpop.f32.mrb[0].mxu0
        %v455 = vadd.f32 0.0, %v454
        %456 = vmatprep.mubr.f32.mxu0 0.0
        %457 = vmatmul.mubr.f32.gmra.mrb[0].mxu0 %v342
        %v458 = vpop.f32.mrb[0].mxu0
        %v459 = vadd.f32 0.0, %v458
        %v460 = vpop.f32.mrb[0].mxu0
        %v461 = vadd.f32 0.0, %v460
        %462 = vmatprep.mubr.f32.mxu0 0.0
        %463 = vmatmul.mubr.f32.gmra.mrb[0].mxu0 %v345
        %v464 = vpop.f32.mrb[0].mxu0
        %v465 = vadd.f32 0.0, %v464
        %v466 = vpop.f32.mrb[0].mxu0
        %v467 = vadd.f32 0.0, %v466
        %468 = vmatprep.mubr.f32.mxu0 0.0
        %469 = vmatmul.mubr.f32.gmra.mrb[0].mxu0 %v348
        %v470 = vpop.f32.mrb[0].mxu0
        %v471 = vadd.f32 0.0, %v470
        %v472 = vpop.f32.mrb[0].mxu0
        %v473 = vadd.f32 0.0, %v472
        %474 = vmatprep.mubr.f32.mxu0 0.0
        %475 = vmatmul.mubr.f32.gmra.mrb[0].mxu0 %v351
        %v476 = vpop.f32.mrb[0].mxu0
        %v477 = vadd.f32 0.0, %v476
        %v478 = vpop.f32.mrb[0].mxu0
        %v479 = vadd.f32 0.0, %v478
        %480 = vmatprep.mubr.f32.mxu0 0.0
        %481 = vmatmul.mubr.f32.gmra.mrb[0].mxu0 %v354
        %v482 = vpop.f32.mrb[0].mxu0
        %v483 = vadd.f32 0.0, %v482
        %v484 = vpop.f32.mrb[0].mxu0
        %v485 = vadd.f32 0.0, %v484
        %486 = vmatprep.mubr.f32.mxu0 0.0
        %487 = vmatmul.mubr.f32.gmra.mrb[0].mxu0 %v357
        %v488 = vpop.f32.mrb[0].mxu0
        %v489 = vadd.f32 0.0, %v488
        %v490 = vpop.f32.mrb[0].mxu0
        %v491 = vadd.f32 0.0, %v490
        %492 = vmatprep.mubr.f32.mxu0 0.0
        %493 = vmatmul.mubr.f32.gmra.mrb[0].mxu0 %v360
        %v494 = vpop.f32.mrb[0].mxu0
        %v495 = vadd.f32 0.0, %v494
        %v496 = vpop.f32.mrb[0].mxu0
        %v497 = vadd.f32 0.0, %v496
        %498 = vmatprep.mubr.f32.mxu0 0.0
        %499 = vmatmul.mubr.f32.gmra.mrb[0].mxu0 %v363
        %v500 = vpop.f32.mrb[0].mxu0
        %v501 = vadd.f32 0.0, %v500
        %v502 = vpop.f32.mrb[0].mxu0
        %v503 = vadd.f32 0.0, %v502
        %504 = vmatprep.mubr.f32.mxu0 0.0
        %505 = vmatmul.mubr.f32.gmra.mrb[0].mxu0 %v366
        %v506 = vpop.f32.mrb[0].mxu0
        %v507 = vadd.f32 0.0, %v506
        %v508 = vpop.f32.mrb[0].mxu0
        %v509 = vadd.f32 0.0, %v508
        %510 = vmatprep.mubr.f32.mxu0 0.0
        %511 = vmatmul.mubr.f32.gmra.mrb[0].mxu0 %v369
        %v512 = vpop.f32.mrb[0].mxu0
        %v513 = vadd.f32 0.0, %v512
        %v514 = vpop.f32.mrb[0].mxu0
        %v515 = vadd.f32 0.0, %v514
        %516 = vmatprep.mubr.f32.mxu0 0.0
        %517 = vmatmul.mubr.f32.gmra.mrb[0].mxu0 %v372
        %v518 = vpop.f32.mrb[0].mxu0
        %v519 = vadd.f32 0.0, %v518
        %v520 = vpop.f32.mrb[0].mxu0
        %v521 = vadd.f32 0.0, %v520
        %522 = vmatprep.mubr.f32.mxu0 0.0
        %523 = vmatmul.mubr.f32.gmra.mrb[0].mxu0 %v375
        %v524 = vpop.f32.mrb[0].mxu0
        %v525 = vadd.f32 0.0, %v524
        %v526 = vpop.f32.mrb[0].mxu0
        %v527 = vadd.f32 0.0, %v526
        %528 = vmatprep.mubr.f32.mxu0 0.0
        %529 = vmatmul.mubr.f32.gmra.mrb[0].mxu0 %v378
        %v530 = vpop.f32.mrb[0].mxu0
        %v531 = vadd.f32 0.0, %v530
        %v532 = vpop.f32.mrb[0].mxu0
        %v533 = vadd.f32 0.0, %v532
        %534 = vmatprep.mubr.f32.mxu0 0.0
        %535 = vmatmul.mubr.f32.gmra.mrb[0].mxu0 %v381
        %v536 = vpop.f32.mrb[0].mxu0
        %v537 = vadd.f32 0.0, %v536
        %v538 = vpop.f32.mrb[0].mxu0
        %v539 = vadd.f32 0.0, %v538
        %540 = vmatprep.mubr.f32.mxu0 0.0
        %541 = vmatmul.mubr.f32.gmra.mrb[0].mxu0 %v384
        %v542 = vpop.f32.mrb[0].mxu0
        %v543 = vadd.f32 0.0, %v542
        %v544 = vpop.f32.mrb[0].mxu0
        %v545 = vadd.f32 0.0, %v544
        %546 = vdwg.mxu0
        %v547 = vld [vmem:[%s2] ss:$4 sm:$0x3]
        %v549 = vlaneseq
        %v550 = vshrl.u32 %v549, 7
        %v551 = vsub.s32 0, %v550
        %v552 = vrot.slane %v547, %v551
        %v553 = vlaneseq
        %v554 = vshrl.u32 %v553, 7
        %v555 = vsub.s32 1, %v554
        %v556 = vrot.slane %v547, %v555
        %v559 = vmul.f32 %v453, %v552
        %v560 = vmul.f32 %v455, %v556
        %v561 = vmul.f32 %v459, %v552
        %v562 = vmul.f32 %v461, %v556
        %v563 = vmul.f32 %v465, %v552
        %v564 = vmul.f32 %v467, %v556
        %v565 = vmul.f32 %v471, %v552
        %v566 = vmul.f32 %v473, %v556
        %v567 = vmul.f32 %v477, %v552
        %v568 = vmul.f32 %v479, %v556
        %v569 = vmul.f32 %v483, %v552
        %v570 = vmul.f32 %v485, %v556
        %v571 = vmul.f32 %v489, %v552
        %v572 = vmul.f32 %v491, %v556
        %v573 = vmul.f32 %v495, %v552
        %v574 = vmul.f32 %v497, %v556
        %v575 = vmul.f32 %v501, %v552
        %v576 = vmul.f32 %v503, %v556
        %v577 = vmul.f32 %v507, %v552
        %v578 = vmul.f32 %v509, %v556
        %v579 = vmul.f32 %v513, %v552
        %v580 = vmul.f32 %v515, %v556
        %v581 = vmul.f32 %v519, %v552
        %v582 = vmul.f32 %v521, %v556
        %v583 = vmul.f32 %v525, %v552
        %v584 = vmul.f32 %v527, %v556
        %v585 = vmul.f32 %v531, %v552
        %v586 = vmul.f32 %v533, %v556
        %v587 = vmul.f32 %v537, %v552
        %v588 = vmul.f32 %v539, %v556
        %v589 = vmul.f32 %v543, %v552
        %v590 = vmul.f32 %v545, %v556
        %v591 = vld [vmem:[%s3] ss:$4 sm:$0x3]
        %v593 = vlaneseq
        %v594 = vshrl.u32 %v593, 7
        %v595 = vsub.s32 0, %v594
        %v596 = vrot.slane %v591, %v595
        %v597 = vlaneseq
        %v598 = vshrl.u32 %v597, 7
        %v599 = vsub.s32 1, %v598
        %v600 = vrot.slane %v591, %v599
        %v603 = vadd.f32 %v559, %v596
        %v604 = vadd.f32 %v560, %v600
        %v605 = vadd.f32 %v561, %v596
        %v606 = vadd.f32 %v562, %v600
        %v607 = vadd.f32 %v563, %v596
        %v608 = vadd.f32 %v564, %v600
        %v609 = vadd.f32 %v565, %v596
        %v610 = vadd.f32 %v566, %v600
        %v611 = vadd.f32 %v567, %v596
        %v612 = vadd.f32 %v568, %v600
        %v613 = vadd.f32 %v569, %v596
        %v614 = vadd.f32 %v570, %v600
        %v615 = vadd.f32 %v571, %v596
        %v616 = vadd.f32 %v572, %v600
        %v617 = vadd.f32 %v573, %v596
        %v618 = vadd.f32 %v574, %v600
        %v619 = vadd.f32 %v575, %v596
        %v620 = vadd.f32 %v576, %v600
        %v621 = vadd.f32 %v577, %v596
        %v622 = vadd.f32 %v578, %v600
        %v623 = vadd.f32 %v579, %v596
        %v624 = vadd.f32 %v580, %v600
        %v625 = vadd.f32 %v581, %v596
        %v626 = vadd.f32 %v582, %v600
        %v627 = vadd.f32 %v583, %v596
        %v628 = vadd.f32 %v584, %v600
        %v629 = vadd.f32 %v585, %v596
        %v630 = vadd.f32 %v586, %v600
        %v631 = vadd.f32 %v587, %v596
        %v632 = vadd.f32 %v588, %v600
        %v633 = vadd.f32 %v589, %v596
        %v634 = vadd.f32 %v590, %v600
        %v635 = vmax.f32 %v603, 0.0
        %v636 = vmax.f32 %v604, 0.0
        %v637 = vmax.f32 %v605, 0.0
        %v638 = vmax.f32 %v606, 0.0
        %v639 = vmax.f32 %v607, 0.0
        %v640 = vmax.f32 %v608, 0.0
        %v641 = vmax.f32 %v609, 0.0
        %v642 = vmax.f32 %v610, 0.0
        %v643 = vmax.f32 %v611, 0.0
        %v644 = vmax.f32 %v612, 0.0
        %v645 = vmax.f32 %v613, 0.0
        %v646 = vmax.f32 %v614, 0.0
        %v647 = vmax.f32 %v615, 0.0
        %v648 = vmax.f32 %v616, 0.0
        %v649 = vmax.f32 %v617, 0.0
        %v650 = vmax.f32 %v618, 0.0
        %v651 = vmax.f32 %v619, 0.0
        %v652 = vmax.f32 %v620, 0.0
        %v653 = vmax.f32 %v621, 0.0
        %v654 = vmax.f32 %v622, 0.0
        %v655 = vmax.f32 %v623, 0.0
        %v656 = vmax.f32 %v624, 0.0
        %v657 = vmax.f32 %v625, 0.0
        %v658 = vmax.f32 %v626, 0.0
        %v659 = vmax.f32 %v627, 0.0
        %v660 = vmax.f32 %v628, 0.0
        %v661 = vmax.f32 %v629, 0.0
        %v662 = vmax.f32 %v630, 0.0
        %v663 = vmax.f32 %v631, 0.0
        %v664 = vmax.f32 %v632, 0.0
        %v665 = vmax.f32 %v633, 0.0
        %v666 = vmax.f32 %v634, 0.0
        %v667 = vld [vmem:[%s4] sm:$0xff]
        %v668 = vld [vmem:[%s4 + $0x8] sm:$0xff]
        %v669 = vld [vmem:[%s4 + $0x10] sm:$0xff]
        %v670 = vld [vmem:[%s4 + $0x18] sm:$0xff]
        %v671 = vld [vmem:[%s4 + $0x20] sm:$0xff]
        %v672 = vld [vmem:[%s4 + $0x28] sm:$0xff]
        %v673 = vld [vmem:[%s4 + $0x30] sm:$0xff]
        %v674 = vld [vmem:[%s4 + $0x38] sm:$0xff]
        %v675 = vld [vmem:[%s4 + $0x40] sm:$0xff]
        %v676 = vld [vmem:[%s4 + $0x48] sm:$0xff]
        %v677 = vld [vmem:[%s4 + $0x50] sm:$0xff]
        %v678 = vld [vmem:[%s4 + $0x58] sm:$0xff]
        %v679 = vld [vmem:[%s4 + $0x60] sm:$0xff]
        %v680 = vld [vmem:[%s4 + $0x68] sm:$0xff]
        %v681 = vld [vmem:[%s4 + $0x70] sm:$0xff]
        %v682 = vld [vmem:[%s4 + $0x78] sm:$0xff]
        %v683 = vld [vmem:[%s4 + $0x80] sm:$0xff]
        %v684 = vld [vmem:[%s4 + $0x88] sm:$0xff]
        %v685 = vld [vmem:[%s4 + $0x90] sm:$0xff]
        %v686 = vld [vmem:[%s4 + $0x98] sm:$0xff]
        %v687 = vld [vmem:[%s4 + $0xa0] sm:$0xff]
        %v688 = vld [vmem:[%s4 + $0xa8] sm:$0xff]
        %v689 = vld [vmem:[%s4 + $0xb0] sm:$0xff]
        %v690 = vld [vmem:[%s4 + $0xb8] sm:$0xff]
        %v691 = vld [vmem:[%s4 + $0xc0] sm:$0xff]
        %v692 = vld [vmem:[%s4 + $0xc8] sm:$0xff]
        %v693 = vld [vmem:[%s4 + $0xd0] sm:$0xff]
        %v694 = vld [vmem:[%s4 + $0xd8] sm:$0xff]
        %v695 = vld [vmem:[%s4 + $0xe0] sm:$0xff]
        %v696 = vld [vmem:[%s4 + $0xe8] sm:$0xff]
        %v697 = vld [vmem:[%s4 + $0xf0] sm:$0xff]
        %v698 = vld [vmem:[%s4 + $0xf8] sm:$0xff]
        %v699 = vld [vmem:[%s4 + $0x100] sm:$0xff]
        %v700 = vld [vmem:[%s4 + $0x108] sm:$0xff]
        %v701 = vld [vmem:[%s4 + $0x110] sm:$0xff]
        %v702 = vld [vmem:[%s4 + $0x118] sm:$0xff]
        %v703 = vld [vmem:[%s4 + $0x120] sm:$0xff]
        %v704 = vld [vmem:[%s4 + $0x128] sm:$0xff]
        %v705 = vld [vmem:[%s4 + $0x130] sm:$0xff]
        %v706 = vld [vmem:[%s4 + $0x138] sm:$0xff]
        %v707 = vld [vmem:[%s4 + $0x140] sm:$0xff]
        %v708 = vld [vmem:[%s4 + $0x148] sm:$0xff]
        %v709 = vld [vmem:[%s4 + $0x150] sm:$0xff]
        %v710 = vld [vmem:[%s4 + $0x158] sm:$0xff]
        %v711 = vld [vmem:[%s4 + $0x160] sm:$0xff]
        %v712 = vld [vmem:[%s4 + $0x168] sm:$0xff]
        %v713 = vld [vmem:[%s4 + $0x170] sm:$0xff]
        %v714 = vld [vmem:[%s4 + $0x178] sm:$0xff]
        %v715 = vld [vmem:[%s4 + $0x180] sm:$0xff]
        %v716 = vld [vmem:[%s4 + $0x188] sm:$0xff]
        %v717 = vld [vmem:[%s4 + $0x190] sm:$0xff]
        %v718 = vld [vmem:[%s4 + $0x198] sm:$0xff]
        %v719 = vld [vmem:[%s4 + $0x1a0] sm:$0xff]
        %v720 = vld [vmem:[%s4 + $0x1a8] sm:$0xff]
        %v721 = vld [vmem:[%s4 + $0x1b0] sm:$0xff]
        %v722 = vld [vmem:[%s4 + $0x1b8] sm:$0xff]
        %v723 = vld [vmem:[%s4 + $0x1c0] sm:$0xff]
        %v724 = vld [vmem:[%s4 + $0x1c8] sm:$0xff]
        %v725 = vld [vmem:[%s4 + $0x1d0] sm:$0xff]
        %v726 = vld [vmem:[%s4 + $0x1d8] sm:$0xff]
        %v727 = vld [vmem:[%s4 + $0x1e0] sm:$0xff]
        %v728 = vld [vmem:[%s4 + $0x1e8] sm:$0xff]
        %v729 = vld [vmem:[%s4 + $0x1f0] sm:$0xff]
        %v730 = vld [vmem:[%s4 + $0x1f8] sm:$0xff]
        %731 = vmatprep.subr.mxu0 %v668
        %732 = vmatpush1.msra.mxu0 %v667
        %733 = vmatprep.subr.mxu0 %v670
        %734 = vmatpush1.msra.mxu0 %v669
        %735 = vmatprep.subr.mxu0 %v672
        %736 = vmatpush1.msra.mxu0 %v671
        %737 = vmatprep.subr.mxu0 %v674
        %738 = vmatpush1.msra.mxu0 %v673
        %739 = vmatprep.subr.mxu0 %v676
        %740 = vmatpush1.msra.mxu0 %v675
        %741 = vmatprep.subr.mxu0 %v678
        %742 = vmatpush1.msra.mxu0 %v677
        %743 = vmatprep.subr.mxu0 %v680
        %744 = vmatpush1.msra.mxu0 %v679
        %745 = vmatprep.subr.mxu0 %v682
        %746 = vmatpush1.msra.mxu0 %v681
        %747 = vmatprep.subr.mxu0 %v684
        %748 = vmatpush1.msra.mxu0 %v683
        %749 = vmatprep.subr.mxu0 %v686
        %750 = vmatpush1.msra.mxu0 %v685
        %751 = vmatprep.subr.mxu0 %v688
        %752 = vmatpush1.msra.mxu0 %v687
        %753 = vmatprep.subr.mxu0 %v690
        %754 = vmatpush1.msra.mxu0 %v689
        %755 = vmatprep.subr.mxu0 %v692
        %756 = vmatpush1.msra.mxu0 %v691
        %757 = vmatprep.subr.mxu0 %v694
        %758 = vmatpush1.msra.mxu0 %v693
        %759 = vmatprep.subr.mxu0 %v696
        %760 = vmatpush1.msra.mxu0 %v695
        %761 = vmatprep.subr.mxu0 %v698
        %762 = vmatpush1.msra.mxu0 %v697
        %763 = vmatprep.subr.mxu0 %v700
        %764 = vmatpush1.msra.mxu0 %v699
        %765 = vmatprep.subr.mxu0 %v702
        %766 = vmatpush1.msra.mxu0 %v701
        %767 = vmatprep.subr.mxu0 %v704
        %768 = vmatpush1.msra.mxu0 %v703
        %769 = vmatprep.subr.mxu0 %v706
        %770 = vmatpush1.msra.mxu0 %v705
        %771 = vmatprep.subr.mxu0 %v708
        %772 = vmatpush1.msra.mxu0 %v707
        %773 = vmatprep.subr.mxu0 %v710
        %774 = vmatpush1.msra.mxu0 %v709
        %775 = vmatprep.subr.mxu0 %v712
        %776 = vmatpush1.msra.mxu0 %v711
        %777 = vmatprep.subr.mxu0 %v714
        %778 = vmatpush1.msra.mxu0 %v713
        %779 = vmatprep.subr.mxu0 %v716
        %780 = vmatpush1.msra.mxu0 %v715
        %781 = vmatprep.subr.mxu0 %v718
        %782 = vmatpush1.msra.mxu0 %v717
        %783 = vmatprep.subr.mxu0 %v720
        %784 = vmatpush1.msra.mxu0 %v719
        %785 = vmatprep.subr.mxu0 %v722
        %786 = vmatpush1.msra.mxu0 %v721
        %787 = vmatprep.subr.mxu0 %v724
        %788 = vmatpush1.msra.mxu0 %v723
        %789 = vmatprep.subr.mxu0 %v726
        %790 = vmatpush1.msra.mxu0 %v725
        %791 = vmatprep.subr.mxu0 %v728
        %792 = vmatpush1.msra.mxu0 %v727
        %793 = vmatprep.subr.mxu0 %v730
        %794 = vmatpush1.msra.mxu0 %v729
        %795 = vmatprep.mubr.f32.mxu0 %v636
        %796 = vmatmul.mubr.f32.gmra.mrb[0].mxu0 %v635
        %v797 = vpop.f32.mrb[0].mxu0
        %v798 = vadd.f32 0.0, %v797
        %v799 = vpop.f32.mrb[0].mxu0
        %v800 = vadd.f32 0.0, %v799
        %801 = vmatprep.mubr.f32.mxu0 %v638
        %802 = vmatmul.mubr.f32.gmra.mrb[0].mxu0 %v637
        %v803 = vpop.f32.mrb[0].mxu0
        %v804 = vadd.f32 0.0, %v803
        %v805 = vpop.f32.mrb[0].mxu0
        %v806 = vadd.f32 0.0, %v805
        %807 = vmatprep.mubr.f32.mxu0 %v640
        %808 = vmatmul.mubr.f32.gmra.mrb[0].mxu0 %v639
        %v809 = vpop.f32.mrb[0].mxu0
        %v810 = vadd.f32 0.0, %v809
        %v811 = vpop.f32.mrb[0].mxu0
        %v812 = vadd.f32 0.0, %v811
        %813 = vmatprep.mubr.f32.mxu0 %v642
        %814 = vmatmul.mubr.f32.gmra.mrb[0].mxu0 %v641
        %v815 = vpop.f32.mrb[0].mxu0
        %v816 = vadd.f32 0.0, %v815
        %v817 = vpop.f32.mrb[0].mxu0
        %v818 = vadd.f32 0.0, %v817
        %819 = vmatprep.mubr.f32.mxu0 %v644
        %820 = vmatmul.mubr.f32.gmra.mrb[0].mxu0 %v643
        %v821 = vpop.f32.mrb[0].mxu0
        %v822 = vadd.f32 0.0, %v821
        %v823 = vpop.f32.mrb[0].mxu0
        %v824 = vadd.f32 0.0, %v823
        %825 = vmatprep.mubr.f32.mxu0 %v646
        %826 = vmatmul.mubr.f32.gmra.mrb[0].mxu0 %v645
        %v827 = vpop.f32.mrb[0].mxu0
        %v828 = vadd.f32 0.0, %v827
        %v829 = vpop.f32.mrb[0].mxu0
        %v830 = vadd.f32 0.0, %v829
        %831 = vmatprep.mubr.f32.mxu0 %v648
        %832 = vmatmul.mubr.f32.gmra.mrb[0].mxu0 %v647
        %v833 = vpop.f32.mrb[0].mxu0
        %v834 = vadd.f32 0.0, %v833
        %v835 = vpop.f32.mrb[0].mxu0
        %v836 = vadd.f32 0.0, %v835
        %837 = vmatprep.mubr.f32.mxu0 %v650
        %838 = vmatmul.mubr.f32.gmra.mrb[0].mxu0 %v649
        %v839 = vpop.f32.mrb[0].mxu0
        %v840 = vadd.f32 0.0, %v839
        %v841 = vpop.f32.mrb[0].mxu0
        %v842 = vadd.f32 0.0, %v841
        %843 = vmatprep.mubr.f32.mxu0 %v652
        %844 = vmatmul.mubr.f32.gmra.mrb[0].mxu0 %v651
        %v845 = vpop.f32.mrb[0].mxu0
        %v846 = vadd.f32 0.0, %v845
        %v847 = vpop.f32.mrb[0].mxu0
        %v848 = vadd.f32 0.0, %v847
        %849 = vmatprep.mubr.f32.mxu0 %v654
        %850 = vmatmul.mubr.f32.gmra.mrb[0].mxu0 %v653
        %v851 = vpop.f32.mrb[0].mxu0
        %v852 = vadd.f32 0.0, %v851
        %v853 = vpop.f32.mrb[0].mxu0
        %v854 = vadd.f32 0.0, %v853
        %855 = vmatprep.mubr.f32.mxu0 %v656
        %856 = vmatmul.mubr.f32.gmra.mrb[0].mxu0 %v655
        %v857 = vpop.f32.mrb[0].mxu0
        %v858 = vadd.f32 0.0, %v857
        %v859 = vpop.f32.mrb[0].mxu0
        %v860 = vadd.f32 0.0, %v859
        %861 = vmatprep.mubr.f32.mxu0 %v658
        %862 = vmatmul.mubr.f32.gmra.mrb[0].mxu0 %v657
        %v863 = vpop.f32.mrb[0].mxu0
        %v864 = vadd.f32 0.0, %v863
        %v865 = vpop.f32.mrb[0].mxu0
        %v866 = vadd.f32 0.0, %v865
        %867 = vmatprep.mubr.f32.mxu0 %v660
        %868 = vmatmul.mubr.f32.gmra.mrb[0].mxu0 %v659
        %v869 = vpop.f32.mrb[0].mxu0
        %v870 = vadd.f32 0.0, %v869
        %v871 = vpop.f32.mrb[0].mxu0
        %v872 = vadd.f32 0.0, %v871
        %873 = vmatprep.mubr.f32.mxu0 %v662
        %874 = vmatmul.mubr.f32.gmra.mrb[0].mxu0 %v661
        %v875 = vpop.f32.mrb[0].mxu0
        %v876 = vadd.f32 0.0, %v875
        %v877 = vpop.f32.mrb[0].mxu0
        %v878 = vadd.f32 0.0, %v877
        %879 = vmatprep.mubr.f32.mxu0 %v664
        %880 = vmatmul.mubr.f32.gmra.mrb[0].mxu0 %v663
        %v881 = vpop.f32.mrb[0].mxu0
        %v882 = vadd.f32 0.0, %v881
        %v883 = vpop.f32.mrb[0].mxu0
        %v884 = vadd.f32 0.0, %v883
        %885 = vmatprep.mubr.f32.mxu0 %v666
        %886 = vmatmul.mubr.f32.gmra.mrb[0].mxu0 %v665
        %v887 = vpop.f32.mrb[0].mxu0
        %v888 = vadd.f32 0.0, %v887
        %v889 = vpop.f32.mrb[0].mxu0
        %v890 = vadd.f32 0.0, %v889
        %891 = vdwg.mxu0
        %892 = vst [vmem:[#allocation2] sm:$0xff] %v798
        %893 = vst [vmem:[#allocation2 + $0x8] sm:$0xff] %v800
        %894 = vst [vmem:[#allocation2 + $0x10] sm:$0xff] %v804
        %895 = vst [vmem:[#allocation2 + $0x18] sm:$0xff] %v806
        %896 = vst [vmem:[#allocation2 + $0x20] sm:$0xff] %v810
        %897 = vst [vmem:[#allocation2 + $0x28] sm:$0xff] %v812
        %898 = vst [vmem:[#allocation2 + $0x30] sm:$0xff] %v816
        %899 = vst [vmem:[#allocation2 + $0x38] sm:$0xff] %v818
        %900 = vst [vmem:[#allocation2 + $0x40] sm:$0xff] %v822
        %901 = vst [vmem:[#allocation2 + $0x48] sm:$0xff] %v824
        %902 = vst [vmem:[#allocation2 + $0x50] sm:$0xff] %v828
        %903 = vst [vmem:[#allocation2 + $0x58] sm:$0xff] %v830
        %904 = vst [vmem:[#allocation2 + $0x60] sm:$0xff] %v834
        %905 = vst [vmem:[#allocation2 + $0x68] sm:$0xff] %v836
        %906 = vst [vmem:[#allocation2 + $0x70] sm:$0xff] %v840
        %907 = vst [vmem:[#allocation2 + $0x78] sm:$0xff] %v842
        %908 = vst [vmem:[#allocation2 + $0x80] sm:$0xff] %v846
        %909 = vst [vmem:[#allocation2 + $0x88] sm:$0xff] %v848
        %910 = vst [vmem:[#allocation2 + $0x90] sm:$0xff] %v852
        %911 = vst [vmem:[#allocation2 + $0x98] sm:$0xff] %v854
        %912 = vst [vmem:[#allocation2 + $0xa0] sm:$0xff] %v858
        %913 = vst [vmem:[#allocation2 + $0xa8] sm:$0xff] %v860
        %914 = vst [vmem:[#allocation2 + $0xb0] sm:$0xff] %v864
        %915 = vst [vmem:[#allocation2 + $0xb8] sm:$0xff] %v866
        %916 = vst [vmem:[#allocation2 + $0xc0] sm:$0xff] %v870
        %917 = vst [vmem:[#allocation2 + $0xc8] sm:$0xff] %v872
        %918 = vst [vmem:[#allocation2 + $0xd0] sm:$0xff] %v876
        %919 = vst [vmem:[#allocation2 + $0xd8] sm:$0xff] %v878
        %920 = vst [vmem:[#allocation2 + $0xe0] sm:$0xff] %v882
        %921 = vst [vmem:[#allocation2 + $0xe8] sm:$0xff] %v884
        %922 = vst [vmem:[#allocation2 + $0xf0] sm:$0xff] %v888
        %923 = vst [vmem:[#allocation2 + $0xf8] sm:$0xff] %v890
        %s924 = sadd.s32 %s309, 4
        %s925 = smul.u32 %s924, 32
        %s926 = scalar_lea.vmem %s303, %s925
        %v927 = vld [vmem:[%s926 + $0x4] sm:$0xff]
        %v928 = vld [vmem:[%s926 + $0xc] sm:$0xff]
        %v929 = vld [vmem:[%s926 + $0x24] sm:$0xff]
        %v930 = vld [vmem:[%s926 + $0x2c] sm:$0xff]
        %v931 = vld [vmem:[%s926 + $0x44] sm:$0xff]
        %v932 = vld [vmem:[%s926 + $0x4c] sm:$0xff]
        %v933 = vld [vmem:[%s926 + $0x64] sm:$0xff]
        %v934 = vld [vmem:[%s926 + $0x6c] sm:$0xff]
        %v935 = vld [vmem:[%s926 + $0x84] sm:$0xff]
        %v936 = vld [vmem:[%s926 + $0x8c] sm:$0xff]
        %v937 = vld [vmem:[%s926 + $0xa4] sm:$0xff]
        %v938 = vld [vmem:[%s926 + $0xac] sm:$0xff]
        %v939 = vld [vmem:[%s926 + $0xc4] sm:$0xff]
        %v940 = vld [vmem:[%s926 + $0xcc] sm:$0xff]
        %v941 = vld [vmem:[%s926 + $0xe4] sm:$0xff]
        %v942 = vld [vmem:[%s926 + $0xec] sm:$0xff]
        %s943 = scalar_lea.vmem %s1, 64
        %v944 = vld [vmem:[%s943] sm:$0xff]
        %v945 = vld [vmem:[%s943 + $0x8] sm:$0xff]
        %v946 = vld [vmem:[%s943 + $0x10] sm:$0xff]
        %v947 = vld [vmem:[%s943 + $0x18] sm:$0xff]
        %v948 = vld [vmem:[%s943 + $0x20] sm:$0xff]
        %v949 = vld [vmem:[%s943 + $0x28] sm:$0xff]
        %v950 = vld [vmem:[%s943 + $0x30] sm:$0xff]
        %v951 = vld [vmem:[%s943 + $0x38] sm:$0xff]
        %v952 = vld [vmem:[%s926 + $0x6] sm:$0xff]
        %v953 = vld [vmem:[%s926 + $0xe] sm:$0xff]
        %v954 = vld [vmem:[%s926 + $0x26] sm:$0xff]
        %v955 = vld [vmem:[%s926 + $0x2e] sm:$0xff]
        %v956 = vld [vmem:[%s926 + $0x46] sm:$0xff]
        %v957 = vld [vmem:[%s926 + $0x4e] sm:$0xff]
        %v958 = vld [vmem:[%s926 + $0x66] sm:$0xff]
        %v959 = vld [vmem:[%s926 + $0x6e] sm:$0xff]
        %v960 = vld [vmem:[%s926 + $0x86] sm:$0xff]
        %v961 = vld [vmem:[%s926 + $0x8e] sm:$0xff]
        %v962 = vld [vmem:[%s926 + $0xa6] sm:$0xff]
        %v963 = vld [vmem:[%s926 + $0xae] sm:$0xff]
        %v964 = vld [vmem:[%s926 + $0xc6] sm:$0xff]
        %v965 = vld [vmem:[%s926 + $0xce] sm:$0xff]
        %v966 = vld [vmem:[%s926 + $0xe6] sm:$0xff]
        %v967 = vld [vmem:[%s926 + $0xee] sm:$0xff]
        %s968 = scalar_lea.vmem %s1, 128
        %v969 = vld [vmem:[%s968] sm:$0xff]
        %v970 = vld [vmem:[%s968 + $0x8] sm:$0xff]
        %v971 = vld [vmem:[%s968 + $0x10] sm:$0xff]
        %v972 = vld [vmem:[%s968 + $0x18] sm:$0xff]
        %v973 = vld [vmem:[%s968 + $0x20] sm:$0xff]
        %v974 = vld [vmem:[%s968 + $0x28] sm:$0xff]
        %v975 = vld [vmem:[%s968 + $0x30] sm:$0xff]
        %v976 = vld [vmem:[%s968 + $0x38] sm:$0xff]
        %v978 = vsel %vm337, %v952, 0
        %v981 = vsel %vm337, %v953, 0
        %v984 = vsel %vm337, %v954, 0
        %v987 = vsel %vm337, %v955, 0
        %v990 = vsel %vm337, %v956, 0
        %v993 = vsel %vm337, %v957, 0
        %v996 = vsel %vm337, %v958, 0
        %v999 = vsel %vm337, %v959, 0
        %v1002 = vsel %vm337, %v960, 0
        %v1005 = vsel %vm337, %v961, 0
        %v1008 = vsel %vm337, %v962, 0
        %v1011 = vsel %vm337, %v963, 0
        %v1014 = vsel %vm337, %v964, 0
        %v1017 = vsel %vm337, %v965, 0
        %v1020 = vsel %vm337, %v966, 0
        %v1023 = vsel %vm337, %v967, 0
        %1025 = vmatprep.subr.mxu0 %v970
        %1026 = vmatpush1.msra.mxu0 %v969
        %1027 = vmatprep.subr.mxu0 %v972
        %1028 = vmatpush1.msra.mxu0 %v971
        %1029 = vmatprep.subr.mxu0 %v974
        %1030 = vmatpush1.msra.mxu0 %v973
        %1031 = vmatprep.subr.mxu0 %v976
        %1032 = vmatpush1.msra.mxu0 %v975
        %1033 = vmatprep.subr.mxu0 0.0
        %1034 = vmatpush1.msra.mxu0 0.0
        %1035 = vmatprep.subr.mxu0 0.0
        %1036 = vmatpush1.msra.mxu0 0.0
        %1037 = vmatprep.subr.mxu0 0.0
        %1038 = vmatpush1.msra.mxu0 0.0
        %1039 = vmatprep.subr.mxu0 0.0
        %1040 = vmatpush1.msra.mxu0 0.0
        %1041 = vmatprep.subr.mxu0 0.0
        %1042 = vmatpush1.msra.mxu0 0.0
        %1043 = vmatprep.subr.mxu0 0.0
        %1044 = vmatpush1.msra.mxu0 0.0
        %1045 = vmatprep.subr.mxu0 0.0
        %1046 = vmatpush1.msra.mxu0 0.0
        %1047 = vmatprep.subr.mxu0 0.0
        %1048 = vmatpush1.msra.mxu0 0.0
        %1049 = vmatprep.subr.mxu0 0.0
        %1050 = vmatpush1.msra.mxu0 0.0
        %1051 = vmatprep.subr.mxu0 0.0
        %1052 = vmatpush1.msra.mxu0 0.0
        %1053 = vmatprep.subr.mxu0 0.0
        %1054 = vmatpush1.msra.mxu0 0.0
        %1055 = vmatprep.subr.mxu0 0.0
        %1056 = vmatpush1.msra.mxu0 0.0
        %1057 = vmatprep.subr.mxu0 0.0
        %1058 = vmatpush1.msra.mxu0 0.0
        %1059 = vmatprep.subr.mxu0 0.0
        %1060 = vmatpush1.msra.mxu0 0.0
        %1061 = vmatprep.subr.mxu0 0.0
        %1062 = vmatpush1.msra.mxu0 0.0
        %1063 = vmatprep.subr.mxu0 0.0
        %1064 = vmatpush1.msra.mxu0 0.0
        %1065 = vmatprep.subr.mxu0 0.0
        %1066 = vmatpush1.msra.mxu0 0.0
        %1067 = vmatprep.subr.mxu0 0.0
        %1068 = vmatpush1.msra.mxu0 0.0
        %1069 = vmatprep.subr.mxu0 0.0
        %1070 = vmatpush1.msra.mxu0 0.0
        %1071 = vmatprep.subr.mxu0 0.0
        %1072 = vmatpush1.msra.mxu0 0.0
        %1073 = vmatprep.subr.mxu0 0.0
        %1074 = vmatpush1.msra.mxu0 0.0
        %1075 = vmatprep.subr.mxu0 0.0
        %1076 = vmatpush1.msra.mxu0 0.0
        %1077 = vmatprep.subr.mxu0 0.0
        %1078 = vmatpush1.msra.mxu0 0.0
        %1079 = vmatprep.subr.mxu0 0.0
        %1080 = vmatpush1.msra.mxu0 0.0
        %1081 = vmatprep.subr.mxu0 0.0
        %1082 = vmatpush1.msra.mxu0 0.0
        %1083 = vmatprep.subr.mxu0 0.0
        %1084 = vmatpush1.msra.mxu0 0.0
        %1085 = vmatprep.subr.mxu0 0.0
        %1086 = vmatpush1.msra.mxu0 0.0
        %1087 = vmatprep.subr.mxu0 0.0
        %1088 = vmatpush1.msra.mxu0 0.0
        %1089 = vmatprep.mubr.f32.mxu0 0.0
        %1090 = vmatmul.mubr.f32.gmra.mrb[0].mxu0 %v978
        %v1091 = vpop.f32.mrb[0].mxu0
        %v1092 = vadd.f32 0.0, %v1091
        %v1093 = vpop.f32.mrb[0].mxu0
        %v1094 = vadd.f32 0.0, %v1093
        %1095 = vmatprep.mubr.f32.mxu0 0.0
        %1096 = vmatmul.mubr.f32.gmra.mrb[0].mxu0 %v981
        %v1097 = vpop.f32.mrb[0].mxu0
        %v1098 = vadd.f32 0.0, %v1097
        %v1099 = vpop.f32.mrb[0].mxu0
        %v1100 = vadd.f32 0.0, %v1099
        %1101 = vmatprep.mubr.f32.mxu0 0.0
        %1102 = vmatmul.mubr.f32.gmra.mrb[0].mxu0 %v984
        %v1103 = vpop.f32.mrb[0].mxu0
        %v1104 = vadd.f32 0.0, %v1103
        %v1105 = vpop.f32.mrb[0].mxu0
        %v1106 = vadd.f32 0.0, %v1105
        %1107 = vmatprep.mubr.f32.mxu0 0.0
        %1108 = vmatmul.mubr.f32.gmra.mrb[0].mxu0 %v987
        %v1109 = vpop.f32.mrb[0].mxu0
        %v1110 = vadd.f32 0.0, %v1109
        %v1111 = vpop.f32.mrb[0].mxu0
        %v1112 = vadd.f32 0.0, %v1111
        %1113 = vmatprep.mubr.f32.mxu0 0.0
        %1114 = vmatmul.mubr.f32.gmra.mrb[0].mxu0 %v990
        %v1115 = vpop.f32.mrb[0].mxu0
        %v1116 = vadd.f32 0.0, %v1115
        %v1117 = vpop.f32.mrb[0].mxu0
        %v1118 = vadd.f32 0.0, %v1117
        %1119 = vmatprep.mubr.f32.mxu0 0.0
        %1120 = vmatmul.mubr.f32.gmra.mrb[0].mxu0 %v993
        %v1121 = vpop.f32.mrb[0].mxu0
        %v1122 = vadd.f32 0.0, %v1121
        %v1123 = vpop.f32.mrb[0].mxu0
        %v1124 = vadd.f32 0.0, %v1123
        %1125 = vmatprep.mubr.f32.mxu0 0.0
        %1126 = vmatmul.mubr.f32.gmra.mrb[0].mxu0 %v996
        %v1127 = vpop.f32.mrb[0].mxu0
        %v1128 = vadd.f32 0.0, %v1127
        %v1129 = vpop.f32.mrb[0].mxu0
        %v1130 = vadd.f32 0.0, %v1129
        %1131 = vmatprep.mubr.f32.mxu0 0.0
        %1132 = vmatmul.mubr.f32.gmra.mrb[0].mxu0 %v999
        %v1133 = vpop.f32.mrb[0].mxu0
        %v1134 = vadd.f32 0.0, %v1133
        %v1135 = vpop.f32.mrb[0].mxu0
        %v1136 = vadd.f32 0.0, %v1135
        %1137 = vmatprep.mubr.f32.mxu0 0.0
        %1138 = vmatmul.mubr.f32.gmra.mrb[0].mxu0 %v1002
        %v1139 = vpop.f32.mrb[0].mxu0
        %v1140 = vadd.f32 0.0, %v1139
        %v1141 = vpop.f32.mrb[0].mxu0
        %v1142 = vadd.f32 0.0, %v1141
        %1143 = vmatprep.mubr.f32.mxu0 0.0
        %1144 = vmatmul.mubr.f32.gmra.mrb[0].mxu0 %v1005
        %v1145 = vpop.f32.mrb[0].mxu0
        %v1146 = vadd.f32 0.0, %v1145
        %v1147 = vpop.f32.mrb[0].mxu0
        %v1148 = vadd.f32 0.0, %v1147
        %1149 = vmatprep.mubr.f32.mxu0 0.0
        %1150 = vmatmul.mubr.f32.gmra.mrb[0].mxu0 %v1008
        %v1151 = vpop.f32.mrb[0].mxu0
        %v1152 = vadd.f32 0.0, %v1151
        %v1153 = vpop.f32.mrb[0].mxu0
        %v1154 = vadd.f32 0.0, %v1153
        %1155 = vmatprep.mubr.f32.mxu0 0.0
        %1156 = vmatmul.mubr.f32.gmra.mrb[0].mxu0 %v1011
        %v1157 = vpop.f32.mrb[0].mxu0
        %v1158 = vadd.f32 0.0, %v1157
        %v1159 = vpop.f32.mrb[0].mxu0
        %v1160 = vadd.f32 0.0, %v1159
        %1161 = vmatprep.mubr.f32.mxu0 0.0
        %1162 = vmatmul.mubr.f32.gmra.mrb[0].mxu0 %v1014
        %v1163 = vpop.f32.mrb[0].mxu0
        %v1164 = vadd.f32 0.0, %v1163
        %v1165 = vpop.f32.mrb[0].mxu0
        %v1166 = vadd.f32 0.0, %v1165
        %1167 = vmatprep.mubr.f32.mxu0 0.0
        %1168 = vmatmul.mubr.f32.gmra.mrb[0].mxu0 %v1017
        %v1169 = vpop.f32.mrb[0].mxu0
        %v1170 = vadd.f32 0.0, %v1169
        %v1171 = vpop.f32.mrb[0].mxu0
        %v1172 = vadd.f32 0.0, %v1171
        %1173 = vmatprep.mubr.f32.mxu0 0.0
        %1174 = vmatmul.mubr.f32.gmra.mrb[0].mxu0 %v1020
        %v1175 = vpop.f32.mrb[0].mxu0
        %v1176 = vadd.f32 0.0, %v1175
        %v1177 = vpop.f32.mrb[0].mxu0
        %v1178 = vadd.f32 0.0, %v1177
        %1179 = vmatprep.mubr.f32.mxu0 0.0
        %1180 = vmatmul.mubr.f32.gmra.mrb[0].mxu0 %v1023
        %v1181 = vpop.f32.mrb[0].mxu0
        %v1182 = vadd.f32 0.0, %v1181
        %v1183 = vpop.f32.mrb[0].mxu0
        %v1184 = vadd.f32 0.0, %v1183
        %1185 = vdwg.mxu0
        %v1187 = vsel %vm337, %v927, 0
        %v1190 = vsel %vm337, %v928, 0
        %v1193 = vsel %vm337, %v929, 0
        %v1196 = vsel %vm337, %v930, 0
        %v1199 = vsel %vm337, %v931, 0
        %v1202 = vsel %vm337, %v932, 0
        %v1205 = vsel %vm337, %v933, 0
        %v1208 = vsel %vm337, %v934, 0
        %v1211 = vsel %vm337, %v935, 0
        %v1214 = vsel %vm337, %v936, 0
        %v1217 = vsel %vm337, %v937, 0
        %v1220 = vsel %vm337, %v938, 0
        %v1223 = vsel %vm337, %v939, 0
        %v1226 = vsel %vm337, %v940, 0
        %v1229 = vsel %vm337, %v941, 0
        %v1232 = vsel %vm337, %v942, 0
        %1234 = vmatprep.subr.mxu0 %v945
        %1235 = vmatpush1.msra.mxu0 %v944
        %1236 = vmatprep.subr.mxu0 %v947
        %1237 = vmatpush1.msra.mxu0 %v946
        %1238 = vmatprep.subr.mxu0 %v949
        %1239 = vmatpush1.msra.mxu0 %v948
        %1240 = vmatprep.subr.mxu0 %v951
        %1241 = vmatpush1.msra.mxu0 %v950
        %1242 = vmatprep.subr.mxu0 0.0
        %1243 = vmatpush1.msra.mxu0 0.0
        %1244 = vmatprep.subr.mxu0 0.0
        %1245 = vmatpush1.msra.mxu0 0.0
        %1246 = vmatprep.subr.mxu0 0.0
        %1247 = vmatpush1.msra.mxu0 0.0
        %1248 = vmatprep.subr.mxu0 0.0
        %1249 = vmatpush1.msra.mxu0 0.0
        %1250 = vmatprep.subr.mxu0 0.0
        %1251 = vmatpush1.msra.mxu0 0.0
        %1252 = vmatprep.subr.mxu0 0.0
        %1253 = vmatpush1.msra.mxu0 0.0
        %1254 = vmatprep.subr.mxu0 0.0
        %1255 = vmatpush1.msra.mxu0 0.0
        %1256 = vmatprep.subr.mxu0 0.0
        %1257 = vmatpush1.msra.mxu0 0.0
        %1258 = vmatprep.subr.mxu0 0.0
        %1259 = vmatpush1.msra.mxu0 0.0
        %1260 = vmatprep.subr.mxu0 0.0
        %1261 = vmatpush1.msra.mxu0 0.0
        %1262 = vmatprep.subr.mxu0 0.0
        %1263 = vmatpush1.msra.mxu0 0.0
        %1264 = vmatprep.subr.mxu0 0.0
        %1265 = vmatpush1.msra.mxu0 0.0
        %1266 = vmatprep.subr.mxu0 0.0
        %1267 = vmatpush1.msra.mxu0 0.0
        %1268 = vmatprep.subr.mxu0 0.0
        %1269 = vmatpush1.msra.mxu0 0.0
        %1270 = vmatprep.subr.mxu0 0.0
        %1271 = vmatpush1.msra.mxu0 0.0
        %1272 = vmatprep.subr.mxu0 0.0
        %1273 = vmatpush1.msra.mxu0 0.0
        %1274 = vmatprep.subr.mxu0 0.0
        %1275 = vmatpush1.msra.mxu0 0.0
        %1276 = vmatprep.subr.mxu0 0.0
        %1277 = vmatpush1.msra.mxu0 0.0
        %1278 = vmatprep.subr.mxu0 0.0
        %1279 = vmatpush1.msra.mxu0 0.0
        %1280 = vmatprep.subr.mxu0 0.0
        %1281 = vmatpush1.msra.mxu0 0.0
        %1282 = vmatprep.subr.mxu0 0.0
        %1283 = vmatpush1.msra.mxu0 0.0
        %1284 = vmatprep.subr.mxu0 0.0
        %1285 = vmatpush1.msra.mxu0 0.0
        %1286 = vmatprep.subr.mxu0 0.0
        %1287 = vmatpush1.msra.mxu0 0.0
        %1288 = vmatprep.subr.mxu0 0.0
        %1289 = vmatpush1.msra.mxu0 0.0
        %1290 = vmatprep.subr.mxu0 0.0
        %1291 = vmatpush1.msra.mxu0 0.0
        %1292 = vmatprep.subr.mxu0 0.0
        %1293 = vmatpush1.msra.mxu0 0.0
        %1294 = vmatprep.subr.mxu0 0.0
        %1295 = vmatpush1.msra.mxu0 0.0
        %1296 = vmatprep.subr.mxu0 0.0
        %1297 = vmatpush1.msra.mxu0 0.0
        %1298 = vmatprep.mubr.f32.mxu0 0.0
        %1299 = vmatmul.mubr.f32.gmra.mrb[0].mxu0 %v1187
        %v1300 = vpop.f32.mrb[0].mxu0
        %v1301 = vadd.f32 %v1092, %v1300
        %v1302 = vpop.f32.mrb[0].mxu0
        %v1303 = vadd.f32 %v1094, %v1302
        %1304 = vmatprep.mubr.f32.mxu0 0.0
        %1305 = vmatmul.mubr.f32.gmra.mrb[0].mxu0 %v1190
        %v1306 = vpop.f32.mrb[0].mxu0
        %v1307 = vadd.f32 %v1098, %v1306
        %v1308 = vpop.f32.mrb[0].mxu0
        %v1309 = vadd.f32 %v1100, %v1308
        %1310 = vmatprep.mubr.f32.mxu0 0.0
        %1311 = vmatmul.mubr.f32.gmra.mrb[0].mxu0 %v1193
        %v1312 = vpop.f32.mrb[0].mxu0
        %v1313 = vadd.f32 %v1104, %v1312
        %v1314 = vpop.f32.mrb[0].mxu0
        %v1315 = vadd.f32 %v1106, %v1314
        %1316 = vmatprep.mubr.f32.mxu0 0.0
        %1317 = vmatmul.mubr.f32.gmra.mrb[0].mxu0 %v1196
        %v1318 = vpop.f32.mrb[0].mxu0
        %v1319 = vadd.f32 %v1110, %v1318
        %v1320 = vpop.f32.mrb[0].mxu0
        %v1321 = vadd.f32 %v1112, %v1320
        %1322 = vmatprep.mubr.f32.mxu0 0.0
        %1323 = vmatmul.mubr.f32.gmra.mrb[0].mxu0 %v1199
        %v1324 = vpop.f32.mrb[0].mxu0
        %v1325 = vadd.f32 %v1116, %v1324
        %v1326 = vpop.f32.mrb[0].mxu0
        %v1327 = vadd.f32 %v1118, %v1326
        %1328 = vmatprep.mubr.f32.mxu0 0.0
        %1329 = vmatmul.mubr.f32.gmra.mrb[0].mxu0 %v1202
        %v1330 = vpop.f32.mrb[0].mxu0
        %v1331 = vadd.f32 %v1122, %v1330
        %v1332 = vpop.f32.mrb[0].mxu0
        %v1333 = vadd.f32 %v1124, %v1332
        %1334 = vmatprep.mubr.f32.mxu0 0.0
        %1335 = vmatmul.mubr.f32.gmra.mrb[0].mxu0 %v1205
        %v1336 = vpop.f32.mrb[0].mxu0
        %v1337 = vadd.f32 %v1128, %v1336
        %v1338 = vpop.f32.mrb[0].mxu0
        %v1339 = vadd.f32 %v1130, %v1338
        %1340 = vmatprep.mubr.f32.mxu0 0.0
        %1341 = vmatmul.mubr.f32.gmra.mrb[0].mxu0 %v1208
        %v1342 = vpop.f32.mrb[0].mxu0
        %v1343 = vadd.f32 %v1134, %v1342
        %v1344 = vpop.f32.mrb[0].mxu0
        %v1345 = vadd.f32 %v1136, %v1344
        %1346 = vmatprep.mubr.f32.mxu0 0.0
        %1347 = vmatmul.mubr.f32.gmra.mrb[0].mxu0 %v1211
        %v1348 = vpop.f32.mrb[0].mxu0
        %v1349 = vadd.f32 %v1140, %v1348
        %v1350 = vpop.f32.mrb[0].mxu0
        %v1351 = vadd.f32 %v1142, %v1350
        %1352 = vmatprep.mubr.f32.mxu0 0.0
        %1353 = vmatmul.mubr.f32.gmra.mrb[0].mxu0 %v1214
        %v1354 = vpop.f32.mrb[0].mxu0
        %v1355 = vadd.f32 %v1146, %v1354
        %v1356 = vpop.f32.mrb[0].mxu0
        %v1357 = vadd.f32 %v1148, %v1356
        %1358 = vmatprep.mubr.f32.mxu0 0.0
        %1359 = vmatmul.mubr.f32.gmra.mrb[0].mxu0 %v1217
        %v1360 = vpop.f32.mrb[0].mxu0
        %v1361 = vadd.f32 %v1152, %v1360
        %v1362 = vpop.f32.mrb[0].mxu0
        %v1363 = vadd.f32 %v1154, %v1362
        %1364 = vmatprep.mubr.f32.mxu0 0.0
        %1365 = vmatmul.mubr.f32.gmra.mrb[0].mxu0 %v1220
        %v1366 = vpop.f32.mrb[0].mxu0
        %v1367 = vadd.f32 %v1158, %v1366
        %v1368 = vpop.f32.mrb[0].mxu0
        %v1369 = vadd.f32 %v1160, %v1368
        %1370 = vmatprep.mubr.f32.mxu0 0.0
        %1371 = vmatmul.mubr.f32.gmra.mrb[0].mxu0 %v1223
        %v1372 = vpop.f32.mrb[0].mxu0
        %v1373 = vadd.f32 %v1164, %v1372
        %v1374 = vpop.f32.mrb[0].mxu0
        %v1375 = vadd.f32 %v1166, %v1374
        %1376 = vmatprep.mubr.f32.mxu0 0.0
        %1377 = vmatmul.mubr.f32.gmra.mrb[0].mxu0 %v1226
        %v1378 = vpop.f32.mrb[0].mxu0
        %v1379 = vadd.f32 %v1170, %v1378
        %v1380 = vpop.f32.mrb[0].mxu0
        %v1381 = vadd.f32 %v1172, %v1380
        %1382 = vmatprep.mubr.f32.mxu0 0.0
        %1383 = vmatmul.mubr.f32.gmra.mrb[0].mxu0 %v1229
        %v1384 = vpop.f32.mrb[0].mxu0
        %v1385 = vadd.f32 %v1176, %v1384
        %v1386 = vpop.f32.mrb[0].mxu0
        %v1387 = vadd.f32 %v1178, %v1386
        %1388 = vmatprep.mubr.f32.mxu0 0.0
        %1389 = vmatmul.mubr.f32.gmra.mrb[0].mxu0 %v1232
        %v1390 = vpop.f32.mrb[0].mxu0
        %v1391 = vadd.f32 %v1182, %v1390
        %v1392 = vpop.f32.mrb[0].mxu0
        %v1393 = vadd.f32 %v1184, %v1392
        %1394 = vdwg.mxu0
        %v1395 = vld [vmem:[%s926 + $0x8] sm:$0xff]
        %v1396 = vld [vmem:[%s926 + $0x10] sm:$0xff]
        %v1397 = vld [vmem:[%s926 + $0x28] sm:$0xff]
        %v1398 = vld [vmem:[%s926 + $0x30] sm:$0xff]
        %v1399 = vld [vmem:[%s926 + $0x48] sm:$0xff]
        %v1400 = vld [vmem:[%s926 + $0x50] sm:$0xff]
        %v1401 = vld [vmem:[%s926 + $0x68] sm:$0xff]
        %v1402 = vld [vmem:[%s926 + $0x70] sm:$0xff]
        %v1403 = vld [vmem:[%s926 + $0x88] sm:$0xff]
        %v1404 = vld [vmem:[%s926 + $0x90] sm:$0xff]
        %v1405 = vld [vmem:[%s926 + $0xa8] sm:$0xff]
        %v1406 = vld [vmem:[%s926 + $0xb0] sm:$0xff]
        %v1407 = vld [vmem:[%s926 + $0xc8] sm:$0xff]
        %v1408 = vld [vmem:[%s926 + $0xd0] sm:$0xff]
        %v1409 = vld [vmem:[%s926 + $0xe8] sm:$0xff]
        %v1410 = vld [vmem:[%s926 + $0xf0] sm:$0xff]
        %s1411 = scalar_lea.vmem %s1, 192
        %v1412 = vld [vmem:[%s1411] sm:$0xff]
        %v1413 = vld [vmem:[%s1411 + $0x8] sm:$0xff]
        %v1414 = vld [vmem:[%s1411 + $0x10] sm:$0xff]
        %v1415 = vld [vmem:[%s1411 + $0x18] sm:$0xff]
        %v1416 = vld [vmem:[%s1411 + $0x20] sm:$0xff]
        %v1417 = vld [vmem:[%s1411 + $0x28] sm:$0xff]
        %v1418 = vld [vmem:[%s1411 + $0x30] sm:$0xff]
        %v1419 = vld [vmem:[%s1411 + $0x38] sm:$0xff]
        %v1421 = vsel %vm337, %v1395, 0
        %v1424 = vsel %vm337, %v1396, 0
        %v1427 = vsel %vm337, %v1397, 0
        %v1430 = vsel %vm337, %v1398, 0
        %v1433 = vsel %vm337, %v1399, 0
        %v1436 = vsel %vm337, %v1400, 0
        %v1439 = vsel %vm337, %v1401, 0
        %v1442 = vsel %vm337, %v1402, 0
        %v1445 = vsel %vm337, %v1403, 0
        %v1448 = vsel %vm337, %v1404, 0
        %v1451 = vsel %vm337, %v1405, 0
        %v1454 = vsel %vm337, %v1406, 0
        %v1457 = vsel %vm337, %v1407, 0
        %v1460 = vsel %vm337, %v1408, 0
        %v1463 = vsel %vm337, %v1409, 0
        %v1466 = vsel %vm337, %v1410, 0
        %1468 = vmatprep.subr.mxu0 %v1413
        %1469 = vmatpush1.msra.mxu0 %v1412
        %1470 = vmatprep.subr.mxu0 %v1415
        %1471 = vmatpush1.msra.mxu0 %v1414
        %1472 = vmatprep.subr.mxu0 %v1417
        %1473 = vmatpush1.msra.mxu0 %v1416
        %1474 = vmatprep.subr.mxu0 %v1419
        %1475 = vmatpush1.msra.mxu0 %v1418
        %1476 = vmatprep.subr.mxu0 0.0
        %1477 = vmatpush1.msra.mxu0 0.0
        %1478 = vmatprep.subr.mxu0 0.0
        %1479 = vmatpush1.msra.mxu0 0.0
        %1480 = vmatprep.subr.mxu0 0.0
        %1481 = vmatpush1.msra.mxu0 0.0
        %1482 = vmatprep.subr.mxu0 0.0
        %1483 = vmatpush1.msra.mxu0 0.0
        %1484 = vmatprep.subr.mxu0 0.0
        %1485 = vmatpush1.msra.mxu0 0.0
        %1486 = vmatprep.subr.mxu0 0.0
        %1487 = vmatpush1.msra.mxu0 0.0
        %1488 = vmatprep.subr.mxu0 0.0
        %1489 = vmatpush1.msra.mxu0 0.0
        %1490 = vmatprep.subr.mxu0 0.0
        %1491 = vmatpush1.msra.mxu0 0.0
        %1492 = vmatprep.subr.mxu0 0.0
        %1493 = vmatpush1.msra.mxu0 0.0
        %1494 = vmatprep.subr.mxu0 0.0
        %1495 = vmatpush1.msra.mxu0 0.0
        %1496 = vmatprep.subr.mxu0 0.0
        %1497 = vmatpush1.msra.mxu0 0.0
        %1498 = vmatprep.subr.mxu0 0.0
        %1499 = vmatpush1.msra.mxu0 0.0
        %1500 = vmatprep.subr.mxu0 0.0
        %1501 = vmatpush1.msra.mxu0 0.0
        %1502 = vmatprep.subr.mxu0 0.0
        %1503 = vmatpush1.msra.mxu0 0.0
        %1504 = vmatprep.subr.mxu0 0.0
        %1505 = vmatpush1.msra.mxu0 0.0
        %1506 = vmatprep.subr.mxu0 0.0
        %1507 = vmatpush1.msra.mxu0 0.0
        %1508 = vmatprep.subr.mxu0 0.0
        %1509 = vmatpush1.msra.mxu0 0.0
        %1510 = vmatprep.subr.mxu0 0.0
        %1511 = vmatpush1.msra.mxu0 0.0
        %1512 = vmatprep.subr.mxu0 0.0
        %1513 = vmatpush1.msra.mxu0 0.0
        %1514 = vmatprep.subr.mxu0 0.0
        %1515 = vmatpush1.msra.mxu0 0.0
        %1516 = vmatprep.subr.mxu0 0.0
        %1517 = vmatpush1.msra.mxu0 0.0
        %1518 = vmatprep.subr.mxu0 0.0
        %1519 = vmatpush1.msra.mxu0 0.0
        %1520 = vmatprep.subr.mxu0 0.0
        %1521 = vmatpush1.msra.mxu0 0.0
        %1522 = vmatprep.subr.mxu0 0.0
        %1523 = vmatpush1.msra.mxu0 0.0
        %1524 = vmatprep.subr.mxu0 0.0
        %1525 = vmatpush1.msra.mxu0 0.0
        %1526 = vmatprep.subr.mxu0 0.0
        %1527 = vmatpush1.msra.mxu0 0.0
        %1528 = vmatprep.subr.mxu0 0.0
        %1529 = vmatpush1.msra.mxu0 0.0
        %1530 = vmatprep.subr.mxu0 0.0
        %1531 = vmatpush1.msra.mxu0 0.0
        %1532 = vmatprep.mubr.f32.mxu0 0.0
        %1533 = vmatmul.mubr.f32.gmra.mrb[0].mxu0 %v1421
        %v1534 = vpop.f32.mrb[0].mxu0
        %v1535 = vadd.f32 0.0, %v1534
        %v1536 = vpop.f32.mrb[0].mxu0
        %v1537 = vadd.f32 0.0, %v1536
        %1538 = vmatprep.mubr.f32.mxu0 0.0
        %1539 = vmatmul.mubr.f32.gmra.mrb[0].mxu0 %v1424
        %v1540 = vpop.f32.mrb[0].mxu0
        %v1541 = vadd.f32 0.0, %v1540
        %v1542 = vpop.f32.mrb[0].mxu0
        %v1543 = vadd.f32 0.0, %v1542
        %1544 = vmatprep.mubr.f32.mxu0 0.0
        %1545 = vmatmul.mubr.f32.gmra.mrb[0].mxu0 %v1427
        %v1546 = vpop.f32.mrb[0].mxu0
        %v1547 = vadd.f32 0.0, %v1546
        %v1548 = vpop.f32.mrb[0].mxu0
        %v1549 = vadd.f32 0.0, %v1548
        %1550 = vmatprep.mubr.f32.mxu0 0.0
        %1551 = vmatmul.mubr.f32.gmra.mrb[0].mxu0 %v1430
        %v1552 = vpop.f32.mrb[0].mxu0
        %v1553 = vadd.f32 0.0, %v1552
        %v1554 = vpop.f32.mrb[0].mxu0
        %v1555 = vadd.f32 0.0, %v1554
        %1556 = vmatprep.mubr.f32.mxu0 0.0
        %1557 = vmatmul.mubr.f32.gmra.mrb[0].mxu0 %v1433
        %v1558 = vpop.f32.mrb[0].mxu0
        %v1559 = vadd.f32 0.0, %v1558
        %v1560 = vpop.f32.mrb[0].mxu0
        %v1561 = vadd.f32 0.0, %v1560
        %1562 = vmatprep.mubr.f32.mxu0 0.0
        %1563 = vmatmul.mubr.f32.gmra.mrb[0].mxu0 %v1436
        %v1564 = vpop.f32.mrb[0].mxu0
        %v1565 = vadd.f32 0.0, %v1564
        %v1566 = vpop.f32.mrb[0].mxu0
        %v1567 = vadd.f32 0.0, %v1566
        %1568 = vmatprep.mubr.f32.mxu0 0.0
        %1569 = vmatmul.mubr.f32.gmra.mrb[0].mxu0 %v1439
        %v1570 = vpop.f32.mrb[0].mxu0
        %v1571 = vadd.f32 0.0, %v1570
        %v1572 = vpop.f32.mrb[0].mxu0
        %v1573 = vadd.f32 0.0, %v1572
        %1574 = vmatprep.mubr.f32.mxu0 0.0
        %1575 = vmatmul.mubr.f32.gmra.mrb[0].mxu0 %v1442
        %v1576 = vpop.f32.mrb[0].mxu0
        %v1577 = vadd.f32 0.0, %v1576
        %v1578 = vpop.f32.mrb[0].mxu0
        %v1579 = vadd.f32 0.0, %v1578
        %1580 = vmatprep.mubr.f32.mxu0 0.0
        %1581 = vmatmul.mubr.f32.gmra.mrb[0].mxu0 %v1445
        %v1582 = vpop.f32.mrb[0].mxu0
        %v1583 = vadd.f32 0.0, %v1582
        %v1584 = vpop.f32.mrb[0].mxu0
        %v1585 = vadd.f32 0.0, %v1584
        %1586 = vmatprep.mubr.f32.mxu0 0.0
        %1587 = vmatmul.mubr.f32.gmra.mrb[0].mxu0 %v1448
        %v1588 = vpop.f32.mrb[0].mxu0
        %v1589 = vadd.f32 0.0, %v1588
        %v1590 = vpop.f32.mrb[0].mxu0
        %v1591 = vadd.f32 0.0, %v1590
        %1592 = vmatprep.mubr.f32.mxu0 0.0
        %1593 = vmatmul.mubr.f32.gmra.mrb[0].mxu0 %v1451
        %v1594 = vpop.f32.mrb[0].mxu0
        %v1595 = vadd.f32 0.0, %v1594
        %v1596 = vpop.f32.mrb[0].mxu0
        %v1597 = vadd.f32 0.0, %v1596
        %1598 = vmatprep.mubr.f32.mxu0 0.0
        %1599 = vmatmul.mubr.f32.gmra.mrb[0].mxu0 %v1454
        %v1600 = vpop.f32.mrb[0].mxu0
        %v1601 = vadd.f32 0.0, %v1600
        %v1602 = vpop.f32.mrb[0].mxu0
        %v1603 = vadd.f32 0.0, %v1602
        %1604 = vmatprep.mubr.f32.mxu0 0.0
        %1605 = vmatmul.mubr.f32.gmra.mrb[0].mxu0 %v1457
        %v1606 = vpop.f32.mrb[0].mxu0
        %v1607 = vadd.f32 0.0, %v1606
        %v1608 = vpop.f32.mrb[0].mxu0
        %v1609 = vadd.f32 0.0, %v1608
        %1610 = vmatprep.mubr.f32.mxu0 0.0
        %1611 = vmatmul.mubr.f32.gmra.mrb[0].mxu0 %v1460
        %v1612 = vpop.f32.mrb[0].mxu0
        %v1613 = vadd.f32 0.0, %v1612
        %v1614 = vpop.f32.mrb[0].mxu0
        %v1615 = vadd.f32 0.0, %v1614
        %1616 = vmatprep.mubr.f32.mxu0 0.0
        %1617 = vmatmul.mubr.f32.gmra.mrb[0].mxu0 %v1463
        %v1618 = vpop.f32.mrb[0].mxu0
        %v1619 = vadd.f32 0.0, %v1618
        %v1620 = vpop.f32.mrb[0].mxu0
        %v1621 = vadd.f32 0.0, %v1620
        %1622 = vmatprep.mubr.f32.mxu0 0.0
        %1623 = vmatmul.mubr.f32.gmra.mrb[0].mxu0 %v1466
        %v1624 = vpop.f32.mrb[0].mxu0
        %v1625 = vadd.f32 0.0, %v1624
        %v1626 = vpop.f32.mrb[0].mxu0
        %v1627 = vadd.f32 0.0, %v1626
        %1628 = vdwg.mxu0
        %v1629 = vadd.f32 %v1301, %v1535
        %v1630 = vadd.f32 %v1303, %v1537
        %v1631 = vadd.f32 %v1307, %v1541
        %v1632 = vadd.f32 %v1309, %v1543
        %v1633 = vadd.f32 %v1313, %v1547
        %v1634 = vadd.f32 %v1315, %v1549
        %v1635 = vadd.f32 %v1319, %v1553
        %v1636 = vadd.f32 %v1321, %v1555
        %v1637 = vadd.f32 %v1325, %v1559
        %v1638 = vadd.f32 %v1327, %v1561
        %v1639 = vadd.f32 %v1331, %v1565
        %v1640 = vadd.f32 %v1333, %v1567
        %v1641 = vadd.f32 %v1337, %v1571
        %v1642 = vadd.f32 %v1339, %v1573
        %v1643 = vadd.f32 %v1343, %v1577
        %v1644 = vadd.f32 %v1345, %v1579
        %v1645 = vadd.f32 %v1349, %v1583
        %v1646 = vadd.f32 %v1351, %v1585
        %v1647 = vadd.f32 %v1355, %v1589
        %v1648 = vadd.f32 %v1357, %v1591
        %v1649 = vadd.f32 %v1361, %v1595
        %v1650 = vadd.f32 %v1363, %v1597
        %v1651 = vadd.f32 %v1367, %v1601
        %v1652 = vadd.f32 %v1369, %v1603
        %v1653 = vadd.f32 %v1373, %v1607
        %v1654 = vadd.f32 %v1375, %v1609
        %v1655 = vadd.f32 %v1379, %v1613
        %v1656 = vadd.f32 %v1381, %v1615
        %v1657 = vadd.f32 %v1385, %v1619
        %v1658 = vadd.f32 %v1387, %v1621
        %v1659 = vadd.f32 %v1391, %v1625
        %v1660 = vadd.f32 %v1393, %v1627
        %v1661 = vld [vmem:[%s312 + $0x4] sm:$0xff]
        %v1662 = vld [vmem:[%s312 + $0xc] sm:$0xff]
        %v1663 = vld [vmem:[%s312 + $0x24] sm:$0xff]
        %v1664 = vld [vmem:[%s312 + $0x2c] sm:$0xff]
        %v1665 = vld [vmem:[%s312 + $0x44] sm:$0xff]
        %v1666 = vld [vmem:[%s312 + $0x4c] sm:$0xff]
        %v1667 = vld [vmem:[%s312 + $0x64] sm:$0xff]
        %v1668 = vld [vmem:[%s312 + $0x6c] sm:$0xff]
        %v1669 = vld [vmem:[%s312 + $0x84] sm:$0xff]
        %v1670 = vld [vmem:[%s312 + $0x8c] sm:$0xff]
        %v1671 = vld [vmem:[%s312 + $0xa4] sm:$0xff]
        %v1672 = vld [vmem:[%s312 + $0xac] sm:$0xff]
        %v1673 = vld [vmem:[%s312 + $0xc4] sm:$0xff]
        %v1674 = vld [vmem:[%s312 + $0xcc] sm:$0xff]
        %v1675 = vld [vmem:[%s312 + $0xe4] sm:$0xff]
        %v1676 = vld [vmem:[%s312 + $0xec] sm:$0xff]
        %s1677 = scalar_lea.vmem %s1, 256
        %v1678 = vld [vmem:[%s1677] sm:$0xff]
        %v1679 = vld [vmem:[%s1677 + $0x8] sm:$0xff]
        %v1680 = vld [vmem:[%s1677 + $0x10] sm:$0xff]
        %v1681 = vld [vmem:[%s1677 + $0x18] sm:$0xff]
        %v1682 = vld [vmem:[%s1677 + $0x20] sm:$0xff]
        %v1683 = vld [vmem:[%s1677 + $0x28] sm:$0xff]
        %v1684 = vld [vmem:[%s1677 + $0x30] sm:$0xff]
        %v1685 = vld [vmem:[%s1677 + $0x38] sm:$0xff]
        %v1687 = vsel %vm337, %v1661, 0
        %v1690 = vsel %vm337, %v1662, 0
        %v1693 = vsel %vm337, %v1663, 0
        %v1696 = vsel %vm337, %v1664, 0
        %v1699 = vsel %vm337, %v1665, 0
        %v1702 = vsel %vm337, %v1666, 0
        %v1705 = vsel %vm337, %v1667, 0
        %v1708 = vsel %vm337, %v1668, 0
        %v1711 = vsel %vm337, %v1669, 0
        %v1714 = vsel %vm337, %v1670, 0
        %v1717 = vsel %vm337, %v1671, 0
        %v1720 = vsel %vm337, %v1672, 0
        %v1723 = vsel %vm337, %v1673, 0
        %v1726 = vsel %vm337, %v1674, 0
        %v1729 = vsel %vm337, %v1675, 0
        %v1732 = vsel %vm337, %v1676, 0
        %1734 = vmatprep.subr.mxu0 %v1679
        %1735 = vmatpush1.msra.mxu0 %v1678
        %1736 = vmatprep.subr.mxu0 %v1681
        %1737 = vmatpush1.msra.mxu0 %v1680
        %1738 = vmatprep.subr.mxu0 %v1683
        %1739 = vmatpush1.msra.mxu0 %v1682
        %1740 = vmatprep.subr.mxu0 %v1685
        %1741 = vmatpush1.msra.mxu0 %v1684
        %1742 = vmatprep.subr.mxu0 0.0
        %1743 = vmatpush1.msra.mxu0 0.0
        %1744 = vmatprep.subr.mxu0 0.0
        %1745 = vmatpush1.msra.mxu0 0.0
        %1746 = vmatprep.subr.mxu0 0.0
        %1747 = vmatpush1.msra.mxu0 0.0
        %1748 = vmatprep.subr.mxu0 0.0
        %1749 = vmatpush1.msra.mxu0 0.0
        %1750 = vmatprep.subr.mxu0 0.0
        %1751 = vmatpush1.msra.mxu0 0.0
        %1752 = vmatprep.subr.mxu0 0.0
        %1753 = vmatpush1.msra.mxu0 0.0
        %1754 = vmatprep.subr.mxu0 0.0
        %1755 = vmatpush1.msra.mxu0 0.0
        %1756 = vmatprep.subr.mxu0 0.0
        %1757 = vmatpush1.msra.mxu0 0.0
        %1758 = vmatprep.subr.mxu0 0.0
        %1759 = vmatpush1.msra.mxu0 0.0
        %1760 = vmatprep.subr.mxu0 0.0
        %1761 = vmatpush1.msra.mxu0 0.0
        %1762 = vmatprep.subr.mxu0 0.0
        %1763 = vmatpush1.msra.mxu0 0.0
        %1764 = vmatprep.subr.mxu0 0.0
        %1765 = vmatpush1.msra.mxu0 0.0
        %1766 = vmatprep.subr.mxu0 0.0
        %1767 = vmatpush1.msra.mxu0 0.0
        %1768 = vmatprep.subr.mxu0 0.0
        %1769 = vmatpush1.msra.mxu0 0.0
        %1770 = vmatprep.subr.mxu0 0.0
        %1771 = vmatpush1.msra.mxu0 0.0
        %1772 = vmatprep.subr.mxu0 0.0
        %1773 = vmatpush1.msra.mxu0 0.0
        %1774 = vmatprep.subr.mxu0 0.0
        %1775 = vmatpush1.msra.mxu0 0.0
        %1776 = vmatprep.subr.mxu0 0.0
        %1777 = vmatpush1.msra.mxu0 0.0
        %1778 = vmatprep.subr.mxu0 0.0
        %1779 = vmatpush1.msra.mxu0 0.0
        %1780 = vmatprep.subr.mxu0 0.0
        %1781 = vmatpush1.msra.mxu0 0.0
        %1782 = vmatprep.subr.mxu0 0.0
        %1783 = vmatpush1.msra.mxu0 0.0
        %1784 = vmatprep.subr.mxu0 0.0
        %1785 = vmatpush1.msra.mxu0 0.0
        %1786 = vmatprep.subr.mxu0 0.0
        %1787 = vmatpush1.msra.mxu0 0.0
        %1788 = vmatprep.subr.mxu0 0.0
        %1789 = vmatpush1.msra.mxu0 0.0
        %1790 = vmatprep.subr.mxu0 0.0
        %1791 = vmatpush1.msra.mxu0 0.0
        %1792 = vmatprep.subr.mxu0 0.0
        %1793 = vmatpush1.msra.mxu0 0.0
        %1794 = vmatprep.subr.mxu0 0.0
        %1795 = vmatpush1.msra.mxu0 0.0
        %1796 = vmatprep.subr.mxu0 0.0
        %1797 = vmatpush1.msra.mxu0 0.0
        %1798 = vmatprep.mubr.f32.mxu0 0.0
        %1799 = vmatmul.mubr.f32.gmra.mrb[0].mxu0 %v1687
        %v1800 = vpop.f32.mrb[0].mxu0
        %v1801 = vadd.f32 0.0, %v1800
        %v1802 = vpop.f32.mrb[0].mxu0
        %v1803 = vadd.f32 0.0, %v1802
        %1804 = vmatprep.mubr.f32.mxu0 0.0
        %1805 = vmatmul.mubr.f32.gmra.mrb[0].mxu0 %v1690
        %v1806 = vpop.f32.mrb[0].mxu0
        %v1807 = vadd.f32 0.0, %v1806
        %v1808 = vpop.f32.mrb[0].mxu0
        %v1809 = vadd.f32 0.0, %v1808
        %1810 = vmatprep.mubr.f32.mxu0 0.0
        %1811 = vmatmul.mubr.f32.gmra.mrb[0].mxu0 %v1693
        %v1812 = vpop.f32.mrb[0].mxu0
        %v1813 = vadd.f32 0.0, %v1812
        %v1814 = vpop.f32.mrb[0].mxu0
        %v1815 = vadd.f32 0.0, %v1814
        %1816 = vmatprep.mubr.f32.mxu0 0.0
        %1817 = vmatmul.mubr.f32.gmra.mrb[0].mxu0 %v1696
        %v1818 = vpop.f32.mrb[0].mxu0
        %v1819 = vadd.f32 0.0, %v1818
        %v1820 = vpop.f32.mrb[0].mxu0
        %v1821 = vadd.f32 0.0, %v1820
        %1822 = vmatprep.mubr.f32.mxu0 0.0
        %1823 = vmatmul.mubr.f32.gmra.mrb[0].mxu0 %v1699
        %v1824 = vpop.f32.mrb[0].mxu0
        %v1825 = vadd.f32 0.0, %v1824
        %v1826 = vpop.f32.mrb[0].mxu0
        %v1827 = vadd.f32 0.0, %v1826
        %1828 = vmatprep.mubr.f32.mxu0 0.0
        %1829 = vmatmul.mubr.f32.gmra.mrb[0].mxu0 %v1702
        %v1830 = vpop.f32.mrb[0].mxu0
        %v1831 = vadd.f32 0.0, %v1830
        %v1832 = vpop.f32.mrb[0].mxu0
        %v1833 = vadd.f32 0.0, %v1832
        %1834 = vmatprep.mubr.f32.mxu0 0.0
        %1835 = vmatmul.mubr.f32.gmra.mrb[0].mxu0 %v1705
        %v1836 = vpop.f32.mrb[0].mxu0
        %v1837 = vadd.f32 0.0, %v1836
        %v1838 = vpop.f32.mrb[0].mxu0
        %v1839 = vadd.f32 0.0, %v1838
        %1840 = vmatprep.mubr.f32.mxu0 0.0
        %1841 = vmatmul.mubr.f32.gmra.mrb[0].mxu0 %v1708
        %v1842 = vpop.f32.mrb[0].mxu0
        %v1843 = vadd.f32 0.0, %v1842
        %v1844 = vpop.f32.mrb[0].mxu0
        %v1845 = vadd.f32 0.0, %v1844
        %1846 = vmatprep.mubr.f32.mxu0 0.0
        %1847 = vmatmul.mubr.f32.gmra.mrb[0].mxu0 %v1711
        %v1848 = vpop.f32.mrb[0].mxu0
        %v1849 = vadd.f32 0.0, %v1848
        %v1850 = vpop.f32.mrb[0].mxu0
        %v1851 = vadd.f32 0.0, %v1850
        %1852 = vmatprep.mubr.f32.mxu0 0.0
        %1853 = vmatmul.mubr.f32.gmra.mrb[0].mxu0 %v1714
        %v1854 = vpop.f32.mrb[0].mxu0
        %v1855 = vadd.f32 0.0, %v1854
        %v1856 = vpop.f32.mrb[0].mxu0
        %v1857 = vadd.f32 0.0, %v1856
        %1858 = vmatprep.mubr.f32.mxu0 0.0
        %1859 = vmatmul.mubr.f32.gmra.mrb[0].mxu0 %v1717
        %v1860 = vpop.f32.mrb[0].mxu0
        %v1861 = vadd.f32 0.0, %v1860
        %v1862 = vpop.f32.mrb[0].mxu0
        %v1863 = vadd.f32 0.0, %v1862
        %1864 = vmatprep.mubr.f32.mxu0 0.0
        %1865 = vmatmul.mubr.f32.gmra.mrb[0].mxu0 %v1720
        %v1866 = vpop.f32.mrb[0].mxu0
        %v1867 = vadd.f32 0.0, %v1866
        %v1868 = vpop.f32.mrb[0].mxu0
        %v1869 = vadd.f32 0.0, %v1868
        %1870 = vmatprep.mubr.f32.mxu0 0.0
        %1871 = vmatmul.mubr.f32.gmra.mrb[0].mxu0 %v1723
        %v1872 = vpop.f32.mrb[0].mxu0
        %v1873 = vadd.f32 0.0, %v1872
        %v1874 = vpop.f32.mrb[0].mxu0
        %v1875 = vadd.f32 0.0, %v1874
        %1876 = vmatprep.mubr.f32.mxu0 0.0
        %1877 = vmatmul.mubr.f32.gmra.mrb[0].mxu0 %v1726
        %v1878 = vpop.f32.mrb[0].mxu0
        %v1879 = vadd.f32 0.0, %v1878
        %v1880 = vpop.f32.mrb[0].mxu0
        %v1881 = vadd.f32 0.0, %v1880
        %1882 = vmatprep.mubr.f32.mxu0 0.0
        %1883 = vmatmul.mubr.f32.gmra.mrb[0].mxu0 %v1729
        %v1884 = vpop.f32.mrb[0].mxu0
        %v1885 = vadd.f32 0.0, %v1884
        %v1886 = vpop.f32.mrb[0].mxu0
        %v1887 = vadd.f32 0.0, %v1886
        %1888 = vmatprep.mubr.f32.mxu0 0.0
        %1889 = vmatmul.mubr.f32.gmra.mrb[0].mxu0 %v1732
        %v1890 = vpop.f32.mrb[0].mxu0
        %v1891 = vadd.f32 0.0, %v1890
        %v1892 = vpop.f32.mrb[0].mxu0
        %v1893 = vadd.f32 0.0, %v1892
        %1894 = vdwg.mxu0
        %v1895 = vadd.f32 %v1629, %v1801
        %v1896 = vadd.f32 %v1630, %v1803
        %v1897 = vadd.f32 %v1631, %v1807
        %v1898 = vadd.f32 %v1632, %v1809
        %v1899 = vadd.f32 %v1633, %v1813
        %v1900 = vadd.f32 %v1634, %v1815
        %v1901 = vadd.f32 %v1635, %v1819
        %v1902 = vadd.f32 %v1636, %v1821
        %v1903 = vadd.f32 %v1637, %v1825
        %v1904 = vadd.f32 %v1638, %v1827
        %v1905 = vadd.f32 %v1639, %v1831
        %v1906 = vadd.f32 %v1640, %v1833
        %v1907 = vadd.f32 %v1641, %v1837
        %v1908 = vadd.f32 %v1642, %v1839
        %v1909 = vadd.f32 %v1643, %v1843
        %v1910 = vadd.f32 %v1644, %v1845
        %v1911 = vadd.f32 %v1645, %v1849
        %v1912 = vadd.f32 %v1646, %v1851
        %v1913 = vadd.f32 %v1647, %v1855
        %v1914 = vadd.f32 %v1648, %v1857
        %v1915 = vadd.f32 %v1649, %v1861
        %v1916 = vadd.f32 %v1650, %v1863
        %v1917 = vadd.f32 %v1651, %v1867
        %v1918 = vadd.f32 %v1652, %v1869
        %v1919 = vadd.f32 %v1653, %v1873
        %v1920 = vadd.f32 %v1654, %v1875
        %v1921 = vadd.f32 %v1655, %v1879
        %v1922 = vadd.f32 %v1656, %v1881
        %v1923 = vadd.f32 %v1657, %v1885
        %v1924 = vadd.f32 %v1658, %v1887
        %v1925 = vadd.f32 %v1659, %v1891
        %v1926 = vadd.f32 %v1660, %v1893
        %v1927 = vld [vmem:[%s312 + $0x6] sm:$0xff]
        %v1928 = vld [vmem:[%s312 + $0xe] sm:$0xff]
        %v1929 = vld [vmem:[%s312 + $0x26] sm:$0xff]
        %v1930 = vld [vmem:[%s312 + $0x2e] sm:$0xff]
        %v1931 = vld [vmem:[%s312 + $0x46] sm:$0xff]
        %v1932 = vld [vmem:[%s312 + $0x4e] sm:$0xff]
        %v1933 = vld [vmem:[%s312 + $0x66] sm:$0xff]
        %v1934 = vld [vmem:[%s312 + $0x6e] sm:$0xff]
        %v1935 = vld [vmem:[%s312 + $0x86] sm:$0xff]
        %v1936 = vld [vmem:[%s312 + $0x8e] sm:$0xff]
        %v1937 = vld [vmem:[%s312 + $0xa6] sm:$0xff]
        %v1938 = vld [vmem:[%s312 + $0xae] sm:$0xff]
        %v1939 = vld [vmem:[%s312 + $0xc6] sm:$0xff]
        %v1940 = vld [vmem:[%s312 + $0xce] sm:$0xff]
        %v1941 = vld [vmem:[%s312 + $0xe6] sm:$0xff]
        %v1942 = vld [vmem:[%s312 + $0xee] sm:$0xff]
        %s1943 = scalar_lea.vmem %s1, 320
        %v1944 = vld [vmem:[%s1943] sm:$0xff]
        %v1945 = vld [vmem:[%s1943 + $0x8] sm:$0xff]
        %v1946 = vld [vmem:[%s1943 + $0x10] sm:$0xff]
        %v1947 = vld [vmem:[%s1943 + $0x18] sm:$0xff]
        %v1948 = vld [vmem:[%s1943 + $0x20] sm:$0xff]
        %v1949 = vld [vmem:[%s1943 + $0x28] sm:$0xff]
        %v1950 = vld [vmem:[%s1943 + $0x30] sm:$0xff]
        %v1951 = vld [vmem:[%s1943 + $0x38] sm:$0xff]
        %v1953 = vsel %vm337, %v1927, 0
        %v1956 = vsel %vm337, %v1928, 0
        %v1959 = vsel %vm337, %v1929, 0
        %v1962 = vsel %vm337, %v1930, 0
        %v1965 = vsel %vm337, %v1931, 0
        %v1968 = vsel %vm337, %v1932, 0
        %v1971 = vsel %vm337, %v1933, 0
        %v1974 = vsel %vm337, %v1934, 0
        %v1977 = vsel %vm337, %v1935, 0
        %v1980 = vsel %vm337, %v1936, 0
        %v1983 = vsel %vm337, %v1937, 0
        %v1986 = vsel %vm337, %v1938, 0
        %v1989 = vsel %vm337, %v1939, 0
        %v1992 = vsel %vm337, %v1940, 0
        %v1995 = vsel %vm337, %v1941, 0
        %v1998 = vsel %vm337, %v1942, 0
        %2000 = vmatprep.subr.mxu0 %v1945
        %2001 = vmatpush1.msra.mxu0 %v1944
        %2002 = vmatprep.subr.mxu0 %v1947
        %2003 = vmatpush1.msra.mxu0 %v1946
        %2004 = vmatprep.subr.mxu0 %v1949
        %2005 = vmatpush1.msra.mxu0 %v1948
        %2006 = vmatprep.subr.mxu0 %v1951
        %2007 = vmatpush1.msra.mxu0 %v1950
        %2008 = vmatprep.subr.mxu0 0.0
        %2009 = vmatpush1.msra.mxu0 0.0
        %2010 = vmatprep.subr.mxu0 0.0
        %2011 = vmatpush1.msra.mxu0 0.0
        %2012 = vmatprep.subr.mxu0 0.0
        %2013 = vmatpush1.msra.mxu0 0.0
        %2014 = vmatprep.subr.mxu0 0.0
        %2015 = vmatpush1.msra.mxu0 0.0
        %2016 = vmatprep.subr.mxu0 0.0
        %2017 = vmatpush1.msra.mxu0 0.0
        %2018 = vmatprep.subr.mxu0 0.0
        %2019 = vmatpush1.msra.mxu0 0.0
        %2020 = vmatprep.subr.mxu0 0.0
        %2021 = vmatpush1.msra.mxu0 0.0
        %2022 = vmatprep.subr.mxu0 0.0
        %2023 = vmatpush1.msra.mxu0 0.0
        %2024 = vmatprep.subr.mxu0 0.0
        %2025 = vmatpush1.msra.mxu0 0.0
        %2026 = vmatprep.subr.mxu0 0.0
        %2027 = vmatpush1.msra.mxu0 0.0
        %2028 = vmatprep.subr.mxu0 0.0
        %2029 = vmatpush1.msra.mxu0 0.0
        %2030 = vmatprep.subr.mxu0 0.0
        %2031 = vmatpush1.msra.mxu0 0.0
        %2032 = vmatprep.subr.mxu0 0.0
        %2033 = vmatpush1.msra.mxu0 0.0
        %2034 = vmatprep.subr.mxu0 0.0
        %2035 = vmatpush1.msra.mxu0 0.0
        %2036 = vmatprep.subr.mxu0 0.0
        %2037 = vmatpush1.msra.mxu0 0.0
        %2038 = vmatprep.subr.mxu0 0.0
        %2039 = vmatpush1.msra.mxu0 0.0
        %2040 = vmatprep.subr.mxu0 0.0
        %2041 = vmatpush1.msra.mxu0 0.0
        %2042 = vmatprep.subr.mxu0 0.0
        %2043 = vmatpush1.msra.mxu0 0.0
        %2044 = vmatprep.subr.mxu0 0.0
        %2045 = vmatpush1.msra.mxu0 0.0
        %2046 = vmatprep.subr.mxu0 0.0
        %2047 = vmatpush1.msra.mxu0 0.0
        %2048 = vmatprep.subr.mxu0 0.0
        %2049 = vmatpush1.msra.mxu0 0.0
        %2050 = vmatprep.subr.mxu0 0.0
        %2051 = vmatpush1.msra.mxu0 0.0
        %2052 = vmatprep.subr.mxu0 0.0
        %2053 = vmatpush1.msra.mxu0 0.0
        %2054 = vmatprep.subr.mxu0 0.0
        %2055 = vmatpush1.msra.mxu0 0.0
        %2056 = vmatprep.subr.mxu0 0.0
        %2057 = vmatpush1.msra.mxu0 0.0
        %2058 = vmatprep.subr.mxu0 0.0
        %2059 = vmatpush1.msra.mxu0 0.0
        %2060 = vmatprep.subr.mxu0 0.0
        %2061 = vmatpush1.msra.mxu0 0.0
        %2062 = vmatprep.subr.mxu0 0.0
        %2063 = vmatpush1.msra.mxu0 0.0
        %2064 = vmatprep.mubr.f32.mxu0 0.0
        %2065 = vmatmul.mubr.f32.gmra.mrb[0].mxu0 %v1953
        %v2066 = vpop.f32.mrb[0].mxu0
        %v2067 = vadd.f32 0.0, %v2066
        %v2068 = vpop.f32.mrb[0].mxu0
        %v2069 = vadd.f32 0.0, %v2068
        %2070 = vmatprep.mubr.f32.mxu0 0.0
        %2071 = vmatmul.mubr.f32.gmra.mrb[0].mxu0 %v1956
        %v2072 = vpop.f32.mrb[0].mxu0
        %v2073 = vadd.f32 0.0, %v2072
        %v2074 = vpop.f32.mrb[0].mxu0
        %v2075 = vadd.f32 0.0, %v2074
        %2076 = vmatprep.mubr.f32.mxu0 0.0
        %2077 = vmatmul.mubr.f32.gmra.mrb[0].mxu0 %v1959
        %v2078 = vpop.f32.mrb[0].mxu0
        %v2079 = vadd.f32 0.0, %v2078
        %v2080 = vpop.f32.mrb[0].mxu0
        %v2081 = vadd.f32 0.0, %v2080
        %2082 = vmatprep.mubr.f32.mxu0 0.0
        %2083 = vmatmul.mubr.f32.gmra.mrb[0].mxu0 %v1962
        %v2084 = vpop.f32.mrb[0].mxu0
        %v2085 = vadd.f32 0.0, %v2084
        %v2086 = vpop.f32.mrb[0].mxu0
        %v2087 = vadd.f32 0.0, %v2086
        %2088 = vmatprep.mubr.f32.mxu0 0.0
        %2089 = vmatmul.mubr.f32.gmra.mrb[0].mxu0 %v1965
        %v2090 = vpop.f32.mrb[0].mxu0
        %v2091 = vadd.f32 0.0, %v2090
        %v2092 = vpop.f32.mrb[0].mxu0
        %v2093 = vadd.f32 0.0, %v2092
        %2094 = vmatprep.mubr.f32.mxu0 0.0
        %2095 = vmatmul.mubr.f32.gmra.mrb[0].mxu0 %v1968
        %v2096 = vpop.f32.mrb[0].mxu0
        %v2097 = vadd.f32 0.0, %v2096
        %v2098 = vpop.f32.mrb[0].mxu0
        %v2099 = vadd.f32 0.0, %v2098
        %2100 = vmatprep.mubr.f32.mxu0 0.0
        %2101 = vmatmul.mubr.f32.gmra.mrb[0].mxu0 %v1971
        %v2102 = vpop.f32.mrb[0].mxu0
        %v2103 = vadd.f32 0.0, %v2102
        %v2104 = vpop.f32.mrb[0].mxu0
        %v2105 = vadd.f32 0.0, %v2104
        %2106 = vmatprep.mubr.f32.mxu0 0.0
        %2107 = vmatmul.mubr.f32.gmra.mrb[0].mxu0 %v1974
        %v2108 = vpop.f32.mrb[0].mxu0
        %v2109 = vadd.f32 0.0, %v2108
        %v2110 = vpop.f32.mrb[0].mxu0
        %v2111 = vadd.f32 0.0, %v2110
        %2112 = vmatprep.mubr.f32.mxu0 0.0
        %2113 = vmatmul.mubr.f32.gmra.mrb[0].mxu0 %v1977
        %v2114 = vpop.f32.mrb[0].mxu0
        %v2115 = vadd.f32 0.0, %v2114
        %v2116 = vpop.f32.mrb[0].mxu0
        %v2117 = vadd.f32 0.0, %v2116
        %2118 = vmatprep.mubr.f32.mxu0 0.0
        %2119 = vmatmul.mubr.f32.gmra.mrb[0].mxu0 %v1980
        %v2120 = vpop.f32.mrb[0].mxu0
        %v2121 = vadd.f32 0.0, %v2120
        %v2122 = vpop.f32.mrb[0].mxu0
        %v2123 = vadd.f32 0.0, %v2122
        %2124 = vmatprep.mubr.f32.mxu0 0.0
        %2125 = vmatmul.mubr.f32.gmra.mrb[0].mxu0 %v1983
        %v2126 = vpop.f32.mrb[0].mxu0
        %v2127 = vadd.f32 0.0, %v2126
        %v2128 = vpop.f32.mrb[0].mxu0
        %v2129 = vadd.f32 0.0, %v2128
        %2130 = vmatprep.mubr.f32.mxu0 0.0
        %2131 = vmatmul.mubr.f32.gmra.mrb[0].mxu0 %v1986
        %v2132 = vpop.f32.mrb[0].mxu0
        %v2133 = vadd.f32 0.0, %v2132
        %v2134 = vpop.f32.mrb[0].mxu0
        %v2135 = vadd.f32 0.0, %v2134
        %2136 = vmatprep.mubr.f32.mxu0 0.0
        %2137 = vmatmul.mubr.f32.gmra.mrb[0].mxu0 %v1989
        %v2138 = vpop.f32.mrb[0].mxu0
        %v2139 = vadd.f32 0.0, %v2138
        %v2140 = vpop.f32.mrb[0].mxu0
        %v2141 = vadd.f32 0.0, %v2140
        %2142 = vmatprep.mubr.f32.mxu0 0.0
        %2143 = vmatmul.mubr.f32.gmra.mrb[0].mxu0 %v1992
        %v2144 = vpop.f32.mrb[0].mxu0
        %v2145 = vadd.f32 0.0, %v2144
        %v2146 = vpop.f32.mrb[0].mxu0
        %v2147 = vadd.f32 0.0, %v2146
        %2148 = vmatprep.mubr.f32.mxu0 0.0
        %2149 = vmatmul.mubr.f32.gmra.mrb[0].mxu0 %v1995
        %v2150 = vpop.f32.mrb[0].mxu0
        %v2151 = vadd.f32 0.0, %v2150
        %v2152 = vpop.f32.mrb[0].mxu0
        %v2153 = vadd.f32 0.0, %v2152
        %2154 = vmatprep.mubr.f32.mxu0 0.0
        %2155 = vmatmul.mubr.f32.gmra.mrb[0].mxu0 %v1998
        %v2156 = vpop.f32.mrb[0].mxu0
        %v2157 = vadd.f32 0.0, %v2156
        %v2158 = vpop.f32.mrb[0].mxu0
        %v2159 = vadd.f32 0.0, %v2158
        %2160 = vdwg.mxu0
        %v2161 = vadd.f32 %v1895, %v2067
        %v2162 = vadd.f32 %v1896, %v2069
        %v2163 = vadd.f32 %v1897, %v2073
        %v2164 = vadd.f32 %v1898, %v2075
        %v2165 = vadd.f32 %v1899, %v2079
        %v2166 = vadd.f32 %v1900, %v2081
        %v2167 = vadd.f32 %v1901, %v2085
        %v2168 = vadd.f32 %v1902, %v2087
        %v2169 = vadd.f32 %v1903, %v2091
        %v2170 = vadd.f32 %v1904, %v2093
        %v2171 = vadd.f32 %v1905, %v2097
        %v2172 = vadd.f32 %v1906, %v2099
        %v2173 = vadd.f32 %v1907, %v2103
        %v2174 = vadd.f32 %v1908, %v2105
        %v2175 = vadd.f32 %v1909, %v2109
        %v2176 = vadd.f32 %v1910, %v2111
        %v2177 = vadd.f32 %v1911, %v2115
        %v2178 = vadd.f32 %v1912, %v2117
        %v2179 = vadd.f32 %v1913, %v2121
        %v2180 = vadd.f32 %v1914, %v2123
        %v2181 = vadd.f32 %v1915, %v2127
        %v2182 = vadd.f32 %v1916, %v2129
        %v2183 = vadd.f32 %v1917, %v2133
        %v2184 = vadd.f32 %v1918, %v2135
        %v2185 = vadd.f32 %v1919, %v2139
        %v2186 = vadd.f32 %v1920, %v2141
        %v2187 = vadd.f32 %v1921, %v2145
        %v2188 = vadd.f32 %v1922, %v2147
        %v2189 = vadd.f32 %v1923, %v2151
        %v2190 = vadd.f32 %v1924, %v2153
        %v2191 = vadd.f32 %v1925, %v2157
        %v2192 = vadd.f32 %v1926, %v2159
        %v2193 = vld [vmem:[%s312 + $0x8] sm:$0xff]
        %v2194 = vld [vmem:[%s312 + $0x10] sm:$0xff]
        %v2195 = vld [vmem:[%s312 + $0x28] sm:$0xff]
        %v2196 = vld [vmem:[%s312 + $0x30] sm:$0xff]
        %v2197 = vld [vmem:[%s312 + $0x48] sm:$0xff]
        %v2198 = vld [vmem:[%s312 + $0x50] sm:$0xff]
        %v2199 = vld [vmem:[%s312 + $0x68] sm:$0xff]
        %v2200 = vld [vmem:[%s312 + $0x70] sm:$0xff]
        %v2201 = vld [vmem:[%s312 + $0x88] sm:$0xff]
        %v2202 = vld [vmem:[%s312 + $0x90] sm:$0xff]
        %v2203 = vld [vmem:[%s312 + $0xa8] sm:$0xff]
        %v2204 = vld [vmem:[%s312 + $0xb0] sm:$0xff]
        %v2205 = vld [vmem:[%s312 + $0xc8] sm:$0xff]
        %v2206 = vld [vmem:[%s312 + $0xd0] sm:$0xff]
        %v2207 = vld [vmem:[%s312 + $0xe8] sm:$0xff]
        %v2208 = vld [vmem:[%s312 + $0xf0] sm:$0xff]
        %s2209 = scalar_lea.vmem %s1, 384
        %v2210 = vld [vmem:[%s2209] sm:$0xff]
        %v2211 = vld [vmem:[%s2209 + $0x8] sm:$0xff]
        %v2212 = vld [vmem:[%s2209 + $0x10] sm:$0xff]
        %v2213 = vld [vmem:[%s2209 + $0x18] sm:$0xff]
        %v2214 = vld [vmem:[%s2209 + $0x20] sm:$0xff]
        %v2215 = vld [vmem:[%s2209 + $0x28] sm:$0xff]
        %v2216 = vld [vmem:[%s2209 + $0x30] sm:$0xff]
        %v2217 = vld [vmem:[%s2209 + $0x38] sm:$0xff]
        %v2219 = vsel %vm337, %v2193, 0
        %v2222 = vsel %vm337, %v2194, 0
        %v2225 = vsel %vm337, %v2195, 0
        %v2228 = vsel %vm337, %v2196, 0
        %v2231 = vsel %vm337, %v2197, 0
        %v2234 = vsel %vm337, %v2198, 0
        %v2237 = vsel %vm337, %v2199, 0
        %v2240 = vsel %vm337, %v2200, 0
        %v2243 = vsel %vm337, %v2201, 0
        %v2246 = vsel %vm337, %v2202, 0
        %v2249 = vsel %vm337, %v2203, 0
        %v2252 = vsel %vm337, %v2204, 0
        %v2255 = vsel %vm337, %v2205, 0
        %v2258 = vsel %vm337, %v2206, 0
        %v2261 = vsel %vm337, %v2207, 0
        %v2264 = vsel %vm337, %v2208, 0
        %2266 = vmatprep.subr.mxu0 %v2211
        %2267 = vmatpush1.msra.mxu0 %v2210
        %2268 = vmatprep.subr.mxu0 %v2213
        %2269 = vmatpush1.msra.mxu0 %v2212
        %2270 = vmatprep.subr.mxu0 %v2215
        %2271 = vmatpush1.msra.mxu0 %v2214
        %2272 = vmatprep.subr.mxu0 %v2217
        %2273 = vmatpush1.msra.mxu0 %v2216
        %2274 = vmatprep.subr.mxu0 0.0
        %2275 = vmatpush1.msra.mxu0 0.0
        %2276 = vmatprep.subr.mxu0 0.0
        %2277 = vmatpush1.msra.mxu0 0.0
        %2278 = vmatprep.subr.mxu0 0.0
        %2279 = vmatpush1.msra.mxu0 0.0
        %2280 = vmatprep.subr.mxu0 0.0
        %2281 = vmatpush1.msra.mxu0 0.0
        %2282 = vmatprep.subr.mxu0 0.0
        %2283 = vmatpush1.msra.mxu0 0.0
        %2284 = vmatprep.subr.mxu0 0.0
        %2285 = vmatpush1.msra.mxu0 0.0
        %2286 = vmatprep.subr.mxu0 0.0
        %2287 = vmatpush1.msra.mxu0 0.0
        %2288 = vmatprep.subr.mxu0 0.0
        %2289 = vmatpush1.msra.mxu0 0.0
        %2290 = vmatprep.subr.mxu0 0.0
        %2291 = vmatpush1.msra.mxu0 0.0
        %2292 = vmatprep.subr.mxu0 0.0
        %2293 = vmatpush1.msra.mxu0 0.0
        %2294 = vmatprep.subr.mxu0 0.0
        %2295 = vmatpush1.msra.mxu0 0.0
        %2296 = vmatprep.subr.mxu0 0.0
        %2297 = vmatpush1.msra.mxu0 0.0
        %2298 = vmatprep.subr.mxu0 0.0
        %2299 = vmatpush1.msra.mxu0 0.0
        %2300 = vmatprep.subr.mxu0 0.0
        %2301 = vmatpush1.msra.mxu0 0.0
        %2302 = vmatprep.subr.mxu0 0.0
        %2303 = vmatpush1.msra.mxu0 0.0
        %2304 = vmatprep.subr.mxu0 0.0
        %2305 = vmatpush1.msra.mxu0 0.0
        %2306 = vmatprep.subr.mxu0 0.0
        %2307 = vmatpush1.msra.mxu0 0.0
        %2308 = vmatprep.subr.mxu0 0.0
        %2309 = vmatpush1.msra.mxu0 0.0
        %2310 = vmatprep.subr.mxu0 0.0
        %2311 = vmatpush1.msra.mxu0 0.0
        %2312 = vmatprep.subr.mxu0 0.0
        %2313 = vmatpush1.msra.mxu0 0.0
        %2314 = vmatprep.subr.mxu0 0.0
        %2315 = vmatpush1.msra.mxu0 0.0
        %2316 = vmatprep.subr.mxu0 0.0
        %2317 = vmatpush1.msra.mxu0 0.0
        %2318 = vmatprep.subr.mxu0 0.0
        %2319 = vmatpush1.msra.mxu0 0.0
        %2320 = vmatprep.subr.mxu0 0.0
        %2321 = vmatpush1.msra.mxu0 0.0
        %2322 = vmatprep.subr.mxu0 0.0
        %2323 = vmatpush1.msra.mxu0 0.0
        %2324 = vmatprep.subr.mxu0 0.0
        %2325 = vmatpush1.msra.mxu0 0.0
        %2326 = vmatprep.subr.mxu0 0.0
        %2327 = vmatpush1.msra.mxu0 0.0
        %2328 = vmatprep.subr.mxu0 0.0
        %2329 = vmatpush1.msra.mxu0 0.0
        %2330 = vmatprep.mubr.f32.mxu0 0.0
        %2331 = vmatmul.mubr.f32.gmra.mrb[0].mxu0 %v2219
        %v2332 = vpop.f32.mrb[0].mxu0
        %v2333 = vadd.f32 0.0, %v2332
        %v2334 = vpop.f32.mrb[0].mxu0
        %v2335 = vadd.f32 0.0, %v2334
        %2336 = vmatprep.mubr.f32.mxu0 0.0
        %2337 = vmatmul.mubr.f32.gmra.mrb[0].mxu0 %v2222
        %v2338 = vpop.f32.mrb[0].mxu0
        %v2339 = vadd.f32 0.0, %v2338
        %v2340 = vpop.f32.mrb[0].mxu0
        %v2341 = vadd.f32 0.0, %v2340
        %2342 = vmatprep.mubr.f32.mxu0 0.0
        %2343 = vmatmul.mubr.f32.gmra.mrb[0].mxu0 %v2225
        %v2344 = vpop.f32.mrb[0].mxu0
        %v2345 = vadd.f32 0.0, %v2344
        %v2346 = vpop.f32.mrb[0].mxu0
        %v2347 = vadd.f32 0.0, %v2346
        %2348 = vmatprep.mubr.f32.mxu0 0.0
        %2349 = vmatmul.mubr.f32.gmra.mrb[0].mxu0 %v2228
        %v2350 = vpop.f32.mrb[0].mxu0
        %v2351 = vadd.f32 0.0, %v2350
        %v2352 = vpop.f32.mrb[0].mxu0
        %v2353 = vadd.f32 0.0, %v2352
        %2354 = vmatprep.mubr.f32.mxu0 0.0
        %2355 = vmatmul.mubr.f32.gmra.mrb[0].mxu0 %v2231
        %v2356 = vpop.f32.mrb[0].mxu0
        %v2357 = vadd.f32 0.0, %v2356
        %v2358 = vpop.f32.mrb[0].mxu0
        %v2359 = vadd.f32 0.0, %v2358
        %2360 = vmatprep.mubr.f32.mxu0 0.0
        %2361 = vmatmul.mubr.f32.gmra.mrb[0].mxu0 %v2234
        %v2362 = vpop.f32.mrb[0].mxu0
        %v2363 = vadd.f32 0.0, %v2362
        %v2364 = vpop.f32.mrb[0].mxu0
        %v2365 = vadd.f32 0.0, %v2364
        %2366 = vmatprep.mubr.f32.mxu0 0.0
        %2367 = vmatmul.mubr.f32.gmra.mrb[0].mxu0 %v2237
        %v2368 = vpop.f32.mrb[0].mxu0
        %v2369 = vadd.f32 0.0, %v2368
        %v2370 = vpop.f32.mrb[0].mxu0
        %v2371 = vadd.f32 0.0, %v2370
        %2372 = vmatprep.mubr.f32.mxu0 0.0
        %2373 = vmatmul.mubr.f32.gmra.mrb[0].mxu0 %v2240
        %v2374 = vpop.f32.mrb[0].mxu0
        %v2375 = vadd.f32 0.0, %v2374
        %v2376 = vpop.f32.mrb[0].mxu0
        %v2377 = vadd.f32 0.0, %v2376
        %2378 = vmatprep.mubr.f32.mxu0 0.0
        %2379 = vmatmul.mubr.f32.gmra.mrb[0].mxu0 %v2243
        %v2380 = vpop.f32.mrb[0].mxu0
        %v2381 = vadd.f32 0.0, %v2380
        %v2382 = vpop.f32.mrb[0].mxu0
        %v2383 = vadd.f32 0.0, %v2382
        %2384 = vmatprep.mubr.f32.mxu0 0.0
        %2385 = vmatmul.mubr.f32.gmra.mrb[0].mxu0 %v2246
        %v2386 = vpop.f32.mrb[0].mxu0
        %v2387 = vadd.f32 0.0, %v2386
        %v2388 = vpop.f32.mrb[0].mxu0
        %v2389 = vadd.f32 0.0, %v2388
        %2390 = vmatprep.mubr.f32.mxu0 0.0
        %2391 = vmatmul.mubr.f32.gmra.mrb[0].mxu0 %v2249
        %v2392 = vpop.f32.mrb[0].mxu0
        %v2393 = vadd.f32 0.0, %v2392
        %v2394 = vpop.f32.mrb[0].mxu0
        %v2395 = vadd.f32 0.0, %v2394
        %2396 = vmatprep.mubr.f32.mxu0 0.0
        %2397 = vmatmul.mubr.f32.gmra.mrb[0].mxu0 %v2252
        %v2398 = vpop.f32.mrb[0].mxu0
        %v2399 = vadd.f32 0.0, %v2398
        %v2400 = vpop.f32.mrb[0].mxu0
        %v2401 = vadd.f32 0.0, %v2400
        %2402 = vmatprep.mubr.f32.mxu0 0.0
        %2403 = vmatmul.mubr.f32.gmra.mrb[0].mxu0 %v2255
        %v2404 = vpop.f32.mrb[0].mxu0
        %v2405 = vadd.f32 0.0, %v2404
        %v2406 = vpop.f32.mrb[0].mxu0
        %v2407 = vadd.f32 0.0, %v2406
        %2408 = vmatprep.mubr.f32.mxu0 0.0
        %2409 = vmatmul.mubr.f32.gmra.mrb[0].mxu0 %v2258
        %v2410 = vpop.f32.mrb[0].mxu0
        %v2411 = vadd.f32 0.0, %v2410
        %v2412 = vpop.f32.mrb[0].mxu0
        %v2413 = vadd.f32 0.0, %v2412
        %2414 = vmatprep.mubr.f32.mxu0 0.0
        %2415 = vmatmul.mubr.f32.gmra.mrb[0].mxu0 %v2261
        %v2416 = vpop.f32.mrb[0].mxu0
        %v2417 = vadd.f32 0.0, %v2416
        %v2418 = vpop.f32.mrb[0].mxu0
        %v2419 = vadd.f32 0.0, %v2418
        %2420 = vmatprep.mubr.f32.mxu0 0.0
        %2421 = vmatmul.mubr.f32.gmra.mrb[0].mxu0 %v2264
        %v2422 = vpop.f32.mrb[0].mxu0
        %v2423 = vadd.f32 0.0, %v2422
        %v2424 = vpop.f32.mrb[0].mxu0
        %v2425 = vadd.f32 0.0, %v2424
        %2426 = vdwg.mxu0
        %v2427 = vadd.f32 %v2161, %v2333
        %v2428 = vadd.f32 %v2162, %v2335
        %v2429 = vadd.f32 %v2163, %v2339
        %v2430 = vadd.f32 %v2164, %v2341
        %v2431 = vadd.f32 %v2165, %v2345
        %v2432 = vadd.f32 %v2166, %v2347
        %v2433 = vadd.f32 %v2167, %v2351
        %v2434 = vadd.f32 %v2168, %v2353
        %v2435 = vadd.f32 %v2169, %v2357
        %v2436 = vadd.f32 %v2170, %v2359
        %v2437 = vadd.f32 %v2171, %v2363
        %v2438 = vadd.f32 %v2172, %v2365
        %v2439 = vadd.f32 %v2173, %v2369
        %v2440 = vadd.f32 %v2174, %v2371
        %v2441 = vadd.f32 %v2175, %v2375
        %v2442 = vadd.f32 %v2176, %v2377
        %v2443 = vadd.f32 %v2177, %v2381
        %v2444 = vadd.f32 %v2178, %v2383
        %v2445 = vadd.f32 %v2179, %v2387
        %v2446 = vadd.f32 %v2180, %v2389
        %v2447 = vadd.f32 %v2181, %v2393
        %v2448 = vadd.f32 %v2182, %v2395
        %v2449 = vadd.f32 %v2183, %v2399
        %v2450 = vadd.f32 %v2184, %v2401
        %v2451 = vadd.f32 %v2185, %v2405
        %v2452 = vadd.f32 %v2186, %v2407
        %v2453 = vadd.f32 %v2187, %v2411
        %v2454 = vadd.f32 %v2188, %v2413
        %v2455 = vadd.f32 %v2189, %v2417
        %v2456 = vadd.f32 %v2190, %v2419
        %v2457 = vadd.f32 %v2191, %v2423
        %v2458 = vadd.f32 %v2192, %v2425
        %s2459 = sadd.s32 %s309, 8
        %s2460 = smul.u32 %s2459, 32
        %s2461 = scalar_lea.vmem %s303, %s2460
        %v2462 = vld [vmem:[%s2461 + $0x4] sm:$0xff]
        %v2463 = vld [vmem:[%s2461 + $0xc] sm:$0xff]
        %v2464 = vld [vmem:[%s2461 + $0x24] sm:$0xff]
        %v2465 = vld [vmem:[%s2461 + $0x2c] sm:$0xff]
        %v2466 = vld [vmem:[%s2461 + $0x44] sm:$0xff]
        %v2467 = vld [vmem:[%s2461 + $0x4c] sm:$0xff]
        %v2468 = vld [vmem:[%s2461 + $0x64] sm:$0xff]
        %v2469 = vld [vmem:[%s2461 + $0x6c] sm:$0xff]
        %v2470 = vld [vmem:[%s2461 + $0x84] sm:$0xff]
        %v2471 = vld [vmem:[%s2461 + $0x8c] sm:$0xff]
        %v2472 = vld [vmem:[%s2461 + $0xa4] sm:$0xff]
        %v2473 = vld [vmem:[%s2461 + $0xac] sm:$0xff]
        %v2474 = vld [vmem:[%s2461 + $0xc4] sm:$0xff]
        %v2475 = vld [vmem:[%s2461 + $0xcc] sm:$0xff]
        %v2476 = vld [vmem:[%s2461 + $0xe4] sm:$0xff]
        %v2477 = vld [vmem:[%s2461 + $0xec] sm:$0xff]
        %s2478 = scalar_lea.vmem %s1, 448
        %v2479 = vld [vmem:[%s2478] sm:$0xff]
        %v2480 = vld [vmem:[%s2478 + $0x8] sm:$0xff]
        %v2481 = vld [vmem:[%s2478 + $0x10] sm:$0xff]
        %v2482 = vld [vmem:[%s2478 + $0x18] sm:$0xff]
        %v2483 = vld [vmem:[%s2478 + $0x20] sm:$0xff]
        %v2484 = vld [vmem:[%s2478 + $0x28] sm:$0xff]
        %v2485 = vld [vmem:[%s2478 + $0x30] sm:$0xff]
        %v2486 = vld [vmem:[%s2478 + $0x38] sm:$0xff]
        %v2488 = vsel %vm337, %v2462, 0
        %v2491 = vsel %vm337, %v2463, 0
        %v2494 = vsel %vm337, %v2464, 0
        %v2497 = vsel %vm337, %v2465, 0
        %v2500 = vsel %vm337, %v2466, 0
        %v2503 = vsel %vm337, %v2467, 0
        %v2506 = vsel %vm337, %v2468, 0
        %v2509 = vsel %vm337, %v2469, 0
        %v2512 = vsel %vm337, %v2470, 0
        %v2515 = vsel %vm337, %v2471, 0
        %v2518 = vsel %vm337, %v2472, 0
        %v2521 = vsel %vm337, %v2473, 0
        %v2524 = vsel %vm337, %v2474, 0
        %v2527 = vsel %vm337, %v2475, 0
        %v2530 = vsel %vm337, %v2476, 0
        %v2533 = vsel %vm337, %v2477, 0
        %2535 = vmatprep.subr.mxu0 %v2480
        %2536 = vmatpush1.msra.mxu0 %v2479
        %2537 = vmatprep.subr.mxu0 %v2482
        %2538 = vmatpush1.msra.mxu0 %v2481
        %2539 = vmatprep.subr.mxu0 %v2484
        %2540 = vmatpush1.msra.mxu0 %v2483
        %2541 = vmatprep.subr.mxu0 %v2486
        %2542 = vmatpush1.msra.mxu0 %v2485
        %2543 = vmatprep.subr.mxu0 0.0
        %2544 = vmatpush1.msra.mxu0 0.0
        %2545 = vmatprep.subr.mxu0 0.0
        %2546 = vmatpush1.msra.mxu0 0.0
        %2547 = vmatprep.subr.mxu0 0.0
        %2548 = vmatpush1.msra.mxu0 0.0
        %2549 = vmatprep.subr.mxu0 0.0
        %2550 = vmatpush1.msra.mxu0 0.0
        %2551 = vmatprep.subr.mxu0 0.0
        %2552 = vmatpush1.msra.mxu0 0.0
        %2553 = vmatprep.subr.mxu0 0.0
        %2554 = vmatpush1.msra.mxu0 0.0
        %2555 = vmatprep.subr.mxu0 0.0
        %2556 = vmatpush1.msra.mxu0 0.0
        %2557 = vmatprep.subr.mxu0 0.0
        %2558 = vmatpush1.msra.mxu0 0.0
        %2559 = vmatprep.subr.mxu0 0.0
        %2560 = vmatpush1.msra.mxu0 0.0
        %2561 = vmatprep.subr.mxu0 0.0
        %2562 = vmatpush1.msra.mxu0 0.0
        %2563 = vmatprep.subr.mxu0 0.0
        %2564 = vmatpush1.msra.mxu0 0.0
        %2565 = vmatprep.subr.mxu0 0.0
        %2566 = vmatpush1.msra.mxu0 0.0
        %2567 = vmatprep.subr.mxu0 0.0
        %2568 = vmatpush1.msra.mxu0 0.0
        %2569 = vmatprep.subr.mxu0 0.0
        %2570 = vmatpush1.msra.mxu0 0.0
        %2571 = vmatprep.subr.mxu0 0.0
        %2572 = vmatpush1.msra.mxu0 0.0
        %2573 = vmatprep.subr.mxu0 0.0
        %2574 = vmatpush1.msra.mxu0 0.0
        %2575 = vmatprep.subr.mxu0 0.0
        %2576 = vmatpush1.msra.mxu0 0.0
        %2577 = vmatprep.subr.mxu0 0.0
        %2578 = vmatpush1.msra.mxu0 0.0
        %2579 = vmatprep.subr.mxu0 0.0
        %2580 = vmatpush1.msra.mxu0 0.0
        %2581 = vmatprep.subr.mxu0 0.0
        %2582 = vmatpush1.msra.mxu0 0.0
        %2583 = vmatprep.subr.mxu0 0.0
        %2584 = vmatpush1.msra.mxu0 0.0
        %2585 = vmatprep.subr.mxu0 0.0
        %2586 = vmatpush1.msra.mxu0 0.0
        %2587 = vmatprep.subr.mxu0 0.0
        %2588 = vmatpush1.msra.mxu0 0.0
        %2589 = vmatprep.subr.mxu0 0.0
        %2590 = vmatpush1.msra.mxu0 0.0
        %2591 = vmatprep.subr.mxu0 0.0
        %2592 = vmatpush1.msra.mxu0 0.0
        %2593 = vmatprep.subr.mxu0 0.0
        %2594 = vmatpush1.msra.mxu0 0.0
        %2595 = vmatprep.subr.mxu0 0.0
        %2596 = vmatpush1.msra.mxu0 0.0
        %2597 = vmatprep.subr.mxu0 0.0
        %2598 = vmatpush1.msra.mxu0 0.0
        %2599 = vmatprep.mubr.f32.mxu0 0.0
        %2600 = vmatmul.mubr.f32.gmra.mrb[0].mxu0 %v2488
        %v2601 = vpop.f32.mrb[0].mxu0
        %v2602 = vadd.f32 0.0, %v2601
        %v2603 = vpop.f32.mrb[0].mxu0
        %v2604 = vadd.f32 0.0, %v2603
        %2605 = vmatprep.mubr.f32.mxu0 0.0
        %2606 = vmatmul.mubr.f32.gmra.mrb[0].mxu0 %v2491
        %v2607 = vpop.f32.mrb[0].mxu0
        %v2608 = vadd.f32 0.0, %v2607
        %v2609 = vpop.f32.mrb[0].mxu0
        %v2610 = vadd.f32 0.0, %v2609
        %2611 = vmatprep.mubr.f32.mxu0 0.0
        %2612 = vmatmul.mubr.f32.gmra.mrb[0].mxu0 %v2494
        %v2613 = vpop.f32.mrb[0].mxu0
        %v2614 = vadd.f32 0.0, %v2613
        %v2615 = vpop.f32.mrb[0].mxu0
        %v2616 = vadd.f32 0.0, %v2615
        %2617 = vmatprep.mubr.f32.mxu0 0.0
        %2618 = vmatmul.mubr.f32.gmra.mrb[0].mxu0 %v2497
        %v2619 = vpop.f32.mrb[0].mxu0
        %v2620 = vadd.f32 0.0, %v2619
        %v2621 = vpop.f32.mrb[0].mxu0
        %v2622 = vadd.f32 0.0, %v2621
        %2623 = vmatprep.mubr.f32.mxu0 0.0
        %2624 = vmatmul.mubr.f32.gmra.mrb[0].mxu0 %v2500
        %v2625 = vpop.f32.mrb[0].mxu0
        %v2626 = vadd.f32 0.0, %v2625
        %v2627 = vpop.f32.mrb[0].mxu0
        %v2628 = vadd.f32 0.0, %v2627
        %2629 = vmatprep.mubr.f32.mxu0 0.0
        %2630 = vmatmul.mubr.f32.gmra.mrb[0].mxu0 %v2503
        %v2631 = vpop.f32.mrb[0].mxu0
        %v2632 = vadd.f32 0.0, %v2631
        %v2633 = vpop.f32.mrb[0].mxu0
        %v2634 = vadd.f32 0.0, %v2633
        %2635 = vmatprep.mubr.f32.mxu0 0.0
        %2636 = vmatmul.mubr.f32.gmra.mrb[0].mxu0 %v2506
        %v2637 = vpop.f32.mrb[0].mxu0
        %v2638 = vadd.f32 0.0, %v2637
        %v2639 = vpop.f32.mrb[0].mxu0
        %v2640 = vadd.f32 0.0, %v2639
        %2641 = vmatprep.mubr.f32.mxu0 0.0
        %2642 = vmatmul.mubr.f32.gmra.mrb[0].mxu0 %v2509
        %v2643 = vpop.f32.mrb[0].mxu0
        %v2644 = vadd.f32 0.0, %v2643
        %v2645 = vpop.f32.mrb[0].mxu0
        %v2646 = vadd.f32 0.0, %v2645
        %2647 = vmatprep.mubr.f32.mxu0 0.0
        %2648 = vmatmul.mubr.f32.gmra.mrb[0].mxu0 %v2512
        %v2649 = vpop.f32.mrb[0].mxu0
        %v2650 = vadd.f32 0.0, %v2649
        %v2651 = vpop.f32.mrb[0].mxu0
        %v2652 = vadd.f32 0.0, %v2651
        %2653 = vmatprep.mubr.f32.mxu0 0.0
        %2654 = vmatmul.mubr.f32.gmra.mrb[0].mxu0 %v2515
        %v2655 = vpop.f32.mrb[0].mxu0
        %v2656 = vadd.f32 0.0, %v2655
        %v2657 = vpop.f32.mrb[0].mxu0
        %v2658 = vadd.f32 0.0, %v2657
        %2659 = vmatprep.mubr.f32.mxu0 0.0
        %2660 = vmatmul.mubr.f32.gmra.mrb[0].mxu0 %v2518
        %v2661 = vpop.f32.mrb[0].mxu0
        %v2662 = vadd.f32 0.0, %v2661
        %v2663 = vpop.f32.mrb[0].mxu0
        %v2664 = vadd.f32 0.0, %v2663
        %2665 = vmatprep.mubr.f32.mxu0 0.0
        %2666 = vmatmul.mubr.f32.gmra.mrb[0].mxu0 %v2521
        %v2667 = vpop.f32.mrb[0].mxu0
        %v2668 = vadd.f32 0.0, %v2667
        %v2669 = vpop.f32.mrb[0].mxu0
        %v2670 = vadd.f32 0.0, %v2669
        %2671 = vmatprep.mubr.f32.mxu0 0.0
        %2672 = vmatmul.mubr.f32.gmra.mrb[0].mxu0 %v2524
        %v2673 = vpop.f32.mrb[0].mxu0
        %v2674 = vadd.f32 0.0, %v2673
        %v2675 = vpop.f32.mrb[0].mxu0
        %v2676 = vadd.f32 0.0, %v2675
        %2677 = vmatprep.mubr.f32.mxu0 0.0
        %2678 = vmatmul.mubr.f32.gmra.mrb[0].mxu0 %v2527
        %v2679 = vpop.f32.mrb[0].mxu0
        %v2680 = vadd.f32 0.0, %v2679
        %v2681 = vpop.f32.mrb[0].mxu0
        %v2682 = vadd.f32 0.0, %v2681
        %2683 = vmatprep.mubr.f32.mxu0 0.0
        %2684 = vmatmul.mubr.f32.gmra.mrb[0].mxu0 %v2530
        %v2685 = vpop.f32.mrb[0].mxu0
        %v2686 = vadd.f32 0.0, %v2685
        %v2687 = vpop.f32.mrb[0].mxu0
        %v2688 = vadd.f32 0.0, %v2687
        %2689 = vmatprep.mubr.f32.mxu0 0.0
        %2690 = vmatmul.mubr.f32.gmra.mrb[0].mxu0 %v2533
        %v2691 = vpop.f32.mrb[0].mxu0
        %v2692 = vadd.f32 0.0, %v2691
        %v2693 = vpop.f32.mrb[0].mxu0
        %v2694 = vadd.f32 0.0, %v2693
        %2695 = vdwg.mxu0
        %v2696 = vadd.f32 %v2427, %v2602
        %v2697 = vadd.f32 %v2428, %v2604
        %v2698 = vadd.f32 %v2429, %v2608
        %v2699 = vadd.f32 %v2430, %v2610
        %v2700 = vadd.f32 %v2431, %v2614
        %v2701 = vadd.f32 %v2432, %v2616
        %v2702 = vadd.f32 %v2433, %v2620
        %v2703 = vadd.f32 %v2434, %v2622
        %v2704 = vadd.f32 %v2435, %v2626
        %v2705 = vadd.f32 %v2436, %v2628
        %v2706 = vadd.f32 %v2437, %v2632
        %v2707 = vadd.f32 %v2438, %v2634
        %v2708 = vadd.f32 %v2439, %v2638
        %v2709 = vadd.f32 %v2440, %v2640
        %v2710 = vadd.f32 %v2441, %v2644
        %v2711 = vadd.f32 %v2442, %v2646
        %v2712 = vadd.f32 %v2443, %v2650
        %v2713 = vadd.f32 %v2444, %v2652
        %v2714 = vadd.f32 %v2445, %v2656
        %v2715 = vadd.f32 %v2446, %v2658
        %v2716 = vadd.f32 %v2447, %v2662
        %v2717 = vadd.f32 %v2448, %v2664
        %v2718 = vadd.f32 %v2449, %v2668
        %v2719 = vadd.f32 %v2450, %v2670
        %v2720 = vadd.f32 %v2451, %v2674
        %v2721 = vadd.f32 %v2452, %v2676
        %v2722 = vadd.f32 %v2453, %v2680
        %v2723 = vadd.f32 %v2454, %v2682
        %v2724 = vadd.f32 %v2455, %v2686
        %v2725 = vadd.f32 %v2456, %v2688
        %v2726 = vadd.f32 %v2457, %v2692
        %v2727 = vadd.f32 %v2458, %v2694
        %v2728 = vld [vmem:[%s2461 + $0x6] sm:$0xff]
        %v2729 = vld [vmem:[%s2461 + $0xe] sm:$0xff]
        %v2730 = vld [vmem:[%s2461 + $0x26] sm:$0xff]
        %v2731 = vld [vmem:[%s2461 + $0x2e] sm:$0xff]
        %v2732 = vld [vmem:[%s2461 + $0x46] sm:$0xff]
        %v2733 = vld [vmem:[%s2461 + $0x4e] sm:$0xff]
        %v2734 = vld [vmem:[%s2461 + $0x66] sm:$0xff]
        %v2735 = vld [vmem:[%s2461 + $0x6e] sm:$0xff]
        %v2736 = vld [vmem:[%s2461 + $0x86] sm:$0xff]
        %v2737 = vld [vmem:[%s2461 + $0x8e] sm:$0xff]
        %v2738 = vld [vmem:[%s2461 + $0xa6] sm:$0xff]
        %v2739 = vld [vmem:[%s2461 + $0xae] sm:$0xff]
        %v2740 = vld [vmem:[%s2461 + $0xc6] sm:$0xff]
        %v2741 = vld [vmem:[%s2461 + $0xce] sm:$0xff]
        %v2742 = vld [vmem:[%s2461 + $0xe6] sm:$0xff]
        %v2743 = vld [vmem:[%s2461 + $0xee] sm:$0xff]
        %s2744 = scalar_lea.vmem %s1, 512
        %v2745 = vld [vmem:[%s2744] sm:$0xff]
        %v2746 = vld [vmem:[%s2744 + $0x8] sm:$0xff]
        %v2747 = vld [vmem:[%s2744 + $0x10] sm:$0xff]
        %v2748 = vld [vmem:[%s2744 + $0x18] sm:$0xff]
        %v2749 = vld [vmem:[%s2744 + $0x20] sm:$0xff]
        %v2750 = vld [vmem:[%s2744 + $0x28] sm:$0xff]
        %v2751 = vld [vmem:[%s2744 + $0x30] sm:$0xff]
        %v2752 = vld [vmem:[%s2744 + $0x38] sm:$0xff]
        %v2754 = vsel %vm337, %v2728, 0
        %v2757 = vsel %vm337, %v2729, 0
        %v2760 = vsel %vm337, %v2730, 0
        %v2763 = vsel %vm337, %v2731, 0
        %v2766 = vsel %vm337, %v2732, 0
        %v2769 = vsel %vm337, %v2733, 0
        %v2772 = vsel %vm337, %v2734, 0
        %v2775 = vsel %vm337, %v2735, 0
        %v2778 = vsel %vm337, %v2736, 0
        %v2781 = vsel %vm337, %v2737, 0
        %v2784 = vsel %vm337, %v2738, 0
        %v2787 = vsel %vm337, %v2739, 0
        %v2790 = vsel %vm337, %v2740, 0
        %v2793 = vsel %vm337, %v2741, 0
        %v2796 = vsel %vm337, %v2742, 0
        %v2799 = vsel %vm337, %v2743, 0
        %2801 = vmatprep.subr.mxu0 %v2746
        %2802 = vmatpush1.msra.mxu0 %v2745
        %2803 = vmatprep.subr.mxu0 %v2748
        %2804 = vmatpush1.msra.mxu0 %v2747
        %2805 = vmatprep.subr.mxu0 %v2750
        %2806 = vmatpush1.msra.mxu0 %v2749
        %2807 = vmatprep.subr.mxu0 %v2752
        %2808 = vmatpush1.msra.mxu0 %v2751
        %2809 = vmatprep.subr.mxu0 0.0
        %2810 = vmatpush1.msra.mxu0 0.0
        %2811 = vmatprep.subr.mxu0 0.0
        %2812 = vmatpush1.msra.mxu0 0.0
        %2813 = vmatprep.subr.mxu0 0.0
        %2814 = vmatpush1.msra.mxu0 0.0
        %2815 = vmatprep.subr.mxu0 0.0
        %2816 = vmatpush1.msra.mxu0 0.0
        %2817 = vmatprep.subr.mxu0 0.0
        %2818 = vmatpush1.msra.mxu0 0.0
        %2819 = vmatprep.subr.mxu0 0.0
        %2820 = vmatpush1.msra.mxu0 0.0
        %2821 = vmatprep.subr.mxu0 0.0
        %2822 = vmatpush1.msra.mxu0 0.0
        %2823 = vmatprep.subr.mxu0 0.0
        %2824 = vmatpush1.msra.mxu0 0.0
        %2825 = vmatprep.subr.mxu0 0.0
        %2826 = vmatpush1.msra.mxu0 0.0
        %2827 = vmatprep.subr.mxu0 0.0
        %2828 = vmatpush1.msra.mxu0 0.0
        %2829 = vmatprep.subr.mxu0 0.0
        %2830 = vmatpush1.msra.mxu0 0.0
        %2831 = vmatprep.subr.mxu0 0.0
        %2832 = vmatpush1.msra.mxu0 0.0
        %2833 = vmatprep.subr.mxu0 0.0
        %2834 = vmatpush1.msra.mxu0 0.0
        %2835 = vmatprep.subr.mxu0 0.0
        %2836 = vmatpush1.msra.mxu0 0.0
        %2837 = vmatprep.subr.mxu0 0.0
        %2838 = vmatpush1.msra.mxu0 0.0
        %2839 = vmatprep.subr.mxu0 0.0
        %2840 = vmatpush1.msra.mxu0 0.0
        %2841 = vmatprep.subr.mxu0 0.0
        %2842 = vmatpush1.msra.mxu0 0.0
        %2843 = vmatprep.subr.mxu0 0.0
        %2844 = vmatpush1.msra.mxu0 0.0
        %2845 = vmatprep.subr.mxu0 0.0
        %2846 = vmatpush1.msra.mxu0 0.0
        %2847 = vmatprep.subr.mxu0 0.0
        %2848 = vmatpush1.msra.mxu0 0.0
        %2849 = vmatprep.subr.mxu0 0.0
        %2850 = vmatpush1.msra.mxu0 0.0
        %2851 = vmatprep.subr.mxu0 0.0
        %2852 = vmatpush1.msra.mxu0 0.0
        %2853 = vmatprep.subr.mxu0 0.0
        %2854 = vmatpush1.msra.mxu0 0.0
        %2855 = vmatprep.subr.mxu0 0.0
        %2856 = vmatpush1.msra.mxu0 0.0
        %2857 = vmatprep.subr.mxu0 0.0
        %2858 = vmatpush1.msra.mxu0 0.0
        %2859 = vmatprep.subr.mxu0 0.0
        %2860 = vmatpush1.msra.mxu0 0.0
        %2861 = vmatprep.subr.mxu0 0.0
        %2862 = vmatpush1.msra.mxu0 0.0
        %2863 = vmatprep.subr.mxu0 0.0
        %2864 = vmatpush1.msra.mxu0 0.0
        %2865 = vmatprep.mubr.f32.mxu0 0.0
        %2866 = vmatmul.mubr.f32.gmra.mrb[0].mxu0 %v2754
        %v2867 = vpop.f32.mrb[0].mxu0
        %v2868 = vadd.f32 0.0, %v2867
        %v2869 = vpop.f32.mrb[0].mxu0
        %v2870 = vadd.f32 0.0, %v2869
        %2871 = vmatprep.mubr.f32.mxu0 0.0
        %2872 = vmatmul.mubr.f32.gmra.mrb[0].mxu0 %v2757
        %v2873 = vpop.f32.mrb[0].mxu0
        %v2874 = vadd.f32 0.0, %v2873
        %v2875 = vpop.f32.mrb[0].mxu0
        %v2876 = vadd.f32 0.0, %v2875
        %2877 = vmatprep.mubr.f32.mxu0 0.0
        %2878 = vmatmul.mubr.f32.gmra.mrb[0].mxu0 %v2760
        %v2879 = vpop.f32.mrb[0].mxu0
        %v2880 = vadd.f32 0.0, %v2879
        %v2881 = vpop.f32.mrb[0].mxu0
        %v2882 = vadd.f32 0.0, %v2881
        %2883 = vmatprep.mubr.f32.mxu0 0.0
        %2884 = vmatmul.mubr.f32.gmra.mrb[0].mxu0 %v2763
        %v2885 = vpop.f32.mrb[0].mxu0
        %v2886 = vadd.f32 0.0, %v2885
        %v2887 = vpop.f32.mrb[0].mxu0
        %v2888 = vadd.f32 0.0, %v2887
        %2889 = vmatprep.mubr.f32.mxu0 0.0
        %2890 = vmatmul.mubr.f32.gmra.mrb[0].mxu0 %v2766
        %v2891 = vpop.f32.mrb[0].mxu0
        %v2892 = vadd.f32 0.0, %v2891
        %v2893 = vpop.f32.mrb[0].mxu0
        %v2894 = vadd.f32 0.0, %v2893
        %2895 = vmatprep.mubr.f32.mxu0 0.0
        %2896 = vmatmul.mubr.f32.gmra.mrb[0].mxu0 %v2769
        %v2897 = vpop.f32.mrb[0].mxu0
        %v2898 = vadd.f32 0.0, %v2897
        %v2899 = vpop.f32.mrb[0].mxu0
        %v2900 = vadd.f32 0.0, %v2899
        %2901 = vmatprep.mubr.f32.mxu0 0.0
        %2902 = vmatmul.mubr.f32.gmra.mrb[0].mxu0 %v2772
        %v2903 = vpop.f32.mrb[0].mxu0
        %v2904 = vadd.f32 0.0, %v2903
        %v2905 = vpop.f32.mrb[0].mxu0
        %v2906 = vadd.f32 0.0, %v2905
        %2907 = vmatprep.mubr.f32.mxu0 0.0
        %2908 = vmatmul.mubr.f32.gmra.mrb[0].mxu0 %v2775
        %v2909 = vpop.f32.mrb[0].mxu0
        %v2910 = vadd.f32 0.0, %v2909
        %v2911 = vpop.f32.mrb[0].mxu0
        %v2912 = vadd.f32 0.0, %v2911
        %2913 = vmatprep.mubr.f32.mxu0 0.0
        %2914 = vmatmul.mubr.f32.gmra.mrb[0].mxu0 %v2778
        %v2915 = vpop.f32.mrb[0].mxu0
        %v2916 = vadd.f32 0.0, %v2915
        %v2917 = vpop.f32.mrb[0].mxu0
        %v2918 = vadd.f32 0.0, %v2917
        %2919 = vmatprep.mubr.f32.mxu0 0.0
        %2920 = vmatmul.mubr.f32.gmra.mrb[0].mxu0 %v2781
        %v2921 = vpop.f32.mrb[0].mxu0
        %v2922 = vadd.f32 0.0, %v2921
        %v2923 = vpop.f32.mrb[0].mxu0
        %v2924 = vadd.f32 0.0, %v2923
        %2925 = vmatprep.mubr.f32.mxu0 0.0
        %2926 = vmatmul.mubr.f32.gmra.mrb[0].mxu0 %v2784
        %v2927 = vpop.f32.mrb[0].mxu0
        %v2928 = vadd.f32 0.0, %v2927
        %v2929 = vpop.f32.mrb[0].mxu0
        %v2930 = vadd.f32 0.0, %v2929
        %2931 = vmatprep.mubr.f32.mxu0 0.0
        %2932 = vmatmul.mubr.f32.gmra.mrb[0].mxu0 %v2787
        %v2933 = vpop.f32.mrb[0].mxu0
        %v2934 = vadd.f32 0.0, %v2933
        %v2935 = vpop.f32.mrb[0].mxu0
        %v2936 = vadd.f32 0.0, %v2935
        %2937 = vmatprep.mubr.f32.mxu0 0.0
        %2938 = vmatmul.mubr.f32.gmra.mrb[0].mxu0 %v2790
        %v2939 = vpop.f32.mrb[0].mxu0
        %v2940 = vadd.f32 0.0, %v2939
        %v2941 = vpop.f32.mrb[0].mxu0
        %v2942 = vadd.f32 0.0, %v2941
        %2943 = vmatprep.mubr.f32.mxu0 0.0
        %2944 = vmatmul.mubr.f32.gmra.mrb[0].mxu0 %v2793
        %v2945 = vpop.f32.mrb[0].mxu0
        %v2946 = vadd.f32 0.0, %v2945
        %v2947 = vpop.f32.mrb[0].mxu0
        %v2948 = vadd.f32 0.0, %v2947
        %2949 = vmatprep.mubr.f32.mxu0 0.0
        %2950 = vmatmul.mubr.f32.gmra.mrb[0].mxu0 %v2796
        %v2951 = vpop.f32.mrb[0].mxu0
        %v2952 = vadd.f32 0.0, %v2951
        %v2953 = vpop.f32.mrb[0].mxu0
        %v2954 = vadd.f32 0.0, %v2953
        %2955 = vmatprep.mubr.f32.mxu0 0.0
        %2956 = vmatmul.mubr.f32.gmra.mrb[0].mxu0 %v2799
        %v2957 = vpop.f32.mrb[0].mxu0
        %v2958 = vadd.f32 0.0, %v2957
        %v2959 = vpop.f32.mrb[0].mxu0
        %v2960 = vadd.f32 0.0, %v2959
        %2961 = vdwg.mxu0
        %v2962 = vadd.f32 %v2696, %v2868
        %v2963 = vadd.f32 %v2697, %v2870
        %v2964 = vadd.f32 %v2698, %v2874
        %v2965 = vadd.f32 %v2699, %v2876
        %v2966 = vadd.f32 %v2700, %v2880
        %v2967 = vadd.f32 %v2701, %v2882
        %v2968 = vadd.f32 %v2702, %v2886
        %v2969 = vadd.f32 %v2703, %v2888
        %v2970 = vadd.f32 %v2704, %v2892
        %v2971 = vadd.f32 %v2705, %v2894
        %v2972 = vadd.f32 %v2706, %v2898
        %v2973 = vadd.f32 %v2707, %v2900
        %v2974 = vadd.f32 %v2708, %v2904
        %v2975 = vadd.f32 %v2709, %v2906
        %v2976 = vadd.f32 %v2710, %v2910
        %v2977 = vadd.f32 %v2711, %v2912
        %v2978 = vadd.f32 %v2712, %v2916
        %v2979 = vadd.f32 %v2713, %v2918
        %v2980 = vadd.f32 %v2714, %v2922
        %v2981 = vadd.f32 %v2715, %v2924
        %v2982 = vadd.f32 %v2716, %v2928
        %v2983 = vadd.f32 %v2717, %v2930
        %v2984 = vadd.f32 %v2718, %v2934
        %v2985 = vadd.f32 %v2719, %v2936
        %v2986 = vadd.f32 %v2720, %v2940
        %v2987 = vadd.f32 %v2721, %v2942
        %v2988 = vadd.f32 %v2722, %v2946
        %v2989 = vadd.f32 %v2723, %v2948
        %v2990 = vadd.f32 %v2724, %v2952
        %v2991 = vadd.f32 %v2725, %v2954
        %v2992 = vadd.f32 %v2726, %v2958
        %v2993 = vadd.f32 %v2727, %v2960
        %v2994 = vld [vmem:[%s2461 + $0x8] sm:$0xff]
        %v2995 = vld [vmem:[%s2461 + $0x10] sm:$0xff]
        %v2996 = vld [vmem:[%s2461 + $0x28] sm:$0xff]
        %v2997 = vld [vmem:[%s2461 + $0x30] sm:$0xff]
        %v2998 = vld [vmem:[%s2461 + $0x48] sm:$0xff]
        %v2999 = vld [vmem:[%s2461 + $0x50] sm:$0xff]
        %v3000 = vld [vmem:[%s2461 + $0x68] sm:$0xff]
        %v3001 = vld [vmem:[%s2461 + $0x70] sm:$0xff]
        %v3002 = vld [vmem:[%s2461 + $0x88] sm:$0xff]
        %v3003 = vld [vmem:[%s2461 + $0x90] sm:$0xff]
        %v3004 = vld [vmem:[%s2461 + $0xa8] sm:$0xff]
        %v3005 = vld [vmem:[%s2461 + $0xb0] sm:$0xff]
        %v3006 = vld [vmem:[%s2461 + $0xc8] sm:$0xff]
        %v3007 = vld [vmem:[%s2461 + $0xd0] sm:$0xff]
        %v3008 = vld [vmem:[%s2461 + $0xe8] sm:$0xff]
        %v3009 = vld [vmem:[%s2461 + $0xf0] sm:$0xff]
        %s3010 = scalar_lea.vmem %s1, 576
        %v3011 = vld [vmem:[%s3010] sm:$0xff]
        %v3012 = vld [vmem:[%s3010 + $0x8] sm:$0xff]
        %v3013 = vld [vmem:[%s3010 + $0x10] sm:$0xff]
        %v3014 = vld [vmem:[%s3010 + $0x18] sm:$0xff]
        %v3015 = vld [vmem:[%s3010 + $0x20] sm:$0xff]
        %v3016 = vld [vmem:[%s3010 + $0x28] sm:$0xff]
        %v3017 = vld [vmem:[%s3010 + $0x30] sm:$0xff]
        %v3018 = vld [vmem:[%s3010 + $0x38] sm:$0xff]
        %v3020 = vsel %vm337, %v2994, 0
        %v3023 = vsel %vm337, %v2995, 0
        %v3026 = vsel %vm337, %v2996, 0
        %v3029 = vsel %vm337, %v2997, 0
        %v3032 = vsel %vm337, %v2998, 0
        %v3035 = vsel %vm337, %v2999, 0
        %v3038 = vsel %vm337, %v3000, 0
        %v3041 = vsel %vm337, %v3001, 0
        %v3044 = vsel %vm337, %v3002, 0
        %v3047 = vsel %vm337, %v3003, 0
        %v3050 = vsel %vm337, %v3004, 0
        %v3053 = vsel %vm337, %v3005, 0
        %v3056 = vsel %vm337, %v3006, 0
        %v3059 = vsel %vm337, %v3007, 0
        %v3062 = vsel %vm337, %v3008, 0
        %v3065 = vsel %vm337, %v3009, 0
        %3067 = vmatprep.subr.mxu0 %v3012
        %3068 = vmatpush1.msra.mxu0 %v3011
        %3069 = vmatprep.subr.mxu0 %v3014
        %3070 = vmatpush1.msra.mxu0 %v3013
        %3071 = vmatprep.subr.mxu0 %v3016
        %3072 = vmatpush1.msra.mxu0 %v3015
        %3073 = vmatprep.subr.mxu0 %v3018
        %3074 = vmatpush1.msra.mxu0 %v3017
        %3075 = vmatprep.subr.mxu0 0.0
        %3076 = vmatpush1.msra.mxu0 0.0
        %3077 = vmatprep.subr.mxu0 0.0
        %3078 = vmatpush1.msra.mxu0 0.0
        %3079 = vmatprep.subr.mxu0 0.0
        %3080 = vmatpush1.msra.mxu0 0.0
        %3081 = vmatprep.subr.mxu0 0.0
        %3082 = vmatpush1.msra.mxu0 0.0
        %3083 = vmatprep.subr.mxu0 0.0
        %3084 = vmatpush1.msra.mxu0 0.0
        %3085 = vmatprep.subr.mxu0 0.0
        %3086 = vmatpush1.msra.mxu0 0.0
        %3087 = vmatprep.subr.mxu0 0.0
        %3088 = vmatpush1.msra.mxu0 0.0
        %3089 = vmatprep.subr.mxu0 0.0
        %3090 = vmatpush1.msra.mxu0 0.0
        %3091 = vmatprep.subr.mxu0 0.0
        %3092 = vmatpush1.msra.mxu0 0.0
        %3093 = vmatprep.subr.mxu0 0.0
        %3094 = vmatpush1.msra.mxu0 0.0
        %3095 = vmatprep.subr.mxu0 0.0
        %3096 = vmatpush1.msra.mxu0 0.0
        %3097 = vmatprep.subr.mxu0 0.0
        %3098 = vmatpush1.msra.mxu0 0.0
        %3099 = vmatprep.subr.mxu0 0.0
        %3100 = vmatpush1.msra.mxu0 0.0
        %3101 = vmatprep.subr.mxu0 0.0
        %3102 = vmatpush1.msra.mxu0 0.0
        %3103 = vmatprep.subr.mxu0 0.0
        %3104 = vmatpush1.msra.mxu0 0.0
        %3105 = vmatprep.subr.mxu0 0.0
        %3106 = vmatpush1.msra.mxu0 0.0
        %3107 = vmatprep.subr.mxu0 0.0
        %3108 = vmatpush1.msra.mxu0 0.0
        %3109 = vmatprep.subr.mxu0 0.0
        %3110 = vmatpush1.msra.mxu0 0.0
        %3111 = vmatprep.subr.mxu0 0.0
        %3112 = vmatpush1.msra.mxu0 0.0
        %3113 = vmatprep.subr.mxu0 0.0
        %3114 = vmatpush1.msra.mxu0 0.0
        %3115 = vmatprep.subr.mxu0 0.0
        %3116 = vmatpush1.msra.mxu0 0.0
        %3117 = vmatprep.subr.mxu0 0.0
        %3118 = vmatpush1.msra.mxu0 0.0
        %3119 = vmatprep.subr.mxu0 0.0
        %3120 = vmatpush1.msra.mxu0 0.0
        %3121 = vmatprep.subr.mxu0 0.0
        %3122 = vmatpush1.msra.mxu0 0.0
        %3123 = vmatprep.subr.mxu0 0.0
        %3124 = vmatpush1.msra.mxu0 0.0
        %3125 = vmatprep.subr.mxu0 0.0
        %3126 = vmatpush1.msra.mxu0 0.0
        %3127 = vmatprep.subr.mxu0 0.0
        %3128 = vmatpush1.msra.mxu0 0.0
        %3129 = vmatprep.subr.mxu0 0.0
        %3130 = vmatpush1.msra.mxu0 0.0
        %3131 = vmatprep.mubr.f32.mxu0 0.0
        %3132 = vmatmul.mubr.f32.gmra.mrb[0].mxu0 %v3020
        %v3133 = vpop.f32.mrb[0].mxu0
        %v3134 = vadd.f32 0.0, %v3133
        %v3135 = vpop.f32.mrb[0].mxu0
        %v3136 = vadd.f32 0.0, %v3135
        %3137 = vmatprep.mubr.f32.mxu0 0.0
        %3138 = vmatmul.mubr.f32.gmra.mrb[0].mxu0 %v3023
        %v3139 = vpop.f32.mrb[0].mxu0
        %v3140 = vadd.f32 0.0, %v3139
        %v3141 = vpop.f32.mrb[0].mxu0
        %v3142 = vadd.f32 0.0, %v3141
        %3143 = vmatprep.mubr.f32.mxu0 0.0
        %3144 = vmatmul.mubr.f32.gmra.mrb[0].mxu0 %v3026
        %v3145 = vpop.f32.mrb[0].mxu0
        %v3146 = vadd.f32 0.0, %v3145
        %v3147 = vpop.f32.mrb[0].mxu0
        %v3148 = vadd.f32 0.0, %v3147
        %3149 = vmatprep.mubr.f32.mxu0 0.0
        %3150 = vmatmul.mubr.f32.gmra.mrb[0].mxu0 %v3029
        %v3151 = vpop.f32.mrb[0].mxu0
        %v3152 = vadd.f32 0.0, %v3151
        %v3153 = vpop.f32.mrb[0].mxu0
        %v3154 = vadd.f32 0.0, %v3153
        %3155 = vmatprep.mubr.f32.mxu0 0.0
        %3156 = vmatmul.mubr.f32.gmra.mrb[0].mxu0 %v3032
        %v3157 = vpop.f32.mrb[0].mxu0
        %v3158 = vadd.f32 0.0, %v3157
        %v3159 = vpop.f32.mrb[0].mxu0
        %v3160 = vadd.f32 0.0, %v3159
        %3161 = vmatprep.mubr.f32.mxu0 0.0
        %3162 = vmatmul.mubr.f32.gmra.mrb[0].mxu0 %v3035
        %v3163 = vpop.f32.mrb[0].mxu0
        %v3164 = vadd.f32 0.0, %v3163
        %v3165 = vpop.f32.mrb[0].mxu0
        %v3166 = vadd.f32 0.0, %v3165
        %3167 = vmatprep.mubr.f32.mxu0 0.0
        %3168 = vmatmul.mubr.f32.gmra.mrb[0].mxu0 %v3038
        %v3169 = vpop.f32.mrb[0].mxu0
        %v3170 = vadd.f32 0.0, %v3169
        %v3171 = vpop.f32.mrb[0].mxu0
        %v3172 = vadd.f32 0.0, %v3171
        %3173 = vmatprep.mubr.f32.mxu0 0.0
        %3174 = vmatmul.mubr.f32.gmra.mrb[0].mxu0 %v3041
        %v3175 = vpop.f32.mrb[0].mxu0
        %v3176 = vadd.f32 0.0, %v3175
        %v3177 = vpop.f32.mrb[0].mxu0
        %v3178 = vadd.f32 0.0, %v3177
        %3179 = vmatprep.mubr.f32.mxu0 0.0
        %3180 = vmatmul.mubr.f32.gmra.mrb[0].mxu0 %v3044
        %v3181 = vpop.f32.mrb[0].mxu0
        %v3182 = vadd.f32 0.0, %v3181
        %v3183 = vpop.f32.mrb[0].mxu0
        %v3184 = vadd.f32 0.0, %v3183
        %3185 = vmatprep.mubr.f32.mxu0 0.0
        %3186 = vmatmul.mubr.f32.gmra.mrb[0].mxu0 %v3047
        %v3187 = vpop.f32.mrb[0].mxu0
        %v3188 = vadd.f32 0.0, %v3187
        %v3189 = vpop.f32.mrb[0].mxu0
        %v3190 = vadd.f32 0.0, %v3189
        %3191 = vmatprep.mubr.f32.mxu0 0.0
        %3192 = vmatmul.mubr.f32.gmra.mrb[0].mxu0 %v3050
        %v3193 = vpop.f32.mrb[0].mxu0
        %v3194 = vadd.f32 0.0, %v3193
        %v3195 = vpop.f32.mrb[0].mxu0
        %v3196 = vadd.f32 0.0, %v3195
        %3197 = vmatprep.mubr.f32.mxu0 0.0
        %3198 = vmatmul.mubr.f32.gmra.mrb[0].mxu0 %v3053
        %v3199 = vpop.f32.mrb[0].mxu0
        %v3200 = vadd.f32 0.0, %v3199
        %v3201 = vpop.f32.mrb[0].mxu0
        %v3202 = vadd.f32 0.0, %v3201
        %3203 = vmatprep.mubr.f32.mxu0 0.0
        %3204 = vmatmul.mubr.f32.gmra.mrb[0].mxu0 %v3056
        %v3205 = vpop.f32.mrb[0].mxu0
        %v3206 = vadd.f32 0.0, %v3205
        %v3207 = vpop.f32.mrb[0].mxu0
        %v3208 = vadd.f32 0.0, %v3207
        %3209 = vmatprep.mubr.f32.mxu0 0.0
        %3210 = vmatmul.mubr.f32.gmra.mrb[0].mxu0 %v3059
        %v3211 = vpop.f32.mrb[0].mxu0
        %v3212 = vadd.f32 0.0, %v3211
        %v3213 = vpop.f32.mrb[0].mxu0
        %v3214 = vadd.f32 0.0, %v3213
        %3215 = vmatprep.mubr.f32.mxu0 0.0
        %3216 = vmatmul.mubr.f32.gmra.mrb[0].mxu0 %v3062
        %v3217 = vpop.f32.mrb[0].mxu0
        %v3218 = vadd.f32 0.0, %v3217
        %v3219 = vpop.f32.mrb[0].mxu0
        %v3220 = vadd.f32 0.0, %v3219
        %3221 = vmatprep.mubr.f32.mxu0 0.0
        %3222 = vmatmul.mubr.f32.gmra.mrb[0].mxu0 %v3065
        %v3223 = vpop.f32.mrb[0].mxu0
        %v3224 = vadd.f32 0.0, %v3223
        %v3225 = vpop.f32.mrb[0].mxu0
        %v3226 = vadd.f32 0.0, %v3225
        %3227 = vdwg.mxu0
        %v3228 = vadd.f32 %v2962, %v3134
        %v3229 = vadd.f32 %v2963, %v3136
        %v3230 = vadd.f32 %v2964, %v3140
        %v3231 = vadd.f32 %v2965, %v3142
        %v3232 = vadd.f32 %v2966, %v3146
        %v3233 = vadd.f32 %v2967, %v3148
        %v3234 = vadd.f32 %v2968, %v3152
        %v3235 = vadd.f32 %v2969, %v3154
        %v3236 = vadd.f32 %v2970, %v3158
        %v3237 = vadd.f32 %v2971, %v3160
        %v3238 = vadd.f32 %v2972, %v3164
        %v3239 = vadd.f32 %v2973, %v3166
        %v3240 = vadd.f32 %v2974, %v3170
        %v3241 = vadd.f32 %v2975, %v3172
        %v3242 = vadd.f32 %v2976, %v3176
        %v3243 = vadd.f32 %v2977, %v3178
        %v3244 = vadd.f32 %v2978, %v3182
        %v3245 = vadd.f32 %v2979, %v3184
        %v3246 = vadd.f32 %v2980, %v3188
        %v3247 = vadd.f32 %v2981, %v3190
        %v3248 = vadd.f32 %v2982, %v3194
        %v3249 = vadd.f32 %v2983, %v3196
        %v3250 = vadd.f32 %v2984, %v3200
        %v3251 = vadd.f32 %v2985, %v3202
        %v3252 = vadd.f32 %v2986, %v3206
        %v3253 = vadd.f32 %v2987, %v3208
        %v3254 = vadd.f32 %v2988, %v3212
        %v3255 = vadd.f32 %v2989, %v3214
        %v3256 = vadd.f32 %v2990, %v3218
        %v3257 = vadd.f32 %v2991, %v3220
        %v3258 = vadd.f32 %v2992, %v3224
        %v3259 = vadd.f32 %v2993, %v3226
        %s3260 = scalar_lea.vmem %s2, 1
        %v3261 = vld [vmem:[%s3260] ss:$4 sm:$0x3]
        %v3263 = vlaneseq
        %v3264 = vshrl.u32 %v3263, 7
        %v3265 = vsub.s32 0, %v3264
        %v3266 = vrot.slane %v3261, %v3265
        %v3267 = vlaneseq
        %v3268 = vshrl.u32 %v3267, 7
        %v3269 = vsub.s32 1, %v3268
        %v3270 = vrot.slane %v3261, %v3269
        %v3273 = vmul.f32 %v3228, %v3266
        %v3274 = vmul.f32 %v3229, %v3270
        %v3275 = vmul.f32 %v3230, %v3266
        %v3276 = vmul.f32 %v3231, %v3270
        %v3277 = vmul.f32 %v3232, %v3266
        %v3278 = vmul.f32 %v3233, %v3270
        %v3279 = vmul.f32 %v3234, %v3266
        %v3280 = vmul.f32 %v3235, %v3270
        %v3281 = vmul.f32 %v3236, %v3266
        %v3282 = vmul.f32 %v3237, %v3270
        %v3283 = vmul.f32 %v3238, %v3266
        %v3284 = vmul.f32 %v3239, %v3270
        %v3285 = vmul.f32 %v3240, %v3266
        %v3286 = vmul.f32 %v3241, %v3270
        %v3287 = vmul.f32 %v3242, %v3266
        %v3288 = vmul.f32 %v3243, %v3270
        %v3289 = vmul.f32 %v3244, %v3266
        %v3290 = vmul.f32 %v3245, %v3270
        %v3291 = vmul.f32 %v3246, %v3266
        %v3292 = vmul.f32 %v3247, %v3270
        %v3293 = vmul.f32 %v3248, %v3266
        %v3294 = vmul.f32 %v3249, %v3270
        %v3295 = vmul.f32 %v3250, %v3266
        %v3296 = vmul.f32 %v3251, %v3270
        %v3297 = vmul.f32 %v3252, %v3266
        %v3298 = vmul.f32 %v3253, %v3270
        %v3299 = vmul.f32 %v3254, %v3266
        %v3300 = vmul.f32 %v3255, %v3270
        %v3301 = vmul.f32 %v3256, %v3266
        %v3302 = vmul.f32 %v3257, %v3270
        %v3303 = vmul.f32 %v3258, %v3266
        %v3304 = vmul.f32 %v3259, %v3270
        %s3305 = scalar_lea.vmem %s3, 1
        %v3306 = vld [vmem:[%s3305] ss:$4 sm:$0x3]
        %v3308 = vlaneseq
        %v3309 = vshrl.u32 %v3308, 7
        %v3310 = vsub.s32 0, %v3309
        %v3311 = vrot.slane %v3306, %v3310
        %v3312 = vlaneseq
        %v3313 = vshrl.u32 %v3312, 7
        %v3314 = vsub.s32 1, %v3313
        %v3315 = vrot.slane %v3306, %v3314
        %v3318 = vadd.f32 %v3273, %v3311
        %v3319 = vadd.f32 %v3274, %v3315
        %v3320 = vadd.f32 %v3275, %v3311
        %v3321 = vadd.f32 %v3276, %v3315
        %v3322 = vadd.f32 %v3277, %v3311
        %v3323 = vadd.f32 %v3278, %v3315
        %v3324 = vadd.f32 %v3279, %v3311
        %v3325 = vadd.f32 %v3280, %v3315
        %v3326 = vadd.f32 %v3281, %v3311
        %v3327 = vadd.f32 %v3282, %v3315
        %v3328 = vadd.f32 %v3283, %v3311
        %v3329 = vadd.f32 %v3284, %v3315
        %v3330 = vadd.f32 %v3285, %v3311
        %v3331 = vadd.f32 %v3286, %v3315
        %v3332 = vadd.f32 %v3287, %v3311
        %v3333 = vadd.f32 %v3288, %v3315
        %v3334 = vadd.f32 %v3289, %v3311
        %v3335 = vadd.f32 %v3290, %v3315
        %v3336 = vadd.f32 %v3291, %v3311
        %v3337 = vadd.f32 %v3292, %v3315
        %v3338 = vadd.f32 %v3293, %v3311
        %v3339 = vadd.f32 %v3294, %v3315
        %v3340 = vadd.f32 %v3295, %v3311
        %v3341 = vadd.f32 %v3296, %v3315
        %v3342 = vadd.f32 %v3297, %v3311
        %v3343 = vadd.f32 %v3298, %v3315
        %v3344 = vadd.f32 %v3299, %v3311
        %v3345 = vadd.f32 %v3300, %v3315
        %v3346 = vadd.f32 %v3301, %v3311
        %v3347 = vadd.f32 %v3302, %v3315
        %v3348 = vadd.f32 %v3303, %v3311
        %v3349 = vadd.f32 %v3304, %v3315
        %v3350 = vmax.f32 %v3318, 0.0
        %v3351 = vmax.f32 %v3319, 0.0
        %v3352 = vmax.f32 %v3320, 0.0
        %v3353 = vmax.f32 %v3321, 0.0
        %v3354 = vmax.f32 %v3322, 0.0
        %v3355 = vmax.f32 %v3323, 0.0
        %v3356 = vmax.f32 %v3324, 0.0
        %v3357 = vmax.f32 %v3325, 0.0
        %v3358 = vmax.f32 %v3326, 0.0
        %v3359 = vmax.f32 %v3327, 0.0
        %v3360 = vmax.f32 %v3328, 0.0
        %v3361 = vmax.f32 %v3329, 0.0
        %v3362 = vmax.f32 %v3330, 0.0
        %v3363 = vmax.f32 %v3331, 0.0
        %v3364 = vmax.f32 %v3332, 0.0
        %v3365 = vmax.f32 %v3333, 0.0
        %v3366 = vmax.f32 %v3334, 0.0
        %v3367 = vmax.f32 %v3335, 0.0
        %v3368 = vmax.f32 %v3336, 0.0
        %v3369 = vmax.f32 %v3337, 0.0
        %v3370 = vmax.f32 %v3338, 0.0
        %v3371 = vmax.f32 %v3339, 0.0
        %v3372 = vmax.f32 %v3340, 0.0
        %v3373 = vmax.f32 %v3341, 0.0
        %v3374 = vmax.f32 %v3342, 0.0
        %v3375 = vmax.f32 %v3343, 0.0
        %v3376 = vmax.f32 %v3344, 0.0
        %v3377 = vmax.f32 %v3345, 0.0
        %v3378 = vmax.f32 %v3346, 0.0
        %v3379 = vmax.f32 %v3347, 0.0
        %v3380 = vmax.f32 %v3348, 0.0
        %v3381 = vmax.f32 %v3349, 0.0
        %s3382 = scalar_lea.vmem %s4, 512
        %v3383 = vld [vmem:[%s3382] sm:$0xff]
        %v3384 = vld [vmem:[%s3382 + $0x8] sm:$0xff]
        %v3385 = vld [vmem:[%s3382 + $0x10] sm:$0xff]
        %v3386 = vld [vmem:[%s3382 + $0x18] sm:$0xff]
        %v3387 = vld [vmem:[%s3382 + $0x20] sm:$0xff]
        %v3388 = vld [vmem:[%s3382 + $0x28] sm:$0xff]
        %v3389 = vld [vmem:[%s3382 + $0x30] sm:$0xff]
        %v3390 = vld [vmem:[%s3382 + $0x38] sm:$0xff]
        %v3391 = vld [vmem:[%s3382 + $0x40] sm:$0xff]
        %v3392 = vld [vmem:[%s3382 + $0x48] sm:$0xff]
        %v3393 = vld [vmem:[%s3382 + $0x50] sm:$0xff]
        %v3394 = vld [vmem:[%s3382 + $0x58] sm:$0xff]
        %v3395 = vld [vmem:[%s3382 + $0x60] sm:$0xff]
        %v3396 = vld [vmem:[%s3382 + $0x68] sm:$0xff]
        %v3397 = vld [vmem:[%s3382 + $0x70] sm:$0xff]
        %v3398 = vld [vmem:[%s3382 + $0x78] sm:$0xff]
        %v3399 = vld [vmem:[%s3382 + $0x80] sm:$0xff]
        %v3400 = vld [vmem:[%s3382 + $0x88] sm:$0xff]
        %v3401 = vld [vmem:[%s3382 + $0x90] sm:$0xff]
        %v3402 = vld [vmem:[%s3382 + $0x98] sm:$0xff]
        %v3403 = vld [vmem:[%s3382 + $0xa0] sm:$0xff]
        %v3404 = vld [vmem:[%s3382 + $0xa8] sm:$0xff]
        %v3405 = vld [vmem:[%s3382 + $0xb0] sm:$0xff]
        %v3406 = vld [vmem:[%s3382 + $0xb8] sm:$0xff]
        %v3407 = vld [vmem:[%s3382 + $0xc0] sm:$0xff]
        %v3408 = vld [vmem:[%s3382 + $0xc8] sm:$0xff]
        %v3409 = vld [vmem:[%s3382 + $0xd0] sm:$0xff]
        %v3410 = vld [vmem:[%s3382 + $0xd8] sm:$0xff]
        %v3411 = vld [vmem:[%s3382 + $0xe0] sm:$0xff]
        %v3412 = vld [vmem:[%s3382 + $0xe8] sm:$0xff]
        %v3413 = vld [vmem:[%s3382 + $0xf0] sm:$0xff]
        %v3414 = vld [vmem:[%s3382 + $0xf8] sm:$0xff]
        %v3415 = vld [vmem:[%s3382 + $0x100] sm:$0xff]
        %v3416 = vld [vmem:[%s3382 + $0x108] sm:$0xff]
        %v3417 = vld [vmem:[%s3382 + $0x110] sm:$0xff]
        %v3418 = vld [vmem:[%s3382 + $0x118] sm:$0xff]
        %v3419 = vld [vmem:[%s3382 + $0x120] sm:$0xff]
        %v3420 = vld [vmem:[%s3382 + $0x128] sm:$0xff]
        %v3421 = vld [vmem:[%s3382 + $0x130] sm:$0xff]
        %v3422 = vld [vmem:[%s3382 + $0x138] sm:$0xff]
        %v3423 = vld [vmem:[%s3382 + $0x140] sm:$0xff]
        %v3424 = vld [vmem:[%s3382 + $0x148] sm:$0xff]
        %v3425 = vld [vmem:[%s3382 + $0x150] sm:$0xff]
        %v3426 = vld [vmem:[%s3382 + $0x158] sm:$0xff]
        %v3427 = vld [vmem:[%s3382 + $0x160] sm:$0xff]
        %v3428 = vld [vmem:[%s3382 + $0x168] sm:$0xff]
        %v3429 = vld [vmem:[%s3382 + $0x170] sm:$0xff]
        %v3430 = vld [vmem:[%s3382 + $0x178] sm:$0xff]
        %v3431 = vld [vmem:[%s3382 + $0x180] sm:$0xff]
        %v3432 = vld [vmem:[%s3382 + $0x188] sm:$0xff]
        %v3433 = vld [vmem:[%s3382 + $0x190] sm:$0xff]
        %v3434 = vld [vmem:[%s3382 + $0x198] sm:$0xff]
        %v3435 = vld [vmem:[%s3382 + $0x1a0] sm:$0xff]
        %v3436 = vld [vmem:[%s3382 + $0x1a8] sm:$0xff]
        %v3437 = vld [vmem:[%s3382 + $0x1b0] sm:$0xff]
        %v3438 = vld [vmem:[%s3382 + $0x1b8] sm:$0xff]
        %v3439 = vld [vmem:[%s3382 + $0x1c0] sm:$0xff]
        %v3440 = vld [vmem:[%s3382 + $0x1c8] sm:$0xff]
        %v3441 = vld [vmem:[%s3382 + $0x1d0] sm:$0xff]
        %v3442 = vld [vmem:[%s3382 + $0x1d8] sm:$0xff]
        %v3443 = vld [vmem:[%s3382 + $0x1e0] sm:$0xff]
        %v3444 = vld [vmem:[%s3382 + $0x1e8] sm:$0xff]
        %v3445 = vld [vmem:[%s3382 + $0x1f0] sm:$0xff]
        %v3446 = vld [vmem:[%s3382 + $0x1f8] sm:$0xff]
        %3447 = vmatprep.subr.mxu0 %v3384
        %3448 = vmatpush1.msra.mxu0 %v3383
        %3449 = vmatprep.subr.mxu0 %v3386
        %3450 = vmatpush1.msra.mxu0 %v3385
        %3451 = vmatprep.subr.mxu0 %v3388
        %3452 = vmatpush1.msra.mxu0 %v3387
        %3453 = vmatprep.subr.mxu0 %v3390
        %3454 = vmatpush1.msra.mxu0 %v3389
        %3455 = vmatprep.subr.mxu0 %v3392
        %3456 = vmatpush1.msra.mxu0 %v3391
        %3457 = vmatprep.subr.mxu0 %v3394
        %3458 = vmatpush1.msra.mxu0 %v3393
        %3459 = vmatprep.subr.mxu0 %v3396
        %3460 = vmatpush1.msra.mxu0 %v3395
        %3461 = vmatprep.subr.mxu0 %v3398
        %3462 = vmatpush1.msra.mxu0 %v3397
        %3463 = vmatprep.subr.mxu0 %v3400
        %3464 = vmatpush1.msra.mxu0 %v3399
        %3465 = vmatprep.subr.mxu0 %v3402
        %3466 = vmatpush1.msra.mxu0 %v3401
        %3467 = vmatprep.subr.mxu0 %v3404
        %3468 = vmatpush1.msra.mxu0 %v3403
        %3469 = vmatprep.subr.mxu0 %v3406
        %3470 = vmatpush1.msra.mxu0 %v3405
        %3471 = vmatprep.subr.mxu0 %v3408
        %3472 = vmatpush1.msra.mxu0 %v3407
        %3473 = vmatprep.subr.mxu0 %v3410
        %3474 = vmatpush1.msra.mxu0 %v3409
        %3475 = vmatprep.subr.mxu0 %v3412
        %3476 = vmatpush1.msra.mxu0 %v3411
        %3477 = vmatprep.subr.mxu0 %v3414
        %3478 = vmatpush1.msra.mxu0 %v3413
        %3479 = vmatprep.subr.mxu0 %v3416
        %3480 = vmatpush1.msra.mxu0 %v3415
        %3481 = vmatprep.subr.mxu0 %v3418
        %3482 = vmatpush1.msra.mxu0 %v3417
        %3483 = vmatprep.subr.mxu0 %v3420
        %3484 = vmatpush1.msra.mxu0 %v3419
        %3485 = vmatprep.subr.mxu0 %v3422
        %3486 = vmatpush1.msra.mxu0 %v3421
        %3487 = vmatprep.subr.mxu0 %v3424
        %3488 = vmatpush1.msra.mxu0 %v3423
        %3489 = vmatprep.subr.mxu0 %v3426
        %3490 = vmatpush1.msra.mxu0 %v3425
        %3491 = vmatprep.subr.mxu0 %v3428
        %3492 = vmatpush1.msra.mxu0 %v3427
        %3493 = vmatprep.subr.mxu0 %v3430
        %3494 = vmatpush1.msra.mxu0 %v3429
        %3495 = vmatprep.subr.mxu0 %v3432
        %3496 = vmatpush1.msra.mxu0 %v3431
        %3497 = vmatprep.subr.mxu0 %v3434
        %3498 = vmatpush1.msra.mxu0 %v3433
        %3499 = vmatprep.subr.mxu0 %v3436
        %3500 = vmatpush1.msra.mxu0 %v3435
        %3501 = vmatprep.subr.mxu0 %v3438
        %3502 = vmatpush1.msra.mxu0 %v3437
        %3503 = vmatprep.subr.mxu0 %v3440
        %3504 = vmatpush1.msra.mxu0 %v3439
        %3505 = vmatprep.subr.mxu0 %v3442
        %3506 = vmatpush1.msra.mxu0 %v3441
        %3507 = vmatprep.subr.mxu0 %v3444
        %3508 = vmatpush1.msra.mxu0 %v3443
        %3509 = vmatprep.subr.mxu0 %v3446
        %3510 = vmatpush1.msra.mxu0 %v3445
        %3511 = vmatprep.mubr.f32.mxu0 %v3351
        %3512 = vmatmul.mubr.f32.gmra.mrb[0].mxu0 %v3350
        %v3513 = vpop.f32.mrb[0].mxu0
        %v3514 = vadd.f32 0.0, %v3513
        %v3515 = vpop.f32.mrb[0].mxu0
        %v3516 = vadd.f32 0.0, %v3515
        %3517 = vmatprep.mubr.f32.mxu0 %v3353
        %3518 = vmatmul.mubr.f32.gmra.mrb[0].mxu0 %v3352
        %v3519 = vpop.f32.mrb[0].mxu0
        %v3520 = vadd.f32 0.0, %v3519
        %v3521 = vpop.f32.mrb[0].mxu0
        %v3522 = vadd.f32 0.0, %v3521
        %3523 = vmatprep.mubr.f32.mxu0 %v3355
        %3524 = vmatmul.mubr.f32.gmra.mrb[0].mxu0 %v3354
        %v3525 = vpop.f32.mrb[0].mxu0
        %v3526 = vadd.f32 0.0, %v3525
        %v3527 = vpop.f32.mrb[0].mxu0
        %v3528 = vadd.f32 0.0, %v3527
        %3529 = vmatprep.mubr.f32.mxu0 %v3357
        %3530 = vmatmul.mubr.f32.gmra.mrb[0].mxu0 %v3356
        %v3531 = vpop.f32.mrb[0].mxu0
        %v3532 = vadd.f32 0.0, %v3531
        %v3533 = vpop.f32.mrb[0].mxu0
        %v3534 = vadd.f32 0.0, %v3533
        %3535 = vmatprep.mubr.f32.mxu0 %v3359
        %3536 = vmatmul.mubr.f32.gmra.mrb[0].mxu0 %v3358
        %v3537 = vpop.f32.mrb[0].mxu0
        %v3538 = vadd.f32 0.0, %v3537
        %v3539 = vpop.f32.mrb[0].mxu0
        %v3540 = vadd.f32 0.0, %v3539
        %3541 = vmatprep.mubr.f32.mxu0 %v3361
        %3542 = vmatmul.mubr.f32.gmra.mrb[0].mxu0 %v3360
        %v3543 = vpop.f32.mrb[0].mxu0
        %v3544 = vadd.f32 0.0, %v3543
        %v3545 = vpop.f32.mrb[0].mxu0
        %v3546 = vadd.f32 0.0, %v3545
        %3547 = vmatprep.mubr.f32.mxu0 %v3363
        %3548 = vmatmul.mubr.f32.gmra.mrb[0].mxu0 %v3362
        %v3549 = vpop.f32.mrb[0].mxu0
        %v3550 = vadd.f32 0.0, %v3549
        %v3551 = vpop.f32.mrb[0].mxu0
        %v3552 = vadd.f32 0.0, %v3551
        %3553 = vmatprep.mubr.f32.mxu0 %v3365
        %3554 = vmatmul.mubr.f32.gmra.mrb[0].mxu0 %v3364
        %v3555 = vpop.f32.mrb[0].mxu0
        %v3556 = vadd.f32 0.0, %v3555
        %v3557 = vpop.f32.mrb[0].mxu0
        %v3558 = vadd.f32 0.0, %v3557
        %3559 = vmatprep.mubr.f32.mxu0 %v3367
        %3560 = vmatmul.mubr.f32.gmra.mrb[0].mxu0 %v3366
        %v3561 = vpop.f32.mrb[0].mxu0
        %v3562 = vadd.f32 0.0, %v3561
        %v3563 = vpop.f32.mrb[0].mxu0
        %v3564 = vadd.f32 0.0, %v3563
        %3565 = vmatprep.mubr.f32.mxu0 %v3369
        %3566 = vmatmul.mubr.f32.gmra.mrb[0].mxu0 %v3368
        %v3567 = vpop.f32.mrb[0].mxu0
        %v3568 = vadd.f32 0.0, %v3567
        %v3569 = vpop.f32.mrb[0].mxu0
        %v3570 = vadd.f32 0.0, %v3569
        %3571 = vmatprep.mubr.f32.mxu0 %v3371
        %3572 = vmatmul.mubr.f32.gmra.mrb[0].mxu0 %v3370
        %v3573 = vpop.f32.mrb[0].mxu0
        %v3574 = vadd.f32 0.0, %v3573
        %v3575 = vpop.f32.mrb[0].mxu0
        %v3576 = vadd.f32 0.0, %v3575
        %3577 = vmatprep.mubr.f32.mxu0 %v3373
        %3578 = vmatmul.mubr.f32.gmra.mrb[0].mxu0 %v3372
        %v3579 = vpop.f32.mrb[0].mxu0
        %v3580 = vadd.f32 0.0, %v3579
        %v3581 = vpop.f32.mrb[0].mxu0
        %v3582 = vadd.f32 0.0, %v3581
        %3583 = vmatprep.mubr.f32.mxu0 %v3375
        %3584 = vmatmul.mubr.f32.gmra.mrb[0].mxu0 %v3374
        %v3585 = vpop.f32.mrb[0].mxu0
        %v3586 = vadd.f32 0.0, %v3585
        %v3587 = vpop.f32.mrb[0].mxu0
        %v3588 = vadd.f32 0.0, %v3587
        %3589 = vmatprep.mubr.f32.mxu0 %v3377
        %3590 = vmatmul.mubr.f32.gmra.mrb[0].mxu0 %v3376
        %v3591 = vpop.f32.mrb[0].mxu0
        %v3592 = vadd.f32 0.0, %v3591
        %v3593 = vpop.f32.mrb[0].mxu0
        %v3594 = vadd.f32 0.0, %v3593
        %3595 = vmatprep.mubr.f32.mxu0 %v3379
        %3596 = vmatmul.mubr.f32.gmra.mrb[0].mxu0 %v3378
        %v3597 = vpop.f32.mrb[0].mxu0
        %v3598 = vadd.f32 0.0, %v3597
        %v3599 = vpop.f32.mrb[0].mxu0
        %v3600 = vadd.f32 0.0, %v3599
        %3601 = vmatprep.mubr.f32.mxu0 %v3381
        %3602 = vmatmul.mubr.f32.gmra.mrb[0].mxu0 %v3380
        %v3603 = vpop.f32.mrb[0].mxu0
        %v3604 = vadd.f32 0.0, %v3603
        %v3605 = vpop.f32.mrb[0].mxu0
        %v3606 = vadd.f32 0.0, %v3605
        %3607 = vdwg.mxu0
        %v3608 = vld [vmem:[#allocation2] sm:$0xff]
        %v3609 = vld [vmem:[#allocation2 + $0x8] sm:$0xff]
        %v3610 = vld [vmem:[#allocation2 + $0x10] sm:$0xff]
        %v3611 = vld [vmem:[#allocation2 + $0x18] sm:$0xff]
        %v3612 = vld [vmem:[#allocation2 + $0x20] sm:$0xff]
        %v3613 = vld [vmem:[#allocation2 + $0x28] sm:$0xff]
        %v3614 = vld [vmem:[#allocation2 + $0x30] sm:$0xff]
        %v3615 = vld [vmem:[#allocation2 + $0x38] sm:$0xff]
        %v3616 = vld [vmem:[#allocation2 + $0x40] sm:$0xff]
        %v3617 = vld [vmem:[#allocation2 + $0x48] sm:$0xff]
        %v3618 = vld [vmem:[#allocation2 + $0x50] sm:$0xff]
        %v3619 = vld [vmem:[#allocation2 + $0x58] sm:$0xff]
        %v3620 = vld [vmem:[#allocation2 + $0x60] sm:$0xff]
        %v3621 = vld [vmem:[#allocation2 + $0x68] sm:$0xff]
        %v3622 = vld [vmem:[#allocation2 + $0x70] sm:$0xff]
        %v3623 = vld [vmem:[#allocation2 + $0x78] sm:$0xff]
        %v3624 = vld [vmem:[#allocation2 + $0x80] sm:$0xff]
        %v3625 = vld [vmem:[#allocation2 + $0x88] sm:$0xff]
        %v3626 = vld [vmem:[#allocation2 + $0x90] sm:$0xff]
        %v3627 = vld [vmem:[#allocation2 + $0x98] sm:$0xff]
        %v3628 = vld [vmem:[#allocation2 + $0xa0] sm:$0xff]
        %v3629 = vld [vmem:[#allocation2 + $0xa8] sm:$0xff]
        %v3630 = vld [vmem:[#allocation2 + $0xb0] sm:$0xff]
        %v3631 = vld [vmem:[#allocation2 + $0xb8] sm:$0xff]
        %v3632 = vld [vmem:[#allocation2 + $0xc0] sm:$0xff]
        %v3633 = vld [vmem:[#allocation2 + $0xc8] sm:$0xff]
        %v3634 = vld [vmem:[#allocation2 + $0xd0] sm:$0xff]
        %v3635 = vld [vmem:[#allocation2 + $0xd8] sm:$0xff]
        %v3636 = vld [vmem:[#allocation2 + $0xe0] sm:$0xff]
        %v3637 = vld [vmem:[#allocation2 + $0xe8] sm:$0xff]
        %v3638 = vld [vmem:[#allocation2 + $0xf0] sm:$0xff]
        %v3639 = vld [vmem:[#allocation2 + $0xf8] sm:$0xff]
        %v3640 = vadd.f32 %v3608, %v3514
        %v3641 = vadd.f32 %v3609, %v3516
        %v3642 = vadd.f32 %v3610, %v3520
        %v3643 = vadd.f32 %v3611, %v3522
        %v3644 = vadd.f32 %v3612, %v3526
        %v3645 = vadd.f32 %v3613, %v3528
        %v3646 = vadd.f32 %v3614, %v3532
        %v3647 = vadd.f32 %v3615, %v3534
        %v3648 = vadd.f32 %v3616, %v3538
        %v3649 = vadd.f32 %v3617, %v3540
        %v3650 = vadd.f32 %v3618, %v3544
        %v3651 = vadd.f32 %v3619, %v3546
        %v3652 = vadd.f32 %v3620, %v3550
        %v3653 = vadd.f32 %v3621, %v3552
        %v3654 = vadd.f32 %v3622, %v3556
        %v3655 = vadd.f32 %v3623, %v3558
        %v3656 = vadd.f32 %v3624, %v3562
        %v3657 = vadd.f32 %v3625, %v3564
        %v3658 = vadd.f32 %v3626, %v3568
        %v3659 = vadd.f32 %v3627, %v3570
        %v3660 = vadd.f32 %v3628, %v3574
        %v3661 = vadd.f32 %v3629, %v3576
        %v3662 = vadd.f32 %v3630, %v3580
        %v3663 = vadd.f32 %v3631, %v3582
        %v3664 = vadd.f32 %v3632, %v3586
        %v3665 = vadd.f32 %v3633, %v3588
        %v3666 = vadd.f32 %v3634, %v3592
        %v3667 = vadd.f32 %v3635, %v3594
        %v3668 = vadd.f32 %v3636, %v3598
        %v3669 = vadd.f32 %v3637, %v3600
        %v3670 = vadd.f32 %v3638, %v3604
        %v3671 = vadd.f32 %v3639, %v3606
        %3672 = vst [vmem:[#allocation2] sm:$0xff] %v3640
        %3673 = vst [vmem:[#allocation2 + $0x8] sm:$0xff] %v3641
        %3674 = vst [vmem:[#allocation2 + $0x10] sm:$0xff] %v3642
        %3675 = vst [vmem:[#allocation2 + $0x18] sm:$0xff] %v3643
        %3676 = vst [vmem:[#allocation2 + $0x20] sm:$0xff] %v3644
        %3677 = vst [vmem:[#allocation2 + $0x28] sm:$0xff] %v3645
        %3678 = vst [vmem:[#allocation2 + $0x30] sm:$0xff] %v3646
        %3679 = vst [vmem:[#allocation2 + $0x38] sm:$0xff] %v3647
        %3680 = vst [vmem:[#allocation2 + $0x40] sm:$0xff] %v3648
        %3681 = vst [vmem:[#allocation2 + $0x48] sm:$0xff] %v3649
        %3682 = vst [vmem:[#allocation2 + $0x50] sm:$0xff] %v3650
        %3683 = vst [vmem:[#allocation2 + $0x58] sm:$0xff] %v3651
        %3684 = vst [vmem:[#allocation2 + $0x60] sm:$0xff] %v3652
        %3685 = vst [vmem:[#allocation2 + $0x68] sm:$0xff] %v3653
        %3686 = vst [vmem:[#allocation2 + $0x70] sm:$0xff] %v3654
        %3687 = vst [vmem:[#allocation2 + $0x78] sm:$0xff] %v3655
        %3688 = vst [vmem:[#allocation2 + $0x80] sm:$0xff] %v3656
        %3689 = vst [vmem:[#allocation2 + $0x88] sm:$0xff] %v3657
        %3690 = vst [vmem:[#allocation2 + $0x90] sm:$0xff] %v3658
        %3691 = vst [vmem:[#allocation2 + $0x98] sm:$0xff] %v3659
        %3692 = vst [vmem:[#allocation2 + $0xa0] sm:$0xff] %v3660
        %3693 = vst [vmem:[#allocation2 + $0xa8] sm:$0xff] %v3661
        %3694 = vst [vmem:[#allocation2 + $0xb0] sm:$0xff] %v3662
        %3695 = vst [vmem:[#allocation2 + $0xb8] sm:$0xff] %v3663
        %3696 = vst [vmem:[#allocation2 + $0xc0] sm:$0xff] %v3664
        %3697 = vst [vmem:[#allocation2 + $0xc8] sm:$0xff] %v3665
        %3698 = vst [vmem:[#allocation2 + $0xd0] sm:$0xff] %v3666
        %3699 = vst [vmem:[#allocation2 + $0xd8] sm:$0xff] %v3667
        %3700 = vst [vmem:[#allocation2 + $0xe0] sm:$0xff] %v3668
        %3701 = vst [vmem:[#allocation2 + $0xe8] sm:$0xff] %v3669
        %3702 = vst [vmem:[#allocation2 + $0xf0] sm:$0xff] %v3670
        %3703 = vst [vmem:[#allocation2 + $0xf8] sm:$0xff] %v3671
        %s3704 = sadd.s32 %s309, 2
        %s3705 = smul.u32 %s3704, 32
        %s3706 = scalar_lea.vmem %s303, %s3705
        %v3707 = vld [vmem:[%s3706 + $0x2] sm:$0xff]
        %v3708 = vld [vmem:[%s3706 + $0xa] sm:$0xff]
        %v3709 = vld [vmem:[%s3706 + $0x22] sm:$0xff]
        %v3710 = vld [vmem:[%s3706 + $0x2a] sm:$0xff]
        %v3711 = vld [vmem:[%s3706 + $0x42] sm:$0xff]
        %v3712 = vld [vmem:[%s3706 + $0x4a] sm:$0xff]
        %v3713 = vld [vmem:[%s3706 + $0x62] sm:$0xff]
        %v3714 = vld [vmem:[%s3706 + $0x6a] sm:$0xff]
        %v3715 = vld [vmem:[%s3706 + $0x82] sm:$0xff]
        %v3716 = vld [vmem:[%s3706 + $0x8a] sm:$0xff]
        %v3717 = vld [vmem:[%s3706 + $0xa2] sm:$0xff]
        %v3718 = vld [vmem:[%s3706 + $0xaa] sm:$0xff]
        %v3719 = vld [vmem:[%s3706 + $0xc2] sm:$0xff]
        %v3720 = vld [vmem:[%s3706 + $0xca] sm:$0xff]
        %v3721 = vld [vmem:[%s3706 + $0xe2] sm:$0xff]
        %v3722 = vld [vmem:[%s3706 + $0xea] sm:$0xff]
        %s3723 = scalar_lea.vmem %s1, 640
        %v3724 = vld [vmem:[%s3723] sm:$0xff]
        %v3725 = vld [vmem:[%s3723 + $0x8] sm:$0xff]
        %v3726 = vld [vmem:[%s3723 + $0x10] sm:$0xff]
        %v3727 = vld [vmem:[%s3723 + $0x18] sm:$0xff]
        %v3728 = vld [vmem:[%s3723 + $0x20] sm:$0xff]
        %v3729 = vld [vmem:[%s3723 + $0x28] sm:$0xff]
        %v3730 = vld [vmem:[%s3723 + $0x30] sm:$0xff]
        %v3731 = vld [vmem:[%s3723 + $0x38] sm:$0xff]
        %v3732 = vld [vmem:[%s3706 + $0x6] sm:$0xff]
        %v3733 = vld [vmem:[%s3706 + $0xe] sm:$0xff]
        %v3734 = vld [vmem:[%s3706 + $0x26] sm:$0xff]
        %v3735 = vld [vmem:[%s3706 + $0x2e] sm:$0xff]
        %v3736 = vld [vmem:[%s3706 + $0x46] sm:$0xff]
        %v3737 = vld [vmem:[%s3706 + $0x4e] sm:$0xff]
        %v3738 = vld [vmem:[%s3706 + $0x66] sm:$0xff]
        %v3739 = vld [vmem:[%s3706 + $0x6e] sm:$0xff]
        %v3740 = vld [vmem:[%s3706 + $0x86] sm:$0xff]
        %v3741 = vld [vmem:[%s3706 + $0x8e] sm:$0xff]
        %v3742 = vld [vmem:[%s3706 + $0xa6] sm:$0xff]
        %v3743 = vld [vmem:[%s3706 + $0xae] sm:$0xff]
        %v3744 = vld [vmem:[%s3706 + $0xc6] sm:$0xff]
        %v3745 = vld [vmem:[%s3706 + $0xce] sm:$0xff]
        %v3746 = vld [vmem:[%s3706 + $0xe6] sm:$0xff]
        %v3747 = vld [vmem:[%s3706 + $0xee] sm:$0xff]
        %s3748 = scalar_lea.vmem %s1, 704
        %v3749 = vld [vmem:[%s3748] sm:$0xff]
        %v3750 = vld [vmem:[%s3748 + $0x8] sm:$0xff]
        %v3751 = vld [vmem:[%s3748 + $0x10] sm:$0xff]
        %v3752 = vld [vmem:[%s3748 + $0x18] sm:$0xff]
        %v3753 = vld [vmem:[%s3748 + $0x20] sm:$0xff]
        %v3754 = vld [vmem:[%s3748 + $0x28] sm:$0xff]
        %v3755 = vld [vmem:[%s3748 + $0x30] sm:$0xff]
        %v3756 = vld [vmem:[%s3748 + $0x38] sm:$0xff]
        %v3758 = vsel %vm337, %v3732, 0
        %v3761 = vsel %vm337, %v3733, 0
        %v3764 = vsel %vm337, %v3734, 0
        %v3767 = vsel %vm337, %v3735, 0
        %v3770 = vsel %vm337, %v3736, 0
        %v3773 = vsel %vm337, %v3737, 0
        %v3776 = vsel %vm337, %v3738, 0
        %v3779 = vsel %vm337, %v3739, 0
        %v3782 = vsel %vm337, %v3740, 0
        %v3785 = vsel %vm337, %v3741, 0
        %v3788 = vsel %vm337, %v3742, 0
        %v3791 = vsel %vm337, %v3743, 0
        %v3794 = vsel %vm337, %v3744, 0
        %v3797 = vsel %vm337, %v3745, 0
        %v3800 = vsel %vm337, %v3746, 0
        %v3803 = vsel %vm337, %v3747, 0
        %3805 = vmatprep.subr.mxu0 %v3750
        %3806 = vmatpush1.msra.mxu0 %v3749
        %3807 = vmatprep.subr.mxu0 %v3752
        %3808 = vmatpush1.msra.mxu0 %v3751
        %3809 = vmatprep.subr.mxu0 %v3754
        %3810 = vmatpush1.msra.mxu0 %v3753
        %3811 = vmatprep.subr.mxu0 %v3756
        %3812 = vmatpush1.msra.mxu0 %v3755
        %3813 = vmatprep.subr.mxu0 0.0
        %3814 = vmatpush1.msra.mxu0 0.0
        %3815 = vmatprep.subr.mxu0 0.0
        %3816 = vmatpush1.msra.mxu0 0.0
        %3817 = vmatprep.subr.mxu0 0.0
        %3818 = vmatpush1.msra.mxu0 0.0
        %3819 = vmatprep.subr.mxu0 0.0
        %3820 = vmatpush1.msra.mxu0 0.0
        %3821 = vmatprep.subr.mxu0 0.0
        %3822 = vmatpush1.msra.mxu0 0.0
        %3823 = vmatprep.subr.mxu0 0.0
        %3824 = vmatpush1.msra.mxu0 0.0
        %3825 = vmatprep.subr.mxu0 0.0
        %3826 = vmatpush1.msra.mxu0 0.0
        %3827 = vmatprep.subr.mxu0 0.0
        %3828 = vmatpush1.msra.mxu0 0.0
        %3829 = vmatprep.subr.mxu0 0.0
        %3830 = vmatpush1.msra.mxu0 0.0
        %3831 = vmatprep.subr.mxu0 0.0
        %3832 = vmatpush1.msra.mxu0 0.0
        %3833 = vmatprep.subr.mxu0 0.0
        %3834 = vmatpush1.msra.mxu0 0.0
        %3835 = vmatprep.subr.mxu0 0.0
        %3836 = vmatpush1.msra.mxu0 0.0
        %3837 = vmatprep.subr.mxu0 0.0
        %3838 = vmatpush1.msra.mxu0 0.0
        %3839 = vmatprep.subr.mxu0 0.0
        %3840 = vmatpush1.msra.mxu0 0.0
        %3841 = vmatprep.subr.mxu0 0.0
        %3842 = vmatpush1.msra.mxu0 0.0
        %3843 = vmatprep.subr.mxu0 0.0
        %3844 = vmatpush1.msra.mxu0 0.0
        %3845 = vmatprep.subr.mxu0 0.0
        %3846 = vmatpush1.msra.mxu0 0.0
        %3847 = vmatprep.subr.mxu0 0.0
        %3848 = vmatpush1.msra.mxu0 0.0
        %3849 = vmatprep.subr.mxu0 0.0
        %3850 = vmatpush1.msra.mxu0 0.0
        %3851 = vmatprep.subr.mxu0 0.0
        %3852 = vmatpush1.msra.mxu0 0.0
        %3853 = vmatprep.subr.mxu0 0.0
        %3854 = vmatpush1.msra.mxu0 0.0
        %3855 = vmatprep.subr.mxu0 0.0
        %3856 = vmatpush1.msra.mxu0 0.0
        %3857 = vmatprep.subr.mxu0 0.0
        %3858 = vmatpush1.msra.mxu0 0.0
        %3859 = vmatprep.subr.mxu0 0.0
        %3860 = vmatpush1.msra.mxu0 0.0
        %3861 = vmatprep.subr.mxu0 0.0
        %3862 = vmatpush1.msra.mxu0 0.0
        %3863 = vmatprep.subr.mxu0 0.0
        %3864 = vmatpush1.msra.mxu0 0.0
        %3865 = vmatprep.subr.mxu0 0.0
        %3866 = vmatpush1.msra.mxu0 0.0
        %3867 = vmatprep.subr.mxu0 0.0
        %3868 = vmatpush1.msra.mxu0 0.0
        %3869 = vmatprep.mubr.f32.mxu0 0.0
        %3870 = vmatmul.mubr.f32.gmra.mrb[0].mxu0 %v3758
        %v3871 = vpop.f32.mrb[0].mxu0
        %v3872 = vadd.f32 0.0, %v3871
        %v3873 = vpop.f32.mrb[0].mxu0
        %v3874 = vadd.f32 0.0, %v3873
        %3875 = vmatprep.mubr.f32.mxu0 0.0
        %3876 = vmatmul.mubr.f32.gmra.mrb[0].mxu0 %v3761
        %v3877 = vpop.f32.mrb[0].mxu0
        %v3878 = vadd.f32 0.0, %v3877
        %v3879 = vpop.f32.mrb[0].mxu0
        %v3880 = vadd.f32 0.0, %v3879
        %3881 = vmatprep.mubr.f32.mxu0 0.0
        %3882 = vmatmul.mubr.f32.gmra.mrb[0].mxu0 %v3764
        %v3883 = vpop.f32.mrb[0].mxu0
        %v3884 = vadd.f32 0.0, %v3883
        %v3885 = vpop.f32.mrb[0].mxu0
        %v3886 = vadd.f32 0.0, %v3885
        %3887 = vmatprep.mubr.f32.mxu0 0.0
        %3888 = vmatmul.mubr.f32.gmra.mrb[0].mxu0 %v3767
        %v3889 = vpop.f32.mrb[0].mxu0
        %v3890 = vadd.f32 0.0, %v3889
        %v3891 = vpop.f32.mrb[0].mxu0
        %v3892 = vadd.f32 0.0, %v3891
        %3893 = vmatprep.mubr.f32.mxu0 0.0
        %3894 = vmatmul.mubr.f32.gmra.mrb[0].mxu0 %v3770
        %v3895 = vpop.f32.mrb[0].mxu0
        %v3896 = vadd.f32 0.0, %v3895
        %v3897 = vpop.f32.mrb[0].mxu0
        %v3898 = vadd.f32 0.0, %v3897
        %3899 = vmatprep.mubr.f32.mxu0 0.0
        %3900 = vmatmul.mubr.f32.gmra.mrb[0].mxu0 %v3773
        %v3901 = vpop.f32.mrb[0].mxu0
        %v3902 = vadd.f32 0.0, %v3901
        %v3903 = vpop.f32.mrb[0].mxu0
        %v3904 = vadd.f32 0.0, %v3903
        %3905 = vmatprep.mubr.f32.mxu0 0.0
        %3906 = vmatmul.mubr.f32.gmra.mrb[0].mxu0 %v3776
        %v3907 = vpop.f32.mrb[0].mxu0
        %v3908 = vadd.f32 0.0, %v3907
        %v3909 = vpop.f32.mrb[0].mxu0
        %v3910 = vadd.f32 0.0, %v3909
        %3911 = vmatprep.mubr.f32.mxu0 0.0
        %3912 = vmatmul.mubr.f32.gmra.mrb[0].mxu0 %v3779
        %v3913 = vpop.f32.mrb[0].mxu0
        %v3914 = vadd.f32 0.0, %v3913
        %v3915 = vpop.f32.mrb[0].mxu0
        %v3916 = vadd.f32 0.0, %v3915
        %3917 = vmatprep.mubr.f32.mxu0 0.0
        %3918 = vmatmul.mubr.f32.gmra.mrb[0].mxu0 %v3782
        %v3919 = vpop.f32.mrb[0].mxu0
        %v3920 = vadd.f32 0.0, %v3919
        %v3921 = vpop.f32.mrb[0].mxu0
        %v3922 = vadd.f32 0.0, %v3921
        %3923 = vmatprep.mubr.f32.mxu0 0.0
        %3924 = vmatmul.mubr.f32.gmra.mrb[0].mxu0 %v3785
        %v3925 = vpop.f32.mrb[0].mxu0
        %v3926 = vadd.f32 0.0, %v3925
        %v3927 = vpop.f32.mrb[0].mxu0
        %v3928 = vadd.f32 0.0, %v3927
        %3929 = vmatprep.mubr.f32.mxu0 0.0
        %3930 = vmatmul.mubr.f32.gmra.mrb[0].mxu0 %v3788
        %v3931 = vpop.f32.mrb[0].mxu0
        %v3932 = vadd.f32 0.0, %v3931
        %v3933 = vpop.f32.mrb[0].mxu0
        %v3934 = vadd.f32 0.0, %v3933
        %3935 = vmatprep.mubr.f32.mxu0 0.0
        %3936 = vmatmul.mubr.f32.gmra.mrb[0].mxu0 %v3791
        %v3937 = vpop.f32.mrb[0].mxu0
        %v3938 = vadd.f32 0.0, %v3937
        %v3939 = vpop.f32.mrb[0].mxu0
        %v3940 = vadd.f32 0.0, %v3939
        %3941 = vmatprep.mubr.f32.mxu0 0.0
        %3942 = vmatmul.mubr.f32.gmra.mrb[0].mxu0 %v3794
        %v3943 = vpop.f32.mrb[0].mxu0
        %v3944 = vadd.f32 0.0, %v3943
        %v3945 = vpop.f32.mrb[0].mxu0
        %v3946 = vadd.f32 0.0, %v3945
        %3947 = vmatprep.mubr.f32.mxu0 0.0
        %3948 = vmatmul.mubr.f32.gmra.mrb[0].mxu0 %v3797
        %v3949 = vpop.f32.mrb[0].mxu0
        %v3950 = vadd.f32 0.0, %v3949
        %v3951 = vpop.f32.mrb[0].mxu0
        %v3952 = vadd.f32 0.0, %v3951
        %3953 = vmatprep.mubr.f32.mxu0 0.0
        %3954 = vmatmul.mubr.f32.gmra.mrb[0].mxu0 %v3800
        %v3955 = vpop.f32.mrb[0].mxu0
        %v3956 = vadd.f32 0.0, %v3955
        %v3957 = vpop.f32.mrb[0].mxu0
        %v3958 = vadd.f32 0.0, %v3957
        %3959 = vmatprep.mubr.f32.mxu0 0.0
        %3960 = vmatmul.mubr.f32.gmra.mrb[0].mxu0 %v3803
        %v3961 = vpop.f32.mrb[0].mxu0
        %v3962 = vadd.f32 0.0, %v3961
        %v3963 = vpop.f32.mrb[0].mxu0
        %v3964 = vadd.f32 0.0, %v3963
        %3965 = vdwg.mxu0
        %v3967 = vsel %vm337, %v3707, 0
        %v3970 = vsel %vm337, %v3708, 0
        %v3973 = vsel %vm337, %v3709, 0
        %v3976 = vsel %vm337, %v3710, 0
        %v3979 = vsel %vm337, %v3711, 0
        %v3982 = vsel %vm337, %v3712, 0
        %v3985 = vsel %vm337, %v3713, 0
        %v3988 = vsel %vm337, %v3714, 0
        %v3991 = vsel %vm337, %v3715, 0
        %v3994 = vsel %vm337, %v3716, 0
        %v3997 = vsel %vm337, %v3717, 0
        %v4000 = vsel %vm337, %v3718, 0
        %v4003 = vsel %vm337, %v3719, 0
        %v4006 = vsel %vm337, %v3720, 0
        %v4009 = vsel %vm337, %v3721, 0
        %v4012 = vsel %vm337, %v3722, 0
        %4014 = vmatprep.subr.mxu0 %v3725
        %4015 = vmatpush1.msra.mxu0 %v3724
        %4016 = vmatprep.subr.mxu0 %v3727
        %4017 = vmatpush1.msra.mxu0 %v3726
        %4018 = vmatprep.subr.mxu0 %v3729
        %4019 = vmatpush1.msra.mxu0 %v3728
        %4020 = vmatprep.subr.mxu0 %v3731
        %4021 = vmatpush1.msra.mxu0 %v3730
        %4022 = vmatprep.subr.mxu0 0.0
        %4023 = vmatpush1.msra.mxu0 0.0
        %4024 = vmatprep.subr.mxu0 0.0
        %4025 = vmatpush1.msra.mxu0 0.0
        %4026 = vmatprep.subr.mxu0 0.0
        %4027 = vmatpush1.msra.mxu0 0.0
        %4028 = vmatprep.subr.mxu0 0.0
        %4029 = vmatpush1.msra.mxu0 0.0
        %4030 = vmatprep.subr.mxu0 0.0
        %4031 = vmatpush1.msra.mxu0 0.0
        %4032 = vmatprep.subr.mxu0 0.0
        %4033 = vmatpush1.msra.mxu0 0.0
        %4034 = vmatprep.subr.mxu0 0.0
        %4035 = vmatpush1.msra.mxu0 0.0
        %4036 = vmatprep.subr.mxu0 0.0
        %4037 = vmatpush1.msra.mxu0 0.0
        %4038 = vmatprep.subr.mxu0 0.0
        %4039 = vmatpush1.msra.mxu0 0.0
        %4040 = vmatprep.subr.mxu0 0.0
        %4041 = vmatpush1.msra.mxu0 0.0
        %4042 = vmatprep.subr.mxu0 0.0
        %4043 = vmatpush1.msra.mxu0 0.0
        %4044 = vmatprep.subr.mxu0 0.0
        %4045 = vmatpush1.msra.mxu0 0.0
        %4046 = vmatprep.subr.mxu0 0.0
        %4047 = vmatpush1.msra.mxu0 0.0
        %4048 = vmatprep.subr.mxu0 0.0
        %4049 = vmatpush1.msra.mxu0 0.0
        %4050 = vmatprep.subr.mxu0 0.0
        %4051 = vmatpush1.msra.mxu0 0.0
        %4052 = vmatprep.subr.mxu0 0.0
        %4053 = vmatpush1.msra.mxu0 0.0
        %4054 = vmatprep.subr.mxu0 0.0
        %4055 = vmatpush1.msra.mxu0 0.0
        %4056 = vmatprep.subr.mxu0 0.0
        %4057 = vmatpush1.msra.mxu0 0.0
        %4058 = vmatprep.subr.mxu0 0.0
        %4059 = vmatpush1.msra.mxu0 0.0
        %4060 = vmatprep.subr.mxu0 0.0
        %4061 = vmatpush1.msra.mxu0 0.0
        %4062 = vmatprep.subr.mxu0 0.0
        %4063 = vmatpush1.msra.mxu0 0.0
        %4064 = vmatprep.subr.mxu0 0.0
        %4065 = vmatpush1.msra.mxu0 0.0
        %4066 = vmatprep.subr.mxu0 0.0
        %4067 = vmatpush1.msra.mxu0 0.0
        %4068 = vmatprep.subr.mxu0 0.0
        %4069 = vmatpush1.msra.mxu0 0.0
        %4070 = vmatprep.subr.mxu0 0.0
        %4071 = vmatpush1.msra.mxu0 0.0
        %4072 = vmatprep.subr.mxu0 0.0
        %4073 = vmatpush1.msra.mxu0 0.0
        %4074 = vmatprep.subr.mxu0 0.0
        %4075 = vmatpush1.msra.mxu0 0.0
        %4076 = vmatprep.subr.mxu0 0.0
        %4077 = vmatpush1.msra.mxu0 0.0
        %4078 = vmatprep.mubr.f32.mxu0 0.0
        %4079 = vmatmul.mubr.f32.gmra.mrb[0].mxu0 %v3967
        %v4080 = vpop.f32.mrb[0].mxu0
        %v4081 = vadd.f32 %v3872, %v4080
        %v4082 = vpop.f32.mrb[0].mxu0
        %v4083 = vadd.f32 %v3874, %v4082
        %4084 = vmatprep.mubr.f32.mxu0 0.0
        %4085 = vmatmul.mubr.f32.gmra.mrb[0].mxu0 %v3970
        %v4086 = vpop.f32.mrb[0].mxu0
        %v4087 = vadd.f32 %v3878, %v4086
        %v4088 = vpop.f32.mrb[0].mxu0
        %v4089 = vadd.f32 %v3880, %v4088
        %4090 = vmatprep.mubr.f32.mxu0 0.0
        %4091 = vmatmul.mubr.f32.gmra.mrb[0].mxu0 %v3973
        %v4092 = vpop.f32.mrb[0].mxu0
        %v4093 = vadd.f32 %v3884, %v4092
        %v4094 = vpop.f32.mrb[0].mxu0
        %v4095 = vadd.f32 %v3886, %v4094
        %4096 = vmatprep.mubr.f32.mxu0 0.0
        %4097 = vmatmul.mubr.f32.gmra.mrb[0].mxu0 %v3976
        %v4098 = vpop.f32.mrb[0].mxu0
        %v4099 = vadd.f32 %v3890, %v4098
        %v4100 = vpop.f32.mrb[0].mxu0
        %v4101 = vadd.f32 %v3892, %v4100
        %4102 = vmatprep.mubr.f32.mxu0 0.0
        %4103 = vmatmul.mubr.f32.gmra.mrb[0].mxu0 %v3979
        %v4104 = vpop.f32.mrb[0].mxu0
        %v4105 = vadd.f32 %v3896, %v4104
        %v4106 = vpop.f32.mrb[0].mxu0
        %v4107 = vadd.f32 %v3898, %v4106
        %4108 = vmatprep.mubr.f32.mxu0 0.0
        %4109 = vmatmul.mubr.f32.gmra.mrb[0].mxu0 %v3982
        %v4110 = vpop.f32.mrb[0].mxu0
        %v4111 = vadd.f32 %v3902, %v4110
        %v4112 = vpop.f32.mrb[0].mxu0
        %v4113 = vadd.f32 %v3904, %v4112
        %4114 = vmatprep.mubr.f32.mxu0 0.0
        %4115 = vmatmul.mubr.f32.gmra.mrb[0].mxu0 %v3985
        %v4116 = vpop.f32.mrb[0].mxu0
        %v4117 = vadd.f32 %v3908, %v4116
        %v4118 = vpop.f32.mrb[0].mxu0
        %v4119 = vadd.f32 %v3910, %v4118
        %4120 = vmatprep.mubr.f32.mxu0 0.0
        %4121 = vmatmul.mubr.f32.gmra.mrb[0].mxu0 %v3988
        %v4122 = vpop.f32.mrb[0].mxu0
        %v4123 = vadd.f32 %v3914, %v4122
        %v4124 = vpop.f32.mrb[0].mxu0
        %v4125 = vadd.f32 %v3916, %v4124
        %4126 = vmatprep.mubr.f32.mxu0 0.0
        %4127 = vmatmul.mubr.f32.gmra.mrb[0].mxu0 %v3991
        %v4128 = vpop.f32.mrb[0].mxu0
        %v4129 = vadd.f32 %v3920, %v4128
        %v4130 = vpop.f32.mrb[0].mxu0
        %v4131 = vadd.f32 %v3922, %v4130
        %4132 = vmatprep.mubr.f32.mxu0 0.0
        %4133 = vmatmul.mubr.f32.gmra.mrb[0].mxu0 %v3994
        %v4134 = vpop.f32.mrb[0].mxu0
        %v4135 = vadd.f32 %v3926, %v4134
        %v4136 = vpop.f32.mrb[0].mxu0
        %v4137 = vadd.f32 %v3928, %v4136
        %4138 = vmatprep.mubr.f32.mxu0 0.0
        %4139 = vmatmul.mubr.f32.gmra.mrb[0].mxu0 %v3997
        %v4140 = vpop.f32.mrb[0].mxu0
        %v4141 = vadd.f32 %v3932, %v4140
        %v4142 = vpop.f32.mrb[0].mxu0
        %v4143 = vadd.f32 %v3934, %v4142
        %4144 = vmatprep.mubr.f32.mxu0 0.0
        %4145 = vmatmul.mubr.f32.gmra.mrb[0].mxu0 %v4000
        %v4146 = vpop.f32.mrb[0].mxu0
        %v4147 = vadd.f32 %v3938, %v4146
        %v4148 = vpop.f32.mrb[0].mxu0
        %v4149 = vadd.f32 %v3940, %v4148
        %4150 = vmatprep.mubr.f32.mxu0 0.0
        %4151 = vmatmul.mubr.f32.gmra.mrb[0].mxu0 %v4003
        %v4152 = vpop.f32.mrb[0].mxu0
        %v4153 = vadd.f32 %v3944, %v4152
        %v4154 = vpop.f32.mrb[0].mxu0
        %v4155 = vadd.f32 %v3946, %v4154
        %4156 = vmatprep.mubr.f32.mxu0 0.0
        %4157 = vmatmul.mubr.f32.gmra.mrb[0].mxu0 %v4006
        %v4158 = vpop.f32.mrb[0].mxu0
        %v4159 = vadd.f32 %v3950, %v4158
        %v4160 = vpop.f32.mrb[0].mxu0
        %v4161 = vadd.f32 %v3952, %v4160
        %4162 = vmatprep.mubr.f32.mxu0 0.0
        %4163 = vmatmul.mubr.f32.gmra.mrb[0].mxu0 %v4009
        %v4164 = vpop.f32.mrb[0].mxu0
        %v4165 = vadd.f32 %v3956, %v4164
        %v4166 = vpop.f32.mrb[0].mxu0
        %v4167 = vadd.f32 %v3958, %v4166
        %4168 = vmatprep.mubr.f32.mxu0 0.0
        %4169 = vmatmul.mubr.f32.gmra.mrb[0].mxu0 %v4012
        %v4170 = vpop.f32.mrb[0].mxu0
        %v4171 = vadd.f32 %v3962, %v4170
        %v4172 = vpop.f32.mrb[0].mxu0
        %v4173 = vadd.f32 %v3964, %v4172
        %4174 = vdwg.mxu0
        %v4175 = vld [vmem:[%s3706 + $0xa] sm:$0xff]
        %v4176 = vld [vmem:[%s3706 + $0x12] sm:$0xff]
        %v4177 = vld [vmem:[%s3706 + $0x2a] sm:$0xff]
        %v4178 = vld [vmem:[%s3706 + $0x32] sm:$0xff]
        %v4179 = vld [vmem:[%s3706 + $0x4a] sm:$0xff]
        %v4180 = vld [vmem:[%s3706 + $0x52] sm:$0xff]
        %v4181 = vld [vmem:[%s3706 + $0x6a] sm:$0xff]
        %v4182 = vld [vmem:[%s3706 + $0x72] sm:$0xff]
        %v4183 = vld [vmem:[%s3706 + $0x8a] sm:$0xff]
        %v4184 = vld [vmem:[%s3706 + $0x92] sm:$0xff]
        %v4185 = vld [vmem:[%s3706 + $0xaa] sm:$0xff]
        %v4186 = vld [vmem:[%s3706 + $0xb2] sm:$0xff]
        %v4187 = vld [vmem:[%s3706 + $0xca] sm:$0xff]
        %v4188 = vld [vmem:[%s3706 + $0xd2] sm:$0xff]
        %v4189 = vld [vmem:[%s3706 + $0xea] sm:$0xff]
        %v4190 = vld [vmem:[%s3706 + $0xf2] sm:$0xff]
        %s4191 = scalar_lea.vmem %s1, 768
        %v4192 = vld [vmem:[%s4191] sm:$0xff]
        %v4193 = vld [vmem:[%s4191 + $0x8] sm:$0xff]
        %v4194 = vld [vmem:[%s4191 + $0x10] sm:$0xff]
        %v4195 = vld [vmem:[%s4191 + $0x18] sm:$0xff]
        %v4196 = vld [vmem:[%s4191 + $0x20] sm:$0xff]
        %v4197 = vld [vmem:[%s4191 + $0x28] sm:$0xff]
        %v4198 = vld [vmem:[%s4191 + $0x30] sm:$0xff]
        %v4199 = vld [vmem:[%s4191 + $0x38] sm:$0xff]
        %v4201 = vsel %vm337, %v4175, 0
        %v4204 = vsel %vm337, %v4176, 0
        %v4207 = vsel %vm337, %v4177, 0
        %v4210 = vsel %vm337, %v4178, 0
        %v4213 = vsel %vm337, %v4179, 0
        %v4216 = vsel %vm337, %v4180, 0
        %v4219 = vsel %vm337, %v4181, 0
        %v4222 = vsel %vm337, %v4182, 0
        %v4225 = vsel %vm337, %v4183, 0
        %v4228 = vsel %vm337, %v4184, 0
        %v4231 = vsel %vm337, %v4185, 0
        %v4234 = vsel %vm337, %v4186, 0
        %v4237 = vsel %vm337, %v4187, 0
        %v4240 = vsel %vm337, %v4188, 0
        %v4243 = vsel %vm337, %v4189, 0
        %v4246 = vsel %vm337, %v4190, 0
        %4248 = vmatprep.subr.mxu0 %v4193
        %4249 = vmatpush1.msra.mxu0 %v4192
        %4250 = vmatprep.subr.mxu0 %v4195
        %4251 = vmatpush1.msra.mxu0 %v4194
        %4252 = vmatprep.subr.mxu0 %v4197
        %4253 = vmatpush1.msra.mxu0 %v4196
        %4254 = vmatprep.subr.mxu0 %v4199
        %4255 = vmatpush1.msra.mxu0 %v4198
        %4256 = vmatprep.subr.mxu0 0.0
        %4257 = vmatpush1.msra.mxu0 0.0
        %4258 = vmatprep.subr.mxu0 0.0
        %4259 = vmatpush1.msra.mxu0 0.0
        %4260 = vmatprep.subr.mxu0 0.0
        %4261 = vmatpush1.msra.mxu0 0.0
        %4262 = vmatprep.subr.mxu0 0.0
        %4263 = vmatpush1.msra.mxu0 0.0
        %4264 = vmatprep.subr.mxu0 0.0
        %4265 = vmatpush1.msra.mxu0 0.0
        %4266 = vmatprep.subr.mxu0 0.0
        %4267 = vmatpush1.msra.mxu0 0.0
        %4268 = vmatprep.subr.mxu0 0.0
        %4269 = vmatpush1.msra.mxu0 0.0
        %4270 = vmatprep.subr.mxu0 0.0
        %4271 = vmatpush1.msra.mxu0 0.0
        %4272 = vmatprep.subr.mxu0 0.0
        %4273 = vmatpush1.msra.mxu0 0.0
        %4274 = vmatprep.subr.mxu0 0.0
        %4275 = vmatpush1.msra.mxu0 0.0
        %4276 = vmatprep.subr.mxu0 0.0
        %4277 = vmatpush1.msra.mxu0 0.0
        %4278 = vmatprep.subr.mxu0 0.0
        %4279 = vmatpush1.msra.mxu0 0.0
        %4280 = vmatprep.subr.mxu0 0.0
        %4281 = vmatpush1.msra.mxu0 0.0
        %4282 = vmatprep.subr.mxu0 0.0
        %4283 = vmatpush1.msra.mxu0 0.0
        %4284 = vmatprep.subr.mxu0 0.0
        %4285 = vmatpush1.msra.mxu0 0.0
        %4286 = vmatprep.subr.mxu0 0.0
        %4287 = vmatpush1.msra.mxu0 0.0
        %4288 = vmatprep.subr.mxu0 0.0
        %4289 = vmatpush1.msra.mxu0 0.0
        %4290 = vmatprep.subr.mxu0 0.0
        %4291 = vmatpush1.msra.mxu0 0.0
        %4292 = vmatprep.subr.mxu0 0.0
        %4293 = vmatpush1.msra.mxu0 0.0
        %4294 = vmatprep.subr.mxu0 0.0
        %4295 = vmatpush1.msra.mxu0 0.0
        %4296 = vmatprep.subr.mxu0 0.0
        %4297 = vmatpush1.msra.mxu0 0.0
        %4298 = vmatprep.subr.mxu0 0.0
        %4299 = vmatpush1.msra.mxu0 0.0
        %4300 = vmatprep.subr.mxu0 0.0
        %4301 = vmatpush1.msra.mxu0 0.0
        %4302 = vmatprep.subr.mxu0 0.0
        %4303 = vmatpush1.msra.mxu0 0.0
        %4304 = vmatprep.subr.mxu0 0.0
        %4305 = vmatpush1.msra.mxu0 0.0
        %4306 = vmatprep.subr.mxu0 0.0
        %4307 = vmatpush1.msra.mxu0 0.0
        %4308 = vmatprep.subr.mxu0 0.0
        %4309 = vmatpush1.msra.mxu0 0.0
        %4310 = vmatprep.subr.mxu0 0.0
        %4311 = vmatpush1.msra.mxu0 0.0
        %4312 = vmatprep.mubr.f32.mxu0 0.0
        %4313 = vmatmul.mubr.f32.gmra.mrb[0].mxu0 %v4201
        %v4314 = vpop.f32.mrb[0].mxu0
        %v4315 = vadd.f32 0.0, %v4314
        %v4316 = vpop.f32.mrb[0].mxu0
        %v4317 = vadd.f32 0.0, %v4316
        %4318 = vmatprep.mubr.f32.mxu0 0.0
        %4319 = vmatmul.mubr.f32.gmra.mrb[0].mxu0 %v4204
        %v4320 = vpop.f32.mrb[0].mxu0
        %v4321 = vadd.f32 0.0, %v4320
        %v4322 = vpop.f32.mrb[0].mxu0
        %v4323 = vadd.f32 0.0, %v4322
        %4324 = vmatprep.mubr.f32.mxu0 0.0
        %4325 = vmatmul.mubr.f32.gmra.mrb[0].mxu0 %v4207
        %v4326 = vpop.f32.mrb[0].mxu0
        %v4327 = vadd.f32 0.0, %v4326
        %v4328 = vpop.f32.mrb[0].mxu0
        %v4329 = vadd.f32 0.0, %v4328
        %4330 = vmatprep.mubr.f32.mxu0 0.0
        %4331 = vmatmul.mubr.f32.gmra.mrb[0].mxu0 %v4210
        %v4332 = vpop.f32.mrb[0].mxu0
        %v4333 = vadd.f32 0.0, %v4332
        %v4334 = vpop.f32.mrb[0].mxu0
        %v4335 = vadd.f32 0.0, %v4334
        %4336 = vmatprep.mubr.f32.mxu0 0.0
        %4337 = vmatmul.mubr.f32.gmra.mrb[0].mxu0 %v4213
        %v4338 = vpop.f32.mrb[0].mxu0
        %v4339 = vadd.f32 0.0, %v4338
        %v4340 = vpop.f32.mrb[0].mxu0
        %v4341 = vadd.f32 0.0, %v4340
        %4342 = vmatprep.mubr.f32.mxu0 0.0
        %4343 = vmatmul.mubr.f32.gmra.mrb[0].mxu0 %v4216
        %v4344 = vpop.f32.mrb[0].mxu0
        %v4345 = vadd.f32 0.0, %v4344
        %v4346 = vpop.f32.mrb[0].mxu0
        %v4347 = vadd.f32 0.0, %v4346
        %4348 = vmatprep.mubr.f32.mxu0 0.0
        %4349 = vmatmul.mubr.f32.gmra.mrb[0].mxu0 %v4219
        %v4350 = vpop.f32.mrb[0].mxu0
        %v4351 = vadd.f32 0.0, %v4350
        %v4352 = vpop.f32.mrb[0].mxu0
        %v4353 = vadd.f32 0.0, %v4352
        %4354 = vmatprep.mubr.f32.mxu0 0.0
        %4355 = vmatmul.mubr.f32.gmra.mrb[0].mxu0 %v4222
        %v4356 = vpop.f32.mrb[0].mxu0
        %v4357 = vadd.f32 0.0, %v4356
        %v4358 = vpop.f32.mrb[0].mxu0
        %v4359 = vadd.f32 0.0, %v4358
        %4360 = vmatprep.mubr.f32.mxu0 0.0
        %4361 = vmatmul.mubr.f32.gmra.mrb[0].mxu0 %v4225
        %v4362 = vpop.f32.mrb[0].mxu0
        %v4363 = vadd.f32 0.0, %v4362
        %v4364 = vpop.f32.mrb[0].mxu0
        %v4365 = vadd.f32 0.0, %v4364
        %4366 = vmatprep.mubr.f32.mxu0 0.0
        %4367 = vmatmul.mubr.f32.gmra.mrb[0].mxu0 %v4228
        %v4368 = vpop.f32.mrb[0].mxu0
        %v4369 = vadd.f32 0.0, %v4368
        %v4370 = vpop.f32.mrb[0].mxu0
        %v4371 = vadd.f32 0.0, %v4370
        %4372 = vmatprep.mubr.f32.mxu0 0.0
        %4373 = vmatmul.mubr.f32.gmra.mrb[0].mxu0 %v4231
        %v4374 = vpop.f32.mrb[0].mxu0
        %v4375 = vadd.f32 0.0, %v4374
        %v4376 = vpop.f32.mrb[0].mxu0
        %v4377 = vadd.f32 0.0, %v4376
        %4378 = vmatprep.mubr.f32.mxu0 0.0
        %4379 = vmatmul.mubr.f32.gmra.mrb[0].mxu0 %v4234
        %v4380 = vpop.f32.mrb[0].mxu0
        %v4381 = vadd.f32 0.0, %v4380
        %v4382 = vpop.f32.mrb[0].mxu0
        %v4383 = vadd.f32 0.0, %v4382
        %4384 = vmatprep.mubr.f32.mxu0 0.0
        %4385 = vmatmul.mubr.f32.gmra.mrb[0].mxu0 %v4237
        %v4386 = vpop.f32.mrb[0].mxu0
        %v4387 = vadd.f32 0.0, %v4386
        %v4388 = vpop.f32.mrb[0].mxu0
        %v4389 = vadd.f32 0.0, %v4388
        %4390 = vmatprep.mubr.f32.mxu0 0.0
        %4391 = vmatmul.mubr.f32.gmra.mrb[0].mxu0 %v4240
        %v4392 = vpop.f32.mrb[0].mxu0
        %v4393 = vadd.f32 0.0, %v4392
        %v4394 = vpop.f32.mrb[0].mxu0
        %v4395 = vadd.f32 0.0, %v4394
        %4396 = vmatprep.mubr.f32.mxu0 0.0
        %4397 = vmatmul.mubr.f32.gmra.mrb[0].mxu0 %v4243
        %v4398 = vpop.f32.mrb[0].mxu0
        %v4399 = vadd.f32 0.0, %v4398
        %v4400 = vpop.f32.mrb[0].mxu0
        %v4401 = vadd.f32 0.0, %v4400
        %4402 = vmatprep.mubr.f32.mxu0 0.0
        %4403 = vmatmul.mubr.f32.gmra.mrb[0].mxu0 %v4246
        %v4404 = vpop.f32.mrb[0].mxu0
        %v4405 = vadd.f32 0.0, %v4404
        %v4406 = vpop.f32.mrb[0].mxu0
        %v4407 = vadd.f32 0.0, %v4406
        %4408 = vdwg.mxu0
        %v4409 = vadd.f32 %v4081, %v4315
        %v4410 = vadd.f32 %v4083, %v4317
        %v4411 = vadd.f32 %v4087, %v4321
        %v4412 = vadd.f32 %v4089, %v4323
        %v4413 = vadd.f32 %v4093, %v4327
        %v4414 = vadd.f32 %v4095, %v4329
        %v4415 = vadd.f32 %v4099, %v4333
        %v4416 = vadd.f32 %v4101, %v4335
        %v4417 = vadd.f32 %v4105, %v4339
        %v4418 = vadd.f32 %v4107, %v4341
        %v4419 = vadd.f32 %v4111, %v4345
        %v4420 = vadd.f32 %v4113, %v4347
        %v4421 = vadd.f32 %v4117, %v4351
        %v4422 = vadd.f32 %v4119, %v4353
        %v4423 = vadd.f32 %v4123, %v4357
        %v4424 = vadd.f32 %v4125, %v4359
        %v4425 = vadd.f32 %v4129, %v4363
        %v4426 = vadd.f32 %v4131, %v4365
        %v4427 = vadd.f32 %v4135, %v4369
        %v4428 = vadd.f32 %v4137, %v4371
        %v4429 = vadd.f32 %v4141, %v4375
        %v4430 = vadd.f32 %v4143, %v4377
        %v4431 = vadd.f32 %v4147, %v4381
        %v4432 = vadd.f32 %v4149, %v4383
        %v4433 = vadd.f32 %v4153, %v4387
        %v4434 = vadd.f32 %v4155, %v4389
        %v4435 = vadd.f32 %v4159, %v4393
        %v4436 = vadd.f32 %v4161, %v4395
        %v4437 = vadd.f32 %v4165, %v4399
        %v4438 = vadd.f32 %v4167, %v4401
        %v4439 = vadd.f32 %v4171, %v4405
        %v4440 = vadd.f32 %v4173, %v4407
        %v4441 = vld [vmem:[%s312 + $0x2] sm:$0xff]
        %v4442 = vld [vmem:[%s312 + $0xa] sm:$0xff]
        %v4443 = vld [vmem:[%s312 + $0x22] sm:$0xff]
        %v4444 = vld [vmem:[%s312 + $0x2a] sm:$0xff]
        %v4445 = vld [vmem:[%s312 + $0x42] sm:$0xff]
        %v4446 = vld [vmem:[%s312 + $0x4a] sm:$0xff]
        %v4447 = vld [vmem:[%s312 + $0x62] sm:$0xff]
        %v4448 = vld [vmem:[%s312 + $0x6a] sm:$0xff]
        %v4449 = vld [vmem:[%s312 + $0x82] sm:$0xff]
        %v4450 = vld [vmem:[%s312 + $0x8a] sm:$0xff]
        %v4451 = vld [vmem:[%s312 + $0xa2] sm:$0xff]
        %v4452 = vld [vmem:[%s312 + $0xaa] sm:$0xff]
        %v4453 = vld [vmem:[%s312 + $0xc2] sm:$0xff]
        %v4454 = vld [vmem:[%s312 + $0xca] sm:$0xff]
        %v4455 = vld [vmem:[%s312 + $0xe2] sm:$0xff]
        %v4456 = vld [vmem:[%s312 + $0xea] sm:$0xff]
        %s4457 = scalar_lea.vmem %s1, 832
        %v4458 = vld [vmem:[%s4457] sm:$0xff]
        %v4459 = vld [vmem:[%s4457 + $0x8] sm:$0xff]
        %v4460 = vld [vmem:[%s4457 + $0x10] sm:$0xff]
        %v4461 = vld [vmem:[%s4457 + $0x18] sm:$0xff]
        %v4462 = vld [vmem:[%s4457 + $0x20] sm:$0xff]
        %v4463 = vld [vmem:[%s4457 + $0x28] sm:$0xff]
        %v4464 = vld [vmem:[%s4457 + $0x30] sm:$0xff]
        %v4465 = vld [vmem:[%s4457 + $0x38] sm:$0xff]
        %v4467 = vsel %vm337, %v4441, 0
        %v4470 = vsel %vm337, %v4442, 0
        %v4473 = vsel %vm337, %v4443, 0
        %v4476 = vsel %vm337, %v4444, 0
        %v4479 = vsel %vm337, %v4445, 0
        %v4482 = vsel %vm337, %v4446, 0
        %v4485 = vsel %vm337, %v4447, 0
        %v4488 = vsel %vm337, %v4448, 0
        %v4491 = vsel %vm337, %v4449, 0
        %v4494 = vsel %vm337, %v4450, 0
        %v4497 = vsel %vm337, %v4451, 0
        %v4500 = vsel %vm337, %v4452, 0
        %v4503 = vsel %vm337, %v4453, 0
        %v4506 = vsel %vm337, %v4454, 0
        %v4509 = vsel %vm337, %v4455, 0
        %v4512 = vsel %vm337, %v4456, 0
        %4514 = vmatprep.subr.mxu0 %v4459
        %4515 = vmatpush1.msra.mxu0 %v4458
        %4516 = vmatprep.subr.mxu0 %v4461
        %4517 = vmatpush1.msra.mxu0 %v4460
        %4518 = vmatprep.subr.mxu0 %v4463
        %4519 = vmatpush1.msra.mxu0 %v4462
        %4520 = vmatprep.subr.mxu0 %v4465
        %4521 = vmatpush1.msra.mxu0 %v4464
        %4522 = vmatprep.subr.mxu0 0.0
        %4523 = vmatpush1.msra.mxu0 0.0
        %4524 = vmatprep.subr.mxu0 0.0
        %4525 = vmatpush1.msra.mxu0 0.0
        %4526 = vmatprep.subr.mxu0 0.0
        %4527 = vmatpush1.msra.mxu0 0.0
        %4528 = vmatprep.subr.mxu0 0.0
        %4529 = vmatpush1.msra.mxu0 0.0
        %4530 = vmatprep.subr.mxu0 0.0
        %4531 = vmatpush1.msra.mxu0 0.0
        %4532 = vmatprep.subr.mxu0 0.0
        %4533 = vmatpush1.msra.mxu0 0.0
        %4534 = vmatprep.subr.mxu0 0.0
        %4535 = vmatpush1.msra.mxu0 0.0
        %4536 = vmatprep.subr.mxu0 0.0
        %4537 = vmatpush1.msra.mxu0 0.0
        %4538 = vmatprep.subr.mxu0 0.0
        %4539 = vmatpush1.msra.mxu0 0.0
        %4540 = vmatprep.subr.mxu0 0.0
        %4541 = vmatpush1.msra.mxu0 0.0
        %4542 = vmatprep.subr.mxu0 0.0
        %4543 = vmatpush1.msra.mxu0 0.0
        %4544 = vmatprep.subr.mxu0 0.0
        %4545 = vmatpush1.msra.mxu0 0.0
        %4546 = vmatprep.subr.mxu0 0.0
        %4547 = vmatpush1.msra.mxu0 0.0
        %4548 = vmatprep.subr.mxu0 0.0
        %4549 = vmatpush1.msra.mxu0 0.0
        %4550 = vmatprep.subr.mxu0 0.0
        %4551 = vmatpush1.msra.mxu0 0.0
        %4552 = vmatprep.subr.mxu0 0.0
        %4553 = vmatpush1.msra.mxu0 0.0
        %4554 = vmatprep.subr.mxu0 0.0
        %4555 = vmatpush1.msra.mxu0 0.0
        %4556 = vmatprep.subr.mxu0 0.0
        %4557 = vmatpush1.msra.mxu0 0.0
        %4558 = vmatprep.subr.mxu0 0.0
        %4559 = vmatpush1.msra.mxu0 0.0
        %4560 = vmatprep.subr.mxu0 0.0
        %4561 = vmatpush1.msra.mxu0 0.0
        %4562 = vmatprep.subr.mxu0 0.0
        %4563 = vmatpush1.msra.mxu0 0.0
        %4564 = vmatprep.subr.mxu0 0.0
        %4565 = vmatpush1.msra.mxu0 0.0
        %4566 = vmatprep.subr.mxu0 0.0
        %4567 = vmatpush1.msra.mxu0 0.0
        %4568 = vmatprep.subr.mxu0 0.0
        %4569 = vmatpush1.msra.mxu0 0.0
        %4570 = vmatprep.subr.mxu0 0.0
        %4571 = vmatpush1.msra.mxu0 0.0
        %4572 = vmatprep.subr.mxu0 0.0
        %4573 = vmatpush1.msra.mxu0 0.0
        %4574 = vmatprep.subr.mxu0 0.0
        %4575 = vmatpush1.msra.mxu0 0.0
        %4576 = vmatprep.subr.mxu0 0.0
        %4577 = vmatpush1.msra.mxu0 0.0
        %4578 = vmatprep.mubr.f32.mxu0 0.0
        %4579 = vmatmul.mubr.f32.gmra.mrb[0].mxu0 %v4467
        %v4580 = vpop.f32.mrb[0].mxu0
        %v4581 = vadd.f32 0.0, %v4580
        %v4582 = vpop.f32.mrb[0].mxu0
        %v4583 = vadd.f32 0.0, %v4582
        %4584 = vmatprep.mubr.f32.mxu0 0.0
        %4585 = vmatmul.mubr.f32.gmra.mrb[0].mxu0 %v4470
        %v4586 = vpop.f32.mrb[0].mxu0
        %v4587 = vadd.f32 0.0, %v4586
        %v4588 = vpop.f32.mrb[0].mxu0
        %v4589 = vadd.f32 0.0, %v4588
        %4590 = vmatprep.mubr.f32.mxu0 0.0
        %4591 = vmatmul.mubr.f32.gmra.mrb[0].mxu0 %v4473
        %v4592 = vpop.f32.mrb[0].mxu0
        %v4593 = vadd.f32 0.0, %v4592
        %v4594 = vpop.f32.mrb[0].mxu0
        %v4595 = vadd.f32 0.0, %v4594
        %4596 = vmatprep.mubr.f32.mxu0 0.0
        %4597 = vmatmul.mubr.f32.gmra.mrb[0].mxu0 %v4476
        %v4598 = vpop.f32.mrb[0].mxu0
        %v4599 = vadd.f32 0.0, %v4598
        %v4600 = vpop.f32.mrb[0].mxu0
        %v4601 = vadd.f32 0.0, %v4600
        %4602 = vmatprep.mubr.f32.mxu0 0.0
        %4603 = vmatmul.mubr.f32.gmra.mrb[0].mxu0 %v4479
        %v4604 = vpop.f32.mrb[0].mxu0
        %v4605 = vadd.f32 0.0, %v4604
        %v4606 = vpop.f32.mrb[0].mxu0
        %v4607 = vadd.f32 0.0, %v4606
        %4608 = vmatprep.mubr.f32.mxu0 0.0
        %4609 = vmatmul.mubr.f32.gmra.mrb[0].mxu0 %v4482
        %v4610 = vpop.f32.mrb[0].mxu0
        %v4611 = vadd.f32 0.0, %v4610
        %v4612 = vpop.f32.mrb[0].mxu0
        %v4613 = vadd.f32 0.0, %v4612
        %4614 = vmatprep.mubr.f32.mxu0 0.0
        %4615 = vmatmul.mubr.f32.gmra.mrb[0].mxu0 %v4485
        %v4616 = vpop.f32.mrb[0].mxu0
        %v4617 = vadd.f32 0.0, %v4616
        %v4618 = vpop.f32.mrb[0].mxu0
        %v4619 = vadd.f32 0.0, %v4618
        %4620 = vmatprep.mubr.f32.mxu0 0.0
        %4621 = vmatmul.mubr.f32.gmra.mrb[0].mxu0 %v4488
        %v4622 = vpop.f32.mrb[0].mxu0
        %v4623 = vadd.f32 0.0, %v4622
        %v4624 = vpop.f32.mrb[0].mxu0
        %v4625 = vadd.f32 0.0, %v4624
        %4626 = vmatprep.mubr.f32.mxu0 0.0
        %4627 = vmatmul.mubr.f32.gmra.mrb[0].mxu0 %v4491
        %v4628 = vpop.f32.mrb[0].mxu0
        %v4629 = vadd.f32 0.0, %v4628
        %v4630 = vpop.f32.mrb[0].mxu0
        %v4631 = vadd.f32 0.0, %v4630
        %4632 = vmatprep.mubr.f32.mxu0 0.0
        %4633 = vmatmul.mubr.f32.gmra.mrb[0].mxu0 %v4494
        %v4634 = vpop.f32.mrb[0].mxu0
        %v4635 = vadd.f32 0.0, %v4634
        %v4636 = vpop.f32.mrb[0].mxu0
        %v4637 = vadd.f32 0.0, %v4636
        %4638 = vmatprep.mubr.f32.mxu0 0.0
        %4639 = vmatmul.mubr.f32.gmra.mrb[0].mxu0 %v4497
        %v4640 = vpop.f32.mrb[0].mxu0
        %v4641 = vadd.f32 0.0, %v4640
        %v4642 = vpop.f32.mrb[0].mxu0
        %v4643 = vadd.f32 0.0, %v4642
        %4644 = vmatprep.mubr.f32.mxu0 0.0
        %4645 = vmatmul.mubr.f32.gmra.mrb[0].mxu0 %v4500
        %v4646 = vpop.f32.mrb[0].mxu0
        %v4647 = vadd.f32 0.0, %v4646
        %v4648 = vpop.f32.mrb[0].mxu0
        %v4649 = vadd.f32 0.0, %v4648
        %4650 = vmatprep.mubr.f32.mxu0 0.0
        %4651 = vmatmul.mubr.f32.gmra.mrb[0].mxu0 %v4503
        %v4652 = vpop.f32.mrb[0].mxu0
        %v4653 = vadd.f32 0.0, %v4652
        %v4654 = vpop.f32.mrb[0].mxu0
        %v4655 = vadd.f32 0.0, %v4654
        %4656 = vmatprep.mubr.f32.mxu0 0.0
        %4657 = vmatmul.mubr.f32.gmra.mrb[0].mxu0 %v4506
        %v4658 = vpop.f32.mrb[0].mxu0
        %v4659 = vadd.f32 0.0, %v4658
        %v4660 = vpop.f32.mrb[0].mxu0
        %v4661 = vadd.f32 0.0, %v4660
        %4662 = vmatprep.mubr.f32.mxu0 0.0
        %4663 = vmatmul.mubr.f32.gmra.mrb[0].mxu0 %v4509
        %v4664 = vpop.f32.mrb[0].mxu0
        %v4665 = vadd.f32 0.0, %v4664
        %v4666 = vpop.f32.mrb[0].mxu0
        %v4667 = vadd.f32 0.0, %v4666
        %4668 = vmatprep.mubr.f32.mxu0 0.0
        %4669 = vmatmul.mubr.f32.gmra.mrb[0].mxu0 %v4512
        %v4670 = vpop.f32.mrb[0].mxu0
        %v4671 = vadd.f32 0.0, %v4670
        %v4672 = vpop.f32.mrb[0].mxu0
        %v4673 = vadd.f32 0.0, %v4672
        %4674 = vdwg.mxu0
        %v4675 = vadd.f32 %v4409, %v4581
        %v4676 = vadd.f32 %v4410, %v4583
        %v4677 = vadd.f32 %v4411, %v4587
        %v4678 = vadd.f32 %v4412, %v4589
        %v4679 = vadd.f32 %v4413, %v4593
        %v4680 = vadd.f32 %v4414, %v4595
        %v4681 = vadd.f32 %v4415, %v4599
        %v4682 = vadd.f32 %v4416, %v4601
        %v4683 = vadd.f32 %v4417, %v4605
        %v4684 = vadd.f32 %v4418, %v4607
        %v4685 = vadd.f32 %v4419, %v4611
        %v4686 = vadd.f32 %v4420, %v4613
        %v4687 = vadd.f32 %v4421, %v4617
        %v4688 = vadd.f32 %v4422, %v4619
        %v4689 = vadd.f32 %v4423, %v4623
        %v4690 = vadd.f32 %v4424, %v4625
        %v4691 = vadd.f32 %v4425, %v4629
        %v4692 = vadd.f32 %v4426, %v4631
        %v4693 = vadd.f32 %v4427, %v4635
        %v4694 = vadd.f32 %v4428, %v4637
        %v4695 = vadd.f32 %v4429, %v4641
        %v4696 = vadd.f32 %v4430, %v4643
        %v4697 = vadd.f32 %v4431, %v4647
        %v4698 = vadd.f32 %v4432, %v4649
        %v4699 = vadd.f32 %v4433, %v4653
        %v4700 = vadd.f32 %v4434, %v4655
        %v4701 = vadd.f32 %v4435, %v4659
        %v4702 = vadd.f32 %v4436, %v4661
        %v4703 = vadd.f32 %v4437, %v4665
        %v4704 = vadd.f32 %v4438, %v4667
        %v4705 = vadd.f32 %v4439, %v4671
        %v4706 = vadd.f32 %v4440, %v4673
        %v4707 = vld [vmem:[%s312 + $0x6] sm:$0xff]
        %v4708 = vld [vmem:[%s312 + $0xe] sm:$0xff]
        %v4709 = vld [vmem:[%s312 + $0x26] sm:$0xff]
        %v4710 = vld [vmem:[%s312 + $0x2e] sm:$0xff]
        %v4711 = vld [vmem:[%s312 + $0x46] sm:$0xff]
        %v4712 = vld [vmem:[%s312 + $0x4e] sm:$0xff]
        %v4713 = vld [vmem:[%s312 + $0x66] sm:$0xff]
        %v4714 = vld [vmem:[%s312 + $0x6e] sm:$0xff]
        %v4715 = vld [vmem:[%s312 + $0x86] sm:$0xff]
        %v4716 = vld [vmem:[%s312 + $0x8e] sm:$0xff]
        %v4717 = vld [vmem:[%s312 + $0xa6] sm:$0xff]
        %v4718 = vld [vmem:[%s312 + $0xae] sm:$0xff]
        %v4719 = vld [vmem:[%s312 + $0xc6] sm:$0xff]
        %v4720 = vld [vmem:[%s312 + $0xce] sm:$0xff]
        %v4721 = vld [vmem:[%s312 + $0xe6] sm:$0xff]
        %v4722 = vld [vmem:[%s312 + $0xee] sm:$0xff]
        %s4723 = scalar_lea.vmem %s1, 896
        %v4724 = vld [vmem:[%s4723] sm:$0xff]
        %v4725 = vld [vmem:[%s4723 + $0x8] sm:$0xff]
        %v4726 = vld [vmem:[%s4723 + $0x10] sm:$0xff]
        %v4727 = vld [vmem:[%s4723 + $0x18] sm:$0xff]
        %v4728 = vld [vmem:[%s4723 + $0x20] sm:$0xff]
        %v4729 = vld [vmem:[%s4723 + $0x28] sm:$0xff]
        %v4730 = vld [vmem:[%s4723 + $0x30] sm:$0xff]
        %v4731 = vld [vmem:[%s4723 + $0x38] sm:$0xff]
        %v4733 = vsel %vm337, %v4707, 0
        %v4736 = vsel %vm337, %v4708, 0
        %v4739 = vsel %vm337, %v4709, 0
        %v4742 = vsel %vm337, %v4710, 0
        %v4745 = vsel %vm337, %v4711, 0
        %v4748 = vsel %vm337, %v4712, 0
        %v4751 = vsel %vm337, %v4713, 0
        %v4754 = vsel %vm337, %v4714, 0
        %v4757 = vsel %vm337, %v4715, 0
        %v4760 = vsel %vm337, %v4716, 0
        %v4763 = vsel %vm337, %v4717, 0
        %v4766 = vsel %vm337, %v4718, 0
        %v4769 = vsel %vm337, %v4719, 0
        %v4772 = vsel %vm337, %v4720, 0
        %v4775 = vsel %vm337, %v4721, 0
        %v4778 = vsel %vm337, %v4722, 0
        %4780 = vmatprep.subr.mxu0 %v4725
        %4781 = vmatpush1.msra.mxu0 %v4724
        %4782 = vmatprep.subr.mxu0 %v4727
        %4783 = vmatpush1.msra.mxu0 %v4726
        %4784 = vmatprep.subr.mxu0 %v4729
        %4785 = vmatpush1.msra.mxu0 %v4728
        %4786 = vmatprep.subr.mxu0 %v4731
        %4787 = vmatpush1.msra.mxu0 %v4730
        %4788 = vmatprep.subr.mxu0 0.0
        %4789 = vmatpush1.msra.mxu0 0.0
        %4790 = vmatprep.subr.mxu0 0.0
        %4791 = vmatpush1.msra.mxu0 0.0
        %4792 = vmatprep.subr.mxu0 0.0
        %4793 = vmatpush1.msra.mxu0 0.0
        %4794 = vmatprep.subr.mxu0 0.0
        %4795 = vmatpush1.msra.mxu0 0.0
        %4796 = vmatprep.subr.mxu0 0.0
        %4797 = vmatpush1.msra.mxu0 0.0
        %4798 = vmatprep.subr.mxu0 0.0
        %4799 = vmatpush1.msra.mxu0 0.0
        %4800 = vmatprep.subr.mxu0 0.0
        %4801 = vmatpush1.msra.mxu0 0.0
        %4802 = vmatprep.subr.mxu0 0.0
        %4803 = vmatpush1.msra.mxu0 0.0
        %4804 = vmatprep.subr.mxu0 0.0
        %4805 = vmatpush1.msra.mxu0 0.0
        %4806 = vmatprep.subr.mxu0 0.0
        %4807 = vmatpush1.msra.mxu0 0.0
        %4808 = vmatprep.subr.mxu0 0.0
        %4809 = vmatpush1.msra.mxu0 0.0
        %4810 = vmatprep.subr.mxu0 0.0
        %4811 = vmatpush1.msra.mxu0 0.0
        %4812 = vmatprep.subr.mxu0 0.0
        %4813 = vmatpush1.msra.mxu0 0.0
        %4814 = vmatprep.subr.mxu0 0.0
        %4815 = vmatpush1.msra.mxu0 0.0
        %4816 = vmatprep.subr.mxu0 0.0
        %4817 = vmatpush1.msra.mxu0 0.0
        %4818 = vmatprep.subr.mxu0 0.0
        %4819 = vmatpush1.msra.mxu0 0.0
        %4820 = vmatprep.subr.mxu0 0.0
        %4821 = vmatpush1.msra.mxu0 0.0
        %4822 = vmatprep.subr.mxu0 0.0
        %4823 = vmatpush1.msra.mxu0 0.0
        %4824 = vmatprep.subr.mxu0 0.0
        %4825 = vmatpush1.msra.mxu0 0.0
        %4826 = vmatprep.subr.mxu0 0.0
        %4827 = vmatpush1.msra.mxu0 0.0
        %4828 = vmatprep.subr.mxu0 0.0
        %4829 = vmatpush1.msra.mxu0 0.0
        %4830 = vmatprep.subr.mxu0 0.0
        %4831 = vmatpush1.msra.mxu0 0.0
        %4832 = vmatprep.subr.mxu0 0.0
        %4833 = vmatpush1.msra.mxu0 0.0
        %4834 = vmatprep.subr.mxu0 0.0
        %4835 = vmatpush1.msra.mxu0 0.0
        %4836 = vmatprep.subr.mxu0 0.0
        %4837 = vmatpush1.msra.mxu0 0.0
        %4838 = vmatprep.subr.mxu0 0.0
        %4839 = vmatpush1.msra.mxu0 0.0
        %4840 = vmatprep.subr.mxu0 0.0
        %4841 = vmatpush1.msra.mxu0 0.0
        %4842 = vmatprep.subr.mxu0 0.0
        %4843 = vmatpush1.msra.mxu0 0.0
        %4844 = vmatprep.mubr.f32.mxu0 0.0
        %4845 = vmatmul.mubr.f32.gmra.mrb[0].mxu0 %v4733
        %v4846 = vpop.f32.mrb[0].mxu0
        %v4847 = vadd.f32 0.0, %v4846
        %v4848 = vpop.f32.mrb[0].mxu0
        %v4849 = vadd.f32 0.0, %v4848
        %4850 = vmatprep.mubr.f32.mxu0 0.0
        %4851 = vmatmul.mubr.f32.gmra.mrb[0].mxu0 %v4736
        %v4852 = vpop.f32.mrb[0].mxu0
        %v4853 = vadd.f32 0.0, %v4852
        %v4854 = vpop.f32.mrb[0].mxu0
        %v4855 = vadd.f32 0.0, %v4854
        %4856 = vmatprep.mubr.f32.mxu0 0.0
        %4857 = vmatmul.mubr.f32.gmra.mrb[0].mxu0 %v4739
        %v4858 = vpop.f32.mrb[0].mxu0
        %v4859 = vadd.f32 0.0, %v4858
        %v4860 = vpop.f32.mrb[0].mxu0
        %v4861 = vadd.f32 0.0, %v4860
        %4862 = vmatprep.mubr.f32.mxu0 0.0
        %4863 = vmatmul.mubr.f32.gmra.mrb[0].mxu0 %v4742
        %v4864 = vpop.f32.mrb[0].mxu0
        %v4865 = vadd.f32 0.0, %v4864
        %v4866 = vpop.f32.mrb[0].mxu0
        %v4867 = vadd.f32 0.0, %v4866
        %4868 = vmatprep.mubr.f32.mxu0 0.0
        %4869 = vmatmul.mubr.f32.gmra.mrb[0].mxu0 %v4745
        %v4870 = vpop.f32.mrb[0].mxu0
        %v4871 = vadd.f32 0.0, %v4870
        %v4872 = vpop.f32.mrb[0].mxu0
        %v4873 = vadd.f32 0.0, %v4872
        %4874 = vmatprep.mubr.f32.mxu0 0.0
        %4875 = vmatmul.mubr.f32.gmra.mrb[0].mxu0 %v4748
        %v4876 = vpop.f32.mrb[0].mxu0
        %v4877 = vadd.f32 0.0, %v4876
        %v4878 = vpop.f32.mrb[0].mxu0
        %v4879 = vadd.f32 0.0, %v4878
        %4880 = vmatprep.mubr.f32.mxu0 0.0
        %4881 = vmatmul.mubr.f32.gmra.mrb[0].mxu0 %v4751
        %v4882 = vpop.f32.mrb[0].mxu0
        %v4883 = vadd.f32 0.0, %v4882
        %v4884 = vpop.f32.mrb[0].mxu0
        %v4885 = vadd.f32 0.0, %v4884
        %4886 = vmatprep.mubr.f32.mxu0 0.0
        %4887 = vmatmul.mubr.f32.gmra.mrb[0].mxu0 %v4754
        %v4888 = vpop.f32.mrb[0].mxu0
        %v4889 = vadd.f32 0.0, %v4888
        %v4890 = vpop.f32.mrb[0].mxu0
        %v4891 = vadd.f32 0.0, %v4890
        %4892 = vmatprep.mubr.f32.mxu0 0.0
        %4893 = vmatmul.mubr.f32.gmra.mrb[0].mxu0 %v4757
        %v4894 = vpop.f32.mrb[0].mxu0
        %v4895 = vadd.f32 0.0, %v4894
        %v4896 = vpop.f32.mrb[0].mxu0
        %v4897 = vadd.f32 0.0, %v4896
        %4898 = vmatprep.mubr.f32.mxu0 0.0
        %4899 = vmatmul.mubr.f32.gmra.mrb[0].mxu0 %v4760
        %v4900 = vpop.f32.mrb[0].mxu0
        %v4901 = vadd.f32 0.0, %v4900
        %v4902 = vpop.f32.mrb[0].mxu0
        %v4903 = vadd.f32 0.0, %v4902
        %4904 = vmatprep.mubr.f32.mxu0 0.0
        %4905 = vmatmul.mubr.f32.gmra.mrb[0].mxu0 %v4763
        %v4906 = vpop.f32.mrb[0].mxu0
        %v4907 = vadd.f32 0.0, %v4906
        %v4908 = vpop.f32.mrb[0].mxu0
        %v4909 = vadd.f32 0.0, %v4908
        %4910 = vmatprep.mubr.f32.mxu0 0.0
        %4911 = vmatmul.mubr.f32.gmra.mrb[0].mxu0 %v4766
        %v4912 = vpop.f32.mrb[0].mxu0
        %v4913 = vadd.f32 0.0, %v4912
        %v4914 = vpop.f32.mrb[0].mxu0
        %v4915 = vadd.f32 0.0, %v4914
        %4916 = vmatprep.mubr.f32.mxu0 0.0
        %4917 = vmatmul.mubr.f32.gmra.mrb[0].mxu0 %v4769
        %v4918 = vpop.f32.mrb[0].mxu0
        %v4919 = vadd.f32 0.0, %v4918
        %v4920 = vpop.f32.mrb[0].mxu0
        %v4921 = vadd.f32 0.0, %v4920
        %4922 = vmatprep.mubr.f32.mxu0 0.0
        %4923 = vmatmul.mubr.f32.gmra.mrb[0].mxu0 %v4772
        %v4924 = vpop.f32.mrb[0].mxu0
        %v4925 = vadd.f32 0.0, %v4924
        %v4926 = vpop.f32.mrb[0].mxu0
        %v4927 = vadd.f32 0.0, %v4926
        %4928 = vmatprep.mubr.f32.mxu0 0.0
        %4929 = vmatmul.mubr.f32.gmra.mrb[0].mxu0 %v4775
        %v4930 = vpop.f32.mrb[0].mxu0
        %v4931 = vadd.f32 0.0, %v4930
        %v4932 = vpop.f32.mrb[0].mxu0
        %v4933 = vadd.f32 0.0, %v4932
        %4934 = vmatprep.mubr.f32.mxu0 0.0
        %4935 = vmatmul.mubr.f32.gmra.mrb[0].mxu0 %v4778
        %v4936 = vpop.f32.mrb[0].mxu0
        %v4937 = vadd.f32 0.0, %v4936
        %v4938 = vpop.f32.mrb[0].mxu0
        %v4939 = vadd.f32 0.0, %v4938
        %4940 = vdwg.mxu0
        %v4941 = vadd.f32 %v4675, %v4847
        %v4942 = vadd.f32 %v4676, %v4849
        %v4943 = vadd.f32 %v4677, %v4853
        %v4944 = vadd.f32 %v4678, %v4855
        %v4945 = vadd.f32 %v4679, %v4859
        %v4946 = vadd.f32 %v4680, %v4861
        %v4947 = vadd.f32 %v4681, %v4865
        %v4948 = vadd.f32 %v4682, %v4867
        %v4949 = vadd.f32 %v4683, %v4871
        %v4950 = vadd.f32 %v4684, %v4873
        %v4951 = vadd.f32 %v4685, %v4877
        %v4952 = vadd.f32 %v4686, %v4879
        %v4953 = vadd.f32 %v4687, %v4883
        %v4954 = vadd.f32 %v4688, %v4885
        %v4955 = vadd.f32 %v4689, %v4889
        %v4956 = vadd.f32 %v4690, %v4891
        %v4957 = vadd.f32 %v4691, %v4895
        %v4958 = vadd.f32 %v4692, %v4897
        %v4959 = vadd.f32 %v4693, %v4901
        %v4960 = vadd.f32 %v4694, %v4903
        %v4961 = vadd.f32 %v4695, %v4907
        %v4962 = vadd.f32 %v4696, %v4909
        %v4963 = vadd.f32 %v4697, %v4913
        %v4964 = vadd.f32 %v4698, %v4915
        %v4965 = vadd.f32 %v4699, %v4919
        %v4966 = vadd.f32 %v4700, %v4921
        %v4967 = vadd.f32 %v4701, %v4925
        %v4968 = vadd.f32 %v4702, %v4927
        %v4969 = vadd.f32 %v4703, %v4931
        %v4970 = vadd.f32 %v4704, %v4933
        %v4971 = vadd.f32 %v4705, %v4937
        %v4972 = vadd.f32 %v4706, %v4939
        %v4973 = vld [vmem:[%s312 + $0xa] sm:$0xff]
        %v4974 = vld [vmem:[%s312 + $0x12] sm:$0xff]
        %v4975 = vld [vmem:[%s312 + $0x2a] sm:$0xff]
        %v4976 = vld [vmem:[%s312 + $0x32] sm:$0xff]
        %v4977 = vld [vmem:[%s312 + $0x4a] sm:$0xff]
        %v4978 = vld [vmem:[%s312 + $0x52] sm:$0xff]
        %v4979 = vld [vmem:[%s312 + $0x6a] sm:$0xff]
        %v4980 = vld [vmem:[%s312 + $0x72] sm:$0xff]
        %v4981 = vld [vmem:[%s312 + $0x8a] sm:$0xff]
        %v4982 = vld [vmem:[%s312 + $0x92] sm:$0xff]
        %v4983 = vld [vmem:[%s312 + $0xaa] sm:$0xff]
        %v4984 = vld [vmem:[%s312 + $0xb2] sm:$0xff]
        %v4985 = vld [vmem:[%s312 + $0xca] sm:$0xff]
        %v4986 = vld [vmem:[%s312 + $0xd2] sm:$0xff]
        %v4987 = vld [vmem:[%s312 + $0xea] sm:$0xff]
        %v4988 = vld [vmem:[%s312 + $0xf2] sm:$0xff]
        %s4989 = scalar_lea.vmem %s1, 960
        %v4990 = vld [vmem:[%s4989] sm:$0xff]
        %v4991 = vld [vmem:[%s4989 + $0x8] sm:$0xff]
        %v4992 = vld [vmem:[%s4989 + $0x10] sm:$0xff]
        %v4993 = vld [vmem:[%s4989 + $0x18] sm:$0xff]
        %v4994 = vld [vmem:[%s4989 + $0x20] sm:$0xff]
        %v4995 = vld [vmem:[%s4989 + $0x28] sm:$0xff]
        %v4996 = vld [vmem:[%s4989 + $0x30] sm:$0xff]
        %v4997 = vld [vmem:[%s4989 + $0x38] sm:$0xff]
        %v4999 = vsel %vm337, %v4973, 0
        %v5002 = vsel %vm337, %v4974, 0
        %v5005 = vsel %vm337, %v4975, 0
        %v5008 = vsel %vm337, %v4976, 0
        %v5011 = vsel %vm337, %v4977, 0
        %v5014 = vsel %vm337, %v4978, 0
        %v5017 = vsel %vm337, %v4979, 0
        %v5020 = vsel %vm337, %v4980, 0
        %v5023 = vsel %vm337, %v4981, 0
        %v5026 = vsel %vm337, %v4982, 0
        %v5029 = vsel %vm337, %v4983, 0
        %v5032 = vsel %vm337, %v4984, 0
        %v5035 = vsel %vm337, %v4985, 0
        %v5038 = vsel %vm337, %v4986, 0
        %v5041 = vsel %vm337, %v4987, 0
        %v5044 = vsel %vm337, %v4988, 0
        %5046 = vmatprep.subr.mxu0 %v4991
        %5047 = vmatpush1.msra.mxu0 %v4990
        %5048 = vmatprep.subr.mxu0 %v4993
        %5049 = vmatpush1.msra.mxu0 %v4992
        %5050 = vmatprep.subr.mxu0 %v4995
        %5051 = vmatpush1.msra.mxu0 %v4994
        %5052 = vmatprep.subr.mxu0 %v4997
        %5053 = vmatpush1.msra.mxu0 %v4996
        %5054 = vmatprep.subr.mxu0 0.0
        %5055 = vmatpush1.msra.mxu0 0.0
        %5056 = vmatprep.subr.mxu0 0.0
        %5057 = vmatpush1.msra.mxu0 0.0
        %5058 = vmatprep.subr.mxu0 0.0
        %5059 = vmatpush1.msra.mxu0 0.0
        %5060 = vmatprep.subr.mxu0 0.0
        %5061 = vmatpush1.msra.mxu0 0.0
        %5062 = vmatprep.subr.mxu0 0.0
        %5063 = vmatpush1.msra.mxu0 0.0
        %5064 = vmatprep.subr.mxu0 0.0
        %5065 = vmatpush1.msra.mxu0 0.0
        %5066 = vmatprep.subr.mxu0 0.0
        %5067 = vmatpush1.msra.mxu0 0.0
        %5068 = vmatprep.subr.mxu0 0.0
        %5069 = vmatpush1.msra.mxu0 0.0
        %5070 = vmatprep.subr.mxu0 0.0
        %5071 = vmatpush1.msra.mxu0 0.0
        %5072 = vmatprep.subr.mxu0 0.0
        %5073 = vmatpush1.msra.mxu0 0.0
        %5074 = vmatprep.subr.mxu0 0.0
        %5075 = vmatpush1.msra.mxu0 0.0
        %5076 = vmatprep.subr.mxu0 0.0
        %5077 = vmatpush1.msra.mxu0 0.0
        %5078 = vmatprep.subr.mxu0 0.0
        %5079 = vmatpush1.msra.mxu0 0.0
        %5080 = vmatprep.subr.mxu0 0.0
        %5081 = vmatpush1.msra.mxu0 0.0
        %5082 = vmatprep.subr.mxu0 0.0
        %5083 = vmatpush1.msra.mxu0 0.0
        %5084 = vmatprep.subr.mxu0 0.0
        %5085 = vmatpush1.msra.mxu0 0.0
        %5086 = vmatprep.subr.mxu0 0.0
        %5087 = vmatpush1.msra.mxu0 0.0
        %5088 = vmatprep.subr.mxu0 0.0
        %5089 = vmatpush1.msra.mxu0 0.0
        %5090 = vmatprep.subr.mxu0 0.0
        %5091 = vmatpush1.msra.mxu0 0.0
        %5092 = vmatprep.subr.mxu0 0.0
        %5093 = vmatpush1.msra.mxu0 0.0
        %5094 = vmatprep.subr.mxu0 0.0
        %5095 = vmatpush1.msra.mxu0 0.0
        %5096 = vmatprep.subr.mxu0 0.0
        %5097 = vmatpush1.msra.mxu0 0.0
        %5098 = vmatprep.subr.mxu0 0.0
        %5099 = vmatpush1.msra.mxu0 0.0
        %5100 = vmatprep.subr.mxu0 0.0
        %5101 = vmatpush1.msra.mxu0 0.0
        %5102 = vmatprep.subr.mxu0 0.0
        %5103 = vmatpush1.msra.mxu0 0.0
        %5104 = vmatprep.subr.mxu0 0.0
        %5105 = vmatpush1.msra.mxu0 0.0
        %5106 = vmatprep.subr.mxu0 0.0
        %5107 = vmatpush1.msra.mxu0 0.0
        %5108 = vmatprep.subr.mxu0 0.0
        %5109 = vmatpush1.msra.mxu0 0.0
        %5110 = vmatprep.mubr.f32.mxu0 0.0
        %5111 = vmatmul.mubr.f32.gmra.mrb[0].mxu0 %v4999
        %v5112 = vpop.f32.mrb[0].mxu0
        %v5113 = vadd.f32 0.0, %v5112
        %v5114 = vpop.f32.mrb[0].mxu0
        %v5115 = vadd.f32 0.0, %v5114
        %5116 = vmatprep.mubr.f32.mxu0 0.0
        %5117 = vmatmul.mubr.f32.gmra.mrb[0].mxu0 %v5002
        %v5118 = vpop.f32.mrb[0].mxu0
        %v5119 = vadd.f32 0.0, %v5118
        %v5120 = vpop.f32.mrb[0].mxu0
        %v5121 = vadd.f32 0.0, %v5120
        %5122 = vmatprep.mubr.f32.mxu0 0.0
        %5123 = vmatmul.mubr.f32.gmra.mrb[0].mxu0 %v5005
        %v5124 = vpop.f32.mrb[0].mxu0
        %v5125 = vadd.f32 0.0, %v5124
        %v5126 = vpop.f32.mrb[0].mxu0
        %v5127 = vadd.f32 0.0, %v5126
        %5128 = vmatprep.mubr.f32.mxu0 0.0
        %5129 = vmatmul.mubr.f32.gmra.mrb[0].mxu0 %v5008
        %v5130 = vpop.f32.mrb[0].mxu0
        %v5131 = vadd.f32 0.0, %v5130
        %v5132 = vpop.f32.mrb[0].mxu0
        %v5133 = vadd.f32 0.0, %v5132
        %5134 = vmatprep.mubr.f32.mxu0 0.0
        %5135 = vmatmul.mubr.f32.gmra.mrb[0].mxu0 %v5011
        %v5136 = vpop.f32.mrb[0].mxu0
        %v5137 = vadd.f32 0.0, %v5136
        %v5138 = vpop.f32.mrb[0].mxu0
        %v5139 = vadd.f32 0.0, %v5138
        %5140 = vmatprep.mubr.f32.mxu0 0.0
        %5141 = vmatmul.mubr.f32.gmra.mrb[0].mxu0 %v5014
        %v5142 = vpop.f32.mrb[0].mxu0
        %v5143 = vadd.f32 0.0, %v5142
        %v5144 = vpop.f32.mrb[0].mxu0
        %v5145 = vadd.f32 0.0, %v5144
        %5146 = vmatprep.mubr.f32.mxu0 0.0
        %5147 = vmatmul.mubr.f32.gmra.mrb[0].mxu0 %v5017
        %v5148 = vpop.f32.mrb[0].mxu0
        %v5149 = vadd.f32 0.0, %v5148
        %v5150 = vpop.f32.mrb[0].mxu0
        %v5151 = vadd.f32 0.0, %v5150
        %5152 = vmatprep.mubr.f32.mxu0 0.0
        %5153 = vmatmul.mubr.f32.gmra.mrb[0].mxu0 %v5020
        %v5154 = vpop.f32.mrb[0].mxu0
        %v5155 = vadd.f32 0.0, %v5154
        %v5156 = vpop.f32.mrb[0].mxu0
        %v5157 = vadd.f32 0.0, %v5156
        %5158 = vmatprep.mubr.f32.mxu0 0.0
        %5159 = vmatmul.mubr.f32.gmra.mrb[0].mxu0 %v5023
        %v5160 = vpop.f32.mrb[0].mxu0
        %v5161 = vadd.f32 0.0, %v5160
        %v5162 = vpop.f32.mrb[0].mxu0
        %v5163 = vadd.f32 0.0, %v5162
        %5164 = vmatprep.mubr.f32.mxu0 0.0
        %5165 = vmatmul.mubr.f32.gmra.mrb[0].mxu0 %v5026
        %v5166 = vpop.f32.mrb[0].mxu0
        %v5167 = vadd.f32 0.0, %v5166
        %v5168 = vpop.f32.mrb[0].mxu0
        %v5169 = vadd.f32 0.0, %v5168
        %5170 = vmatprep.mubr.f32.mxu0 0.0
        %5171 = vmatmul.mubr.f32.gmra.mrb[0].mxu0 %v5029
        %v5172 = vpop.f32.mrb[0].mxu0
        %v5173 = vadd.f32 0.0, %v5172
        %v5174 = vpop.f32.mrb[0].mxu0
        %v5175 = vadd.f32 0.0, %v5174
        %5176 = vmatprep.mubr.f32.mxu0 0.0
        %5177 = vmatmul.mubr.f32.gmra.mrb[0].mxu0 %v5032
        %v5178 = vpop.f32.mrb[0].mxu0
        %v5179 = vadd.f32 0.0, %v5178
        %v5180 = vpop.f32.mrb[0].mxu0
        %v5181 = vadd.f32 0.0, %v5180
        %5182 = vmatprep.mubr.f32.mxu0 0.0
        %5183 = vmatmul.mubr.f32.gmra.mrb[0].mxu0 %v5035
        %v5184 = vpop.f32.mrb[0].mxu0
        %v5185 = vadd.f32 0.0, %v5184
        %v5186 = vpop.f32.mrb[0].mxu0
        %v5187 = vadd.f32 0.0, %v5186
        %5188 = vmatprep.mubr.f32.mxu0 0.0
        %5189 = vmatmul.mubr.f32.gmra.mrb[0].mxu0 %v5038
        %v5190 = vpop.f32.mrb[0].mxu0
        %v5191 = vadd.f32 0.0, %v5190
        %v5192 = vpop.f32.mrb[0].mxu0
        %v5193 = vadd.f32 0.0, %v5192
        %5194 = vmatprep.mubr.f32.mxu0 0.0
        %5195 = vmatmul.mubr.f32.gmra.mrb[0].mxu0 %v5041
        %v5196 = vpop.f32.mrb[0].mxu0
        %v5197 = vadd.f32 0.0, %v5196
        %v5198 = vpop.f32.mrb[0].mxu0
        %v5199 = vadd.f32 0.0, %v5198
        %5200 = vmatprep.mubr.f32.mxu0 0.0
        %5201 = vmatmul.mubr.f32.gmra.mrb[0].mxu0 %v5044
        %v5202 = vpop.f32.mrb[0].mxu0
        %v5203 = vadd.f32 0.0, %v5202
        %v5204 = vpop.f32.mrb[0].mxu0
        %v5205 = vadd.f32 0.0, %v5204
        %5206 = vdwg.mxu0
        %v5207 = vadd.f32 %v4941, %v5113
        %v5208 = vadd.f32 %v4942, %v5115
        %v5209 = vadd.f32 %v4943, %v5119
        %v5210 = vadd.f32 %v4944, %v5121
        %v5211 = vadd.f32 %v4945, %v5125
        %v5212 = vadd.f32 %v4946, %v5127
        %v5213 = vadd.f32 %v4947, %v5131
        %v5214 = vadd.f32 %v4948, %v5133
        %v5215 = vadd.f32 %v4949, %v5137
        %v5216 = vadd.f32 %v4950, %v5139
        %v5217 = vadd.f32 %v4951, %v5143
        %v5218 = vadd.f32 %v4952, %v5145
        %v5219 = vadd.f32 %v4953, %v5149
        %v5220 = vadd.f32 %v4954, %v5151
        %v5221 = vadd.f32 %v4955, %v5155
        %v5222 = vadd.f32 %v4956, %v5157
        %v5223 = vadd.f32 %v4957, %v5161
        %v5224 = vadd.f32 %v4958, %v5163
        %v5225 = vadd.f32 %v4959, %v5167
        %v5226 = vadd.f32 %v4960, %v5169
        %v5227 = vadd.f32 %v4961, %v5173
        %v5228 = vadd.f32 %v4962, %v5175
        %v5229 = vadd.f32 %v4963, %v5179
        %v5230 = vadd.f32 %v4964, %v5181
        %v5231 = vadd.f32 %v4965, %v5185
        %v5232 = vadd.f32 %v4966, %v5187
        %v5233 = vadd.f32 %v4967, %v5191
        %v5234 = vadd.f32 %v4968, %v5193
        %v5235 = vadd.f32 %v4969, %v5197
        %v5236 = vadd.f32 %v4970, %v5199
        %v5237 = vadd.f32 %v4971, %v5203
        %v5238 = vadd.f32 %v4972, %v5205
        %s5239 = sadd.s32 %s309, 10
        %s5240 = smul.u32 %s5239, 32
        %s5241 = scalar_lea.vmem %s303, %s5240
        %v5242 = vld [vmem:[%s5241 + $0x2] sm:$0xff]
        %v5243 = vld [vmem:[%s5241 + $0xa] sm:$0xff]
        %v5244 = vld [vmem:[%s5241 + $0x22] sm:$0xff]
        %v5245 = vld [vmem:[%s5241 + $0x2a] sm:$0xff]
        %v5246 = vld [vmem:[%s5241 + $0x42] sm:$0xff]
        %v5247 = vld [vmem:[%s5241 + $0x4a] sm:$0xff]
        %v5248 = vld [vmem:[%s5241 + $0x62] sm:$0xff]
        %v5249 = vld [vmem:[%s5241 + $0x6a] sm:$0xff]
        %v5250 = vld [vmem:[%s5241 + $0x82] sm:$0xff]
        %v5251 = vld [vmem:[%s5241 + $0x8a] sm:$0xff]
        %v5252 = vld [vmem:[%s5241 + $0xa2] sm:$0xff]
        %v5253 = vld [vmem:[%s5241 + $0xaa] sm:$0xff]
        %v5254 = vld [vmem:[%s5241 + $0xc2] sm:$0xff]
        %v5255 = vld [vmem:[%s5241 + $0xca] sm:$0xff]
        %v5256 = vld [vmem:[%s5241 + $0xe2] sm:$0xff]
        %v5257 = vld [vmem:[%s5241 + $0xea] sm:$0xff]
        %s5258 = scalar_lea.vmem %s1, 1024
        %v5259 = vld [vmem:[%s5258] sm:$0xff]
        %v5260 = vld [vmem:[%s5258 + $0x8] sm:$0xff]
        %v5261 = vld [vmem:[%s5258 + $0x10] sm:$0xff]
        %v5262 = vld [vmem:[%s5258 + $0x18] sm:$0xff]
        %v5263 = vld [vmem:[%s5258 + $0x20] sm:$0xff]
        %v5264 = vld [vmem:[%s5258 + $0x28] sm:$0xff]
        %v5265 = vld [vmem:[%s5258 + $0x30] sm:$0xff]
        %v5266 = vld [vmem:[%s5258 + $0x38] sm:$0xff]
        %v5268 = vsel %vm337, %v5242, 0
        %v5271 = vsel %vm337, %v5243, 0
        %v5274 = vsel %vm337, %v5244, 0
        %v5277 = vsel %vm337, %v5245, 0
        %v5280 = vsel %vm337, %v5246, 0
        %v5283 = vsel %vm337, %v5247, 0
        %v5286 = vsel %vm337, %v5248, 0
        %v5289 = vsel %vm337, %v5249, 0
        %v5292 = vsel %vm337, %v5250, 0
        %v5295 = vsel %vm337, %v5251, 0
        %v5298 = vsel %vm337, %v5252, 0
        %v5301 = vsel %vm337, %v5253, 0
        %v5304 = vsel %vm337, %v5254, 0
        %v5307 = vsel %vm337, %v5255, 0
        %v5310 = vsel %vm337, %v5256, 0
        %v5313 = vsel %vm337, %v5257, 0
        %5315 = vmatprep.subr.mxu0 %v5260
        %5316 = vmatpush1.msra.mxu0 %v5259
        %5317 = vmatprep.subr.mxu0 %v5262
        %5318 = vmatpush1.msra.mxu0 %v5261
        %5319 = vmatprep.subr.mxu0 %v5264
        %5320 = vmatpush1.msra.mxu0 %v5263
        %5321 = vmatprep.subr.mxu0 %v5266
        %5322 = vmatpush1.msra.mxu0 %v5265
        %5323 = vmatprep.subr.mxu0 0.0
        %5324 = vmatpush1.msra.mxu0 0.0
        %5325 = vmatprep.subr.mxu0 0.0
        %5326 = vmatpush1.msra.mxu0 0.0
        %5327 = vmatprep.subr.mxu0 0.0
        %5328 = vmatpush1.msra.mxu0 0.0
        %5329 = vmatprep.subr.mxu0 0.0
        %5330 = vmatpush1.msra.mxu0 0.0
        %5331 = vmatprep.subr.mxu0 0.0
        %5332 = vmatpush1.msra.mxu0 0.0
        %5333 = vmatprep.subr.mxu0 0.0
        %5334 = vmatpush1.msra.mxu0 0.0
        %5335 = vmatprep.subr.mxu0 0.0
        %5336 = vmatpush1.msra.mxu0 0.0
        %5337 = vmatprep.subr.mxu0 0.0
        %5338 = vmatpush1.msra.mxu0 0.0
        %5339 = vmatprep.subr.mxu0 0.0
        %5340 = vmatpush1.msra.mxu0 0.0
        %5341 = vmatprep.subr.mxu0 0.0
        %5342 = vmatpush1.msra.mxu0 0.0
        %5343 = vmatprep.subr.mxu0 0.0
        %5344 = vmatpush1.msra.mxu0 0.0
        %5345 = vmatprep.subr.mxu0 0.0
        %5346 = vmatpush1.msra.mxu0 0.0
        %5347 = vmatprep.subr.mxu0 0.0
        %5348 = vmatpush1.msra.mxu0 0.0
        %5349 = vmatprep.subr.mxu0 0.0
        %5350 = vmatpush1.msra.mxu0 0.0
        %5351 = vmatprep.subr.mxu0 0.0
        %5352 = vmatpush1.msra.mxu0 0.0
        %5353 = vmatprep.subr.mxu0 0.0
        %5354 = vmatpush1.msra.mxu0 0.0
        %5355 = vmatprep.subr.mxu0 0.0
        %5356 = vmatpush1.msra.mxu0 0.0
        %5357 = vmatprep.subr.mxu0 0.0
        %5358 = vmatpush1.msra.mxu0 0.0
        %5359 = vmatprep.subr.mxu0 0.0
        %5360 = vmatpush1.msra.mxu0 0.0
        %5361 = vmatprep.subr.mxu0 0.0
        %5362 = vmatpush1.msra.mxu0 0.0
        %5363 = vmatprep.subr.mxu0 0.0
        %5364 = vmatpush1.msra.mxu0 0.0
        %5365 = vmatprep.subr.mxu0 0.0
        %5366 = vmatpush1.msra.mxu0 0.0
        %5367 = vmatprep.subr.mxu0 0.0
        %5368 = vmatpush1.msra.mxu0 0.0
        %5369 = vmatprep.subr.mxu0 0.0
        %5370 = vmatpush1.msra.mxu0 0.0
        %5371 = vmatprep.subr.mxu0 0.0
        %5372 = vmatpush1.msra.mxu0 0.0
        %5373 = vmatprep.subr.mxu0 0.0
        %5374 = vmatpush1.msra.mxu0 0.0
        %5375 = vmatprep.subr.mxu0 0.0
        %5376 = vmatpush1.msra.mxu0 0.0
        %5377 = vmatprep.subr.mxu0 0.0
        %5378 = vmatpush1.msra.mxu0 0.0
        %5379 = vmatprep.mubr.f32.mxu0 0.0
        %5380 = vmatmul.mubr.f32.gmra.mrb[0].mxu0 %v5268
        %v5381 = vpop.f32.mrb[0].mxu0
        %v5382 = vadd.f32 0.0, %v5381
        %v5383 = vpop.f32.mrb[0].mxu0
        %v5384 = vadd.f32 0.0, %v5383
        %5385 = vmatprep.mubr.f32.mxu0 0.0
        %5386 = vmatmul.mubr.f32.gmra.mrb[0].mxu0 %v5271
        %v5387 = vpop.f32.mrb[0].mxu0
        %v5388 = vadd.f32 0.0, %v5387
        %v5389 = vpop.f32.mrb[0].mxu0
        %v5390 = vadd.f32 0.0, %v5389
        %5391 = vmatprep.mubr.f32.mxu0 0.0
        %5392 = vmatmul.mubr.f32.gmra.mrb[0].mxu0 %v5274
        %v5393 = vpop.f32.mrb[0].mxu0
        %v5394 = vadd.f32 0.0, %v5393
        %v5395 = vpop.f32.mrb[0].mxu0
        %v5396 = vadd.f32 0.0, %v5395
        %5397 = vmatprep.mubr.f32.mxu0 0.0
        %5398 = vmatmul.mubr.f32.gmra.mrb[0].mxu0 %v5277
        %v5399 = vpop.f32.mrb[0].mxu0
        %v5400 = vadd.f32 0.0, %v5399
        %v5401 = vpop.f32.mrb[0].mxu0
        %v5402 = vadd.f32 0.0, %v5401
        %5403 = vmatprep.mubr.f32.mxu0 0.0
        %5404 = vmatmul.mubr.f32.gmra.mrb[0].mxu0 %v5280
        %v5405 = vpop.f32.mrb[0].mxu0
        %v5406 = vadd.f32 0.0, %v5405
        %v5407 = vpop.f32.mrb[0].mxu0
        %v5408 = vadd.f32 0.0, %v5407
        %5409 = vmatprep.mubr.f32.mxu0 0.0
        %5410 = vmatmul.mubr.f32.gmra.mrb[0].mxu0 %v5283
        %v5411 = vpop.f32.mrb[0].mxu0
        %v5412 = vadd.f32 0.0, %v5411
        %v5413 = vpop.f32.mrb[0].mxu0
        %v5414 = vadd.f32 0.0, %v5413
        %5415 = vmatprep.mubr.f32.mxu0 0.0
        %5416 = vmatmul.mubr.f32.gmra.mrb[0].mxu0 %v5286
        %v5417 = vpop.f32.mrb[0].mxu0
        %v5418 = vadd.f32 0.0, %v5417
        %v5419 = vpop.f32.mrb[0].mxu0
        %v5420 = vadd.f32 0.0, %v5419
        %5421 = vmatprep.mubr.f32.mxu0 0.0
        %5422 = vmatmul.mubr.f32.gmra.mrb[0].mxu0 %v5289
        %v5423 = vpop.f32.mrb[0].mxu0
        %v5424 = vadd.f32 0.0, %v5423
        %v5425 = vpop.f32.mrb[0].mxu0
        %v5426 = vadd.f32 0.0, %v5425
        %5427 = vmatprep.mubr.f32.mxu0 0.0
        %5428 = vmatmul.mubr.f32.gmra.mrb[0].mxu0 %v5292
        %v5429 = vpop.f32.mrb[0].mxu0
        %v5430 = vadd.f32 0.0, %v5429
        %v5431 = vpop.f32.mrb[0].mxu0
        %v5432 = vadd.f32 0.0, %v5431
        %5433 = vmatprep.mubr.f32.mxu0 0.0
        %5434 = vmatmul.mubr.f32.gmra.mrb[0].mxu0 %v5295
        %v5435 = vpop.f32.mrb[0].mxu0
        %v5436 = vadd.f32 0.0, %v5435
        %v5437 = vpop.f32.mrb[0].mxu0
        %v5438 = vadd.f32 0.0, %v5437
        %5439 = vmatprep.mubr.f32.mxu0 0.0
        %5440 = vmatmul.mubr.f32.gmra.mrb[0].mxu0 %v5298
        %v5441 = vpop.f32.mrb[0].mxu0
        %v5442 = vadd.f32 0.0, %v5441
        %v5443 = vpop.f32.mrb[0].mxu0
        %v5444 = vadd.f32 0.0, %v5443
        %5445 = vmatprep.mubr.f32.mxu0 0.0
        %5446 = vmatmul.mubr.f32.gmra.mrb[0].mxu0 %v5301
        %v5447 = vpop.f32.mrb[0].mxu0
        %v5448 = vadd.f32 0.0, %v5447
        %v5449 = vpop.f32.mrb[0].mxu0
        %v5450 = vadd.f32 0.0, %v5449
        %5451 = vmatprep.mubr.f32.mxu0 0.0
        %5452 = vmatmul.mubr.f32.gmra.mrb[0].mxu0 %v5304
        %v5453 = vpop.f32.mrb[0].mxu0
        %v5454 = vadd.f32 0.0, %v5453
        %v5455 = vpop.f32.mrb[0].mxu0
        %v5456 = vadd.f32 0.0, %v5455
        %5457 = vmatprep.mubr.f32.mxu0 0.0
        %5458 = vmatmul.mubr.f32.gmra.mrb[0].mxu0 %v5307
        %v5459 = vpop.f32.mrb[0].mxu0
        %v5460 = vadd.f32 0.0, %v5459
        %v5461 = vpop.f32.mrb[0].mxu0
        %v5462 = vadd.f32 0.0, %v5461
        %5463 = vmatprep.mubr.f32.mxu0 0.0
        %5464 = vmatmul.mubr.f32.gmra.mrb[0].mxu0 %v5310
        %v5465 = vpop.f32.mrb[0].mxu0
        %v5466 = vadd.f32 0.0, %v5465
        %v5467 = vpop.f32.mrb[0].mxu0
        %v5468 = vadd.f32 0.0, %v5467
        %5469 = vmatprep.mubr.f32.mxu0 0.0
        %5470 = vmatmul.mubr.f32.gmra.mrb[0].mxu0 %v5313
        %v5471 = vpop.f32.mrb[0].mxu0
        %v5472 = vadd.f32 0.0, %v5471
        %v5473 = vpop.f32.mrb[0].mxu0
        %v5474 = vadd.f32 0.0, %v5473
        %5475 = vdwg.mxu0
        %v5476 = vadd.f32 %v5207, %v5382
        %v5477 = vadd.f32 %v5208, %v5384
        %v5478 = vadd.f32 %v5209, %v5388
        %v5479 = vadd.f32 %v5210, %v5390
        %v5480 = vadd.f32 %v5211, %v5394
        %v5481 = vadd.f32 %v5212, %v5396
        %v5482 = vadd.f32 %v5213, %v5400
        %v5483 = vadd.f32 %v5214, %v5402
        %v5484 = vadd.f32 %v5215, %v5406
        %v5485 = vadd.f32 %v5216, %v5408
        %v5486 = vadd.f32 %v5217, %v5412
        %v5487 = vadd.f32 %v5218, %v5414
        %v5488 = vadd.f32 %v5219, %v5418
        %v5489 = vadd.f32 %v5220, %v5420
        %v5490 = vadd.f32 %v5221, %v5424
        %v5491 = vadd.f32 %v5222, %v5426
        %v5492 = vadd.f32 %v5223, %v5430
        %v5493 = vadd.f32 %v5224, %v5432
        %v5494 = vadd.f32 %v5225, %v5436
        %v5495 = vadd.f32 %v5226, %v5438
        %v5496 = vadd.f32 %v5227, %v5442
        %v5497 = vadd.f32 %v5228, %v5444
        %v5498 = vadd.f32 %v5229, %v5448
        %v5499 = vadd.f32 %v5230, %v5450
        %v5500 = vadd.f32 %v5231, %v5454
        %v5501 = vadd.f32 %v5232, %v5456
        %v5502 = vadd.f32 %v5233, %v5460
        %v5503 = vadd.f32 %v5234, %v5462
        %v5504 = vadd.f32 %v5235, %v5466
        %v5505 = vadd.f32 %v5236, %v5468
        %v5506 = vadd.f32 %v5237, %v5472
        %v5507 = vadd.f32 %v5238, %v5474
        %v5508 = vld [vmem:[%s5241 + $0x6] sm:$0xff]
        %v5509 = vld [vmem:[%s5241 + $0xe] sm:$0xff]
        %v5510 = vld [vmem:[%s5241 + $0x26] sm:$0xff]
        %v5511 = vld [vmem:[%s5241 + $0x2e] sm:$0xff]
        %v5512 = vld [vmem:[%s5241 + $0x46] sm:$0xff]
        %v5513 = vld [vmem:[%s5241 + $0x4e] sm:$0xff]
        %v5514 = vld [vmem:[%s5241 + $0x66] sm:$0xff]
        %v5515 = vld [vmem:[%s5241 + $0x6e] sm:$0xff]
        %v5516 = vld [vmem:[%s5241 + $0x86] sm:$0xff]
        %v5517 = vld [vmem:[%s5241 + $0x8e] sm:$0xff]
        %v5518 = vld [vmem:[%s5241 + $0xa6] sm:$0xff]
        %v5519 = vld [vmem:[%s5241 + $0xae] sm:$0xff]
        %v5520 = vld [vmem:[%s5241 + $0xc6] sm:$0xff]
        %v5521 = vld [vmem:[%s5241 + $0xce] sm:$0xff]
        %v5522 = vld [vmem:[%s5241 + $0xe6] sm:$0xff]
        %v5523 = vld [vmem:[%s5241 + $0xee] sm:$0xff]
        %s5524 = scalar_lea.vmem %s1, 1088
        %v5525 = vld [vmem:[%s5524] sm:$0xff]
        %v5526 = vld [vmem:[%s5524 + $0x8] sm:$0xff]
        %v5527 = vld [vmem:[%s5524 + $0x10] sm:$0xff]
        %v5528 = vld [vmem:[%s5524 + $0x18] sm:$0xff]
        %v5529 = vld [vmem:[%s5524 + $0x20] sm:$0xff]
        %v5530 = vld [vmem:[%s5524 + $0x28] sm:$0xff]
        %v5531 = vld [vmem:[%s5524 + $0x30] sm:$0xff]
        %v5532 = vld [vmem:[%s5524 + $0x38] sm:$0xff]
        %v5534 = vsel %vm337, %v5508, 0
        %v5537 = vsel %vm337, %v5509, 0
        %v5540 = vsel %vm337, %v5510, 0
        %v5543 = vsel %vm337, %v5511, 0
        %v5546 = vsel %vm337, %v5512, 0
        %v5549 = vsel %vm337, %v5513, 0
        %v5552 = vsel %vm337, %v5514, 0
        %v5555 = vsel %vm337, %v5515, 0
        %v5558 = vsel %vm337, %v5516, 0
        %v5561 = vsel %vm337, %v5517, 0
        %v5564 = vsel %vm337, %v5518, 0
        %v5567 = vsel %vm337, %v5519, 0
        %v5570 = vsel %vm337, %v5520, 0
        %v5573 = vsel %vm337, %v5521, 0
        %v5576 = vsel %vm337, %v5522, 0
        %v5579 = vsel %vm337, %v5523, 0
        %5581 = vmatprep.subr.mxu0 %v5526
        %5582 = vmatpush1.msra.mxu0 %v5525
        %5583 = vmatprep.subr.mxu0 %v5528
        %5584 = vmatpush1.msra.mxu0 %v5527
        %5585 = vmatprep.subr.mxu0 %v5530
        %5586 = vmatpush1.msra.mxu0 %v5529
        %5587 = vmatprep.subr.mxu0 %v5532
        %5588 = vmatpush1.msra.mxu0 %v5531
        %5589 = vmatprep.subr.mxu0 0.0
        %5590 = vmatpush1.msra.mxu0 0.0
        %5591 = vmatprep.subr.mxu0 0.0
        %5592 = vmatpush1.msra.mxu0 0.0
        %5593 = vmatprep.subr.mxu0 0.0
        %5594 = vmatpush1.msra.mxu0 0.0
        %5595 = vmatprep.subr.mxu0 0.0
        %5596 = vmatpush1.msra.mxu0 0.0
        %5597 = vmatprep.subr.mxu0 0.0
        %5598 = vmatpush1.msra.mxu0 0.0
        %5599 = vmatprep.subr.mxu0 0.0
        %5600 = vmatpush1.msra.mxu0 0.0
        %5601 = vmatprep.subr.mxu0 0.0
        %5602 = vmatpush1.msra.mxu0 0.0
        %5603 = vmatprep.subr.mxu0 0.0
        %5604 = vmatpush1.msra.mxu0 0.0
        %5605 = vmatprep.subr.mxu0 0.0
        %5606 = vmatpush1.msra.mxu0 0.0
        %5607 = vmatprep.subr.mxu0 0.0
        %5608 = vmatpush1.msra.mxu0 0.0
        %5609 = vmatprep.subr.mxu0 0.0
        %5610 = vmatpush1.msra.mxu0 0.0
        %5611 = vmatprep.subr.mxu0 0.0
        %5612 = vmatpush1.msra.mxu0 0.0
        %5613 = vmatprep.subr.mxu0 0.0
        %5614 = vmatpush1.msra.mxu0 0.0
        %5615 = vmatprep.subr.mxu0 0.0
        %5616 = vmatpush1.msra.mxu0 0.0
        %5617 = vmatprep.subr.mxu0 0.0
        %5618 = vmatpush1.msra.mxu0 0.0
        %5619 = vmatprep.subr.mxu0 0.0
        %5620 = vmatpush1.msra.mxu0 0.0
        %5621 = vmatprep.subr.mxu0 0.0
        %5622 = vmatpush1.msra.mxu0 0.0
        %5623 = vmatprep.subr.mxu0 0.0
        %5624 = vmatpush1.msra.mxu0 0.0
        %5625 = vmatprep.subr.mxu0 0.0
        %5626 = vmatpush1.msra.mxu0 0.0
        %5627 = vmatprep.subr.mxu0 0.0
        %5628 = vmatpush1.msra.mxu0 0.0
        %5629 = vmatprep.subr.mxu0 0.0
        %5630 = vmatpush1.msra.mxu0 0.0
        %5631 = vmatprep.subr.mxu0 0.0
        %5632 = vmatpush1.msra.mxu0 0.0
        %5633 = vmatprep.subr.mxu0 0.0
        %5634 = vmatpush1.msra.mxu0 0.0
        %5635 = vmatprep.subr.mxu0 0.0
        %5636 = vmatpush1.msra.mxu0 0.0
        %5637 = vmatprep.subr.mxu0 0.0
        %5638 = vmatpush1.msra.mxu0 0.0
        %5639 = vmatprep.subr.mxu0 0.0
        %5640 = vmatpush1.msra.mxu0 0.0
        %5641 = vmatprep.subr.mxu0 0.0
        %5642 = vmatpush1.msra.mxu0 0.0
        %5643 = vmatprep.subr.mxu0 0.0
        %5644 = vmatpush1.msra.mxu0 0.0
        %5645 = vmatprep.mubr.f32.mxu0 0.0
        %5646 = vmatmul.mubr.f32.gmra.mrb[0].mxu0 %v5534
        %v5647 = vpop.f32.mrb[0].mxu0
        %v5648 = vadd.f32 0.0, %v5647
        %v5649 = vpop.f32.mrb[0].mxu0
        %v5650 = vadd.f32 0.0, %v5649
        %5651 = vmatprep.mubr.f32.mxu0 0.0
        %5652 = vmatmul.mubr.f32.gmra.mrb[0].mxu0 %v5537
        %v5653 = vpop.f32.mrb[0].mxu0
        %v5654 = vadd.f32 0.0, %v5653
        %v5655 = vpop.f32.mrb[0].mxu0
        %v5656 = vadd.f32 0.0, %v5655
        %5657 = vmatprep.mubr.f32.mxu0 0.0
        %5658 = vmatmul.mubr.f32.gmra.mrb[0].mxu0 %v5540
        %v5659 = vpop.f32.mrb[0].mxu0
        %v5660 = vadd.f32 0.0, %v5659
        %v5661 = vpop.f32.mrb[0].mxu0
        %v5662 = vadd.f32 0.0, %v5661
        %5663 = vmatprep.mubr.f32.mxu0 0.0
        %5664 = vmatmul.mubr.f32.gmra.mrb[0].mxu0 %v5543
        %v5665 = vpop.f32.mrb[0].mxu0
        %v5666 = vadd.f32 0.0, %v5665
        %v5667 = vpop.f32.mrb[0].mxu0
        %v5668 = vadd.f32 0.0, %v5667
        %5669 = vmatprep.mubr.f32.mxu0 0.0
        %5670 = vmatmul.mubr.f32.gmra.mrb[0].mxu0 %v5546
        %v5671 = vpop.f32.mrb[0].mxu0
        %v5672 = vadd.f32 0.0, %v5671
        %v5673 = vpop.f32.mrb[0].mxu0
        %v5674 = vadd.f32 0.0, %v5673
        %5675 = vmatprep.mubr.f32.mxu0 0.0
        %5676 = vmatmul.mubr.f32.gmra.mrb[0].mxu0 %v5549
        %v5677 = vpop.f32.mrb[0].mxu0
        %v5678 = vadd.f32 0.0, %v5677
        %v5679 = vpop.f32.mrb[0].mxu0
        %v5680 = vadd.f32 0.0, %v5679
        %5681 = vmatprep.mubr.f32.mxu0 0.0
        %5682 = vmatmul.mubr.f32.gmra.mrb[0].mxu0 %v5552
        %v5683 = vpop.f32.mrb[0].mxu0
        %v5684 = vadd.f32 0.0, %v5683
        %v5685 = vpop.f32.mrb[0].mxu0
        %v5686 = vadd.f32 0.0, %v5685
        %5687 = vmatprep.mubr.f32.mxu0 0.0
        %5688 = vmatmul.mubr.f32.gmra.mrb[0].mxu0 %v5555
        %v5689 = vpop.f32.mrb[0].mxu0
        %v5690 = vadd.f32 0.0, %v5689
        %v5691 = vpop.f32.mrb[0].mxu0
        %v5692 = vadd.f32 0.0, %v5691
        %5693 = vmatprep.mubr.f32.mxu0 0.0
        %5694 = vmatmul.mubr.f32.gmra.mrb[0].mxu0 %v5558
        %v5695 = vpop.f32.mrb[0].mxu0
        %v5696 = vadd.f32 0.0, %v5695
        %v5697 = vpop.f32.mrb[0].mxu0
        %v5698 = vadd.f32 0.0, %v5697
        %5699 = vmatprep.mubr.f32.mxu0 0.0
        %5700 = vmatmul.mubr.f32.gmra.mrb[0].mxu0 %v5561
        %v5701 = vpop.f32.mrb[0].mxu0
        %v5702 = vadd.f32 0.0, %v5701
        %v5703 = vpop.f32.mrb[0].mxu0
        %v5704 = vadd.f32 0.0, %v5703
        %5705 = vmatprep.mubr.f32.mxu0 0.0
        %5706 = vmatmul.mubr.f32.gmra.mrb[0].mxu0 %v5564
        %v5707 = vpop.f32.mrb[0].mxu0
        %v5708 = vadd.f32 0.0, %v5707
        %v5709 = vpop.f32.mrb[0].mxu0
        %v5710 = vadd.f32 0.0, %v5709
        %5711 = vmatprep.mubr.f32.mxu0 0.0
        %5712 = vmatmul.mubr.f32.gmra.mrb[0].mxu0 %v5567
        %v5713 = vpop.f32.mrb[0].mxu0
        %v5714 = vadd.f32 0.0, %v5713
        %v5715 = vpop.f32.mrb[0].mxu0
        %v5716 = vadd.f32 0.0, %v5715
        %5717 = vmatprep.mubr.f32.mxu0 0.0
        %5718 = vmatmul.mubr.f32.gmra.mrb[0].mxu0 %v5570
        %v5719 = vpop.f32.mrb[0].mxu0
        %v5720 = vadd.f32 0.0, %v5719
        %v5721 = vpop.f32.mrb[0].mxu0
        %v5722 = vadd.f32 0.0, %v5721
        %5723 = vmatprep.mubr.f32.mxu0 0.0
        %5724 = vmatmul.mubr.f32.gmra.mrb[0].mxu0 %v5573
        %v5725 = vpop.f32.mrb[0].mxu0
        %v5726 = vadd.f32 0.0, %v5725
        %v5727 = vpop.f32.mrb[0].mxu0
        %v5728 = vadd.f32 0.0, %v5727
        %5729 = vmatprep.mubr.f32.mxu0 0.0
        %5730 = vmatmul.mubr.f32.gmra.mrb[0].mxu0 %v5576
        %v5731 = vpop.f32.mrb[0].mxu0
        %v5732 = vadd.f32 0.0, %v5731
        %v5733 = vpop.f32.mrb[0].mxu0
        %v5734 = vadd.f32 0.0, %v5733
        %5735 = vmatprep.mubr.f32.mxu0 0.0
        %5736 = vmatmul.mubr.f32.gmra.mrb[0].mxu0 %v5579
        %v5737 = vpop.f32.mrb[0].mxu0
        %v5738 = vadd.f32 0.0, %v5737
        %v5739 = vpop.f32.mrb[0].mxu0
        %v5740 = vadd.f32 0.0, %v5739
        %5741 = vdwg.mxu0
        %v5742 = vadd.f32 %v5476, %v5648
        %v5743 = vadd.f32 %v5477, %v5650
        %v5744 = vadd.f32 %v5478, %v5654
        %v5745 = vadd.f32 %v5479, %v5656
        %v5746 = vadd.f32 %v5480, %v5660
        %v5747 = vadd.f32 %v5481, %v5662
        %v5748 = vadd.f32 %v5482, %v5666
        %v5749 = vadd.f32 %v5483, %v5668
        %v5750 = vadd.f32 %v5484, %v5672
        %v5751 = vadd.f32 %v5485, %v5674
        %v5752 = vadd.f32 %v5486, %v5678
        %v5753 = vadd.f32 %v5487, %v5680
        %v5754 = vadd.f32 %v5488, %v5684
        %v5755 = vadd.f32 %v5489, %v5686
        %v5756 = vadd.f32 %v5490, %v5690
        %v5757 = vadd.f32 %v5491, %v5692
        %v5758 = vadd.f32 %v5492, %v5696
        %v5759 = vadd.f32 %v5493, %v5698
        %v5760 = vadd.f32 %v5494, %v5702
        %v5761 = vadd.f32 %v5495, %v5704
        %v5762 = vadd.f32 %v5496, %v5708
        %v5763 = vadd.f32 %v5497, %v5710
        %v5764 = vadd.f32 %v5498, %v5714
        %v5765 = vadd.f32 %v5499, %v5716
        %v5766 = vadd.f32 %v5500, %v5720
        %v5767 = vadd.f32 %v5501, %v5722
        %v5768 = vadd.f32 %v5502, %v5726
        %v5769 = vadd.f32 %v5503, %v5728
        %v5770 = vadd.f32 %v5504, %v5732
        %v5771 = vadd.f32 %v5505, %v5734
        %v5772 = vadd.f32 %v5506, %v5738
        %v5773 = vadd.f32 %v5507, %v5740
        %v5774 = vld [vmem:[%s5241 + $0xa] sm:$0xff]
        %v5775 = vld [vmem:[%s5241 + $0x12] sm:$0xff]
        %v5776 = vld [vmem:[%s5241 + $0x2a] sm:$0xff]
        %v5777 = vld [vmem:[%s5241 + $0x32] sm:$0xff]
        %v5778 = vld [vmem:[%s5241 + $0x4a] sm:$0xff]
        %v5779 = vld [vmem:[%s5241 + $0x52] sm:$0xff]
        %v5780 = vld [vmem:[%s5241 + $0x6a] sm:$0xff]
        %v5781 = vld [vmem:[%s5241 + $0x72] sm:$0xff]
        %v5782 = vld [vmem:[%s5241 + $0x8a] sm:$0xff]
        %v5783 = vld [vmem:[%s5241 + $0x92] sm:$0xff]
        %v5784 = vld [vmem:[%s5241 + $0xaa] sm:$0xff]
        %v5785 = vld [vmem:[%s5241 + $0xb2] sm:$0xff]
        %v5786 = vld [vmem:[%s5241 + $0xca] sm:$0xff]
        %v5787 = vld [vmem:[%s5241 + $0xd2] sm:$0xff]
        %v5788 = vld [vmem:[%s5241 + $0xea] sm:$0xff]
        %v5789 = vld [vmem:[%s5241 + $0xf2] sm:$0xff]
        %s5790 = scalar_lea.vmem %s1, 1152
        %v5791 = vld [vmem:[%s5790] sm:$0xff]
        %v5792 = vld [vmem:[%s5790 + $0x8] sm:$0xff]
        %v5793 = vld [vmem:[%s5790 + $0x10] sm:$0xff]
        %v5794 = vld [vmem:[%s5790 + $0x18] sm:$0xff]
        %v5795 = vld [vmem:[%s5790 + $0x20] sm:$0xff]
        %v5796 = vld [vmem:[%s5790 + $0x28] sm:$0xff]
        %v5797 = vld [vmem:[%s5790 + $0x30] sm:$0xff]
        %v5798 = vld [vmem:[%s5790 + $0x38] sm:$0xff]
        %v5800 = vsel %vm337, %v5774, 0
        %v5803 = vsel %vm337, %v5775, 0
        %v5806 = vsel %vm337, %v5776, 0
        %v5809 = vsel %vm337, %v5777, 0
        %v5812 = vsel %vm337, %v5778, 0
        %v5815 = vsel %vm337, %v5779, 0
        %v5818 = vsel %vm337, %v5780, 0
        %v5821 = vsel %vm337, %v5781, 0
        %v5824 = vsel %vm337, %v5782, 0
        %v5827 = vsel %vm337, %v5783, 0
        %v5830 = vsel %vm337, %v5784, 0
        %v5833 = vsel %vm337, %v5785, 0
        %v5836 = vsel %vm337, %v5786, 0
        %v5839 = vsel %vm337, %v5787, 0
        %v5842 = vsel %vm337, %v5788, 0
        %v5845 = vsel %vm337, %v5789, 0
        %5847 = vmatprep.subr.mxu0 %v5792
        %5848 = vmatpush1.msra.mxu0 %v5791
        %5849 = vmatprep.subr.mxu0 %v5794
        %5850 = vmatpush1.msra.mxu0 %v5793
        %5851 = vmatprep.subr.mxu0 %v5796
        %5852 = vmatpush1.msra.mxu0 %v5795
        %5853 = vmatprep.subr.mxu0 %v5798
        %5854 = vmatpush1.msra.mxu0 %v5797
        %5855 = vmatprep.subr.mxu0 0.0
        %5856 = vmatpush1.msra.mxu0 0.0
        %5857 = vmatprep.subr.mxu0 0.0
        %5858 = vmatpush1.msra.mxu0 0.0
        %5859 = vmatprep.subr.mxu0 0.0
        %5860 = vmatpush1.msra.mxu0 0.0
        %5861 = vmatprep.subr.mxu0 0.0
        %5862 = vmatpush1.msra.mxu0 0.0
        %5863 = vmatprep.subr.mxu0 0.0
        %5864 = vmatpush1.msra.mxu0 0.0
        %5865 = vmatprep.subr.mxu0 0.0
        %5866 = vmatpush1.msra.mxu0 0.0
        %5867 = vmatprep.subr.mxu0 0.0
        %5868 = vmatpush1.msra.mxu0 0.0
        %5869 = vmatprep.subr.mxu0 0.0
        %5870 = vmatpush1.msra.mxu0 0.0
        %5871 = vmatprep.subr.mxu0 0.0
        %5872 = vmatpush1.msra.mxu0 0.0
        %5873 = vmatprep.subr.mxu0 0.0
        %5874 = vmatpush1.msra.mxu0 0.0
        %5875 = vmatprep.subr.mxu0 0.0
        %5876 = vmatpush1.msra.mxu0 0.0
        %5877 = vmatprep.subr.mxu0 0.0
        %5878 = vmatpush1.msra.mxu0 0.0
        %5879 = vmatprep.subr.mxu0 0.0
        %5880 = vmatpush1.msra.mxu0 0.0
        %5881 = vmatprep.subr.mxu0 0.0
        %5882 = vmatpush1.msra.mxu0 0.0
        %5883 = vmatprep.subr.mxu0 0.0
        %5884 = vmatpush1.msra.mxu0 0.0
        %5885 = vmatprep.subr.mxu0 0.0
        %5886 = vmatpush1.msra.mxu0 0.0
        %5887 = vmatprep.subr.mxu0 0.0
        %5888 = vmatpush1.msra.mxu0 0.0
        %5889 = vmatprep.subr.mxu0 0.0
        %5890 = vmatpush1.msra.mxu0 0.0
        %5891 = vmatprep.subr.mxu0 0.0
        %5892 = vmatpush1.msra.mxu0 0.0
        %5893 = vmatprep.subr.mxu0 0.0
        %5894 = vmatpush1.msra.mxu0 0.0
        %5895 = vmatprep.subr.mxu0 0.0
        %5896 = vmatpush1.msra.mxu0 0.0
        %5897 = vmatprep.subr.mxu0 0.0
        %5898 = vmatpush1.msra.mxu0 0.0
        %5899 = vmatprep.subr.mxu0 0.0
        %5900 = vmatpush1.msra.mxu0 0.0
        %5901 = vmatprep.subr.mxu0 0.0
        %5902 = vmatpush1.msra.mxu0 0.0
        %5903 = vmatprep.subr.mxu0 0.0
        %5904 = vmatpush1.msra.mxu0 0.0
        %5905 = vmatprep.subr.mxu0 0.0
        %5906 = vmatpush1.msra.mxu0 0.0
        %5907 = vmatprep.subr.mxu0 0.0
        %5908 = vmatpush1.msra.mxu0 0.0
        %5909 = vmatprep.subr.mxu0 0.0
        %5910 = vmatpush1.msra.mxu0 0.0
        %5911 = vmatprep.mubr.f32.mxu0 0.0
        %5912 = vmatmul.mubr.f32.gmra.mrb[0].mxu0 %v5800
        %v5913 = vpop.f32.mrb[0].mxu0
        %v5914 = vadd.f32 0.0, %v5913
        %v5915 = vpop.f32.mrb[0].mxu0
        %v5916 = vadd.f32 0.0, %v5915
        %5917 = vmatprep.mubr.f32.mxu0 0.0
        %5918 = vmatmul.mubr.f32.gmra.mrb[0].mxu0 %v5803
        %v5919 = vpop.f32.mrb[0].mxu0
        %v5920 = vadd.f32 0.0, %v5919
        %v5921 = vpop.f32.mrb[0].mxu0
        %v5922 = vadd.f32 0.0, %v5921
        %5923 = vmatprep.mubr.f32.mxu0 0.0
        %5924 = vmatmul.mubr.f32.gmra.mrb[0].mxu0 %v5806
        %v5925 = vpop.f32.mrb[0].mxu0
        %v5926 = vadd.f32 0.0, %v5925
        %v5927 = vpop.f32.mrb[0].mxu0
        %v5928 = vadd.f32 0.0, %v5927
        %5929 = vmatprep.mubr.f32.mxu0 0.0
        %5930 = vmatmul.mubr.f32.gmra.mrb[0].mxu0 %v5809
        %v5931 = vpop.f32.mrb[0].mxu0
        %v5932 = vadd.f32 0.0, %v5931
        %v5933 = vpop.f32.mrb[0].mxu0
        %v5934 = vadd.f32 0.0, %v5933
        %5935 = vmatprep.mubr.f32.mxu0 0.0
        %5936 = vmatmul.mubr.f32.gmra.mrb[0].mxu0 %v5812
        %v5937 = vpop.f32.mrb[0].mxu0
        %v5938 = vadd.f32 0.0, %v5937
        %v5939 = vpop.f32.mrb[0].mxu0
        %v5940 = vadd.f32 0.0, %v5939
        %5941 = vmatprep.mubr.f32.mxu0 0.0
        %5942 = vmatmul.mubr.f32.gmra.mrb[0].mxu0 %v5815
        %v5943 = vpop.f32.mrb[0].mxu0
        %v5944 = vadd.f32 0.0, %v5943
        %v5945 = vpop.f32.mrb[0].mxu0
        %v5946 = vadd.f32 0.0, %v5945
        %5947 = vmatprep.mubr.f32.mxu0 0.0
        %5948 = vmatmul.mubr.f32.gmra.mrb[0].mxu0 %v5818
        %v5949 = vpop.f32.mrb[0].mxu0
        %v5950 = vadd.f32 0.0, %v5949
        %v5951 = vpop.f32.mrb[0].mxu0
        %v5952 = vadd.f32 0.0, %v5951
        %5953 = vmatprep.mubr.f32.mxu0 0.0
        %5954 = vmatmul.mubr.f32.gmra.mrb[0].mxu0 %v5821
        %v5955 = vpop.f32.mrb[0].mxu0
        %v5956 = vadd.f32 0.0, %v5955
        %v5957 = vpop.f32.mrb[0].mxu0
        %v5958 = vadd.f32 0.0, %v5957
        %5959 = vmatprep.mubr.f32.mxu0 0.0
        %5960 = vmatmul.mubr.f32.gmra.mrb[0].mxu0 %v5824
        %v5961 = vpop.f32.mrb[0].mxu0
        %v5962 = vadd.f32 0.0, %v5961
        %v5963 = vpop.f32.mrb[0].mxu0
        %v5964 = vadd.f32 0.0, %v5963
        %5965 = vmatprep.mubr.f32.mxu0 0.0
        %5966 = vmatmul.mubr.f32.gmra.mrb[0].mxu0 %v5827
        %v5967 = vpop.f32.mrb[0].mxu0
        %v5968 = vadd.f32 0.0, %v5967
        %v5969 = vpop.f32.mrb[0].mxu0
        %v5970 = vadd.f32 0.0, %v5969
        %5971 = vmatprep.mubr.f32.mxu0 0.0
        %5972 = vmatmul.mubr.f32.gmra.mrb[0].mxu0 %v5830
        %v5973 = vpop.f32.mrb[0].mxu0
        %v5974 = vadd.f32 0.0, %v5973
        %v5975 = vpop.f32.mrb[0].mxu0
        %v5976 = vadd.f32 0.0, %v5975
        %5977 = vmatprep.mubr.f32.mxu0 0.0
        %5978 = vmatmul.mubr.f32.gmra.mrb[0].mxu0 %v5833
        %v5979 = vpop.f32.mrb[0].mxu0
        %v5980 = vadd.f32 0.0, %v5979
        %v5981 = vpop.f32.mrb[0].mxu0
        %v5982 = vadd.f32 0.0, %v5981
        %5983 = vmatprep.mubr.f32.mxu0 0.0
        %5984 = vmatmul.mubr.f32.gmra.mrb[0].mxu0 %v5836
        %v5985 = vpop.f32.mrb[0].mxu0
        %v5986 = vadd.f32 0.0, %v5985
        %v5987 = vpop.f32.mrb[0].mxu0
        %v5988 = vadd.f32 0.0, %v5987
        %5989 = vmatprep.mubr.f32.mxu0 0.0
        %5990 = vmatmul.mubr.f32.gmra.mrb[0].mxu0 %v5839
        %v5991 = vpop.f32.mrb[0].mxu0
        %v5992 = vadd.f32 0.0, %v5991
        %v5993 = vpop.f32.mrb[0].mxu0
        %v5994 = vadd.f32 0.0, %v5993
        %5995 = vmatprep.mubr.f32.mxu0 0.0
        %5996 = vmatmul.mubr.f32.gmra.mrb[0].mxu0 %v5842
        %v5997 = vpop.f32.mrb[0].mxu0
        %v5998 = vadd.f32 0.0, %v5997
        %v5999 = vpop.f32.mrb[0].mxu0
        %v6000 = vadd.f32 0.0, %v5999
        %6001 = vmatprep.mubr.f32.mxu0 0.0
        %6002 = vmatmul.mubr.f32.gmra.mrb[0].mxu0 %v5845
        %v6003 = vpop.f32.mrb[0].mxu0
        %v6004 = vadd.f32 0.0, %v6003
        %v6005 = vpop.f32.mrb[0].mxu0
        %v6006 = vadd.f32 0.0, %v6005
        %6007 = vdwg.mxu0
        %v6008 = vadd.f32 %v5742, %v5914
        %v6009 = vadd.f32 %v5743, %v5916
        %v6010 = vadd.f32 %v5744, %v5920
        %v6011 = vadd.f32 %v5745, %v5922
        %v6012 = vadd.f32 %v5746, %v5926
        %v6013 = vadd.f32 %v5747, %v5928
        %v6014 = vadd.f32 %v5748, %v5932
        %v6015 = vadd.f32 %v5749, %v5934
        %v6016 = vadd.f32 %v5750, %v5938
        %v6017 = vadd.f32 %v5751, %v5940
        %v6018 = vadd.f32 %v5752, %v5944
        %v6019 = vadd.f32 %v5753, %v5946
        %v6020 = vadd.f32 %v5754, %v5950
        %v6021 = vadd.f32 %v5755, %v5952
        %v6022 = vadd.f32 %v5756, %v5956
        %v6023 = vadd.f32 %v5757, %v5958
        %v6024 = vadd.f32 %v5758, %v5962
        %v6025 = vadd.f32 %v5759, %v5964
        %v6026 = vadd.f32 %v5760, %v5968
        %v6027 = vadd.f32 %v5761, %v5970
        %v6028 = vadd.f32 %v5762, %v5974
        %v6029 = vadd.f32 %v5763, %v5976
        %v6030 = vadd.f32 %v5764, %v5980
        %v6031 = vadd.f32 %v5765, %v5982
        %v6032 = vadd.f32 %v5766, %v5986
        %v6033 = vadd.f32 %v5767, %v5988
        %v6034 = vadd.f32 %v5768, %v5992
        %v6035 = vadd.f32 %v5769, %v5994
        %v6036 = vadd.f32 %v5770, %v5998
        %v6037 = vadd.f32 %v5771, %v6000
        %v6038 = vadd.f32 %v5772, %v6004
        %v6039 = vadd.f32 %v5773, %v6006
        %s6040 = scalar_lea.vmem %s2, 2
        %v6041 = vld [vmem:[%s6040] ss:$4 sm:$0x3]
        %v6043 = vlaneseq
        %v6044 = vshrl.u32 %v6043, 7
        %v6045 = vsub.s32 0, %v6044
        %v6046 = vrot.slane %v6041, %v6045
        %v6047 = vlaneseq
        %v6048 = vshrl.u32 %v6047, 7
        %v6049 = vsub.s32 1, %v6048
        %v6050 = vrot.slane %v6041, %v6049
        %v6053 = vmul.f32 %v6008, %v6046
        %v6054 = vmul.f32 %v6009, %v6050
        %v6055 = vmul.f32 %v6010, %v6046
        %v6056 = vmul.f32 %v6011, %v6050
        %v6057 = vmul.f32 %v6012, %v6046
        %v6058 = vmul.f32 %v6013, %v6050
        %v6059 = vmul.f32 %v6014, %v6046
        %v6060 = vmul.f32 %v6015, %v6050
        %v6061 = vmul.f32 %v6016, %v6046
        %v6062 = vmul.f32 %v6017, %v6050
        %v6063 = vmul.f32 %v6018, %v6046
        %v6064 = vmul.f32 %v6019, %v6050
        %v6065 = vmul.f32 %v6020, %v6046
        %v6066 = vmul.f32 %v6021, %v6050
        %v6067 = vmul.f32 %v6022, %v6046
        %v6068 = vmul.f32 %v6023, %v6050
        %v6069 = vmul.f32 %v6024, %v6046
        %v6070 = vmul.f32 %v6025, %v6050
        %v6071 = vmul.f32 %v6026, %v6046
        %v6072 = vmul.f32 %v6027, %v6050
        %v6073 = vmul.f32 %v6028, %v6046
        %v6074 = vmul.f32 %v6029, %v6050
        %v6075 = vmul.f32 %v6030, %v6046
        %v6076 = vmul.f32 %v6031, %v6050
        %v6077 = vmul.f32 %v6032, %v6046
        %v6078 = vmul.f32 %v6033, %v6050
        %v6079 = vmul.f32 %v6034, %v6046
        %v6080 = vmul.f32 %v6035, %v6050
        %v6081 = vmul.f32 %v6036, %v6046
        %v6082 = vmul.f32 %v6037, %v6050
        %v6083 = vmul.f32 %v6038, %v6046
        %v6084 = vmul.f32 %v6039, %v6050
        %s6085 = scalar_lea.vmem %s3, 2
        %v6086 = vld [vmem:[%s6085] ss:$4 sm:$0x3]
        %v6088 = vlaneseq
        %v6089 = vshrl.u32 %v6088, 7
        %v6090 = vsub.s32 0, %v6089
        %v6091 = vrot.slane %v6086, %v6090
        %v6092 = vlaneseq
        %v6093 = vshrl.u32 %v6092, 7
        %v6094 = vsub.s32 1, %v6093
        %v6095 = vrot.slane %v6086, %v6094
        %v6098 = vadd.f32 %v6053, %v6091
        %v6099 = vadd.f32 %v6054, %v6095
        %v6100 = vadd.f32 %v6055, %v6091
        %v6101 = vadd.f32 %v6056, %v6095
        %v6102 = vadd.f32 %v6057, %v6091
        %v6103 = vadd.f32 %v6058, %v6095
        %v6104 = vadd.f32 %v6059, %v6091
        %v6105 = vadd.f32 %v6060, %v6095
        %v6106 = vadd.f32 %v6061, %v6091
        %v6107 = vadd.f32 %v6062, %v6095
        %v6108 = vadd.f32 %v6063, %v6091
        %v6109 = vadd.f32 %v6064, %v6095
        %v6110 = vadd.f32 %v6065, %v6091
        %v6111 = vadd.f32 %v6066, %v6095
        %v6112 = vadd.f32 %v6067, %v6091
        %v6113 = vadd.f32 %v6068, %v6095
        %v6114 = vadd.f32 %v6069, %v6091
        %v6115 = vadd.f32 %v6070, %v6095
        %v6116 = vadd.f32 %v6071, %v6091
        %v6117 = vadd.f32 %v6072, %v6095
        %v6118 = vadd.f32 %v6073, %v6091
        %v6119 = vadd.f32 %v6074, %v6095
        %v6120 = vadd.f32 %v6075, %v6091
        %v6121 = vadd.f32 %v6076, %v6095
        %v6122 = vadd.f32 %v6077, %v6091
        %v6123 = vadd.f32 %v6078, %v6095
        %v6124 = vadd.f32 %v6079, %v6091
        %v6125 = vadd.f32 %v6080, %v6095
        %v6126 = vadd.f32 %v6081, %v6091
        %v6127 = vadd.f32 %v6082, %v6095
        %v6128 = vadd.f32 %v6083, %v6091
        %v6129 = vadd.f32 %v6084, %v6095
        %v6130 = vmax.f32 %v6098, 0.0
        %v6131 = vmax.f32 %v6099, 0.0
        %v6132 = vmax.f32 %v6100, 0.0
        %v6133 = vmax.f32 %v6101, 0.0
        %v6134 = vmax.f32 %v6102, 0.0
        %v6135 = vmax.f32 %v6103, 0.0
        %v6136 = vmax.f32 %v6104, 0.0
        %v6137 = vmax.f32 %v6105, 0.0
        %v6138 = vmax.f32 %v6106, 0.0
        %v6139 = vmax.f32 %v6107, 0.0
        %v6140 = vmax.f32 %v6108, 0.0
        %v6141 = vmax.f32 %v6109, 0.0
        %v6142 = vmax.f32 %v6110, 0.0
        %v6143 = vmax.f32 %v6111, 0.0
        %v6144 = vmax.f32 %v6112, 0.0
        %v6145 = vmax.f32 %v6113, 0.0
        %v6146 = vmax.f32 %v6114, 0.0
        %v6147 = vmax.f32 %v6115, 0.0
        %v6148 = vmax.f32 %v6116, 0.0
        %v6149 = vmax.f32 %v6117, 0.0
        %v6150 = vmax.f32 %v6118, 0.0
        %v6151 = vmax.f32 %v6119, 0.0
        %v6152 = vmax.f32 %v6120, 0.0
        %v6153 = vmax.f32 %v6121, 0.0
        %v6154 = vmax.f32 %v6122, 0.0
        %v6155 = vmax.f32 %v6123, 0.0
        %v6156 = vmax.f32 %v6124, 0.0
        %v6157 = vmax.f32 %v6125, 0.0
        %v6158 = vmax.f32 %v6126, 0.0
        %v6159 = vmax.f32 %v6127, 0.0
        %v6160 = vmax.f32 %v6128, 0.0
        %v6161 = vmax.f32 %v6129, 0.0
        %s6162 = scalar_lea.vmem %s4, 1024
        %v6163 = vld [vmem:[%s6162] sm:$0xff]
        %v6164 = vld [vmem:[%s6162 + $0x8] sm:$0xff]
        %v6165 = vld [vmem:[%s6162 + $0x10] sm:$0xff]
        %v6166 = vld [vmem:[%s6162 + $0x18] sm:$0xff]
        %v6167 = vld [vmem:[%s6162 + $0x20] sm:$0xff]
        %v6168 = vld [vmem:[%s6162 + $0x28] sm:$0xff]
        %v6169 = vld [vmem:[%s6162 + $0x30] sm:$0xff]
        %v6170 = vld [vmem:[%s6162 + $0x38] sm:$0xff]
        %v6171 = vld [vmem:[%s6162 + $0x40] sm:$0xff]
        %v6172 = vld [vmem:[%s6162 + $0x48] sm:$0xff]
        %v6173 = vld [vmem:[%s6162 + $0x50] sm:$0xff]
        %v6174 = vld [vmem:[%s6162 + $0x58] sm:$0xff]
        %v6175 = vld [vmem:[%s6162 + $0x60] sm:$0xff]
        %v6176 = vld [vmem:[%s6162 + $0x68] sm:$0xff]
        %v6177 = vld [vmem:[%s6162 + $0x70] sm:$0xff]
        %v6178 = vld [vmem:[%s6162 + $0x78] sm:$0xff]
        %v6179 = vld [vmem:[%s6162 + $0x80] sm:$0xff]
        %v6180 = vld [vmem:[%s6162 + $0x88] sm:$0xff]
        %v6181 = vld [vmem:[%s6162 + $0x90] sm:$0xff]
        %v6182 = vld [vmem:[%s6162 + $0x98] sm:$0xff]
        %v6183 = vld [vmem:[%s6162 + $0xa0] sm:$0xff]
        %v6184 = vld [vmem:[%s6162 + $0xa8] sm:$0xff]
        %v6185 = vld [vmem:[%s6162 + $0xb0] sm:$0xff]
        %v6186 = vld [vmem:[%s6162 + $0xb8] sm:$0xff]
        %v6187 = vld [vmem:[%s6162 + $0xc0] sm:$0xff]
        %v6188 = vld [vmem:[%s6162 + $0xc8] sm:$0xff]
        %v6189 = vld [vmem:[%s6162 + $0xd0] sm:$0xff]
        %v6190 = vld [vmem:[%s6162 + $0xd8] sm:$0xff]
        %v6191 = vld [vmem:[%s6162 + $0xe0] sm:$0xff]
        %v6192 = vld [vmem:[%s6162 + $0xe8] sm:$0xff]
        %v6193 = vld [vmem:[%s6162 + $0xf0] sm:$0xff]
        %v6194 = vld [vmem:[%s6162 + $0xf8] sm:$0xff]
        %v6195 = vld [vmem:[%s6162 + $0x100] sm:$0xff]
        %v6196 = vld [vmem:[%s6162 + $0x108] sm:$0xff]
        %v6197 = vld [vmem:[%s6162 + $0x110] sm:$0xff]
        %v6198 = vld [vmem:[%s6162 + $0x118] sm:$0xff]
        %v6199 = vld [vmem:[%s6162 + $0x120] sm:$0xff]
        %v6200 = vld [vmem:[%s6162 + $0x128] sm:$0xff]
        %v6201 = vld [vmem:[%s6162 + $0x130] sm:$0xff]
        %v6202 = vld [vmem:[%s6162 + $0x138] sm:$0xff]
        %v6203 = vld [vmem:[%s6162 + $0x140] sm:$0xff]
        %v6204 = vld [vmem:[%s6162 + $0x148] sm:$0xff]
        %v6205 = vld [vmem:[%s6162 + $0x150] sm:$0xff]
        %v6206 = vld [vmem:[%s6162 + $0x158] sm:$0xff]
        %v6207 = vld [vmem:[%s6162 + $0x160] sm:$0xff]
        %v6208 = vld [vmem:[%s6162 + $0x168] sm:$0xff]
        %v6209 = vld [vmem:[%s6162 + $0x170] sm:$0xff]
        %v6210 = vld [vmem:[%s6162 + $0x178] sm:$0xff]
        %v6211 = vld [vmem:[%s6162 + $0x180] sm:$0xff]
        %v6212 = vld [vmem:[%s6162 + $0x188] sm:$0xff]
        %v6213 = vld [vmem:[%s6162 + $0x190] sm:$0xff]
        %v6214 = vld [vmem:[%s6162 + $0x198] sm:$0xff]
        %v6215 = vld [vmem:[%s6162 + $0x1a0] sm:$0xff]
        %v6216 = vld [vmem:[%s6162 + $0x1a8] sm:$0xff]
        %v6217 = vld [vmem:[%s6162 + $0x1b0] sm:$0xff]
        %v6218 = vld [vmem:[%s6162 + $0x1b8] sm:$0xff]
        %v6219 = vld [vmem:[%s6162 + $0x1c0] sm:$0xff]
        %v6220 = vld [vmem:[%s6162 + $0x1c8] sm:$0xff]
        %v6221 = vld [vmem:[%s6162 + $0x1d0] sm:$0xff]
        %v6222 = vld [vmem:[%s6162 + $0x1d8] sm:$0xff]
        %v6223 = vld [vmem:[%s6162 + $0x1e0] sm:$0xff]
        %v6224 = vld [vmem:[%s6162 + $0x1e8] sm:$0xff]
        %v6225 = vld [vmem:[%s6162 + $0x1f0] sm:$0xff]
        %v6226 = vld [vmem:[%s6162 + $0x1f8] sm:$0xff]
        %6227 = vmatprep.subr.mxu0 %v6164
        %6228 = vmatpush1.msra.mxu0 %v6163
        %6229 = vmatprep.subr.mxu0 %v6166
        %6230 = vmatpush1.msra.mxu0 %v6165
        %6231 = vmatprep.subr.mxu0 %v6168
        %6232 = vmatpush1.msra.mxu0 %v6167
        %6233 = vmatprep.subr.mxu0 %v6170
        %6234 = vmatpush1.msra.mxu0 %v6169
        %6235 = vmatprep.subr.mxu0 %v6172
        %6236 = vmatpush1.msra.mxu0 %v6171
        %6237 = vmatprep.subr.mxu0 %v6174
        %6238 = vmatpush1.msra.mxu0 %v6173
        %6239 = vmatprep.subr.mxu0 %v6176
        %6240 = vmatpush1.msra.mxu0 %v6175
        %6241 = vmatprep.subr.mxu0 %v6178
        %6242 = vmatpush1.msra.mxu0 %v6177
        %6243 = vmatprep.subr.mxu0 %v6180
        %6244 = vmatpush1.msra.mxu0 %v6179
        %6245 = vmatprep.subr.mxu0 %v6182
        %6246 = vmatpush1.msra.mxu0 %v6181
        %6247 = vmatprep.subr.mxu0 %v6184
        %6248 = vmatpush1.msra.mxu0 %v6183
        %6249 = vmatprep.subr.mxu0 %v6186
        %6250 = vmatpush1.msra.mxu0 %v6185
        %6251 = vmatprep.subr.mxu0 %v6188
        %6252 = vmatpush1.msra.mxu0 %v6187
        %6253 = vmatprep.subr.mxu0 %v6190
        %6254 = vmatpush1.msra.mxu0 %v6189
        %6255 = vmatprep.subr.mxu0 %v6192
        %6256 = vmatpush1.msra.mxu0 %v6191
        %6257 = vmatprep.subr.mxu0 %v6194
        %6258 = vmatpush1.msra.mxu0 %v6193
        %6259 = vmatprep.subr.mxu0 %v6196
        %6260 = vmatpush1.msra.mxu0 %v6195
        %6261 = vmatprep.subr.mxu0 %v6198
        %6262 = vmatpush1.msra.mxu0 %v6197
        %6263 = vmatprep.subr.mxu0 %v6200
        %6264 = vmatpush1.msra.mxu0 %v6199
        %6265 = vmatprep.subr.mxu0 %v6202
        %6266 = vmatpush1.msra.mxu0 %v6201
        %6267 = vmatprep.subr.mxu0 %v6204
        %6268 = vmatpush1.msra.mxu0 %v6203
        %6269 = vmatprep.subr.mxu0 %v6206
        %6270 = vmatpush1.msra.mxu0 %v6205
        %6271 = vmatprep.subr.mxu0 %v6208
        %6272 = vmatpush1.msra.mxu0 %v6207
        %6273 = vmatprep.subr.mxu0 %v6210
        %6274 = vmatpush1.msra.mxu0 %v6209
        %6275 = vmatprep.subr.mxu0 %v6212
        %6276 = vmatpush1.msra.mxu0 %v6211
        %6277 = vmatprep.subr.mxu0 %v6214
        %6278 = vmatpush1.msra.mxu0 %v6213
        %6279 = vmatprep.subr.mxu0 %v6216
        %6280 = vmatpush1.msra.mxu0 %v6215
        %6281 = vmatprep.subr.mxu0 %v6218
        %6282 = vmatpush1.msra.mxu0 %v6217
        %6283 = vmatprep.subr.mxu0 %v6220
        %6284 = vmatpush1.msra.mxu0 %v6219
        %6285 = vmatprep.subr.mxu0 %v6222
        %6286 = vmatpush1.msra.mxu0 %v6221
        %6287 = vmatprep.subr.mxu0 %v6224
        %6288 = vmatpush1.msra.mxu0 %v6223
        %6289 = vmatprep.subr.mxu0 %v6226
        %6290 = vmatpush1.msra.mxu0 %v6225
        %6291 = vmatprep.mubr.f32.mxu0 %v6131
        %6292 = vmatmul.mubr.f32.gmra.mrb[0].mxu0 %v6130
        %v6293 = vpop.f32.mrb[0].mxu0
        %v6294 = vadd.f32 0.0, %v6293
        %v6295 = vpop.f32.mrb[0].mxu0
        %v6296 = vadd.f32 0.0, %v6295
        %6297 = vmatprep.mubr.f32.mxu0 %v6133
        %6298 = vmatmul.mubr.f32.gmra.mrb[0].mxu0 %v6132
        %v6299 = vpop.f32.mrb[0].mxu0
        %v6300 = vadd.f32 0.0, %v6299
        %v6301 = vpop.f32.mrb[0].mxu0
        %v6302 = vadd.f32 0.0, %v6301
        %6303 = vmatprep.mubr.f32.mxu0 %v6135
        %6304 = vmatmul.mubr.f32.gmra.mrb[0].mxu0 %v6134
        %v6305 = vpop.f32.mrb[0].mxu0
        %v6306 = vadd.f32 0.0, %v6305
        %v6307 = vpop.f32.mrb[0].mxu0
        %v6308 = vadd.f32 0.0, %v6307
        %6309 = vmatprep.mubr.f32.mxu0 %v6137
        %6310 = vmatmul.mubr.f32.gmra.mrb[0].mxu0 %v6136
        %v6311 = vpop.f32.mrb[0].mxu0
        %v6312 = vadd.f32 0.0, %v6311
        %v6313 = vpop.f32.mrb[0].mxu0
        %v6314 = vadd.f32 0.0, %v6313
        %6315 = vmatprep.mubr.f32.mxu0 %v6139
        %6316 = vmatmul.mubr.f32.gmra.mrb[0].mxu0 %v6138
        %v6317 = vpop.f32.mrb[0].mxu0
        %v6318 = vadd.f32 0.0, %v6317
        %v6319 = vpop.f32.mrb[0].mxu0
        %v6320 = vadd.f32 0.0, %v6319
        %6321 = vmatprep.mubr.f32.mxu0 %v6141
        %6322 = vmatmul.mubr.f32.gmra.mrb[0].mxu0 %v6140
        %v6323 = vpop.f32.mrb[0].mxu0
        %v6324 = vadd.f32 0.0, %v6323
        %v6325 = vpop.f32.mrb[0].mxu0
        %v6326 = vadd.f32 0.0, %v6325
        %6327 = vmatprep.mubr.f32.mxu0 %v6143
        %6328 = vmatmul.mubr.f32.gmra.mrb[0].mxu0 %v6142
        %v6329 = vpop.f32.mrb[0].mxu0
        %v6330 = vadd.f32 0.0, %v6329
        %v6331 = vpop.f32.mrb[0].mxu0
        %v6332 = vadd.f32 0.0, %v6331
        %6333 = vmatprep.mubr.f32.mxu0 %v6145
        %6334 = vmatmul.mubr.f32.gmra.mrb[0].mxu0 %v6144
        %v6335 = vpop.f32.mrb[0].mxu0
        %v6336 = vadd.f32 0.0, %v6335
        %v6337 = vpop.f32.mrb[0].mxu0
        %v6338 = vadd.f32 0.0, %v6337
        %6339 = vmatprep.mubr.f32.mxu0 %v6147
        %6340 = vmatmul.mubr.f32.gmra.mrb[0].mxu0 %v6146
        %v6341 = vpop.f32.mrb[0].mxu0
        %v6342 = vadd.f32 0.0, %v6341
        %v6343 = vpop.f32.mrb[0].mxu0
        %v6344 = vadd.f32 0.0, %v6343
        %6345 = vmatprep.mubr.f32.mxu0 %v6149
        %6346 = vmatmul.mubr.f32.gmra.mrb[0].mxu0 %v6148
        %v6347 = vpop.f32.mrb[0].mxu0
        %v6348 = vadd.f32 0.0, %v6347
        %v6349 = vpop.f32.mrb[0].mxu0
        %v6350 = vadd.f32 0.0, %v6349
        %6351 = vmatprep.mubr.f32.mxu0 %v6151
        %6352 = vmatmul.mubr.f32.gmra.mrb[0].mxu0 %v6150
        %v6353 = vpop.f32.mrb[0].mxu0
        %v6354 = vadd.f32 0.0, %v6353
        %v6355 = vpop.f32.mrb[0].mxu0
        %v6356 = vadd.f32 0.0, %v6355
        %6357 = vmatprep.mubr.f32.mxu0 %v6153
        %6358 = vmatmul.mubr.f32.gmra.mrb[0].mxu0 %v6152
        %v6359 = vpop.f32.mrb[0].mxu0
        %v6360 = vadd.f32 0.0, %v6359
        %v6361 = vpop.f32.mrb[0].mxu0
        %v6362 = vadd.f32 0.0, %v6361
        %6363 = vmatprep.mubr.f32.mxu0 %v6155
        %6364 = vmatmul.mubr.f32.gmra.mrb[0].mxu0 %v6154
        %v6365 = vpop.f32.mrb[0].mxu0
        %v6366 = vadd.f32 0.0, %v6365
        %v6367 = vpop.f32.mrb[0].mxu0
        %v6368 = vadd.f32 0.0, %v6367
        %6369 = vmatprep.mubr.f32.mxu0 %v6157
        %6370 = vmatmul.mubr.f32.gmra.mrb[0].mxu0 %v6156
        %v6371 = vpop.f32.mrb[0].mxu0
        %v6372 = vadd.f32 0.0, %v6371
        %v6373 = vpop.f32.mrb[0].mxu0
        %v6374 = vadd.f32 0.0, %v6373
        %6375 = vmatprep.mubr.f32.mxu0 %v6159
        %6376 = vmatmul.mubr.f32.gmra.mrb[0].mxu0 %v6158
        %v6377 = vpop.f32.mrb[0].mxu0
        %v6378 = vadd.f32 0.0, %v6377
        %v6379 = vpop.f32.mrb[0].mxu0
        %v6380 = vadd.f32 0.0, %v6379
        %6381 = vmatprep.mubr.f32.mxu0 %v6161
        %6382 = vmatmul.mubr.f32.gmra.mrb[0].mxu0 %v6160
        %v6383 = vpop.f32.mrb[0].mxu0
        %v6384 = vadd.f32 0.0, %v6383
        %v6385 = vpop.f32.mrb[0].mxu0
        %v6386 = vadd.f32 0.0, %v6385
        %6387 = vdwg.mxu0
        %v6388 = vld [vmem:[#allocation2] sm:$0xff]
        %v6389 = vld [vmem:[#allocation2 + $0x8] sm:$0xff]
        %v6390 = vld [vmem:[#allocation2 + $0x10] sm:$0xff]
        %v6391 = vld [vmem:[#allocation2 + $0x18] sm:$0xff]
        %v6392 = vld [vmem:[#allocation2 + $0x20] sm:$0xff]
        %v6393 = vld [vmem:[#allocation2 + $0x28] sm:$0xff]
        %v6394 = vld [vmem:[#allocation2 + $0x30] sm:$0xff]
        %v6395 = vld [vmem:[#allocation2 + $0x38] sm:$0xff]
        %v6396 = vld [vmem:[#allocation2 + $0x40] sm:$0xff]
        %v6397 = vld [vmem:[#allocation2 + $0x48] sm:$0xff]
        %v6398 = vld [vmem:[#allocation2 + $0x50] sm:$0xff]
        %v6399 = vld [vmem:[#allocation2 + $0x58] sm:$0xff]
        %v6400 = vld [vmem:[#allocation2 + $0x60] sm:$0xff]
        %v6401 = vld [vmem:[#allocation2 + $0x68] sm:$0xff]
        %v6402 = vld [vmem:[#allocation2 + $0x70] sm:$0xff]
        %v6403 = vld [vmem:[#allocation2 + $0x78] sm:$0xff]
        %v6404 = vld [vmem:[#allocation2 + $0x80] sm:$0xff]
        %v6405 = vld [vmem:[#allocation2 + $0x88] sm:$0xff]
        %v6406 = vld [vmem:[#allocation2 + $0x90] sm:$0xff]
        %v6407 = vld [vmem:[#allocation2 + $0x98] sm:$0xff]
        %v6408 = vld [vmem:[#allocation2 + $0xa0] sm:$0xff]
        %v6409 = vld [vmem:[#allocation2 + $0xa8] sm:$0xff]
        %v6410 = vld [vmem:[#allocation2 + $0xb0] sm:$0xff]
        %v6411 = vld [vmem:[#allocation2 + $0xb8] sm:$0xff]
        %v6412 = vld [vmem:[#allocation2 + $0xc0] sm:$0xff]
        %v6413 = vld [vmem:[#allocation2 + $0xc8] sm:$0xff]
        %v6414 = vld [vmem:[#allocation2 + $0xd0] sm:$0xff]
        %v6415 = vld [vmem:[#allocation2 + $0xd8] sm:$0xff]
        %v6416 = vld [vmem:[#allocation2 + $0xe0] sm:$0xff]
        %v6417 = vld [vmem:[#allocation2 + $0xe8] sm:$0xff]
        %v6418 = vld [vmem:[#allocation2 + $0xf0] sm:$0xff]
        %v6419 = vld [vmem:[#allocation2 + $0xf8] sm:$0xff]
        %v6420 = vadd.f32 %v6388, %v6294
        %v6421 = vadd.f32 %v6389, %v6296
        %v6422 = vadd.f32 %v6390, %v6300
        %v6423 = vadd.f32 %v6391, %v6302
        %v6424 = vadd.f32 %v6392, %v6306
        %v6425 = vadd.f32 %v6393, %v6308
        %v6426 = vadd.f32 %v6394, %v6312
        %v6427 = vadd.f32 %v6395, %v6314
        %v6428 = vadd.f32 %v6396, %v6318
        %v6429 = vadd.f32 %v6397, %v6320
        %v6430 = vadd.f32 %v6398, %v6324
        %v6431 = vadd.f32 %v6399, %v6326
        %v6432 = vadd.f32 %v6400, %v6330
        %v6433 = vadd.f32 %v6401, %v6332
        %v6434 = vadd.f32 %v6402, %v6336
        %v6435 = vadd.f32 %v6403, %v6338
        %v6436 = vadd.f32 %v6404, %v6342
        %v6437 = vadd.f32 %v6405, %v6344
        %v6438 = vadd.f32 %v6406, %v6348
        %v6439 = vadd.f32 %v6407, %v6350
        %v6440 = vadd.f32 %v6408, %v6354
        %v6441 = vadd.f32 %v6409, %v6356
        %v6442 = vadd.f32 %v6410, %v6360
        %v6443 = vadd.f32 %v6411, %v6362
        %v6444 = vadd.f32 %v6412, %v6366
        %v6445 = vadd.f32 %v6413, %v6368
        %v6446 = vadd.f32 %v6414, %v6372
        %v6447 = vadd.f32 %v6415, %v6374
        %v6448 = vadd.f32 %v6416, %v6378
        %v6449 = vadd.f32 %v6417, %v6380
        %v6450 = vadd.f32 %v6418, %v6384
        %v6451 = vadd.f32 %v6419, %v6386
        %6452 = vst [vmem:[#allocation2] sm:$0xff] %v6420
        %6453 = vst [vmem:[#allocation2 + $0x8] sm:$0xff] %v6421
        %6454 = vst [vmem:[#allocation2 + $0x10] sm:$0xff] %v6422
        %6455 = vst [vmem:[#allocation2 + $0x18] sm:$0xff] %v6423
        %6456 = vst [vmem:[#allocation2 + $0x20] sm:$0xff] %v6424
        %6457 = vst [vmem:[#allocation2 + $0x28] sm:$0xff] %v6425
        %6458 = vst [vmem:[#allocation2 + $0x30] sm:$0xff] %v6426
        %6459 = vst [vmem:[#allocation2 + $0x38] sm:$0xff] %v6427
        %6460 = vst [vmem:[#allocation2 + $0x40] sm:$0xff] %v6428
        %6461 = vst [vmem:[#allocation2 + $0x48] sm:$0xff] %v6429
        %6462 = vst [vmem:[#allocation2 + $0x50] sm:$0xff] %v6430
        %6463 = vst [vmem:[#allocation2 + $0x58] sm:$0xff] %v6431
        %6464 = vst [vmem:[#allocation2 + $0x60] sm:$0xff] %v6432
        %6465 = vst [vmem:[#allocation2 + $0x68] sm:$0xff] %v6433
        %6466 = vst [vmem:[#allocation2 + $0x70] sm:$0xff] %v6434
        %6467 = vst [vmem:[#allocation2 + $0x78] sm:$0xff] %v6435
        %6468 = vst [vmem:[#allocation2 + $0x80] sm:$0xff] %v6436
        %6469 = vst [vmem:[#allocation2 + $0x88] sm:$0xff] %v6437
        %6470 = vst [vmem:[#allocation2 + $0x90] sm:$0xff] %v6438
        %6471 = vst [vmem:[#allocation2 + $0x98] sm:$0xff] %v6439
        %6472 = vst [vmem:[#allocation2 + $0xa0] sm:$0xff] %v6440
        %6473 = vst [vmem:[#allocation2 + $0xa8] sm:$0xff] %v6441
        %6474 = vst [vmem:[#allocation2 + $0xb0] sm:$0xff] %v6442
        %6475 = vst [vmem:[#allocation2 + $0xb8] sm:$0xff] %v6443
        %6476 = vst [vmem:[#allocation2 + $0xc0] sm:$0xff] %v6444
        %6477 = vst [vmem:[#allocation2 + $0xc8] sm:$0xff] %v6445
        %6478 = vst [vmem:[#allocation2 + $0xd0] sm:$0xff] %v6446
        %6479 = vst [vmem:[#allocation2 + $0xd8] sm:$0xff] %v6447
        %6480 = vst [vmem:[#allocation2 + $0xe0] sm:$0xff] %v6448
        %6481 = vst [vmem:[#allocation2 + $0xe8] sm:$0xff] %v6449
        %6482 = vst [vmem:[#allocation2 + $0xf0] sm:$0xff] %v6450
        %6483 = vst [vmem:[#allocation2 + $0xf8] sm:$0xff] %v6451
        %s6484 = smul.u32 %s309, 32
        %s6485 = scalar_lea.vmem %s303, %s6484
        %v6486 = vld [vmem:[%s6485] sm:$0xff]
        %v6487 = vld [vmem:[%s6485 + $0x8] sm:$0xff]
        %v6488 = vld [vmem:[%s6485 + $0x20] sm:$0xff]
        %v6489 = vld [vmem:[%s6485 + $0x28] sm:$0xff]
        %v6490 = vld [vmem:[%s6485 + $0x40] sm:$0xff]
        %v6491 = vld [vmem:[%s6485 + $0x48] sm:$0xff]
        %v6492 = vld [vmem:[%s6485 + $0x60] sm:$0xff]
        %v6493 = vld [vmem:[%s6485 + $0x68] sm:$0xff]
        %v6494 = vld [vmem:[%s6485 + $0x80] sm:$0xff]
        %v6495 = vld [vmem:[%s6485 + $0x88] sm:$0xff]
        %v6496 = vld [vmem:[%s6485 + $0xa0] sm:$0xff]
        %v6497 = vld [vmem:[%s6485 + $0xa8] sm:$0xff]
        %v6498 = vld [vmem:[%s6485 + $0xc0] sm:$0xff]
        %v6499 = vld [vmem:[%s6485 + $0xc8] sm:$0xff]
        %v6500 = vld [vmem:[%s6485 + $0xe0] sm:$0xff]
        %v6501 = vld [vmem:[%s6485 + $0xe8] sm:$0xff]
        %s6502 = scalar_lea.vmem %s1, 1216
        %v6503 = vld [vmem:[%s6502] sm:$0xff]
        %v6504 = vld [vmem:[%s6502 + $0x8] sm:$0xff]
        %v6505 = vld [vmem:[%s6502 + $0x10] sm:$0xff]
        %v6506 = vld [vmem:[%s6502 + $0x18] sm:$0xff]
        %v6507 = vld [vmem:[%s6502 + $0x20] sm:$0xff]
        %v6508 = vld [vmem:[%s6502 + $0x28] sm:$0xff]
        %v6509 = vld [vmem:[%s6502 + $0x30] sm:$0xff]
        %v6510 = vld [vmem:[%s6502 + $0x38] sm:$0xff]
        %v6511 = vld [vmem:[%s6485 + $0x6] sm:$0xff]
        %v6512 = vld [vmem:[%s6485 + $0xe] sm:$0xff]
        %v6513 = vld [vmem:[%s6485 + $0x26] sm:$0xff]
        %v6514 = vld [vmem:[%s6485 + $0x2e] sm:$0xff]
        %v6515 = vld [vmem:[%s6485 + $0x46] sm:$0xff]
        %v6516 = vld [vmem:[%s6485 + $0x4e] sm:$0xff]
        %v6517 = vld [vmem:[%s6485 + $0x66] sm:$0xff]
        %v6518 = vld [vmem:[%s6485 + $0x6e] sm:$0xff]
        %v6519 = vld [vmem:[%s6485 + $0x86] sm:$0xff]
        %v6520 = vld [vmem:[%s6485 + $0x8e] sm:$0xff]
        %v6521 = vld [vmem:[%s6485 + $0xa6] sm:$0xff]
        %v6522 = vld [vmem:[%s6485 + $0xae] sm:$0xff]
        %v6523 = vld [vmem:[%s6485 + $0xc6] sm:$0xff]
        %v6524 = vld [vmem:[%s6485 + $0xce] sm:$0xff]
        %v6525 = vld [vmem:[%s6485 + $0xe6] sm:$0xff]
        %v6526 = vld [vmem:[%s6485 + $0xee] sm:$0xff]
        %s6527 = scalar_lea.vmem %s1, 1280
        %v6528 = vld [vmem:[%s6527] sm:$0xff]
        %v6529 = vld [vmem:[%s6527 + $0x8] sm:$0xff]
        %v6530 = vld [vmem:[%s6527 + $0x10] sm:$0xff]
        %v6531 = vld [vmem:[%s6527 + $0x18] sm:$0xff]
        %v6532 = vld [vmem:[%s6527 + $0x20] sm:$0xff]
        %v6533 = vld [vmem:[%s6527 + $0x28] sm:$0xff]
        %v6534 = vld [vmem:[%s6527 + $0x30] sm:$0xff]
        %v6535 = vld [vmem:[%s6527 + $0x38] sm:$0xff]
        %v6537 = vsel %vm337, %v6511, 0
        %v6540 = vsel %vm337, %v6512, 0
        %v6543 = vsel %vm337, %v6513, 0
        %v6546 = vsel %vm337, %v6514, 0
        %v6549 = vsel %vm337, %v6515, 0
        %v6552 = vsel %vm337, %v6516, 0
        %v6555 = vsel %vm337, %v6517, 0
        %v6558 = vsel %vm337, %v6518, 0
        %v6561 = vsel %vm337, %v6519, 0
        %v6564 = vsel %vm337, %v6520, 0
        %v6567 = vsel %vm337, %v6521, 0
        %v6570 = vsel %vm337, %v6522, 0
        %v6573 = vsel %vm337, %v6523, 0
        %v6576 = vsel %vm337, %v6524, 0
        %v6579 = vsel %vm337, %v6525, 0
        %v6582 = vsel %vm337, %v6526, 0
        %6584 = vmatprep.subr.mxu0 %v6529
        %6585 = vmatpush1.msra.mxu0 %v6528
        %6586 = vmatprep.subr.mxu0 %v6531
        %6587 = vmatpush1.msra.mxu0 %v6530
        %6588 = vmatprep.subr.mxu0 %v6533
        %6589 = vmatpush1.msra.mxu0 %v6532
        %6590 = vmatprep.subr.mxu0 %v6535
        %6591 = vmatpush1.msra.mxu0 %v6534
        %6592 = vmatprep.subr.mxu0 0.0
        %6593 = vmatpush1.msra.mxu0 0.0
        %6594 = vmatprep.subr.mxu0 0.0
        %6595 = vmatpush1.msra.mxu0 0.0
        %6596 = vmatprep.subr.mxu0 0.0
        %6597 = vmatpush1.msra.mxu0 0.0
        %6598 = vmatprep.subr.mxu0 0.0
        %6599 = vmatpush1.msra.mxu0 0.0
        %6600 = vmatprep.subr.mxu0 0.0
        %6601 = vmatpush1.msra.mxu0 0.0
        %6602 = vmatprep.subr.mxu0 0.0
        %6603 = vmatpush1.msra.mxu0 0.0
        %6604 = vmatprep.subr.mxu0 0.0
        %6605 = vmatpush1.msra.mxu0 0.0
        %6606 = vmatprep.subr.mxu0 0.0
        %6607 = vmatpush1.msra.mxu0 0.0
        %6608 = vmatprep.subr.mxu0 0.0
        %6609 = vmatpush1.msra.mxu0 0.0
        %6610 = vmatprep.subr.mxu0 0.0
        %6611 = vmatpush1.msra.mxu0 0.0
        %6612 = vmatprep.subr.mxu0 0.0
        %6613 = vmatpush1.msra.mxu0 0.0
        %6614 = vmatprep.subr.mxu0 0.0
        %6615 = vmatpush1.msra.mxu0 0.0
        %6616 = vmatprep.subr.mxu0 0.0
        %6617 = vmatpush1.msra.mxu0 0.0
        %6618 = vmatprep.subr.mxu0 0.0
        %6619 = vmatpush1.msra.mxu0 0.0
        %6620 = vmatprep.subr.mxu0 0.0
        %6621 = vmatpush1.msra.mxu0 0.0
        %6622 = vmatprep.subr.mxu0 0.0
        %6623 = vmatpush1.msra.mxu0 0.0
        %6624 = vmatprep.subr.mxu0 0.0
        %6625 = vmatpush1.msra.mxu0 0.0
        %6626 = vmatprep.subr.mxu0 0.0
        %6627 = vmatpush1.msra.mxu0 0.0
        %6628 = vmatprep.subr.mxu0 0.0
        %6629 = vmatpush1.msra.mxu0 0.0
        %6630 = vmatprep.subr.mxu0 0.0
        %6631 = vmatpush1.msra.mxu0 0.0
        %6632 = vmatprep.subr.mxu0 0.0
        %6633 = vmatpush1.msra.mxu0 0.0
        %6634 = vmatprep.subr.mxu0 0.0
        %6635 = vmatpush1.msra.mxu0 0.0
        %6636 = vmatprep.subr.mxu0 0.0
        %6637 = vmatpush1.msra.mxu0 0.0
        %6638 = vmatprep.subr.mxu0 0.0
        %6639 = vmatpush1.msra.mxu0 0.0
        %6640 = vmatprep.subr.mxu0 0.0
        %6641 = vmatpush1.msra.mxu0 0.0
        %6642 = vmatprep.subr.mxu0 0.0
        %6643 = vmatpush1.msra.mxu0 0.0
        %6644 = vmatprep.subr.mxu0 0.0
        %6645 = vmatpush1.msra.mxu0 0.0
        %6646 = vmatprep.subr.mxu0 0.0
        %6647 = vmatpush1.msra.mxu0 0.0
        %6648 = vmatprep.mubr.f32.mxu0 0.0
        %6649 = vmatmul.mubr.f32.gmra.mrb[0].mxu0 %v6537
        %v6650 = vpop.f32.mrb[0].mxu0
        %v6651 = vadd.f32 0.0, %v6650
        %v6652 = vpop.f32.mrb[0].mxu0
        %v6653 = vadd.f32 0.0, %v6652
        %6654 = vmatprep.mubr.f32.mxu0 0.0
        %6655 = vmatmul.mubr.f32.gmra.mrb[0].mxu0 %v6540
        %v6656 = vpop.f32.mrb[0].mxu0
        %v6657 = vadd.f32 0.0, %v6656
        %v6658 = vpop.f32.mrb[0].mxu0
        %v6659 = vadd.f32 0.0, %v6658
        %6660 = vmatprep.mubr.f32.mxu0 0.0
        %6661 = vmatmul.mubr.f32.gmra.mrb[0].mxu0 %v6543
        %v6662 = vpop.f32.mrb[0].mxu0
        %v6663 = vadd.f32 0.0, %v6662
        %v6664 = vpop.f32.mrb[0].mxu0
        %v6665 = vadd.f32 0.0, %v6664
        %6666 = vmatprep.mubr.f32.mxu0 0.0
        %6667 = vmatmul.mubr.f32.gmra.mrb[0].mxu0 %v6546
        %v6668 = vpop.f32.mrb[0].mxu0
        %v6669 = vadd.f32 0.0, %v6668
        %v6670 = vpop.f32.mrb[0].mxu0
        %v6671 = vadd.f32 0.0, %v6670
        %6672 = vmatprep.mubr.f32.mxu0 0.0
        %6673 = vmatmul.mubr.f32.gmra.mrb[0].mxu0 %v6549
        %v6674 = vpop.f32.mrb[0].mxu0
        %v6675 = vadd.f32 0.0, %v6674
        %v6676 = vpop.f32.mrb[0].mxu0
        %v6677 = vadd.f32 0.0, %v6676
        %6678 = vmatprep.mubr.f32.mxu0 0.0
        %6679 = vmatmul.mubr.f32.gmra.mrb[0].mxu0 %v6552
        %v6680 = vpop.f32.mrb[0].mxu0
        %v6681 = vadd.f32 0.0, %v6680
        %v6682 = vpop.f32.mrb[0].mxu0
        %v6683 = vadd.f32 0.0, %v6682
        %6684 = vmatprep.mubr.f32.mxu0 0.0
        %6685 = vmatmul.mubr.f32.gmra.mrb[0].mxu0 %v6555
        %v6686 = vpop.f32.mrb[0].mxu0
        %v6687 = vadd.f32 0.0, %v6686
        %v6688 = vpop.f32.mrb[0].mxu0
        %v6689 = vadd.f32 0.0, %v6688
        %6690 = vmatprep.mubr.f32.mxu0 0.0
        %6691 = vmatmul.mubr.f32.gmra.mrb[0].mxu0 %v6558
        %v6692 = vpop.f32.mrb[0].mxu0
        %v6693 = vadd.f32 0.0, %v6692
        %v6694 = vpop.f32.mrb[0].mxu0
        %v6695 = vadd.f32 0.0, %v6694
        %6696 = vmatprep.mubr.f32.mxu0 0.0
        %6697 = vmatmul.mubr.f32.gmra.mrb[0].mxu0 %v6561
        %v6698 = vpop.f32.mrb[0].mxu0
        %v6699 = vadd.f32 0.0, %v6698
        %v6700 = vpop.f32.mrb[0].mxu0
        %v6701 = vadd.f32 0.0, %v6700
        %6702 = vmatprep.mubr.f32.mxu0 0.0
        %6703 = vmatmul.mubr.f32.gmra.mrb[0].mxu0 %v6564
        %v6704 = vpop.f32.mrb[0].mxu0
        %v6705 = vadd.f32 0.0, %v6704
        %v6706 = vpop.f32.mrb[0].mxu0
        %v6707 = vadd.f32 0.0, %v6706
        %6708 = vmatprep.mubr.f32.mxu0 0.0
        %6709 = vmatmul.mubr.f32.gmra.mrb[0].mxu0 %v6567
        %v6710 = vpop.f32.mrb[0].mxu0
        %v6711 = vadd.f32 0.0, %v6710
        %v6712 = vpop.f32.mrb[0].mxu0
        %v6713 = vadd.f32 0.0, %v6712
        %6714 = vmatprep.mubr.f32.mxu0 0.0
        %6715 = vmatmul.mubr.f32.gmra.mrb[0].mxu0 %v6570
        %v6716 = vpop.f32.mrb[0].mxu0
        %v6717 = vadd.f32 0.0, %v6716
        %v6718 = vpop.f32.mrb[0].mxu0
        %v6719 = vadd.f32 0.0, %v6718
        %6720 = vmatprep.mubr.f32.mxu0 0.0
        %6721 = vmatmul.mubr.f32.gmra.mrb[0].mxu0 %v6573
        %v6722 = vpop.f32.mrb[0].mxu0
        %v6723 = vadd.f32 0.0, %v6722
        %v6724 = vpop.f32.mrb[0].mxu0
        %v6725 = vadd.f32 0.0, %v6724
        %6726 = vmatprep.mubr.f32.mxu0 0.0
        %6727 = vmatmul.mubr.f32.gmra.mrb[0].mxu0 %v6576
        %v6728 = vpop.f32.mrb[0].mxu0
        %v6729 = vadd.f32 0.0, %v6728
        %v6730 = vpop.f32.mrb[0].mxu0
        %v6731 = vadd.f32 0.0, %v6730
        %6732 = vmatprep.mubr.f32.mxu0 0.0
        %6733 = vmatmul.mubr.f32.gmra.mrb[0].mxu0 %v6579
        %v6734 = vpop.f32.mrb[0].mxu0
        %v6735 = vadd.f32 0.0, %v6734
        %v6736 = vpop.f32.mrb[0].mxu0
        %v6737 = vadd.f32 0.0, %v6736
        %6738 = vmatprep.mubr.f32.mxu0 0.0
        %6739 = vmatmul.mubr.f32.gmra.mrb[0].mxu0 %v6582
        %v6740 = vpop.f32.mrb[0].mxu0
        %v6741 = vadd.f32 0.0, %v6740
        %v6742 = vpop.f32.mrb[0].mxu0
        %v6743 = vadd.f32 0.0, %v6742
        %6744 = vdwg.mxu0
        %v6746 = vsel %vm337, %v6486, 0
        %v6749 = vsel %vm337, %v6487, 0
        %v6752 = vsel %vm337, %v6488, 0
        %v6755 = vsel %vm337, %v6489, 0
        %v6758 = vsel %vm337, %v6490, 0
        %v6761 = vsel %vm337, %v6491, 0
        %v6764 = vsel %vm337, %v6492, 0
        %v6767 = vsel %vm337, %v6493, 0
        %v6770 = vsel %vm337, %v6494, 0
        %v6773 = vsel %vm337, %v6495, 0
        %v6776 = vsel %vm337, %v6496, 0
        %v6779 = vsel %vm337, %v6497, 0
        %v6782 = vsel %vm337, %v6498, 0
        %v6785 = vsel %vm337, %v6499, 0
        %v6788 = vsel %vm337, %v6500, 0
        %v6791 = vsel %vm337, %v6501, 0
        %6793 = vmatprep.subr.mxu0 %v6504
        %6794 = vmatpush1.msra.mxu0 %v6503
        %6795 = vmatprep.subr.mxu0 %v6506
        %6796 = vmatpush1.msra.mxu0 %v6505
        %6797 = vmatprep.subr.mxu0 %v6508
        %6798 = vmatpush1.msra.mxu0 %v6507
        %6799 = vmatprep.subr.mxu0 %v6510
        %6800 = vmatpush1.msra.mxu0 %v6509
        %6801 = vmatprep.subr.mxu0 0.0
        %6802 = vmatpush1.msra.mxu0 0.0
        %6803 = vmatprep.subr.mxu0 0.0
        %6804 = vmatpush1.msra.mxu0 0.0
        %6805 = vmatprep.subr.mxu0 0.0
        %6806 = vmatpush1.msra.mxu0 0.0
        %6807 = vmatprep.subr.mxu0 0.0
        %6808 = vmatpush1.msra.mxu0 0.0
        %6809 = vmatprep.subr.mxu0 0.0
        %6810 = vmatpush1.msra.mxu0 0.0
        %6811 = vmatprep.subr.mxu0 0.0
        %6812 = vmatpush1.msra.mxu0 0.0
        %6813 = vmatprep.subr.mxu0 0.0
        %6814 = vmatpush1.msra.mxu0 0.0
        %6815 = vmatprep.subr.mxu0 0.0
        %6816 = vmatpush1.msra.mxu0 0.0
        %6817 = vmatprep.subr.mxu0 0.0
        %6818 = vmatpush1.msra.mxu0 0.0
        %6819 = vmatprep.subr.mxu0 0.0
        %6820 = vmatpush1.msra.mxu0 0.0
        %6821 = vmatprep.subr.mxu0 0.0
        %6822 = vmatpush1.msra.mxu0 0.0
        %6823 = vmatprep.subr.mxu0 0.0
        %6824 = vmatpush1.msra.mxu0 0.0
        %6825 = vmatprep.subr.mxu0 0.0
        %6826 = vmatpush1.msra.mxu0 0.0
        %6827 = vmatprep.subr.mxu0 0.0
        %6828 = vmatpush1.msra.mxu0 0.0
        %6829 = vmatprep.subr.mxu0 0.0
        %6830 = vmatpush1.msra.mxu0 0.0
        %6831 = vmatprep.subr.mxu0 0.0
        %6832 = vmatpush1.msra.mxu0 0.0
        %6833 = vmatprep.subr.mxu0 0.0
        %6834 = vmatpush1.msra.mxu0 0.0
        %6835 = vmatprep.subr.mxu0 0.0
        %6836 = vmatpush1.msra.mxu0 0.0
        %6837 = vmatprep.subr.mxu0 0.0
        %6838 = vmatpush1.msra.mxu0 0.0
        %6839 = vmatprep.subr.mxu0 0.0
        %6840 = vmatpush1.msra.mxu0 0.0
        %6841 = vmatprep.subr.mxu0 0.0
        %6842 = vmatpush1.msra.mxu0 0.0
        %6843 = vmatprep.subr.mxu0 0.0
        %6844 = vmatpush1.msra.mxu0 0.0
        %6845 = vmatprep.subr.mxu0 0.0
        %6846 = vmatpush1.msra.mxu0 0.0
        %6847 = vmatprep.subr.mxu0 0.0
        %6848 = vmatpush1.msra.mxu0 0.0
        %6849 = vmatprep.subr.mxu0 0.0
        %6850 = vmatpush1.msra.mxu0 0.0
        %6851 = vmatprep.subr.mxu0 0.0
        %6852 = vmatpush1.msra.mxu0 0.0
        %6853 = vmatprep.subr.mxu0 0.0
        %6854 = vmatpush1.msra.mxu0 0.0
        %6855 = vmatprep.subr.mxu0 0.0
        %6856 = vmatpush1.msra.mxu0 0.0
        %6857 = vmatprep.mubr.f32.mxu0 0.0
        %6858 = vmatmul.mubr.f32.gmra.mrb[0].mxu0 %v6746
        %v6859 = vpop.f32.mrb[0].mxu0
        %v6860 = vadd.f32 %v6651, %v6859
        %v6861 = vpop.f32.mrb[0].mxu0
        %v6862 = vadd.f32 %v6653, %v6861
        %6863 = vmatprep.mubr.f32.mxu0 0.0
        %6864 = vmatmul.mubr.f32.gmra.mrb[0].mxu0 %v6749
        %v6865 = vpop.f32.mrb[0].mxu0
        %v6866 = vadd.f32 %v6657, %v6865
        %v6867 = vpop.f32.mrb[0].mxu0
        %v6868 = vadd.f32 %v6659, %v6867
        %6869 = vmatprep.mubr.f32.mxu0 0.0
        %6870 = vmatmul.mubr.f32.gmra.mrb[0].mxu0 %v6752
        %v6871 = vpop.f32.mrb[0].mxu0
        %v6872 = vadd.f32 %v6663, %v6871
        %v6873 = vpop.f32.mrb[0].mxu0
        %v6874 = vadd.f32 %v6665, %v6873
        %6875 = vmatprep.mubr.f32.mxu0 0.0
        %6876 = vmatmul.mubr.f32.gmra.mrb[0].mxu0 %v6755
        %v6877 = vpop.f32.mrb[0].mxu0
        %v6878 = vadd.f32 %v6669, %v6877
        %v6879 = vpop.f32.mrb[0].mxu0
        %v6880 = vadd.f32 %v6671, %v6879
        %6881 = vmatprep.mubr.f32.mxu0 0.0
        %6882 = vmatmul.mubr.f32.gmra.mrb[0].mxu0 %v6758
        %v6883 = vpop.f32.mrb[0].mxu0
        %v6884 = vadd.f32 %v6675, %v6883
        %v6885 = vpop.f32.mrb[0].mxu0
        %v6886 = vadd.f32 %v6677, %v6885
        %6887 = vmatprep.mubr.f32.mxu0 0.0
        %6888 = vmatmul.mubr.f32.gmra.mrb[0].mxu0 %v6761
        %v6889 = vpop.f32.mrb[0].mxu0
        %v6890 = vadd.f32 %v6681, %v6889
        %v6891 = vpop.f32.mrb[0].mxu0
        %v6892 = vadd.f32 %v6683, %v6891
        %6893 = vmatprep.mubr.f32.mxu0 0.0
        %6894 = vmatmul.mubr.f32.gmra.mrb[0].mxu0 %v6764
        %v6895 = vpop.f32.mrb[0].mxu0
        %v6896 = vadd.f32 %v6687, %v6895
        %v6897 = vpop.f32.mrb[0].mxu0
        %v6898 = vadd.f32 %v6689, %v6897
        %6899 = vmatprep.mubr.f32.mxu0 0.0
        %6900 = vmatmul.mubr.f32.gmra.mrb[0].mxu0 %v6767
        %v6901 = vpop.f32.mrb[0].mxu0
        %v6902 = vadd.f32 %v6693, %v6901
        %v6903 = vpop.f32.mrb[0].mxu0
        %v6904 = vadd.f32 %v6695, %v6903
        %6905 = vmatprep.mubr.f32.mxu0 0.0
        %6906 = vmatmul.mubr.f32.gmra.mrb[0].mxu0 %v6770
        %v6907 = vpop.f32.mrb[0].mxu0
        %v6908 = vadd.f32 %v6699, %v6907
        %v6909 = vpop.f32.mrb[0].mxu0
        %v6910 = vadd.f32 %v6701, %v6909
        %6911 = vmatprep.mubr.f32.mxu0 0.0
        %6912 = vmatmul.mubr.f32.gmra.mrb[0].mxu0 %v6773
        %v6913 = vpop.f32.mrb[0].mxu0
        %v6914 = vadd.f32 %v6705, %v6913
        %v6915 = vpop.f32.mrb[0].mxu0
        %v6916 = vadd.f32 %v6707, %v6915
        %6917 = vmatprep.mubr.f32.mxu0 0.0
        %6918 = vmatmul.mubr.f32.gmra.mrb[0].mxu0 %v6776
        %v6919 = vpop.f32.mrb[0].mxu0
        %v6920 = vadd.f32 %v6711, %v6919
        %v6921 = vpop.f32.mrb[0].mxu0
        %v6922 = vadd.f32 %v6713, %v6921
        %6923 = vmatprep.mubr.f32.mxu0 0.0
        %6924 = vmatmul.mubr.f32.gmra.mrb[0].mxu0 %v6779
        %v6925 = vpop.f32.mrb[0].mxu0
        %v6926 = vadd.f32 %v6717, %v6925
        %v6927 = vpop.f32.mrb[0].mxu0
        %v6928 = vadd.f32 %v6719, %v6927
        %6929 = vmatprep.mubr.f32.mxu0 0.0
        %6930 = vmatmul.mubr.f32.gmra.mrb[0].mxu0 %v6782
        %v6931 = vpop.f32.mrb[0].mxu0
        %v6932 = vadd.f32 %v6723, %v6931
        %v6933 = vpop.f32.mrb[0].mxu0
        %v6934 = vadd.f32 %v6725, %v6933
        %6935 = vmatprep.mubr.f32.mxu0 0.0
        %6936 = vmatmul.mubr.f32.gmra.mrb[0].mxu0 %v6785
        %v6937 = vpop.f32.mrb[0].mxu0
        %v6938 = vadd.f32 %v6729, %v6937
        %v6939 = vpop.f32.mrb[0].mxu0
        %v6940 = vadd.f32 %v6731, %v6939
        %6941 = vmatprep.mubr.f32.mxu0 0.0
        %6942 = vmatmul.mubr.f32.gmra.mrb[0].mxu0 %v6788
        %v6943 = vpop.f32.mrb[0].mxu0
        %v6944 = vadd.f32 %v6735, %v6943
        %v6945 = vpop.f32.mrb[0].mxu0
        %v6946 = vadd.f32 %v6737, %v6945
        %6947 = vmatprep.mubr.f32.mxu0 0.0
        %6948 = vmatmul.mubr.f32.gmra.mrb[0].mxu0 %v6791
        %v6949 = vpop.f32.mrb[0].mxu0
        %v6950 = vadd.f32 %v6741, %v6949
        %v6951 = vpop.f32.mrb[0].mxu0
        %v6952 = vadd.f32 %v6743, %v6951
        %6953 = vdwg.mxu0
        %v6954 = vld [vmem:[%s6485 + $0xc] sm:$0xff]
        %v6955 = vld [vmem:[%s6485 + $0x14] sm:$0xff]
        %v6956 = vld [vmem:[%s6485 + $0x2c] sm:$0xff]
        %v6957 = vld [vmem:[%s6485 + $0x34] sm:$0xff]
        %v6958 = vld [vmem:[%s6485 + $0x4c] sm:$0xff]
        %v6959 = vld [vmem:[%s6485 + $0x54] sm:$0xff]
        %v6960 = vld [vmem:[%s6485 + $0x6c] sm:$0xff]
        %v6961 = vld [vmem:[%s6485 + $0x74] sm:$0xff]
        %v6962 = vld [vmem:[%s6485 + $0x8c] sm:$0xff]
        %v6963 = vld [vmem:[%s6485 + $0x94] sm:$0xff]
        %v6964 = vld [vmem:[%s6485 + $0xac] sm:$0xff]
        %v6965 = vld [vmem:[%s6485 + $0xb4] sm:$0xff]
        %v6966 = vld [vmem:[%s6485 + $0xcc] sm:$0xff]
        %v6967 = vld [vmem:[%s6485 + $0xd4] sm:$0xff]
        %v6968 = vld [vmem:[%s6485 + $0xec] sm:$0xff]
        %v6969 = vld [vmem:[%s6485 + $0xf4] sm:$0xff]
        %s6970 = scalar_lea.vmem %s1, 1344
        %v6971 = vld [vmem:[%s6970] sm:$0xff]
        %v6972 = vld [vmem:[%s6970 + $0x8] sm:$0xff]
        %v6973 = vld [vmem:[%s6970 + $0x10] sm:$0xff]
        %v6974 = vld [vmem:[%s6970 + $0x18] sm:$0xff]
        %v6975 = vld [vmem:[%s6970 + $0x20] sm:$0xff]
        %v6976 = vld [vmem:[%s6970 + $0x28] sm:$0xff]
        %v6977 = vld [vmem:[%s6970 + $0x30] sm:$0xff]
        %v6978 = vld [vmem:[%s6970 + $0x38] sm:$0xff]
        %v6980 = vsel %vm337, %v6954, 0
        %v6983 = vsel %vm337, %v6955, 0
        %v6986 = vsel %vm337, %v6956, 0
        %v6989 = vsel %vm337, %v6957, 0
        %v6992 = vsel %vm337, %v6958, 0
        %v6995 = vsel %vm337, %v6959, 0
        %v6998 = vsel %vm337, %v6960, 0
        %v7001 = vsel %vm337, %v6961, 0
        %v7004 = vsel %vm337, %v6962, 0
        %v7007 = vsel %vm337, %v6963, 0
        %v7010 = vsel %vm337, %v6964, 0
        %v7013 = vsel %vm337, %v6965, 0
        %v7016 = vsel %vm337, %v6966, 0
        %v7019 = vsel %vm337, %v6967, 0
        %v7022 = vsel %vm337, %v6968, 0
        %v7025 = vsel %vm337, %v6969, 0
        %7027 = vmatprep.subr.mxu0 %v6972
        %7028 = vmatpush1.msra.mxu0 %v6971
        %7029 = vmatprep.subr.mxu0 %v6974
        %7030 = vmatpush1.msra.mxu0 %v6973
        %7031 = vmatprep.subr.mxu0 %v6976
        %7032 = vmatpush1.msra.mxu0 %v6975
        %7033 = vmatprep.subr.mxu0 %v6978
        %7034 = vmatpush1.msra.mxu0 %v6977
        %7035 = vmatprep.subr.mxu0 0.0
        %7036 = vmatpush1.msra.mxu0 0.0
        %7037 = vmatprep.subr.mxu0 0.0
        %7038 = vmatpush1.msra.mxu0 0.0
        %7039 = vmatprep.subr.mxu0 0.0
        %7040 = vmatpush1.msra.mxu0 0.0
        %7041 = vmatprep.subr.mxu0 0.0
        %7042 = vmatpush1.msra.mxu0 0.0
        %7043 = vmatprep.subr.mxu0 0.0
        %7044 = vmatpush1.msra.mxu0 0.0
        %7045 = vmatprep.subr.mxu0 0.0
        %7046 = vmatpush1.msra.mxu0 0.0
        %7047 = vmatprep.subr.mxu0 0.0
        %7048 = vmatpush1.msra.mxu0 0.0
        %7049 = vmatprep.subr.mxu0 0.0
        %7050 = vmatpush1.msra.mxu0 0.0
        %7051 = vmatprep.subr.mxu0 0.0
        %7052 = vmatpush1.msra.mxu0 0.0
        %7053 = vmatprep.subr.mxu0 0.0
        %7054 = vmatpush1.msra.mxu0 0.0
        %7055 = vmatprep.subr.mxu0 0.0
        %7056 = vmatpush1.msra.mxu0 0.0
        %7057 = vmatprep.subr.mxu0 0.0
        %7058 = vmatpush1.msra.mxu0 0.0
        %7059 = vmatprep.subr.mxu0 0.0
        %7060 = vmatpush1.msra.mxu0 0.0
        %7061 = vmatprep.subr.mxu0 0.0
        %7062 = vmatpush1.msra.mxu0 0.0
        %7063 = vmatprep.subr.mxu0 0.0
        %7064 = vmatpush1.msra.mxu0 0.0
        %7065 = vmatprep.subr.mxu0 0.0
        %7066 = vmatpush1.msra.mxu0 0.0
        %7067 = vmatprep.subr.mxu0 0.0
        %7068 = vmatpush1.msra.mxu0 0.0
        %7069 = vmatprep.subr.mxu0 0.0
        %7070 = vmatpush1.msra.mxu0 0.0
        %7071 = vmatprep.subr.mxu0 0.0
        %7072 = vmatpush1.msra.mxu0 0.0
        %7073 = vmatprep.subr.mxu0 0.0
        %7074 = vmatpush1.msra.mxu0 0.0
        %7075 = vmatprep.subr.mxu0 0.0
        %7076 = vmatpush1.msra.mxu0 0.0
        %7077 = vmatprep.subr.mxu0 0.0
        %7078 = vmatpush1.msra.mxu0 0.0
        %7079 = vmatprep.subr.mxu0 0.0
        %7080 = vmatpush1.msra.mxu0 0.0
        %7081 = vmatprep.subr.mxu0 0.0
        %7082 = vmatpush1.msra.mxu0 0.0
        %7083 = vmatprep.subr.mxu0 0.0
        %7084 = vmatpush1.msra.mxu0 0.0
        %7085 = vmatprep.subr.mxu0 0.0
        %7086 = vmatpush1.msra.mxu0 0.0
        %7087 = vmatprep.subr.mxu0 0.0
        %7088 = vmatpush1.msra.mxu0 0.0
        %7089 = vmatprep.subr.mxu0 0.0
        %7090 = vmatpush1.msra.mxu0 0.0
        %7091 = vmatprep.mubr.f32.mxu0 0.0
        %7092 = vmatmul.mubr.f32.gmra.mrb[0].mxu0 %v6980
        %v7093 = vpop.f32.mrb[0].mxu0
        %v7094 = vadd.f32 0.0, %v7093
        %v7095 = vpop.f32.mrb[0].mxu0
        %v7096 = vadd.f32 0.0, %v7095
        %7097 = vmatprep.mubr.f32.mxu0 0.0
        %7098 = vmatmul.mubr.f32.gmra.mrb[0].mxu0 %v6983
        %v7099 = vpop.f32.mrb[0].mxu0
        %v7100 = vadd.f32 0.0, %v7099
        %v7101 = vpop.f32.mrb[0].mxu0
        %v7102 = vadd.f32 0.0, %v7101
        %7103 = vmatprep.mubr.f32.mxu0 0.0
        %7104 = vmatmul.mubr.f32.gmra.mrb[0].mxu0 %v6986
        %v7105 = vpop.f32.mrb[0].mxu0
        %v7106 = vadd.f32 0.0, %v7105
        %v7107 = vpop.f32.mrb[0].mxu0
        %v7108 = vadd.f32 0.0, %v7107
        %7109 = vmatprep.mubr.f32.mxu0 0.0
        %7110 = vmatmul.mubr.f32.gmra.mrb[0].mxu0 %v6989
        %v7111 = vpop.f32.mrb[0].mxu0
        %v7112 = vadd.f32 0.0, %v7111
        %v7113 = vpop.f32.mrb[0].mxu0
        %v7114 = vadd.f32 0.0, %v7113
        %7115 = vmatprep.mubr.f32.mxu0 0.0
        %7116 = vmatmul.mubr.f32.gmra.mrb[0].mxu0 %v6992
        %v7117 = vpop.f32.mrb[0].mxu0
        %v7118 = vadd.f32 0.0, %v7117
        %v7119 = vpop.f32.mrb[0].mxu0
        %v7120 = vadd.f32 0.0, %v7119
        %7121 = vmatprep.mubr.f32.mxu0 0.0
        %7122 = vmatmul.mubr.f32.gmra.mrb[0].mxu0 %v6995
        %v7123 = vpop.f32.mrb[0].mxu0
        %v7124 = vadd.f32 0.0, %v7123
        %v7125 = vpop.f32.mrb[0].mxu0
        %v7126 = vadd.f32 0.0, %v7125
        %7127 = vmatprep.mubr.f32.mxu0 0.0
        %7128 = vmatmul.mubr.f32.gmra.mrb[0].mxu0 %v6998
        %v7129 = vpop.f32.mrb[0].mxu0
        %v7130 = vadd.f32 0.0, %v7129
        %v7131 = vpop.f32.mrb[0].mxu0
        %v7132 = vadd.f32 0.0, %v7131
        %7133 = vmatprep.mubr.f32.mxu0 0.0
        %7134 = vmatmul.mubr.f32.gmra.mrb[0].mxu0 %v7001
        %v7135 = vpop.f32.mrb[0].mxu0
        %v7136 = vadd.f32 0.0, %v7135
        %v7137 = vpop.f32.mrb[0].mxu0
        %v7138 = vadd.f32 0.0, %v7137
        %7139 = vmatprep.mubr.f32.mxu0 0.0
        %7140 = vmatmul.mubr.f32.gmra.mrb[0].mxu0 %v7004
        %v7141 = vpop.f32.mrb[0].mxu0
        %v7142 = vadd.f32 0.0, %v7141
        %v7143 = vpop.f32.mrb[0].mxu0
        %v7144 = vadd.f32 0.0, %v7143
        %7145 = vmatprep.mubr.f32.mxu0 0.0
        %7146 = vmatmul.mubr.f32.gmra.mrb[0].mxu0 %v7007
        %v7147 = vpop.f32.mrb[0].mxu0
        %v7148 = vadd.f32 0.0, %v7147
        %v7149 = vpop.f32.mrb[0].mxu0
        %v7150 = vadd.f32 0.0, %v7149
        %7151 = vmatprep.mubr.f32.mxu0 0.0
        %7152 = vmatmul.mubr.f32.gmra.mrb[0].mxu0 %v7010
        %v7153 = vpop.f32.mrb[0].mxu0
        %v7154 = vadd.f32 0.0, %v7153
        %v7155 = vpop.f32.mrb[0].mxu0
        %v7156 = vadd.f32 0.0, %v7155
        %7157 = vmatprep.mubr.f32.mxu0 0.0
        %7158 = vmatmul.mubr.f32.gmra.mrb[0].mxu0 %v7013
        %v7159 = vpop.f32.mrb[0].mxu0
        %v7160 = vadd.f32 0.0, %v7159
        %v7161 = vpop.f32.mrb[0].mxu0
        %v7162 = vadd.f32 0.0, %v7161
        %7163 = vmatprep.mubr.f32.mxu0 0.0
        %7164 = vmatmul.mubr.f32.gmra.mrb[0].mxu0 %v7016
        %v7165 = vpop.f32.mrb[0].mxu0
        %v7166 = vadd.f32 0.0, %v7165
        %v7167 = vpop.f32.mrb[0].mxu0
        %v7168 = vadd.f32 0.0, %v7167
        %7169 = vmatprep.mubr.f32.mxu0 0.0
        %7170 = vmatmul.mubr.f32.gmra.mrb[0].mxu0 %v7019
        %v7171 = vpop.f32.mrb[0].mxu0
        %v7172 = vadd.f32 0.0, %v7171
        %v7173 = vpop.f32.mrb[0].mxu0
        %v7174 = vadd.f32 0.0, %v7173
        %7175 = vmatprep.mubr.f32.mxu0 0.0
        %7176 = vmatmul.mubr.f32.gmra.mrb[0].mxu0 %v7022
        %v7177 = vpop.f32.mrb[0].mxu0
        %v7178 = vadd.f32 0.0, %v7177
        %v7179 = vpop.f32.mrb[0].mxu0
        %v7180 = vadd.f32 0.0, %v7179
        %7181 = vmatprep.mubr.f32.mxu0 0.0
        %7182 = vmatmul.mubr.f32.gmra.mrb[0].mxu0 %v7025
        %v7183 = vpop.f32.mrb[0].mxu0
        %v7184 = vadd.f32 0.0, %v7183
        %v7185 = vpop.f32.mrb[0].mxu0
        %v7186 = vadd.f32 0.0, %v7185
        %7187 = vdwg.mxu0
        %v7188 = vadd.f32 %v6860, %v7094
        %v7189 = vadd.f32 %v6862, %v7096
        %v7190 = vadd.f32 %v6866, %v7100
        %v7191 = vadd.f32 %v6868, %v7102
        %v7192 = vadd.f32 %v6872, %v7106
        %v7193 = vadd.f32 %v6874, %v7108
        %v7194 = vadd.f32 %v6878, %v7112
        %v7195 = vadd.f32 %v6880, %v7114
        %v7196 = vadd.f32 %v6884, %v7118
        %v7197 = vadd.f32 %v6886, %v7120
        %v7198 = vadd.f32 %v6890, %v7124
        %v7199 = vadd.f32 %v6892, %v7126
        %v7200 = vadd.f32 %v6896, %v7130
        %v7201 = vadd.f32 %v6898, %v7132
        %v7202 = vadd.f32 %v6902, %v7136
        %v7203 = vadd.f32 %v6904, %v7138
        %v7204 = vadd.f32 %v6908, %v7142
        %v7205 = vadd.f32 %v6910, %v7144
        %v7206 = vadd.f32 %v6914, %v7148
        %v7207 = vadd.f32 %v6916, %v7150
        %v7208 = vadd.f32 %v6920, %v7154
        %v7209 = vadd.f32 %v6922, %v7156
        %v7210 = vadd.f32 %v6926, %v7160
        %v7211 = vadd.f32 %v6928, %v7162
        %v7212 = vadd.f32 %v6932, %v7166
        %v7213 = vadd.f32 %v6934, %v7168
        %v7214 = vadd.f32 %v6938, %v7172
        %v7215 = vadd.f32 %v6940, %v7174
        %v7216 = vadd.f32 %v6944, %v7178
        %v7217 = vadd.f32 %v6946, %v7180
        %v7218 = vadd.f32 %v6950, %v7184
        %v7219 = vadd.f32 %v6952, %v7186
        %v7220 = vld [vmem:[%s312] sm:$0xff]
        %v7221 = vld [vmem:[%s312 + $0x8] sm:$0xff]
        %v7222 = vld [vmem:[%s312 + $0x20] sm:$0xff]
        %v7223 = vld [vmem:[%s312 + $0x28] sm:$0xff]
        %v7224 = vld [vmem:[%s312 + $0x40] sm:$0xff]
        %v7225 = vld [vmem:[%s312 + $0x48] sm:$0xff]
        %v7226 = vld [vmem:[%s312 + $0x60] sm:$0xff]
        %v7227 = vld [vmem:[%s312 + $0x68] sm:$0xff]
        %v7228 = vld [vmem:[%s312 + $0x80] sm:$0xff]
        %v7229 = vld [vmem:[%s312 + $0x88] sm:$0xff]
        %v7230 = vld [vmem:[%s312 + $0xa0] sm:$0xff]
        %v7231 = vld [vmem:[%s312 + $0xa8] sm:$0xff]
        %v7232 = vld [vmem:[%s312 + $0xc0] sm:$0xff]
        %v7233 = vld [vmem:[%s312 + $0xc8] sm:$0xff]
        %v7234 = vld [vmem:[%s312 + $0xe0] sm:$0xff]
        %v7235 = vld [vmem:[%s312 + $0xe8] sm:$0xff]
        %s7236 = scalar_lea.vmem %s1, 1408
        %v7237 = vld [vmem:[%s7236] sm:$0xff]
        %v7238 = vld [vmem:[%s7236 + $0x8] sm:$0xff]
        %v7239 = vld [vmem:[%s7236 + $0x10] sm:$0xff]
        %v7240 = vld [vmem:[%s7236 + $0x18] sm:$0xff]
        %v7241 = vld [vmem:[%s7236 + $0x20] sm:$0xff]
        %v7242 = vld [vmem:[%s7236 + $0x28] sm:$0xff]
        %v7243 = vld [vmem:[%s7236 + $0x30] sm:$0xff]
        %v7244 = vld [vmem:[%s7236 + $0x38] sm:$0xff]
        %v7246 = vsel %vm337, %v7220, 0
        %v7249 = vsel %vm337, %v7221, 0
        %v7252 = vsel %vm337, %v7222, 0
        %v7255 = vsel %vm337, %v7223, 0
        %v7258 = vsel %vm337, %v7224, 0
        %v7261 = vsel %vm337, %v7225, 0
        %v7264 = vsel %vm337, %v7226, 0
        %v7267 = vsel %vm337, %v7227, 0
        %v7270 = vsel %vm337, %v7228, 0
        %v7273 = vsel %vm337, %v7229, 0
        %v7276 = vsel %vm337, %v7230, 0
        %v7279 = vsel %vm337, %v7231, 0
        %v7282 = vsel %vm337, %v7232, 0
        %v7285 = vsel %vm337, %v7233, 0
        %v7288 = vsel %vm337, %v7234, 0
        %v7291 = vsel %vm337, %v7235, 0
        %7293 = vmatprep.subr.mxu0 %v7238
        %7294 = vmatpush1.msra.mxu0 %v7237
        %7295 = vmatprep.subr.mxu0 %v7240
        %7296 = vmatpush1.msra.mxu0 %v7239
        %7297 = vmatprep.subr.mxu0 %v7242
        %7298 = vmatpush1.msra.mxu0 %v7241
        %7299 = vmatprep.subr.mxu0 %v7244
        %7300 = vmatpush1.msra.mxu0 %v7243
        %7301 = vmatprep.subr.mxu0 0.0
        %7302 = vmatpush1.msra.mxu0 0.0
        %7303 = vmatprep.subr.mxu0 0.0
        %7304 = vmatpush1.msra.mxu0 0.0
        %7305 = vmatprep.subr.mxu0 0.0
        %7306 = vmatpush1.msra.mxu0 0.0
        %7307 = vmatprep.subr.mxu0 0.0
        %7308 = vmatpush1.msra.mxu0 0.0
        %7309 = vmatprep.subr.mxu0 0.0
        %7310 = vmatpush1.msra.mxu0 0.0
        %7311 = vmatprep.subr.mxu0 0.0
        %7312 = vmatpush1.msra.mxu0 0.0
        %7313 = vmatprep.subr.mxu0 0.0
        %7314 = vmatpush1.msra.mxu0 0.0
        %7315 = vmatprep.subr.mxu0 0.0
        %7316 = vmatpush1.msra.mxu0 0.0
        %7317 = vmatprep.subr.mxu0 0.0
        %7318 = vmatpush1.msra.mxu0 0.0
        %7319 = vmatprep.subr.mxu0 0.0
        %7320 = vmatpush1.msra.mxu0 0.0
        %7321 = vmatprep.subr.mxu0 0.0
        %7322 = vmatpush1.msra.mxu0 0.0
        %7323 = vmatprep.subr.mxu0 0.0
        %7324 = vmatpush1.msra.mxu0 0.0
        %7325 = vmatprep.subr.mxu0 0.0
        %7326 = vmatpush1.msra.mxu0 0.0
        %7327 = vmatprep.subr.mxu0 0.0
        %7328 = vmatpush1.msra.mxu0 0.0
        %7329 = vmatprep.subr.mxu0 0.0
        %7330 = vmatpush1.msra.mxu0 0.0
        %7331 = vmatprep.subr.mxu0 0.0
        %7332 = vmatpush1.msra.mxu0 0.0
        %7333 = vmatprep.subr.mxu0 0.0
        %7334 = vmatpush1.msra.mxu0 0.0
        %7335 = vmatprep.subr.mxu0 0.0
        %7336 = vmatpush1.msra.mxu0 0.0
        %7337 = vmatprep.subr.mxu0 0.0
        %7338 = vmatpush1.msra.mxu0 0.0
        %7339 = vmatprep.subr.mxu0 0.0
        %7340 = vmatpush1.msra.mxu0 0.0
        %7341 = vmatprep.subr.mxu0 0.0
        %7342 = vmatpush1.msra.mxu0 0.0
        %7343 = vmatprep.subr.mxu0 0.0
        %7344 = vmatpush1.msra.mxu0 0.0
        %7345 = vmatprep.subr.mxu0 0.0
        %7346 = vmatpush1.msra.mxu0 0.0
        %7347 = vmatprep.subr.mxu0 0.0
        %7348 = vmatpush1.msra.mxu0 0.0
        %7349 = vmatprep.subr.mxu0 0.0
        %7350 = vmatpush1.msra.mxu0 0.0
        %7351 = vmatprep.subr.mxu0 0.0
        %7352 = vmatpush1.msra.mxu0 0.0
        %7353 = vmatprep.subr.mxu0 0.0
        %7354 = vmatpush1.msra.mxu0 0.0
        %7355 = vmatprep.subr.mxu0 0.0
        %7356 = vmatpush1.msra.mxu0 0.0
        %7357 = vmatprep.mubr.f32.mxu0 0.0
        %7358 = vmatmul.mubr.f32.gmra.mrb[0].mxu0 %v7246
        %v7359 = vpop.f32.mrb[0].mxu0
        %v7360 = vadd.f32 0.0, %v7359
        %v7361 = vpop.f32.mrb[0].mxu0
        %v7362 = vadd.f32 0.0, %v7361
        %7363 = vmatprep.mubr.f32.mxu0 0.0
        %7364 = vmatmul.mubr.f32.gmra.mrb[0].mxu0 %v7249
        %v7365 = vpop.f32.mrb[0].mxu0
        %v7366 = vadd.f32 0.0, %v7365
        %v7367 = vpop.f32.mrb[0].mxu0
        %v7368 = vadd.f32 0.0, %v7367
        %7369 = vmatprep.mubr.f32.mxu0 0.0
        %7370 = vmatmul.mubr.f32.gmra.mrb[0].mxu0 %v7252
        %v7371 = vpop.f32.mrb[0].mxu0
        %v7372 = vadd.f32 0.0, %v7371
        %v7373 = vpop.f32.mrb[0].mxu0
        %v7374 = vadd.f32 0.0, %v7373
        %7375 = vmatprep.mubr.f32.mxu0 0.0
        %7376 = vmatmul.mubr.f32.gmra.mrb[0].mxu0 %v7255
        %v7377 = vpop.f32.mrb[0].mxu0
        %v7378 = vadd.f32 0.0, %v7377
        %v7379 = vpop.f32.mrb[0].mxu0
        %v7380 = vadd.f32 0.0, %v7379
        %7381 = vmatprep.mubr.f32.mxu0 0.0
        %7382 = vmatmul.mubr.f32.gmra.mrb[0].mxu0 %v7258
        %v7383 = vpop.f32.mrb[0].mxu0
        %v7384 = vadd.f32 0.0, %v7383
        %v7385 = vpop.f32.mrb[0].mxu0
        %v7386 = vadd.f32 0.0, %v7385
        %7387 = vmatprep.mubr.f32.mxu0 0.0
        %7388 = vmatmul.mubr.f32.gmra.mrb[0].mxu0 %v7261
        %v7389 = vpop.f32.mrb[0].mxu0
        %v7390 = vadd.f32 0.0, %v7389
        %v7391 = vpop.f32.mrb[0].mxu0
        %v7392 = vadd.f32 0.0, %v7391
        %7393 = vmatprep.mubr.f32.mxu0 0.0
        %7394 = vmatmul.mubr.f32.gmra.mrb[0].mxu0 %v7264
        %v7395 = vpop.f32.mrb[0].mxu0
        %v7396 = vadd.f32 0.0, %v7395
        %v7397 = vpop.f32.mrb[0].mxu0
        %v7398 = vadd.f32 0.0, %v7397
        %7399 = vmatprep.mubr.f32.mxu0 0.0
        %7400 = vmatmul.mubr.f32.gmra.mrb[0].mxu0 %v7267
        %v7401 = vpop.f32.mrb[0].mxu0
        %v7402 = vadd.f32 0.0, %v7401
        %v7403 = vpop.f32.mrb[0].mxu0
        %v7404 = vadd.f32 0.0, %v7403
        %7405 = vmatprep.mubr.f32.mxu0 0.0
        %7406 = vmatmul.mubr.f32.gmra.mrb[0].mxu0 %v7270
        %v7407 = vpop.f32.mrb[0].mxu0
        %v7408 = vadd.f32 0.0, %v7407
        %v7409 = vpop.f32.mrb[0].mxu0
        %v7410 = vadd.f32 0.0, %v7409
        %7411 = vmatprep.mubr.f32.mxu0 0.0
        %7412 = vmatmul.mubr.f32.gmra.mrb[0].mxu0 %v7273
        %v7413 = vpop.f32.mrb[0].mxu0
        %v7414 = vadd.f32 0.0, %v7413
        %v7415 = vpop.f32.mrb[0].mxu0
        %v7416 = vadd.f32 0.0, %v7415
        %7417 = vmatprep.mubr.f32.mxu0 0.0
        %7418 = vmatmul.mubr.f32.gmra.mrb[0].mxu0 %v7276
        %v7419 = vpop.f32.mrb[0].mxu0
        %v7420 = vadd.f32 0.0, %v7419
        %v7421 = vpop.f32.mrb[0].mxu0
        %v7422 = vadd.f32 0.0, %v7421
        %7423 = vmatprep.mubr.f32.mxu0 0.0
        %7424 = vmatmul.mubr.f32.gmra.mrb[0].mxu0 %v7279
        %v7425 = vpop.f32.mrb[0].mxu0
        %v7426 = vadd.f32 0.0, %v7425
        %v7427 = vpop.f32.mrb[0].mxu0
        %v7428 = vadd.f32 0.0, %v7427
        %7429 = vmatprep.mubr.f32.mxu0 0.0
        %7430 = vmatmul.mubr.f32.gmra.mrb[0].mxu0 %v7282
        %v7431 = vpop.f32.mrb[0].mxu0
        %v7432 = vadd.f32 0.0, %v7431
        %v7433 = vpop.f32.mrb[0].mxu0
        %v7434 = vadd.f32 0.0, %v7433
        %7435 = vmatprep.mubr.f32.mxu0 0.0
        %7436 = vmatmul.mubr.f32.gmra.mrb[0].mxu0 %v7285
        %v7437 = vpop.f32.mrb[0].mxu0
        %v7438 = vadd.f32 0.0, %v7437
        %v7439 = vpop.f32.mrb[0].mxu0
        %v7440 = vadd.f32 0.0, %v7439
        %7441 = vmatprep.mubr.f32.mxu0 0.0
        %7442 = vmatmul.mubr.f32.gmra.mrb[0].mxu0 %v7288
        %v7443 = vpop.f32.mrb[0].mxu0
        %v7444 = vadd.f32 0.0, %v7443
        %v7445 = vpop.f32.mrb[0].mxu0
        %v7446 = vadd.f32 0.0, %v7445
        %7447 = vmatprep.mubr.f32.mxu0 0.0
        %7448 = vmatmul.mubr.f32.gmra.mrb[0].mxu0 %v7291
        %v7449 = vpop.f32.mrb[0].mxu0
        %v7450 = vadd.f32 0.0, %v7449
        %v7451 = vpop.f32.mrb[0].mxu0
        %v7452 = vadd.f32 0.0, %v7451
        %7453 = vdwg.mxu0
        %v7454 = vadd.f32 %v7188, %v7360
        %v7455 = vadd.f32 %v7189, %v7362
        %v7456 = vadd.f32 %v7190, %v7366
        %v7457 = vadd.f32 %v7191, %v7368
        %v7458 = vadd.f32 %v7192, %v7372
        %v7459 = vadd.f32 %v7193, %v7374
        %v7460 = vadd.f32 %v7194, %v7378
        %v7461 = vadd.f32 %v7195, %v7380
        %v7462 = vadd.f32 %v7196, %v7384
        %v7463 = vadd.f32 %v7197, %v7386
        %v7464 = vadd.f32 %v7198, %v7390
        %v7465 = vadd.f32 %v7199, %v7392
        %v7466 = vadd.f32 %v7200, %v7396
        %v7467 = vadd.f32 %v7201, %v7398
        %v7468 = vadd.f32 %v7202, %v7402
        %v7469 = vadd.f32 %v7203, %v7404
        %v7470 = vadd.f32 %v7204, %v7408
        %v7471 = vadd.f32 %v7205, %v7410
        %v7472 = vadd.f32 %v7206, %v7414
        %v7473 = vadd.f32 %v7207, %v7416
        %v7474 = vadd.f32 %v7208, %v7420
        %v7475 = vadd.f32 %v7209, %v7422
        %v7476 = vadd.f32 %v7210, %v7426
        %v7477 = vadd.f32 %v7211, %v7428
        %v7478 = vadd.f32 %v7212, %v7432
        %v7479 = vadd.f32 %v7213, %v7434
        %v7480 = vadd.f32 %v7214, %v7438
        %v7481 = vadd.f32 %v7215, %v7440
        %v7482 = vadd.f32 %v7216, %v7444
        %v7483 = vadd.f32 %v7217, %v7446
        %v7484 = vadd.f32 %v7218, %v7450
        %v7485 = vadd.f32 %v7219, %v7452
        %v7486 = vld [vmem:[%s312 + $0x6] sm:$0xff]
        %v7487 = vld [vmem:[%s312 + $0xe] sm:$0xff]
        %v7488 = vld [vmem:[%s312 + $0x26] sm:$0xff]
        %v7489 = vld [vmem:[%s312 + $0x2e] sm:$0xff]
        %v7490 = vld [vmem:[%s312 + $0x46] sm:$0xff]
        %v7491 = vld [vmem:[%s312 + $0x4e] sm:$0xff]
        %v7492 = vld [vmem:[%s312 + $0x66] sm:$0xff]
        %v7493 = vld [vmem:[%s312 + $0x6e] sm:$0xff]
        %v7494 = vld [vmem:[%s312 + $0x86] sm:$0xff]
        %v7495 = vld [vmem:[%s312 + $0x8e] sm:$0xff]
        %v7496 = vld [vmem:[%s312 + $0xa6] sm:$0xff]
        %v7497 = vld [vmem:[%s312 + $0xae] sm:$0xff]
        %v7498 = vld [vmem:[%s312 + $0xc6] sm:$0xff]
        %v7499 = vld [vmem:[%s312 + $0xce] sm:$0xff]
        %v7500 = vld [vmem:[%s312 + $0xe6] sm:$0xff]
        %v7501 = vld [vmem:[%s312 + $0xee] sm:$0xff]
        %s7502 = scalar_lea.vmem %s1, 1472
        %v7503 = vld [vmem:[%s7502] sm:$0xff]
        %v7504 = vld [vmem:[%s7502 + $0x8] sm:$0xff]
        %v7505 = vld [vmem:[%s7502 + $0x10] sm:$0xff]
        %v7506 = vld [vmem:[%s7502 + $0x18] sm:$0xff]
        %v7507 = vld [vmem:[%s7502 + $0x20] sm:$0xff]
        %v7508 = vld [vmem:[%s7502 + $0x28] sm:$0xff]
        %v7509 = vld [vmem:[%s7502 + $0x30] sm:$0xff]
        %v7510 = vld [vmem:[%s7502 + $0x38] sm:$0xff]
        %v7512 = vsel %vm337, %v7486, 0
        %v7515 = vsel %vm337, %v7487, 0
        %v7518 = vsel %vm337, %v7488, 0
        %v7521 = vsel %vm337, %v7489, 0
        %v7524 = vsel %vm337, %v7490, 0
        %v7527 = vsel %vm337, %v7491, 0
        %v7530 = vsel %vm337, %v7492, 0
        %v7533 = vsel %vm337, %v7493, 0
        %v7536 = vsel %vm337, %v7494, 0
        %v7539 = vsel %vm337, %v7495, 0
        %v7542 = vsel %vm337, %v7496, 0
        %v7545 = vsel %vm337, %v7497, 0
        %v7548 = vsel %vm337, %v7498, 0
        %v7551 = vsel %vm337, %v7499, 0
        %v7554 = vsel %vm337, %v7500, 0
        %v7557 = vsel %vm337, %v7501, 0
        %7559 = vmatprep.subr.mxu0 %v7504
        %7560 = vmatpush1.msra.mxu0 %v7503
        %7561 = vmatprep.subr.mxu0 %v7506
        %7562 = vmatpush1.msra.mxu0 %v7505
        %7563 = vmatprep.subr.mxu0 %v7508
        %7564 = vmatpush1.msra.mxu0 %v7507
        %7565 = vmatprep.subr.mxu0 %v7510
        %7566 = vmatpush1.msra.mxu0 %v7509
        %7567 = vmatprep.subr.mxu0 0.0
        %7568 = vmatpush1.msra.mxu0 0.0
        %7569 = vmatprep.subr.mxu0 0.0
        %7570 = vmatpush1.msra.mxu0 0.0
        %7571 = vmatprep.subr.mxu0 0.0
        %7572 = vmatpush1.msra.mxu0 0.0
        %7573 = vmatprep.subr.mxu0 0.0
        %7574 = vmatpush1.msra.mxu0 0.0
        %7575 = vmatprep.subr.mxu0 0.0
        %7576 = vmatpush1.msra.mxu0 0.0
        %7577 = vmatprep.subr.mxu0 0.0
        %7578 = vmatpush1.msra.mxu0 0.0
        %7579 = vmatprep.subr.mxu0 0.0
        %7580 = vmatpush1.msra.mxu0 0.0
        %7581 = vmatprep.subr.mxu0 0.0
        %7582 = vmatpush1.msra.mxu0 0.0
        %7583 = vmatprep.subr.mxu0 0.0
        %7584 = vmatpush1.msra.mxu0 0.0
        %7585 = vmatprep.subr.mxu0 0.0
        %7586 = vmatpush1.msra.mxu0 0.0
        %7587 = vmatprep.subr.mxu0 0.0
        %7588 = vmatpush1.msra.mxu0 0.0
        %7589 = vmatprep.subr.mxu0 0.0
        %7590 = vmatpush1.msra.mxu0 0.0
        %7591 = vmatprep.subr.mxu0 0.0
        %7592 = vmatpush1.msra.mxu0 0.0
        %7593 = vmatprep.subr.mxu0 0.0
        %7594 = vmatpush1.msra.mxu0 0.0
        %7595 = vmatprep.subr.mxu0 0.0
        %7596 = vmatpush1.msra.mxu0 0.0
        %7597 = vmatprep.subr.mxu0 0.0
        %7598 = vmatpush1.msra.mxu0 0.0
        %7599 = vmatprep.subr.mxu0 0.0
        %7600 = vmatpush1.msra.mxu0 0.0
        %7601 = vmatprep.subr.mxu0 0.0
        %7602 = vmatpush1.msra.mxu0 0.0
        %7603 = vmatprep.subr.mxu0 0.0
        %7604 = vmatpush1.msra.mxu0 0.0
        %7605 = vmatprep.subr.mxu0 0.0
        %7606 = vmatpush1.msra.mxu0 0.0
        %7607 = vmatprep.subr.mxu0 0.0
        %7608 = vmatpush1.msra.mxu0 0.0
        %7609 = vmatprep.subr.mxu0 0.0
        %7610 = vmatpush1.msra.mxu0 0.0
        %7611 = vmatprep.subr.mxu0 0.0
        %7612 = vmatpush1.msra.mxu0 0.0
        %7613 = vmatprep.subr.mxu0 0.0
        %7614 = vmatpush1.msra.mxu0 0.0
        %7615 = vmatprep.subr.mxu0 0.0
        %7616 = vmatpush1.msra.mxu0 0.0
        %7617 = vmatprep.subr.mxu0 0.0
        %7618 = vmatpush1.msra.mxu0 0.0
        %7619 = vmatprep.subr.mxu0 0.0
        %7620 = vmatpush1.msra.mxu0 0.0
        %7621 = vmatprep.subr.mxu0 0.0
        %7622 = vmatpush1.msra.mxu0 0.0
        %7623 = vmatprep.mubr.f32.mxu0 0.0
        %7624 = vmatmul.mubr.f32.gmra.mrb[0].mxu0 %v7512
        %v7625 = vpop.f32.mrb[0].mxu0
        %v7626 = vadd.f32 0.0, %v7625
        %v7627 = vpop.f32.mrb[0].mxu0
        %v7628 = vadd.f32 0.0, %v7627
        %7629 = vmatprep.mubr.f32.mxu0 0.0
        %7630 = vmatmul.mubr.f32.gmra.mrb[0].mxu0 %v7515
        %v7631 = vpop.f32.mrb[0].mxu0
        %v7632 = vadd.f32 0.0, %v7631
        %v7633 = vpop.f32.mrb[0].mxu0
        %v7634 = vadd.f32 0.0, %v7633
        %7635 = vmatprep.mubr.f32.mxu0 0.0
        %7636 = vmatmul.mubr.f32.gmra.mrb[0].mxu0 %v7518
        %v7637 = vpop.f32.mrb[0].mxu0
        %v7638 = vadd.f32 0.0, %v7637
        %v7639 = vpop.f32.mrb[0].mxu0
        %v7640 = vadd.f32 0.0, %v7639
        %7641 = vmatprep.mubr.f32.mxu0 0.0
        %7642 = vmatmul.mubr.f32.gmra.mrb[0].mxu0 %v7521
        %v7643 = vpop.f32.mrb[0].mxu0
        %v7644 = vadd.f32 0.0, %v7643
        %v7645 = vpop.f32.mrb[0].mxu0
        %v7646 = vadd.f32 0.0, %v7645
        %7647 = vmatprep.mubr.f32.mxu0 0.0
        %7648 = vmatmul.mubr.f32.gmra.mrb[0].mxu0 %v7524
        %v7649 = vpop.f32.mrb[0].mxu0
        %v7650 = vadd.f32 0.0, %v7649
        %v7651 = vpop.f32.mrb[0].mxu0
        %v7652 = vadd.f32 0.0, %v7651
        %7653 = vmatprep.mubr.f32.mxu0 0.0
        %7654 = vmatmul.mubr.f32.gmra.mrb[0].mxu0 %v7527
        %v7655 = vpop.f32.mrb[0].mxu0
        %v7656 = vadd.f32 0.0, %v7655
        %v7657 = vpop.f32.mrb[0].mxu0
        %v7658 = vadd.f32 0.0, %v7657
        %7659 = vmatprep.mubr.f32.mxu0 0.0
        %7660 = vmatmul.mubr.f32.gmra.mrb[0].mxu0 %v7530
        %v7661 = vpop.f32.mrb[0].mxu0
        %v7662 = vadd.f32 0.0, %v7661
        %v7663 = vpop.f32.mrb[0].mxu0
        %v7664 = vadd.f32 0.0, %v7663
        %7665 = vmatprep.mubr.f32.mxu0 0.0
        %7666 = vmatmul.mubr.f32.gmra.mrb[0].mxu0 %v7533
        %v7667 = vpop.f32.mrb[0].mxu0
        %v7668 = vadd.f32 0.0, %v7667
        %v7669 = vpop.f32.mrb[0].mxu0
        %v7670 = vadd.f32 0.0, %v7669
        %7671 = vmatprep.mubr.f32.mxu0 0.0
        %7672 = vmatmul.mubr.f32.gmra.mrb[0].mxu0 %v7536
        %v7673 = vpop.f32.mrb[0].mxu0
        %v7674 = vadd.f32 0.0, %v7673
        %v7675 = vpop.f32.mrb[0].mxu0
        %v7676 = vadd.f32 0.0, %v7675
        %7677 = vmatprep.mubr.f32.mxu0 0.0
        %7678 = vmatmul.mubr.f32.gmra.mrb[0].mxu0 %v7539
        %v7679 = vpop.f32.mrb[0].mxu0
        %v7680 = vadd.f32 0.0, %v7679
        %v7681 = vpop.f32.mrb[0].mxu0
        %v7682 = vadd.f32 0.0, %v7681
        %7683 = vmatprep.mubr.f32.mxu0 0.0
        %7684 = vmatmul.mubr.f32.gmra.mrb[0].mxu0 %v7542
        %v7685 = vpop.f32.mrb[0].mxu0
        %v7686 = vadd.f32 0.0, %v7685
        %v7687 = vpop.f32.mrb[0].mxu0
        %v7688 = vadd.f32 0.0, %v7687
        %7689 = vmatprep.mubr.f32.mxu0 0.0
        %7690 = vmatmul.mubr.f32.gmra.mrb[0].mxu0 %v7545
        %v7691 = vpop.f32.mrb[0].mxu0
        %v7692 = vadd.f32 0.0, %v7691
        %v7693 = vpop.f32.mrb[0].mxu0
        %v7694 = vadd.f32 0.0, %v7693
        %7695 = vmatprep.mubr.f32.mxu0 0.0
        %7696 = vmatmul.mubr.f32.gmra.mrb[0].mxu0 %v7548
        %v7697 = vpop.f32.mrb[0].mxu0
        %v7698 = vadd.f32 0.0, %v7697
        %v7699 = vpop.f32.mrb[0].mxu0
        %v7700 = vadd.f32 0.0, %v7699
        %7701 = vmatprep.mubr.f32.mxu0 0.0
        %7702 = vmatmul.mubr.f32.gmra.mrb[0].mxu0 %v7551
        %v7703 = vpop.f32.mrb[0].mxu0
        %v7704 = vadd.f32 0.0, %v7703
        %v7705 = vpop.f32.mrb[0].mxu0
        %v7706 = vadd.f32 0.0, %v7705
        %7707 = vmatprep.mubr.f32.mxu0 0.0
        %7708 = vmatmul.mubr.f32.gmra.mrb[0].mxu0 %v7554
        %v7709 = vpop.f32.mrb[0].mxu0
        %v7710 = vadd.f32 0.0, %v7709
        %v7711 = vpop.f32.mrb[0].mxu0
        %v7712 = vadd.f32 0.0, %v7711
        %7713 = vmatprep.mubr.f32.mxu0 0.0
        %7714 = vmatmul.mubr.f32.gmra.mrb[0].mxu0 %v7557
        %v7715 = vpop.f32.mrb[0].mxu0
        %v7716 = vadd.f32 0.0, %v7715
        %v7717 = vpop.f32.mrb[0].mxu0
        %v7718 = vadd.f32 0.0, %v7717
        %7719 = vdwg.mxu0
        %v7720 = vadd.f32 %v7454, %v7626
        %v7721 = vadd.f32 %v7455, %v7628
        %v7722 = vadd.f32 %v7456, %v7632
        %v7723 = vadd.f32 %v7457, %v7634
        %v7724 = vadd.f32 %v7458, %v7638
        %v7725 = vadd.f32 %v7459, %v7640
        %v7726 = vadd.f32 %v7460, %v7644
        %v7727 = vadd.f32 %v7461, %v7646
        %v7728 = vadd.f32 %v7462, %v7650
        %v7729 = vadd.f32 %v7463, %v7652
        %v7730 = vadd.f32 %v7464, %v7656
        %v7731 = vadd.f32 %v7465, %v7658
        %v7732 = vadd.f32 %v7466, %v7662
        %v7733 = vadd.f32 %v7467, %v7664
        %v7734 = vadd.f32 %v7468, %v7668
        %v7735 = vadd.f32 %v7469, %v7670
        %v7736 = vadd.f32 %v7470, %v7674
        %v7737 = vadd.f32 %v7471, %v7676
        %v7738 = vadd.f32 %v7472, %v7680
        %v7739 = vadd.f32 %v7473, %v7682
        %v7740 = vadd.f32 %v7474, %v7686
        %v7741 = vadd.f32 %v7475, %v7688
        %v7742 = vadd.f32 %v7476, %v7692
        %v7743 = vadd.f32 %v7477, %v7694
        %v7744 = vadd.f32 %v7478, %v7698
        %v7745 = vadd.f32 %v7479, %v7700
        %v7746 = vadd.f32 %v7480, %v7704
        %v7747 = vadd.f32 %v7481, %v7706
        %v7748 = vadd.f32 %v7482, %v7710
        %v7749 = vadd.f32 %v7483, %v7712
        %v7750 = vadd.f32 %v7484, %v7716
        %v7751 = vadd.f32 %v7485, %v7718
        %v7752 = vld [vmem:[%s312 + $0xc] sm:$0xff]
        %v7753 = vld [vmem:[%s312 + $0x14] sm:$0xff]
        %v7754 = vld [vmem:[%s312 + $0x2c] sm:$0xff]
        %v7755 = vld [vmem:[%s312 + $0x34] sm:$0xff]
        %v7756 = vld [vmem:[%s312 + $0x4c] sm:$0xff]
        %v7757 = vld [vmem:[%s312 + $0x54] sm:$0xff]
        %v7758 = vld [vmem:[%s312 + $0x6c] sm:$0xff]
        %v7759 = vld [vmem:[%s312 + $0x74] sm:$0xff]
        %v7760 = vld [vmem:[%s312 + $0x8c] sm:$0xff]
        %v7761 = vld [vmem:[%s312 + $0x94] sm:$0xff]
        %v7762 = vld [vmem:[%s312 + $0xac] sm:$0xff]
        %v7763 = vld [vmem:[%s312 + $0xb4] sm:$0xff]
        %v7764 = vld [vmem:[%s312 + $0xcc] sm:$0xff]
        %v7765 = vld [vmem:[%s312 + $0xd4] sm:$0xff]
        %v7766 = vld [vmem:[%s312 + $0xec] sm:$0xff]
        %v7767 = vld [vmem:[%s312 + $0xf4] sm:$0xff]
        %s7768 = scalar_lea.vmem %s1, 1536
        %v7769 = vld [vmem:[%s7768] sm:$0xff]
        %v7770 = vld [vmem:[%s7768 + $0x8] sm:$0xff]
        %v7771 = vld [vmem:[%s7768 + $0x10] sm:$0xff]
        %v7772 = vld [vmem:[%s7768 + $0x18] sm:$0xff]
        %v7773 = vld [vmem:[%s7768 + $0x20] sm:$0xff]
        %v7774 = vld [vmem:[%s7768 + $0x28] sm:$0xff]
        %v7775 = vld [vmem:[%s7768 + $0x30] sm:$0xff]
        %v7776 = vld [vmem:[%s7768 + $0x38] sm:$0xff]
        %v7778 = vsel %vm337, %v7752, 0
        %v7781 = vsel %vm337, %v7753, 0
        %v7784 = vsel %vm337, %v7754, 0
        %v7787 = vsel %vm337, %v7755, 0
        %v7790 = vsel %vm337, %v7756, 0
        %v7793 = vsel %vm337, %v7757, 0
        %v7796 = vsel %vm337, %v7758, 0
        %v7799 = vsel %vm337, %v7759, 0
        %v7802 = vsel %vm337, %v7760, 0
        %v7805 = vsel %vm337, %v7761, 0
        %v7808 = vsel %vm337, %v7762, 0
        %v7811 = vsel %vm337, %v7763, 0
        %v7814 = vsel %vm337, %v7764, 0
        %v7817 = vsel %vm337, %v7765, 0
        %v7820 = vsel %vm337, %v7766, 0
        %v7823 = vsel %vm337, %v7767, 0
        %7825 = vmatprep.subr.mxu0 %v7770
        %7826 = vmatpush1.msra.mxu0 %v7769
        %7827 = vmatprep.subr.mxu0 %v7772
        %7828 = vmatpush1.msra.mxu0 %v7771
        %7829 = vmatprep.subr.mxu0 %v7774
        %7830 = vmatpush1.msra.mxu0 %v7773
        %7831 = vmatprep.subr.mxu0 %v7776
        %7832 = vmatpush1.msra.mxu0 %v7775
        %7833 = vmatprep.subr.mxu0 0.0
        %7834 = vmatpush1.msra.mxu0 0.0
        %7835 = vmatprep.subr.mxu0 0.0
        %7836 = vmatpush1.msra.mxu0 0.0
        %7837 = vmatprep.subr.mxu0 0.0
        %7838 = vmatpush1.msra.mxu0 0.0
        %7839 = vmatprep.subr.mxu0 0.0
        %7840 = vmatpush1.msra.mxu0 0.0
        %7841 = vmatprep.subr.mxu0 0.0
        %7842 = vmatpush1.msra.mxu0 0.0
        %7843 = vmatprep.subr.mxu0 0.0
        %7844 = vmatpush1.msra.mxu0 0.0
        %7845 = vmatprep.subr.mxu0 0.0
        %7846 = vmatpush1.msra.mxu0 0.0
        %7847 = vmatprep.subr.mxu0 0.0
        %7848 = vmatpush1.msra.mxu0 0.0
        %7849 = vmatprep.subr.mxu0 0.0
        %7850 = vmatpush1.msra.mxu0 0.0
        %7851 = vmatprep.subr.mxu0 0.0
        %7852 = vmatpush1.msra.mxu0 0.0
        %7853 = vmatprep.subr.mxu0 0.0
        %7854 = vmatpush1.msra.mxu0 0.0
        %7855 = vmatprep.subr.mxu0 0.0
        %7856 = vmatpush1.msra.mxu0 0.0
        %7857 = vmatprep.subr.mxu0 0.0
        %7858 = vmatpush1.msra.mxu0 0.0
        %7859 = vmatprep.subr.mxu0 0.0
        %7860 = vmatpush1.msra.mxu0 0.0
        %7861 = vmatprep.subr.mxu0 0.0
        %7862 = vmatpush1.msra.mxu0 0.0
        %7863 = vmatprep.subr.mxu0 0.0
        %7864 = vmatpush1.msra.mxu0 0.0
        %7865 = vmatprep.subr.mxu0 0.0
        %7866 = vmatpush1.msra.mxu0 0.0
        %7867 = vmatprep.subr.mxu0 0.0
        %7868 = vmatpush1.msra.mxu0 0.0
        %7869 = vmatprep.subr.mxu0 0.0
        %7870 = vmatpush1.msra.mxu0 0.0
        %7871 = vmatprep.subr.mxu0 0.0
        %7872 = vmatpush1.msra.mxu0 0.0
        %7873 = vmatprep.subr.mxu0 0.0
        %7874 = vmatpush1.msra.mxu0 0.0
        %7875 = vmatprep.subr.mxu0 0.0
        %7876 = vmatpush1.msra.mxu0 0.0
        %7877 = vmatprep.subr.mxu0 0.0
        %7878 = vmatpush1.msra.mxu0 0.0
        %7879 = vmatprep.subr.mxu0 0.0
        %7880 = vmatpush1.msra.mxu0 0.0
        %7881 = vmatprep.subr.mxu0 0.0
        %7882 = vmatpush1.msra.mxu0 0.0
        %7883 = vmatprep.subr.mxu0 0.0
        %7884 = vmatpush1.msra.mxu0 0.0
        %7885 = vmatprep.subr.mxu0 0.0
        %7886 = vmatpush1.msra.mxu0 0.0
        %7887 = vmatprep.subr.mxu0 0.0
        %7888 = vmatpush1.msra.mxu0 0.0
        %7889 = vmatprep.mubr.f32.mxu0 0.0
        %7890 = vmatmul.mubr.f32.gmra.mrb[0].mxu0 %v7778
        %v7891 = vpop.f32.mrb[0].mxu0
        %v7892 = vadd.f32 0.0, %v7891
        %v7893 = vpop.f32.mrb[0].mxu0
        %v7894 = vadd.f32 0.0, %v7893
        %7895 = vmatprep.mubr.f32.mxu0 0.0
        %7896 = vmatmul.mubr.f32.gmra.mrb[0].mxu0 %v7781
        %v7897 = vpop.f32.mrb[0].mxu0
        %v7898 = vadd.f32 0.0, %v7897
        %v7899 = vpop.f32.mrb[0].mxu0
        %v7900 = vadd.f32 0.0, %v7899
        %7901 = vmatprep.mubr.f32.mxu0 0.0
        %7902 = vmatmul.mubr.f32.gmra.mrb[0].mxu0 %v7784
        %v7903 = vpop.f32.mrb[0].mxu0
        %v7904 = vadd.f32 0.0, %v7903
        %v7905 = vpop.f32.mrb[0].mxu0
        %v7906 = vadd.f32 0.0, %v7905
        %7907 = vmatprep.mubr.f32.mxu0 0.0
        %7908 = vmatmul.mubr.f32.gmra.mrb[0].mxu0 %v7787
        %v7909 = vpop.f32.mrb[0].mxu0
        %v7910 = vadd.f32 0.0, %v7909
        %v7911 = vpop.f32.mrb[0].mxu0
        %v7912 = vadd.f32 0.0, %v7911
        %7913 = vmatprep.mubr.f32.mxu0 0.0
        %7914 = vmatmul.mubr.f32.gmra.mrb[0].mxu0 %v7790
        %v7915 = vpop.f32.mrb[0].mxu0
        %v7916 = vadd.f32 0.0, %v7915
        %v7917 = vpop.f32.mrb[0].mxu0
        %v7918 = vadd.f32 0.0, %v7917
        %7919 = vmatprep.mubr.f32.mxu0 0.0
        %7920 = vmatmul.mubr.f32.gmra.mrb[0].mxu0 %v7793
        %v7921 = vpop.f32.mrb[0].mxu0
        %v7922 = vadd.f32 0.0, %v7921
        %v7923 = vpop.f32.mrb[0].mxu0
        %v7924 = vadd.f32 0.0, %v7923
        %7925 = vmatprep.mubr.f32.mxu0 0.0
        %7926 = vmatmul.mubr.f32.gmra.mrb[0].mxu0 %v7796
        %v7927 = vpop.f32.mrb[0].mxu0
        %v7928 = vadd.f32 0.0, %v7927
        %v7929 = vpop.f32.mrb[0].mxu0
        %v7930 = vadd.f32 0.0, %v7929
        %7931 = vmatprep.mubr.f32.mxu0 0.0
        %7932 = vmatmul.mubr.f32.gmra.mrb[0].mxu0 %v7799
        %v7933 = vpop.f32.mrb[0].mxu0
        %v7934 = vadd.f32 0.0, %v7933
        %v7935 = vpop.f32.mrb[0].mxu0
        %v7936 = vadd.f32 0.0, %v7935
        %7937 = vmatprep.mubr.f32.mxu0 0.0
        %7938 = vmatmul.mubr.f32.gmra.mrb[0].mxu0 %v7802
        %v7939 = vpop.f32.mrb[0].mxu0
        %v7940 = vadd.f32 0.0, %v7939
        %v7941 = vpop.f32.mrb[0].mxu0
        %v7942 = vadd.f32 0.0, %v7941
        %7943 = vmatprep.mubr.f32.mxu0 0.0
        %7944 = vmatmul.mubr.f32.gmra.mrb[0].mxu0 %v7805
        %v7945 = vpop.f32.mrb[0].mxu0
        %v7946 = vadd.f32 0.0, %v7945
        %v7947 = vpop.f32.mrb[0].mxu0
        %v7948 = vadd.f32 0.0, %v7947
        %7949 = vmatprep.mubr.f32.mxu0 0.0
        %7950 = vmatmul.mubr.f32.gmra.mrb[0].mxu0 %v7808
        %v7951 = vpop.f32.mrb[0].mxu0
        %v7952 = vadd.f32 0.0, %v7951
        %v7953 = vpop.f32.mrb[0].mxu0
        %v7954 = vadd.f32 0.0, %v7953
        %7955 = vmatprep.mubr.f32.mxu0 0.0
        %7956 = vmatmul.mubr.f32.gmra.mrb[0].mxu0 %v7811
        %v7957 = vpop.f32.mrb[0].mxu0
        %v7958 = vadd.f32 0.0, %v7957
        %v7959 = vpop.f32.mrb[0].mxu0
        %v7960 = vadd.f32 0.0, %v7959
        %7961 = vmatprep.mubr.f32.mxu0 0.0
        %7962 = vmatmul.mubr.f32.gmra.mrb[0].mxu0 %v7814
        %v7963 = vpop.f32.mrb[0].mxu0
        %v7964 = vadd.f32 0.0, %v7963
        %v7965 = vpop.f32.mrb[0].mxu0
        %v7966 = vadd.f32 0.0, %v7965
        %7967 = vmatprep.mubr.f32.mxu0 0.0
        %7968 = vmatmul.mubr.f32.gmra.mrb[0].mxu0 %v7817
        %v7969 = vpop.f32.mrb[0].mxu0
        %v7970 = vadd.f32 0.0, %v7969
        %v7971 = vpop.f32.mrb[0].mxu0
        %v7972 = vadd.f32 0.0, %v7971
        %7973 = vmatprep.mubr.f32.mxu0 0.0
        %7974 = vmatmul.mubr.f32.gmra.mrb[0].mxu0 %v7820
        %v7975 = vpop.f32.mrb[0].mxu0
        %v7976 = vadd.f32 0.0, %v7975
        %v7977 = vpop.f32.mrb[0].mxu0
        %v7978 = vadd.f32 0.0, %v7977
        %7979 = vmatprep.mubr.f32.mxu0 0.0
        %7980 = vmatmul.mubr.f32.gmra.mrb[0].mxu0 %v7823
        %v7981 = vpop.f32.mrb[0].mxu0
        %v7982 = vadd.f32 0.0, %v7981
        %v7983 = vpop.f32.mrb[0].mxu0
        %v7984 = vadd.f32 0.0, %v7983
        %7985 = vdwg.mxu0
        %v7986 = vadd.f32 %v7720, %v7892
        %v7987 = vadd.f32 %v7721, %v7894
        %v7988 = vadd.f32 %v7722, %v7898
        %v7989 = vadd.f32 %v7723, %v7900
        %v7990 = vadd.f32 %v7724, %v7904
        %v7991 = vadd.f32 %v7725, %v7906
        %v7992 = vadd.f32 %v7726, %v7910
        %v7993 = vadd.f32 %v7727, %v7912
        %v7994 = vadd.f32 %v7728, %v7916
        %v7995 = vadd.f32 %v7729, %v7918
        %v7996 = vadd.f32 %v7730, %v7922
        %v7997 = vadd.f32 %v7731, %v7924
        %v7998 = vadd.f32 %v7732, %v7928
        %v7999 = vadd.f32 %v7733, %v7930
        %v8000 = vadd.f32 %v7734, %v7934
        %v8001 = vadd.f32 %v7735, %v7936
        %v8002 = vadd.f32 %v7736, %v7940
        %v8003 = vadd.f32 %v7737, %v7942
        %v8004 = vadd.f32 %v7738, %v7946
        %v8005 = vadd.f32 %v7739, %v7948
        %v8006 = vadd.f32 %v7740, %v7952
        %v8007 = vadd.f32 %v7741, %v7954
        %v8008 = vadd.f32 %v7742, %v7958
        %v8009 = vadd.f32 %v7743, %v7960
        %v8010 = vadd.f32 %v7744, %v7964
        %v8011 = vadd.f32 %v7745, %v7966
        %v8012 = vadd.f32 %v7746, %v7970
        %v8013 = vadd.f32 %v7747, %v7972
        %v8014 = vadd.f32 %v7748, %v7976
        %v8015 = vadd.f32 %v7749, %v7978
        %v8016 = vadd.f32 %v7750, %v7982
        %v8017 = vadd.f32 %v7751, %v7984
        %s8018 = sadd.s32 %s309, 12
        %s8019 = smul.u32 %s8018, 32
        %s8020 = scalar_lea.vmem %s303, %s8019
        %v8021 = vld [vmem:[%s8020] sm:$0xff]
        %v8022 = vld [vmem:[%s8020 + $0x8] sm:$0xff]
        %v8023 = vld [vmem:[%s8020 + $0x20] sm:$0xff]
        %v8024 = vld [vmem:[%s8020 + $0x28] sm:$0xff]
        %v8025 = vld [vmem:[%s8020 + $0x40] sm:$0xff]
        %v8026 = vld [vmem:[%s8020 + $0x48] sm:$0xff]
        %v8027 = vld [vmem:[%s8020 + $0x60] sm:$0xff]
        %v8028 = vld [vmem:[%s8020 + $0x68] sm:$0xff]
        %v8029 = vld [vmem:[%s8020 + $0x80] sm:$0xff]
        %v8030 = vld [vmem:[%s8020 + $0x88] sm:$0xff]
        %v8031 = vld [vmem:[%s8020 + $0xa0] sm:$0xff]
        %v8032 = vld [vmem:[%s8020 + $0xa8] sm:$0xff]
        %v8033 = vld [vmem:[%s8020 + $0xc0] sm:$0xff]
        %v8034 = vld [vmem:[%s8020 + $0xc8] sm:$0xff]
        %v8035 = vld [vmem:[%s8020 + $0xe0] sm:$0xff]
        %v8036 = vld [vmem:[%s8020 + $0xe8] sm:$0xff]
        %s8037 = scalar_lea.vmem %s1, 1600
        %v8038 = vld [vmem:[%s8037] sm:$0xff]
        %v8039 = vld [vmem:[%s8037 + $0x8] sm:$0xff]
        %v8040 = vld [vmem:[%s8037 + $0x10] sm:$0xff]
        %v8041 = vld [vmem:[%s8037 + $0x18] sm:$0xff]
        %v8042 = vld [vmem:[%s8037 + $0x20] sm:$0xff]
        %v8043 = vld [vmem:[%s8037 + $0x28] sm:$0xff]
        %v8044 = vld [vmem:[%s8037 + $0x30] sm:$0xff]
        %v8045 = vld [vmem:[%s8037 + $0x38] sm:$0xff]
        %v8047 = vsel %vm337, %v8021, 0
        %v8050 = vsel %vm337, %v8022, 0
        %v8053 = vsel %vm337, %v8023, 0
        %v8056 = vsel %vm337, %v8024, 0
        %v8059 = vsel %vm337, %v8025, 0
        %v8062 = vsel %vm337, %v8026, 0
        %v8065 = vsel %vm337, %v8027, 0
        %v8068 = vsel %vm337, %v8028, 0
        %v8071 = vsel %vm337, %v8029, 0
        %v8074 = vsel %vm337, %v8030, 0
        %v8077 = vsel %vm337, %v8031, 0
        %v8080 = vsel %vm337, %v8032, 0
        %v8083 = vsel %vm337, %v8033, 0
        %v8086 = vsel %vm337, %v8034, 0
        %v8089 = vsel %vm337, %v8035, 0
        %v8092 = vsel %vm337, %v8036, 0
        %8094 = vmatprep.subr.mxu0 %v8039
        %8095 = vmatpush1.msra.mxu0 %v8038
        %8096 = vmatprep.subr.mxu0 %v8041
        %8097 = vmatpush1.msra.mxu0 %v8040
        %8098 = vmatprep.subr.mxu0 %v8043
        %8099 = vmatpush1.msra.mxu0 %v8042
        %8100 = vmatprep.subr.mxu0 %v8045
        %8101 = vmatpush1.msra.mxu0 %v8044
        %8102 = vmatprep.subr.mxu0 0.0
        %8103 = vmatpush1.msra.mxu0 0.0
        %8104 = vmatprep.subr.mxu0 0.0
        %8105 = vmatpush1.msra.mxu0 0.0
        %8106 = vmatprep.subr.mxu0 0.0
        %8107 = vmatpush1.msra.mxu0 0.0
        %8108 = vmatprep.subr.mxu0 0.0
        %8109 = vmatpush1.msra.mxu0 0.0
        %8110 = vmatprep.subr.mxu0 0.0
        %8111 = vmatpush1.msra.mxu0 0.0
        %8112 = vmatprep.subr.mxu0 0.0
        %8113 = vmatpush1.msra.mxu0 0.0
        %8114 = vmatprep.subr.mxu0 0.0
        %8115 = vmatpush1.msra.mxu0 0.0
        %8116 = vmatprep.subr.mxu0 0.0
        %8117 = vmatpush1.msra.mxu0 0.0
        %8118 = vmatprep.subr.mxu0 0.0
        %8119 = vmatpush1.msra.mxu0 0.0
        %8120 = vmatprep.subr.mxu0 0.0
        %8121 = vmatpush1.msra.mxu0 0.0
        %8122 = vmatprep.subr.mxu0 0.0
        %8123 = vmatpush1.msra.mxu0 0.0
        %8124 = vmatprep.subr.mxu0 0.0
        %8125 = vmatpush1.msra.mxu0 0.0
        %8126 = vmatprep.subr.mxu0 0.0
        %8127 = vmatpush1.msra.mxu0 0.0
        %8128 = vmatprep.subr.mxu0 0.0
        %8129 = vmatpush1.msra.mxu0 0.0
        %8130 = vmatprep.subr.mxu0 0.0
        %8131 = vmatpush1.msra.mxu0 0.0
        %8132 = vmatprep.subr.mxu0 0.0
        %8133 = vmatpush1.msra.mxu0 0.0
        %8134 = vmatprep.subr.mxu0 0.0
        %8135 = vmatpush1.msra.mxu0 0.0
        %8136 = vmatprep.subr.mxu0 0.0
        %8137 = vmatpush1.msra.mxu0 0.0
        %8138 = vmatprep.subr.mxu0 0.0
        %8139 = vmatpush1.msra.mxu0 0.0
        %8140 = vmatprep.subr.mxu0 0.0
        %8141 = vmatpush1.msra.mxu0 0.0
        %8142 = vmatprep.subr.mxu0 0.0
        %8143 = vmatpush1.msra.mxu0 0.0
        %8144 = vmatprep.subr.mxu0 0.0
        %8145 = vmatpush1.msra.mxu0 0.0
        %8146 = vmatprep.subr.mxu0 0.0
        %8147 = vmatpush1.msra.mxu0 0.0
        %8148 = vmatprep.subr.mxu0 0.0
        %8149 = vmatpush1.msra.mxu0 0.0
        %8150 = vmatprep.subr.mxu0 0.0
        %8151 = vmatpush1.msra.mxu0 0.0
        %8152 = vmatprep.subr.mxu0 0.0
        %8153 = vmatpush1.msra.mxu0 0.0
        %8154 = vmatprep.subr.mxu0 0.0
        %8155 = vmatpush1.msra.mxu0 0.0
        %8156 = vmatprep.subr.mxu0 0.0
        %8157 = vmatpush1.msra.mxu0 0.0
        %8158 = vmatprep.mubr.f32.mxu0 0.0
        %8159 = vmatmul.mubr.f32.gmra.mrb[0].mxu0 %v8047
        %v8160 = vpop.f32.mrb[0].mxu0
        %v8161 = vadd.f32 0.0, %v8160
        %v8162 = vpop.f32.mrb[0].mxu0
        %v8163 = vadd.f32 0.0, %v8162
        %8164 = vmatprep.mubr.f32.mxu0 0.0
        %8165 = vmatmul.mubr.f32.gmra.mrb[0].mxu0 %v8050
        %v8166 = vpop.f32.mrb[0].mxu0
        %v8167 = vadd.f32 0.0, %v8166
        %v8168 = vpop.f32.mrb[0].mxu0
        %v8169 = vadd.f32 0.0, %v8168
        %8170 = vmatprep.mubr.f32.mxu0 0.0
        %8171 = vmatmul.mubr.f32.gmra.mrb[0].mxu0 %v8053
        %v8172 = vpop.f32.mrb[0].mxu0
        %v8173 = vadd.f32 0.0, %v8172
        %v8174 = vpop.f32.mrb[0].mxu0
        %v8175 = vadd.f32 0.0, %v8174
        %8176 = vmatprep.mubr.f32.mxu0 0.0
        %8177 = vmatmul.mubr.f32.gmra.mrb[0].mxu0 %v8056
        %v8178 = vpop.f32.mrb[0].mxu0
        %v8179 = vadd.f32 0.0, %v8178
        %v8180 = vpop.f32.mrb[0].mxu0
        %v8181 = vadd.f32 0.0, %v8180
        %8182 = vmatprep.mubr.f32.mxu0 0.0
        %8183 = vmatmul.mubr.f32.gmra.mrb[0].mxu0 %v8059
        %v8184 = vpop.f32.mrb[0].mxu0
        %v8185 = vadd.f32 0.0, %v8184
        %v8186 = vpop.f32.mrb[0].mxu0
        %v8187 = vadd.f32 0.0, %v8186
        %8188 = vmatprep.mubr.f32.mxu0 0.0
        %8189 = vmatmul.mubr.f32.gmra.mrb[0].mxu0 %v8062
        %v8190 = vpop.f32.mrb[0].mxu0
        %v8191 = vadd.f32 0.0, %v8190
        %v8192 = vpop.f32.mrb[0].mxu0
        %v8193 = vadd.f32 0.0, %v8192
        %8194 = vmatprep.mubr.f32.mxu0 0.0
        %8195 = vmatmul.mubr.f32.gmra.mrb[0].mxu0 %v8065
        %v8196 = vpop.f32.mrb[0].mxu0
        %v8197 = vadd.f32 0.0, %v8196
        %v8198 = vpop.f32.mrb[0].mxu0
        %v8199 = vadd.f32 0.0, %v8198
        %8200 = vmatprep.mubr.f32.mxu0 0.0
        %8201 = vmatmul.mubr.f32.gmra.mrb[0].mxu0 %v8068
        %v8202 = vpop.f32.mrb[0].mxu0
        %v8203 = vadd.f32 0.0, %v8202
        %v8204 = vpop.f32.mrb[0].mxu0
        %v8205 = vadd.f32 0.0, %v8204
        %8206 = vmatprep.mubr.f32.mxu0 0.0
        %8207 = vmatmul.mubr.f32.gmra.mrb[0].mxu0 %v8071
        %v8208 = vpop.f32.mrb[0].mxu0
        %v8209 = vadd.f32 0.0, %v8208
        %v8210 = vpop.f32.mrb[0].mxu0
        %v8211 = vadd.f32 0.0, %v8210
        %8212 = vmatprep.mubr.f32.mxu0 0.0
        %8213 = vmatmul.mubr.f32.gmra.mrb[0].mxu0 %v8074
        %v8214 = vpop.f32.mrb[0].mxu0
        %v8215 = vadd.f32 0.0, %v8214
        %v8216 = vpop.f32.mrb[0].mxu0
        %v8217 = vadd.f32 0.0, %v8216
        %8218 = vmatprep.mubr.f32.mxu0 0.0
        %8219 = vmatmul.mubr.f32.gmra.mrb[0].mxu0 %v8077
        %v8220 = vpop.f32.mrb[0].mxu0
        %v8221 = vadd.f32 0.0, %v8220
        %v8222 = vpop.f32.mrb[0].mxu0
        %v8223 = vadd.f32 0.0, %v8222
        %8224 = vmatprep.mubr.f32.mxu0 0.0
        %8225 = vmatmul.mubr.f32.gmra.mrb[0].mxu0 %v8080
        %v8226 = vpop.f32.mrb[0].mxu0
        %v8227 = vadd.f32 0.0, %v8226
        %v8228 = vpop.f32.mrb[0].mxu0
        %v8229 = vadd.f32 0.0, %v8228
        %8230 = vmatprep.mubr.f32.mxu0 0.0
        %8231 = vmatmul.mubr.f32.gmra.mrb[0].mxu0 %v8083
        %v8232 = vpop.f32.mrb[0].mxu0
        %v8233 = vadd.f32 0.0, %v8232
        %v8234 = vpop.f32.mrb[0].mxu0
        %v8235 = vadd.f32 0.0, %v8234
        %8236 = vmatprep.mubr.f32.mxu0 0.0
        %8237 = vmatmul.mubr.f32.gmra.mrb[0].mxu0 %v8086
        %v8238 = vpop.f32.mrb[0].mxu0
        %v8239 = vadd.f32 0.0, %v8238
        %v8240 = vpop.f32.mrb[0].mxu0
        %v8241 = vadd.f32 0.0, %v8240
        %8242 = vmatprep.mubr.f32.mxu0 0.0
        %8243 = vmatmul.mubr.f32.gmra.mrb[0].mxu0 %v8089
        %v8244 = vpop.f32.mrb[0].mxu0
        %v8245 = vadd.f32 0.0, %v8244
        %v8246 = vpop.f32.mrb[0].mxu0
        %v8247 = vadd.f32 0.0, %v8246
        %8248 = vmatprep.mubr.f32.mxu0 0.0
        %8249 = vmatmul.mubr.f32.gmra.mrb[0].mxu0 %v8092
        %v8250 = vpop.f32.mrb[0].mxu0
        %v8251 = vadd.f32 0.0, %v8250
        %v8252 = vpop.f32.mrb[0].mxu0
        %v8253 = vadd.f32 0.0, %v8252
        %8254 = vdwg.mxu0
        %v8255 = vadd.f32 %v7986, %v8161
        %v8256 = vadd.f32 %v7987, %v8163
        %v8257 = vadd.f32 %v7988, %v8167
        %v8258 = vadd.f32 %v7989, %v8169
        %v8259 = vadd.f32 %v7990, %v8173
        %v8260 = vadd.f32 %v7991, %v8175
        %v8261 = vadd.f32 %v7992, %v8179
        %v8262 = vadd.f32 %v7993, %v8181
        %v8263 = vadd.f32 %v7994, %v8185
        %v8264 = vadd.f32 %v7995, %v8187
        %v8265 = vadd.f32 %v7996, %v8191
        %v8266 = vadd.f32 %v7997, %v8193
        %v8267 = vadd.f32 %v7998, %v8197
        %v8268 = vadd.f32 %v7999, %v8199
        %v8269 = vadd.f32 %v8000, %v8203
        %v8270 = vadd.f32 %v8001, %v8205
        %v8271 = vadd.f32 %v8002, %v8209
        %v8272 = vadd.f32 %v8003, %v8211
        %v8273 = vadd.f32 %v8004, %v8215
        %v8274 = vadd.f32 %v8005, %v8217
        %v8275 = vadd.f32 %v8006, %v8221
        %v8276 = vadd.f32 %v8007, %v8223
        %v8277 = vadd.f32 %v8008, %v8227
        %v8278 = vadd.f32 %v8009, %v8229
        %v8279 = vadd.f32 %v8010, %v8233
        %v8280 = vadd.f32 %v8011, %v8235
        %v8281 = vadd.f32 %v8012, %v8239
        %v8282 = vadd.f32 %v8013, %v8241
        %v8283 = vadd.f32 %v8014, %v8245
        %v8284 = vadd.f32 %v8015, %v8247
        %v8285 = vadd.f32 %v8016, %v8251
        %v8286 = vadd.f32 %v8017, %v8253
        %v8287 = vld [vmem:[%s8020 + $0x6] sm:$0xff]
        %v8288 = vld [vmem:[%s8020 + $0xe] sm:$0xff]
        %v8289 = vld [vmem:[%s8020 + $0x26] sm:$0xff]
        %v8290 = vld [vmem:[%s8020 + $0x2e] sm:$0xff]
        %v8291 = vld [vmem:[%s8020 + $0x46] sm:$0xff]
        %v8292 = vld [vmem:[%s8020 + $0x4e] sm:$0xff]
        %v8293 = vld [vmem:[%s8020 + $0x66] sm:$0xff]
        %v8294 = vld [vmem:[%s8020 + $0x6e] sm:$0xff]
        %v8295 = vld [vmem:[%s8020 + $0x86] sm:$0xff]
        %v8296 = vld [vmem:[%s8020 + $0x8e] sm:$0xff]
        %v8297 = vld [vmem:[%s8020 + $0xa6] sm:$0xff]
        %v8298 = vld [vmem:[%s8020 + $0xae] sm:$0xff]
        %v8299 = vld [vmem:[%s8020 + $0xc6] sm:$0xff]
        %v8300 = vld [vmem:[%s8020 + $0xce] sm:$0xff]
        %v8301 = vld [vmem:[%s8020 + $0xe6] sm:$0xff]
        %v8302 = vld [vmem:[%s8020 + $0xee] sm:$0xff]
        %s8303 = scalar_lea.vmem %s1, 1664
        %v8304 = vld [vmem:[%s8303] sm:$0xff]
        %v8305 = vld [vmem:[%s8303 + $0x8] sm:$0xff]
        %v8306 = vld [vmem:[%s8303 + $0x10] sm:$0xff]
        %v8307 = vld [vmem:[%s8303 + $0x18] sm:$0xff]
        %v8308 = vld [vmem:[%s8303 + $0x20] sm:$0xff]
        %v8309 = vld [vmem:[%s8303 + $0x28] sm:$0xff]
        %v8310 = vld [vmem:[%s8303 + $0x30] sm:$0xff]
        %v8311 = vld [vmem:[%s8303 + $0x38] sm:$0xff]
        %v8313 = vsel %vm337, %v8287, 0
        %v8316 = vsel %vm337, %v8288, 0
        %v8319 = vsel %vm337, %v8289, 0
        %v8322 = vsel %vm337, %v8290, 0
        %v8325 = vsel %vm337, %v8291, 0
        %v8328 = vsel %vm337, %v8292, 0
        %v8331 = vsel %vm337, %v8293, 0
        %v8334 = vsel %vm337, %v8294, 0
        %v8337 = vsel %vm337, %v8295, 0
        %v8340 = vsel %vm337, %v8296, 0
        %v8343 = vsel %vm337, %v8297, 0
        %v8346 = vsel %vm337, %v8298, 0
        %v8349 = vsel %vm337, %v8299, 0
        %v8352 = vsel %vm337, %v8300, 0
        %v8355 = vsel %vm337, %v8301, 0
        %v8358 = vsel %vm337, %v8302, 0
        %8360 = vmatprep.subr.mxu0 %v8305
        %8361 = vmatpush1.msra.mxu0 %v8304
        %8362 = vmatprep.subr.mxu0 %v8307
        %8363 = vmatpush1.msra.mxu0 %v8306
        %8364 = vmatprep.subr.mxu0 %v8309
        %8365 = vmatpush1.msra.mxu0 %v8308
        %8366 = vmatprep.subr.mxu0 %v8311
        %8367 = vmatpush1.msra.mxu0 %v8310
        %8368 = vmatprep.subr.mxu0 0.0
        %8369 = vmatpush1.msra.mxu0 0.0
        %8370 = vmatprep.subr.mxu0 0.0
        %8371 = vmatpush1.msra.mxu0 0.0
        %8372 = vmatprep.subr.mxu0 0.0
        %8373 = vmatpush1.msra.mxu0 0.0
        %8374 = vmatprep.subr.mxu0 0.0
        %8375 = vmatpush1.msra.mxu0 0.0
        %8376 = vmatprep.subr.mxu0 0.0
        %8377 = vmatpush1.msra.mxu0 0.0
        %8378 = vmatprep.subr.mxu0 0.0
        %8379 = vmatpush1.msra.mxu0 0.0
        %8380 = vmatprep.subr.mxu0 0.0
        %8381 = vmatpush1.msra.mxu0 0.0
        %8382 = vmatprep.subr.mxu0 0.0
        %8383 = vmatpush1.msra.mxu0 0.0
        %8384 = vmatprep.subr.mxu0 0.0
        %8385 = vmatpush1.msra.mxu0 0.0
        %8386 = vmatprep.subr.mxu0 0.0
        %8387 = vmatpush1.msra.mxu0 0.0
        %8388 = vmatprep.subr.mxu0 0.0
        %8389 = vmatpush1.msra.mxu0 0.0
        %8390 = vmatprep.subr.mxu0 0.0
        %8391 = vmatpush1.msra.mxu0 0.0
        %8392 = vmatprep.subr.mxu0 0.0
        %8393 = vmatpush1.msra.mxu0 0.0
        %8394 = vmatprep.subr.mxu0 0.0
        %8395 = vmatpush1.msra.mxu0 0.0
        %8396 = vmatprep.subr.mxu0 0.0
        %8397 = vmatpush1.msra.mxu0 0.0
        %8398 = vmatprep.subr.mxu0 0.0
        %8399 = vmatpush1.msra.mxu0 0.0
        %8400 = vmatprep.subr.mxu0 0.0
        %8401 = vmatpush1.msra.mxu0 0.0
        %8402 = vmatprep.subr.mxu0 0.0
        %8403 = vmatpush1.msra.mxu0 0.0
        %8404 = vmatprep.subr.mxu0 0.0
        %8405 = vmatpush1.msra.mxu0 0.0
        %8406 = vmatprep.subr.mxu0 0.0
        %8407 = vmatpush1.msra.mxu0 0.0
        %8408 = vmatprep.subr.mxu0 0.0
        %8409 = vmatpush1.msra.mxu0 0.0
        %8410 = vmatprep.subr.mxu0 0.0
        %8411 = vmatpush1.msra.mxu0 0.0
        %8412 = vmatprep.subr.mxu0 0.0
        %8413 = vmatpush1.msra.mxu0 0.0
        %8414 = vmatprep.subr.mxu0 0.0
        %8415 = vmatpush1.msra.mxu0 0.0
        %8416 = vmatprep.subr.mxu0 0.0
        %8417 = vmatpush1.msra.mxu0 0.0
        %8418 = vmatprep.subr.mxu0 0.0
        %8419 = vmatpush1.msra.mxu0 0.0
        %8420 = vmatprep.subr.mxu0 0.0
        %8421 = vmatpush1.msra.mxu0 0.0
        %8422 = vmatprep.subr.mxu0 0.0
        %8423 = vmatpush1.msra.mxu0 0.0
        %8424 = vmatprep.mubr.f32.mxu0 0.0
        %8425 = vmatmul.mubr.f32.gmra.mrb[0].mxu0 %v8313
        %v8426 = vpop.f32.mrb[0].mxu0
        %v8427 = vadd.f32 0.0, %v8426
        %v8428 = vpop.f32.mrb[0].mxu0
        %v8429 = vadd.f32 0.0, %v8428
        %8430 = vmatprep.mubr.f32.mxu0 0.0
        %8431 = vmatmul.mubr.f32.gmra.mrb[0].mxu0 %v8316
        %v8432 = vpop.f32.mrb[0].mxu0
        %v8433 = vadd.f32 0.0, %v8432
        %v8434 = vpop.f32.mrb[0].mxu0
        %v8435 = vadd.f32 0.0, %v8434
        %8436 = vmatprep.mubr.f32.mxu0 0.0
        %8437 = vmatmul.mubr.f32.gmra.mrb[0].mxu0 %v8319
        %v8438 = vpop.f32.mrb[0].mxu0
        %v8439 = vadd.f32 0.0, %v8438
        %v8440 = vpop.f32.mrb[0].mxu0
        %v8441 = vadd.f32 0.0, %v8440
        %8442 = vmatprep.mubr.f32.mxu0 0.0
        %8443 = vmatmul.mubr.f32.gmra.mrb[0].mxu0 %v8322
        %v8444 = vpop.f32.mrb[0].mxu0
        %v8445 = vadd.f32 0.0, %v8444
        %v8446 = vpop.f32.mrb[0].mxu0
        %v8447 = vadd.f32 0.0, %v8446
        %8448 = vmatprep.mubr.f32.mxu0 0.0
        %8449 = vmatmul.mubr.f32.gmra.mrb[0].mxu0 %v8325
        %v8450 = vpop.f32.mrb[0].mxu0
        %v8451 = vadd.f32 0.0, %v8450
        %v8452 = vpop.f32.mrb[0].mxu0
        %v8453 = vadd.f32 0.0, %v8452
        %8454 = vmatprep.mubr.f32.mxu0 0.0
        %8455 = vmatmul.mubr.f32.gmra.mrb[0].mxu0 %v8328
        %v8456 = vpop.f32.mrb[0].mxu0
        %v8457 = vadd.f32 0.0, %v8456
        %v8458 = vpop.f32.mrb[0].mxu0
        %v8459 = vadd.f32 0.0, %v8458
        %8460 = vmatprep.mubr.f32.mxu0 0.0
        %8461 = vmatmul.mubr.f32.gmra.mrb[0].mxu0 %v8331
        %v8462 = vpop.f32.mrb[0].mxu0
        %v8463 = vadd.f32 0.0, %v8462
        %v8464 = vpop.f32.mrb[0].mxu0
        %v8465 = vadd.f32 0.0, %v8464
        %8466 = vmatprep.mubr.f32.mxu0 0.0
        %8467 = vmatmul.mubr.f32.gmra.mrb[0].mxu0 %v8334
        %v8468 = vpop.f32.mrb[0].mxu0
        %v8469 = vadd.f32 0.0, %v8468
        %v8470 = vpop.f32.mrb[0].mxu0
        %v8471 = vadd.f32 0.0, %v8470
        %8472 = vmatprep.mubr.f32.mxu0 0.0
        %8473 = vmatmul.mubr.f32.gmra.mrb[0].mxu0 %v8337
        %v8474 = vpop.f32.mrb[0].mxu0
        %v8475 = vadd.f32 0.0, %v8474
        %v8476 = vpop.f32.mrb[0].mxu0
        %v8477 = vadd.f32 0.0, %v8476
        %8478 = vmatprep.mubr.f32.mxu0 0.0
        %8479 = vmatmul.mubr.f32.gmra.mrb[0].mxu0 %v8340
        %v8480 = vpop.f32.mrb[0].mxu0
        %v8481 = vadd.f32 0.0, %v8480
        %v8482 = vpop.f32.mrb[0].mxu0
        %v8483 = vadd.f32 0.0, %v8482
        %8484 = vmatprep.mubr.f32.mxu0 0.0
        %8485 = vmatmul.mubr.f32.gmra.mrb[0].mxu0 %v8343
        %v8486 = vpop.f32.mrb[0].mxu0
        %v8487 = vadd.f32 0.0, %v8486
        %v8488 = vpop.f32.mrb[0].mxu0
        %v8489 = vadd.f32 0.0, %v8488
        %8490 = vmatprep.mubr.f32.mxu0 0.0
        %8491 = vmatmul.mubr.f32.gmra.mrb[0].mxu0 %v8346
        %v8492 = vpop.f32.mrb[0].mxu0
        %v8493 = vadd.f32 0.0, %v8492
        %v8494 = vpop.f32.mrb[0].mxu0
        %v8495 = vadd.f32 0.0, %v8494
        %8496 = vmatprep.mubr.f32.mxu0 0.0
        %8497 = vmatmul.mubr.f32.gmra.mrb[0].mxu0 %v8349
        %v8498 = vpop.f32.mrb[0].mxu0
        %v8499 = vadd.f32 0.0, %v8498
        %v8500 = vpop.f32.mrb[0].mxu0
        %v8501 = vadd.f32 0.0, %v8500
        %8502 = vmatprep.mubr.f32.mxu0 0.0
        %8503 = vmatmul.mubr.f32.gmra.mrb[0].mxu0 %v8352
        %v8504 = vpop.f32.mrb[0].mxu0
        %v8505 = vadd.f32 0.0, %v8504
        %v8506 = vpop.f32.mrb[0].mxu0
        %v8507 = vadd.f32 0.0, %v8506
        %8508 = vmatprep.mubr.f32.mxu0 0.0
        %8509 = vmatmul.mubr.f32.gmra.mrb[0].mxu0 %v8355
        %v8510 = vpop.f32.mrb[0].mxu0
        %v8511 = vadd.f32 0.0, %v8510
        %v8512 = vpop.f32.mrb[0].mxu0
        %v8513 = vadd.f32 0.0, %v8512
        %8514 = vmatprep.mubr.f32.mxu0 0.0
        %8515 = vmatmul.mubr.f32.gmra.mrb[0].mxu0 %v8358
        %v8516 = vpop.f32.mrb[0].mxu0
        %v8517 = vadd.f32 0.0, %v8516
        %v8518 = vpop.f32.mrb[0].mxu0
        %v8519 = vadd.f32 0.0, %v8518
        %8520 = vdwg.mxu0
        %v8521 = vadd.f32 %v8255, %v8427
        %v8522 = vadd.f32 %v8256, %v8429
        %v8523 = vadd.f32 %v8257, %v8433
        %v8524 = vadd.f32 %v8258, %v8435
        %v8525 = vadd.f32 %v8259, %v8439
        %v8526 = vadd.f32 %v8260, %v8441
        %v8527 = vadd.f32 %v8261, %v8445
        %v8528 = vadd.f32 %v8262, %v8447
        %v8529 = vadd.f32 %v8263, %v8451
        %v8530 = vadd.f32 %v8264, %v8453
        %v8531 = vadd.f32 %v8265, %v8457
        %v8532 = vadd.f32 %v8266, %v8459
        %v8533 = vadd.f32 %v8267, %v8463
        %v8534 = vadd.f32 %v8268, %v8465
        %v8535 = vadd.f32 %v8269, %v8469
        %v8536 = vadd.f32 %v8270, %v8471
        %v8537 = vadd.f32 %v8271, %v8475
        %v8538 = vadd.f32 %v8272, %v8477
        %v8539 = vadd.f32 %v8273, %v8481
        %v8540 = vadd.f32 %v8274, %v8483
        %v8541 = vadd.f32 %v8275, %v8487
        %v8542 = vadd.f32 %v8276, %v8489
        %v8543 = vadd.f32 %v8277, %v8493
        %v8544 = vadd.f32 %v8278, %v8495
        %v8545 = vadd.f32 %v8279, %v8499
        %v8546 = vadd.f32 %v8280, %v8501
        %v8547 = vadd.f32 %v8281, %v8505
        %v8548 = vadd.f32 %v8282, %v8507
        %v8549 = vadd.f32 %v8283, %v8511
        %v8550 = vadd.f32 %v8284, %v8513
        %v8551 = vadd.f32 %v8285, %v8517
        %v8552 = vadd.f32 %v8286, %v8519
        %v8553 = vld [vmem:[%s8020 + $0xc] sm:$0xff]
        %v8554 = vld [vmem:[%s8020 + $0x14] sm:$0xff]
        %v8555 = vld [vmem:[%s8020 + $0x2c] sm:$0xff]
        %v8556 = vld [vmem:[%s8020 + $0x34] sm:$0xff]
        %v8557 = vld [vmem:[%s8020 + $0x4c] sm:$0xff]
        %v8558 = vld [vmem:[%s8020 + $0x54] sm:$0xff]
        %v8559 = vld [vmem:[%s8020 + $0x6c] sm:$0xff]
        %v8560 = vld [vmem:[%s8020 + $0x74] sm:$0xff]
        %v8561 = vld [vmem:[%s8020 + $0x8c] sm:$0xff]
        %v8562 = vld [vmem:[%s8020 + $0x94] sm:$0xff]
        %v8563 = vld [vmem:[%s8020 + $0xac] sm:$0xff]
        %v8564 = vld [vmem:[%s8020 + $0xb4] sm:$0xff]
        %v8565 = vld [vmem:[%s8020 + $0xcc] sm:$0xff]
        %v8566 = vld [vmem:[%s8020 + $0xd4] sm:$0xff]
        %v8567 = vld [vmem:[%s8020 + $0xec] sm:$0xff]
        %v8568 = vld [vmem:[%s8020 + $0xf4] sm:$0xff]
        %s8569 = scalar_lea.vmem %s1, 1728
        %v8570 = vld [vmem:[%s8569] sm:$0xff]
        %v8571 = vld [vmem:[%s8569 + $0x8] sm:$0xff]
        %v8572 = vld [vmem:[%s8569 + $0x10] sm:$0xff]
        %v8573 = vld [vmem:[%s8569 + $0x18] sm:$0xff]
        %v8574 = vld [vmem:[%s8569 + $0x20] sm:$0xff]
        %v8575 = vld [vmem:[%s8569 + $0x28] sm:$0xff]
        %v8576 = vld [vmem:[%s8569 + $0x30] sm:$0xff]
        %v8577 = vld [vmem:[%s8569 + $0x38] sm:$0xff]
        %v8579 = vsel %vm337, %v8553, 0
        %v8582 = vsel %vm337, %v8554, 0
        %v8585 = vsel %vm337, %v8555, 0
        %v8588 = vsel %vm337, %v8556, 0
        %v8591 = vsel %vm337, %v8557, 0
        %v8594 = vsel %vm337, %v8558, 0
        %v8597 = vsel %vm337, %v8559, 0
        %v8600 = vsel %vm337, %v8560, 0
        %v8603 = vsel %vm337, %v8561, 0
        %v8606 = vsel %vm337, %v8562, 0
        %v8609 = vsel %vm337, %v8563, 0
        %v8612 = vsel %vm337, %v8564, 0
        %v8615 = vsel %vm337, %v8565, 0
        %v8618 = vsel %vm337, %v8566, 0
        %v8621 = vsel %vm337, %v8567, 0
        %v8624 = vsel %vm337, %v8568, 0
        %8626 = vmatprep.subr.mxu0 %v8571
        %8627 = vmatpush1.msra.mxu0 %v8570
        %8628 = vmatprep.subr.mxu0 %v8573
        %8629 = vmatpush1.msra.mxu0 %v8572
        %8630 = vmatprep.subr.mxu0 %v8575
        %8631 = vmatpush1.msra.mxu0 %v8574
        %8632 = vmatprep.subr.mxu0 %v8577
        %8633 = vmatpush1.msra.mxu0 %v8576
        %8634 = vmatprep.subr.mxu0 0.0
        %8635 = vmatpush1.msra.mxu0 0.0
        %8636 = vmatprep.subr.mxu0 0.0
        %8637 = vmatpush1.msra.mxu0 0.0
        %8638 = vmatprep.subr.mxu0 0.0
        %8639 = vmatpush1.msra.mxu0 0.0
        %8640 = vmatprep.subr.mxu0 0.0
        %8641 = vmatpush1.msra.mxu0 0.0
        %8642 = vmatprep.subr.mxu0 0.0
        %8643 = vmatpush1.msra.mxu0 0.0
        %8644 = vmatprep.subr.mxu0 0.0
        %8645 = vmatpush1.msra.mxu0 0.0
        %8646 = vmatprep.subr.mxu0 0.0
        %8647 = vmatpush1.msra.mxu0 0.0
        %8648 = vmatprep.subr.mxu0 0.0
        %8649 = vmatpush1.msra.mxu0 0.0
        %8650 = vmatprep.subr.mxu0 0.0
        %8651 = vmatpush1.msra.mxu0 0.0
        %8652 = vmatprep.subr.mxu0 0.0
        %8653 = vmatpush1.msra.mxu0 0.0
        %8654 = vmatprep.subr.mxu0 0.0
        %8655 = vmatpush1.msra.mxu0 0.0
        %8656 = vmatprep.subr.mxu0 0.0
        %8657 = vmatpush1.msra.mxu0 0.0
        %8658 = vmatprep.subr.mxu0 0.0
        %8659 = vmatpush1.msra.mxu0 0.0
        %8660 = vmatprep.subr.mxu0 0.0
        %8661 = vmatpush1.msra.mxu0 0.0
        %8662 = vmatprep.subr.mxu0 0.0
        %8663 = vmatpush1.msra.mxu0 0.0
        %8664 = vmatprep.subr.mxu0 0.0
        %8665 = vmatpush1.msra.mxu0 0.0
        %8666 = vmatprep.subr.mxu0 0.0
        %8667 = vmatpush1.msra.mxu0 0.0
        %8668 = vmatprep.subr.mxu0 0.0
        %8669 = vmatpush1.msra.mxu0 0.0
        %8670 = vmatprep.subr.mxu0 0.0
        %8671 = vmatpush1.msra.mxu0 0.0
        %8672 = vmatprep.subr.mxu0 0.0
        %8673 = vmatpush1.msra.mxu0 0.0
        %8674 = vmatprep.subr.mxu0 0.0
        %8675 = vmatpush1.msra.mxu0 0.0
        %8676 = vmatprep.subr.mxu0 0.0
        %8677 = vmatpush1.msra.mxu0 0.0
        %8678 = vmatprep.subr.mxu0 0.0
        %8679 = vmatpush1.msra.mxu0 0.0
        %8680 = vmatprep.subr.mxu0 0.0
        %8681 = vmatpush1.msra.mxu0 0.0
        %8682 = vmatprep.subr.mxu0 0.0
        %8683 = vmatpush1.msra.mxu0 0.0
        %8684 = vmatprep.subr.mxu0 0.0
        %8685 = vmatpush1.msra.mxu0 0.0
        %8686 = vmatprep.subr.mxu0 0.0
        %8687 = vmatpush1.msra.mxu0 0.0
        %8688 = vmatprep.subr.mxu0 0.0
        %8689 = vmatpush1.msra.mxu0 0.0
        %8690 = vmatprep.mubr.f32.mxu0 0.0
        %8691 = vmatmul.mubr.f32.gmra.mrb[0].mxu0 %v8579
        %v8692 = vpop.f32.mrb[0].mxu0
        %v8693 = vadd.f32 0.0, %v8692
        %v8694 = vpop.f32.mrb[0].mxu0
        %v8695 = vadd.f32 0.0, %v8694
        %8696 = vmatprep.mubr.f32.mxu0 0.0
        %8697 = vmatmul.mubr.f32.gmra.mrb[0].mxu0 %v8582
        %v8698 = vpop.f32.mrb[0].mxu0
        %v8699 = vadd.f32 0.0, %v8698
        %v8700 = vpop.f32.mrb[0].mxu0
        %v8701 = vadd.f32 0.0, %v8700
        %8702 = vmatprep.mubr.f32.mxu0 0.0
        %8703 = vmatmul.mubr.f32.gmra.mrb[0].mxu0 %v8585
        %v8704 = vpop.f32.mrb[0].mxu0
        %v8705 = vadd.f32 0.0, %v8704
        %v8706 = vpop.f32.mrb[0].mxu0
        %v8707 = vadd.f32 0.0, %v8706
        %8708 = vmatprep.mubr.f32.mxu0 0.0
        %8709 = vmatmul.mubr.f32.gmra.mrb[0].mxu0 %v8588
        %v8710 = vpop.f32.mrb[0].mxu0
        %v8711 = vadd.f32 0.0, %v8710
        %v8712 = vpop.f32.mrb[0].mxu0
        %v8713 = vadd.f32 0.0, %v8712
        %8714 = vmatprep.mubr.f32.mxu0 0.0
        %8715 = vmatmul.mubr.f32.gmra.mrb[0].mxu0 %v8591
        %v8716 = vpop.f32.mrb[0].mxu0
        %v8717 = vadd.f32 0.0, %v8716
        %v8718 = vpop.f32.mrb[0].mxu0
        %v8719 = vadd.f32 0.0, %v8718
        %8720 = vmatprep.mubr.f32.mxu0 0.0
        %8721 = vmatmul.mubr.f32.gmra.mrb[0].mxu0 %v8594
        %v8722 = vpop.f32.mrb[0].mxu0
        %v8723 = vadd.f32 0.0, %v8722
        %v8724 = vpop.f32.mrb[0].mxu0
        %v8725 = vadd.f32 0.0, %v8724
        %8726 = vmatprep.mubr.f32.mxu0 0.0
        %8727 = vmatmul.mubr.f32.gmra.mrb[0].mxu0 %v8597
        %v8728 = vpop.f32.mrb[0].mxu0
        %v8729 = vadd.f32 0.0, %v8728
        %v8730 = vpop.f32.mrb[0].mxu0
        %v8731 = vadd.f32 0.0, %v8730
        %8732 = vmatprep.mubr.f32.mxu0 0.0
        %8733 = vmatmul.mubr.f32.gmra.mrb[0].mxu0 %v8600
        %v8734 = vpop.f32.mrb[0].mxu0
        %v8735 = vadd.f32 0.0, %v8734
        %v8736 = vpop.f32.mrb[0].mxu0
        %v8737 = vadd.f32 0.0, %v8736
        %8738 = vmatprep.mubr.f32.mxu0 0.0
        %8739 = vmatmul.mubr.f32.gmra.mrb[0].mxu0 %v8603
        %v8740 = vpop.f32.mrb[0].mxu0
        %v8741 = vadd.f32 0.0, %v8740
        %v8742 = vpop.f32.mrb[0].mxu0
        %v8743 = vadd.f32 0.0, %v8742
        %8744 = vmatprep.mubr.f32.mxu0 0.0
        %8745 = vmatmul.mubr.f32.gmra.mrb[0].mxu0 %v8606
        %v8746 = vpop.f32.mrb[0].mxu0
        %v8747 = vadd.f32 0.0, %v8746
        %v8748 = vpop.f32.mrb[0].mxu0
        %v8749 = vadd.f32 0.0, %v8748
        %8750 = vmatprep.mubr.f32.mxu0 0.0
        %8751 = vmatmul.mubr.f32.gmra.mrb[0].mxu0 %v8609
        %v8752 = vpop.f32.mrb[0].mxu0
        %v8753 = vadd.f32 0.0, %v8752
        %v8754 = vpop.f32.mrb[0].mxu0
        %v8755 = vadd.f32 0.0, %v8754
        %8756 = vmatprep.mubr.f32.mxu0 0.0
        %8757 = vmatmul.mubr.f32.gmra.mrb[0].mxu0 %v8612
        %v8758 = vpop.f32.mrb[0].mxu0
        %v8759 = vadd.f32 0.0, %v8758
        %v8760 = vpop.f32.mrb[0].mxu0
        %v8761 = vadd.f32 0.0, %v8760
        %8762 = vmatprep.mubr.f32.mxu0 0.0
        %8763 = vmatmul.mubr.f32.gmra.mrb[0].mxu0 %v8615
        %v8764 = vpop.f32.mrb[0].mxu0
        %v8765 = vadd.f32 0.0, %v8764
        %v8766 = vpop.f32.mrb[0].mxu0
        %v8767 = vadd.f32 0.0, %v8766
        %8768 = vmatprep.mubr.f32.mxu0 0.0
        %8769 = vmatmul.mubr.f32.gmra.mrb[0].mxu0 %v8618
        %v8770 = vpop.f32.mrb[0].mxu0
        %v8771 = vadd.f32 0.0, %v8770
        %v8772 = vpop.f32.mrb[0].mxu0
        %v8773 = vadd.f32 0.0, %v8772
        %8774 = vmatprep.mubr.f32.mxu0 0.0
        %8775 = vmatmul.mubr.f32.gmra.mrb[0].mxu0 %v8621
        %v8776 = vpop.f32.mrb[0].mxu0
        %v8777 = vadd.f32 0.0, %v8776
        %v8778 = vpop.f32.mrb[0].mxu0
        %v8779 = vadd.f32 0.0, %v8778
        %8780 = vmatprep.mubr.f32.mxu0 0.0
        %8781 = vmatmul.mubr.f32.gmra.mrb[0].mxu0 %v8624
        %v8782 = vpop.f32.mrb[0].mxu0
        %v8783 = vadd.f32 0.0, %v8782
        %v8784 = vpop.f32.mrb[0].mxu0
        %v8785 = vadd.f32 0.0, %v8784
        %8786 = vdwg.mxu0
        %v8787 = vadd.f32 %v8521, %v8693
        %v8788 = vadd.f32 %v8522, %v8695
        %v8789 = vadd.f32 %v8523, %v8699
        %v8790 = vadd.f32 %v8524, %v8701
        %v8791 = vadd.f32 %v8525, %v8705
        %v8792 = vadd.f32 %v8526, %v8707
        %v8793 = vadd.f32 %v8527, %v8711
        %v8794 = vadd.f32 %v8528, %v8713
        %v8795 = vadd.f32 %v8529, %v8717
        %v8796 = vadd.f32 %v8530, %v8719
        %v8797 = vadd.f32 %v8531, %v8723
        %v8798 = vadd.f32 %v8532, %v8725
        %v8799 = vadd.f32 %v8533, %v8729
        %v8800 = vadd.f32 %v8534, %v8731
        %v8801 = vadd.f32 %v8535, %v8735
        %v8802 = vadd.f32 %v8536, %v8737
        %v8803 = vadd.f32 %v8537, %v8741
        %v8804 = vadd.f32 %v8538, %v8743
        %v8805 = vadd.f32 %v8539, %v8747
        %v8806 = vadd.f32 %v8540, %v8749
        %v8807 = vadd.f32 %v8541, %v8753
        %v8808 = vadd.f32 %v8542, %v8755
        %v8809 = vadd.f32 %v8543, %v8759
        %v8810 = vadd.f32 %v8544, %v8761
        %v8811 = vadd.f32 %v8545, %v8765
        %v8812 = vadd.f32 %v8546, %v8767
        %v8813 = vadd.f32 %v8547, %v8771
        %v8814 = vadd.f32 %v8548, %v8773
        %v8815 = vadd.f32 %v8549, %v8777
        %v8816 = vadd.f32 %v8550, %v8779
        %v8817 = vadd.f32 %v8551, %v8783
        %v8818 = vadd.f32 %v8552, %v8785
        %s8819 = scalar_lea.vmem %s2, 3
        %v8820 = vld [vmem:[%s8819] ss:$4 sm:$0x3]
        %v8822 = vlaneseq
        %v8823 = vshrl.u32 %v8822, 7
        %v8824 = vsub.s32 0, %v8823
        %v8825 = vrot.slane %v8820, %v8824
        %v8826 = vlaneseq
        %v8827 = vshrl.u32 %v8826, 7
        %v8828 = vsub.s32 1, %v8827
        %v8829 = vrot.slane %v8820, %v8828
        %v8832 = vmul.f32 %v8787, %v8825
        %v8833 = vmul.f32 %v8788, %v8829
        %v8834 = vmul.f32 %v8789, %v8825
        %v8835 = vmul.f32 %v8790, %v8829
        %v8836 = vmul.f32 %v8791, %v8825
        %v8837 = vmul.f32 %v8792, %v8829
        %v8838 = vmul.f32 %v8793, %v8825
        %v8839 = vmul.f32 %v8794, %v8829
        %v8840 = vmul.f32 %v8795, %v8825
        %v8841 = vmul.f32 %v8796, %v8829
        %v8842 = vmul.f32 %v8797, %v8825
        %v8843 = vmul.f32 %v8798, %v8829
        %v8844 = vmul.f32 %v8799, %v8825
        %v8845 = vmul.f32 %v8800, %v8829
        %v8846 = vmul.f32 %v8801, %v8825
        %v8847 = vmul.f32 %v8802, %v8829
        %v8848 = vmul.f32 %v8803, %v8825
        %v8849 = vmul.f32 %v8804, %v8829
        %v8850 = vmul.f32 %v8805, %v8825
        %v8851 = vmul.f32 %v8806, %v8829
        %v8852 = vmul.f32 %v8807, %v8825
        %v8853 = vmul.f32 %v8808, %v8829
        %v8854 = vmul.f32 %v8809, %v8825
        %v8855 = vmul.f32 %v8810, %v8829
        %v8856 = vmul.f32 %v8811, %v8825
        %v8857 = vmul.f32 %v8812, %v8829
        %v8858 = vmul.f32 %v8813, %v8825
        %v8859 = vmul.f32 %v8814, %v8829
        %v8860 = vmul.f32 %v8815, %v8825
        %v8861 = vmul.f32 %v8816, %v8829
        %v8862 = vmul.f32 %v8817, %v8825
        %v8863 = vmul.f32 %v8818, %v8829
        %s8864 = scalar_lea.vmem %s3, 3
        %v8865 = vld [vmem:[%s8864] ss:$4 sm:$0x3]
        %v8867 = vlaneseq
        %v8868 = vshrl.u32 %v8867, 7
        %v8869 = vsub.s32 0, %v8868
        %v8870 = vrot.slane %v8865, %v8869
        %v8871 = vlaneseq
        %v8872 = vshrl.u32 %v8871, 7
        %v8873 = vsub.s32 1, %v8872
        %v8874 = vrot.slane %v8865, %v8873
        %v8877 = vadd.f32 %v8832, %v8870
        %v8878 = vadd.f32 %v8833, %v8874
        %v8879 = vadd.f32 %v8834, %v8870
        %v8880 = vadd.f32 %v8835, %v8874
        %v8881 = vadd.f32 %v8836, %v8870
        %v8882 = vadd.f32 %v8837, %v8874
        %v8883 = vadd.f32 %v8838, %v8870
        %v8884 = vadd.f32 %v8839, %v8874
        %v8885 = vadd.f32 %v8840, %v8870
        %v8886 = vadd.f32 %v8841, %v8874
        %v8887 = vadd.f32 %v8842, %v8870
        %v8888 = vadd.f32 %v8843, %v8874
        %v8889 = vadd.f32 %v8844, %v8870
        %v8890 = vadd.f32 %v8845, %v8874
        %v8891 = vadd.f32 %v8846, %v8870
        %v8892 = vadd.f32 %v8847, %v8874
        %v8893 = vadd.f32 %v8848, %v8870
        %v8894 = vadd.f32 %v8849, %v8874
        %v8895 = vadd.f32 %v8850, %v8870
        %v8896 = vadd.f32 %v8851, %v8874
        %v8897 = vadd.f32 %v8852, %v8870
        %v8898 = vadd.f32 %v8853, %v8874
        %v8899 = vadd.f32 %v8854, %v8870
        %v8900 = vadd.f32 %v8855, %v8874
        %v8901 = vadd.f32 %v8856, %v8870
        %v8902 = vadd.f32 %v8857, %v8874
        %v8903 = vadd.f32 %v8858, %v8870
        %v8904 = vadd.f32 %v8859, %v8874
        %v8905 = vadd.f32 %v8860, %v8870
        %v8906 = vadd.f32 %v8861, %v8874
        %v8907 = vadd.f32 %v8862, %v8870
        %v8908 = vadd.f32 %v8863, %v8874
        %v8909 = vmax.f32 %v8877, 0.0
        %v8910 = vmax.f32 %v8878, 0.0
        %v8911 = vmax.f32 %v8879, 0.0
        %v8912 = vmax.f32 %v8880, 0.0
        %v8913 = vmax.f32 %v8881, 0.0
        %v8914 = vmax.f32 %v8882, 0.0
        %v8915 = vmax.f32 %v8883, 0.0
        %v8916 = vmax.f32 %v8884, 0.0
        %v8917 = vmax.f32 %v8885, 0.0
        %v8918 = vmax.f32 %v8886, 0.0
        %v8919 = vmax.f32 %v8887, 0.0
        %v8920 = vmax.f32 %v8888, 0.0
        %v8921 = vmax.f32 %v8889, 0.0
        %v8922 = vmax.f32 %v8890, 0.0
        %v8923 = vmax.f32 %v8891, 0.0
        %v8924 = vmax.f32 %v8892, 0.0
        %v8925 = vmax.f32 %v8893, 0.0
        %v8926 = vmax.f32 %v8894, 0.0
        %v8927 = vmax.f32 %v8895, 0.0
        %v8928 = vmax.f32 %v8896, 0.0
        %v8929 = vmax.f32 %v8897, 0.0
        %v8930 = vmax.f32 %v8898, 0.0
        %v8931 = vmax.f32 %v8899, 0.0
        %v8932 = vmax.f32 %v8900, 0.0
        %v8933 = vmax.f32 %v8901, 0.0
        %v8934 = vmax.f32 %v8902, 0.0
        %v8935 = vmax.f32 %v8903, 0.0
        %v8936 = vmax.f32 %v8904, 0.0
        %v8937 = vmax.f32 %v8905, 0.0
        %v8938 = vmax.f32 %v8906, 0.0
        %v8939 = vmax.f32 %v8907, 0.0
        %v8940 = vmax.f32 %v8908, 0.0
        %s8941 = scalar_lea.vmem %s4, 1536
        %v8942 = vld [vmem:[%s8941] sm:$0xff]
        %v8943 = vld [vmem:[%s8941 + $0x8] sm:$0xff]
        %v8944 = vld [vmem:[%s8941 + $0x10] sm:$0xff]
        %v8945 = vld [vmem:[%s8941 + $0x18] sm:$0xff]
        %v8946 = vld [vmem:[%s8941 + $0x20] sm:$0xff]
        %v8947 = vld [vmem:[%s8941 + $0x28] sm:$0xff]
        %v8948 = vld [vmem:[%s8941 + $0x30] sm:$0xff]
        %v8949 = vld [vmem:[%s8941 + $0x38] sm:$0xff]
        %v8950 = vld [vmem:[%s8941 + $0x40] sm:$0xff]
        %v8951 = vld [vmem:[%s8941 + $0x48] sm:$0xff]
        %v8952 = vld [vmem:[%s8941 + $0x50] sm:$0xff]
        %v8953 = vld [vmem:[%s8941 + $0x58] sm:$0xff]
        %v8954 = vld [vmem:[%s8941 + $0x60] sm:$0xff]
        %v8955 = vld [vmem:[%s8941 + $0x68] sm:$0xff]
        %v8956 = vld [vmem:[%s8941 + $0x70] sm:$0xff]
        %v8957 = vld [vmem:[%s8941 + $0x78] sm:$0xff]
        %v8958 = vld [vmem:[%s8941 + $0x80] sm:$0xff]
        %v8959 = vld [vmem:[%s8941 + $0x88] sm:$0xff]
        %v8960 = vld [vmem:[%s8941 + $0x90] sm:$0xff]
        %v8961 = vld [vmem:[%s8941 + $0x98] sm:$0xff]
        %v8962 = vld [vmem:[%s8941 + $0xa0] sm:$0xff]
        %v8963 = vld [vmem:[%s8941 + $0xa8] sm:$0xff]
        %v8964 = vld [vmem:[%s8941 + $0xb0] sm:$0xff]
        %v8965 = vld [vmem:[%s8941 + $0xb8] sm:$0xff]
        %v8966 = vld [vmem:[%s8941 + $0xc0] sm:$0xff]
        %v8967 = vld [vmem:[%s8941 + $0xc8] sm:$0xff]
        %v8968 = vld [vmem:[%s8941 + $0xd0] sm:$0xff]
        %v8969 = vld [vmem:[%s8941 + $0xd8] sm:$0xff]
        %v8970 = vld [vmem:[%s8941 + $0xe0] sm:$0xff]
        %v8971 = vld [vmem:[%s8941 + $0xe8] sm:$0xff]
        %v8972 = vld [vmem:[%s8941 + $0xf0] sm:$0xff]
        %v8973 = vld [vmem:[%s8941 + $0xf8] sm:$0xff]
        %v8974 = vld [vmem:[%s8941 + $0x100] sm:$0xff]
        %v8975 = vld [vmem:[%s8941 + $0x108] sm:$0xff]
        %v8976 = vld [vmem:[%s8941 + $0x110] sm:$0xff]
        %v8977 = vld [vmem:[%s8941 + $0x118] sm:$0xff]
        %v8978 = vld [vmem:[%s8941 + $0x120] sm:$0xff]
        %v8979 = vld [vmem:[%s8941 + $0x128] sm:$0xff]
        %v8980 = vld [vmem:[%s8941 + $0x130] sm:$0xff]
        %v8981 = vld [vmem:[%s8941 + $0x138] sm:$0xff]
        %v8982 = vld [vmem:[%s8941 + $0x140] sm:$0xff]
        %v8983 = vld [vmem:[%s8941 + $0x148] sm:$0xff]
        %v8984 = vld [vmem:[%s8941 + $0x150] sm:$0xff]
        %v8985 = vld [vmem:[%s8941 + $0x158] sm:$0xff]
        %v8986 = vld [vmem:[%s8941 + $0x160] sm:$0xff]
        %v8987 = vld [vmem:[%s8941 + $0x168] sm:$0xff]
        %v8988 = vld [vmem:[%s8941 + $0x170] sm:$0xff]
        %v8989 = vld [vmem:[%s8941 + $0x178] sm:$0xff]
        %v8990 = vld [vmem:[%s8941 + $0x180] sm:$0xff]
        %v8991 = vld [vmem:[%s8941 + $0x188] sm:$0xff]
        %v8992 = vld [vmem:[%s8941 + $0x190] sm:$0xff]
        %v8993 = vld [vmem:[%s8941 + $0x198] sm:$0xff]
        %v8994 = vld [vmem:[%s8941 + $0x1a0] sm:$0xff]
        %v8995 = vld [vmem:[%s8941 + $0x1a8] sm:$0xff]
        %v8996 = vld [vmem:[%s8941 + $0x1b0] sm:$0xff]
        %v8997 = vld [vmem:[%s8941 + $0x1b8] sm:$0xff]
        %v8998 = vld [vmem:[%s8941 + $0x1c0] sm:$0xff]
        %v8999 = vld [vmem:[%s8941 + $0x1c8] sm:$0xff]
        %v9000 = vld [vmem:[%s8941 + $0x1d0] sm:$0xff]
        %v9001 = vld [vmem:[%s8941 + $0x1d8] sm:$0xff]
        %v9002 = vld [vmem:[%s8941 + $0x1e0] sm:$0xff]
        %v9003 = vld [vmem:[%s8941 + $0x1e8] sm:$0xff]
        %v9004 = vld [vmem:[%s8941 + $0x1f0] sm:$0xff]
        %v9005 = vld [vmem:[%s8941 + $0x1f8] sm:$0xff]
        %9006 = vmatprep.subr.mxu0 %v8943
        %9007 = vmatpush1.msra.mxu0 %v8942
        %9008 = vmatprep.subr.mxu0 %v8945
        %9009 = vmatpush1.msra.mxu0 %v8944
        %9010 = vmatprep.subr.mxu0 %v8947
        %9011 = vmatpush1.msra.mxu0 %v8946
        %9012 = vmatprep.subr.mxu0 %v8949
        %9013 = vmatpush1.msra.mxu0 %v8948
        %9014 = vmatprep.subr.mxu0 %v8951
        %9015 = vmatpush1.msra.mxu0 %v8950
        %9016 = vmatprep.subr.mxu0 %v8953
        %9017 = vmatpush1.msra.mxu0 %v8952
        %9018 = vmatprep.subr.mxu0 %v8955
        %9019 = vmatpush1.msra.mxu0 %v8954
        %9020 = vmatprep.subr.mxu0 %v8957
        %9021 = vmatpush1.msra.mxu0 %v8956
        %9022 = vmatprep.subr.mxu0 %v8959
        %9023 = vmatpush1.msra.mxu0 %v8958
        %9024 = vmatprep.subr.mxu0 %v8961
        %9025 = vmatpush1.msra.mxu0 %v8960
        %9026 = vmatprep.subr.mxu0 %v8963
        %9027 = vmatpush1.msra.mxu0 %v8962
        %9028 = vmatprep.subr.mxu0 %v8965
        %9029 = vmatpush1.msra.mxu0 %v8964
        %9030 = vmatprep.subr.mxu0 %v8967
        %9031 = vmatpush1.msra.mxu0 %v8966
        %9032 = vmatprep.subr.mxu0 %v8969
        %9033 = vmatpush1.msra.mxu0 %v8968
        %9034 = vmatprep.subr.mxu0 %v8971
        %9035 = vmatpush1.msra.mxu0 %v8970
        %9036 = vmatprep.subr.mxu0 %v8973
        %9037 = vmatpush1.msra.mxu0 %v8972
        %9038 = vmatprep.subr.mxu0 %v8975
        %9039 = vmatpush1.msra.mxu0 %v8974
        %9040 = vmatprep.subr.mxu0 %v8977
        %9041 = vmatpush1.msra.mxu0 %v8976
        %9042 = vmatprep.subr.mxu0 %v8979
        %9043 = vmatpush1.msra.mxu0 %v8978
        %9044 = vmatprep.subr.mxu0 %v8981
        %9045 = vmatpush1.msra.mxu0 %v8980
        %9046 = vmatprep.subr.mxu0 %v8983
        %9047 = vmatpush1.msra.mxu0 %v8982
        %9048 = vmatprep.subr.mxu0 %v8985
        %9049 = vmatpush1.msra.mxu0 %v8984
        %9050 = vmatprep.subr.mxu0 %v8987
        %9051 = vmatpush1.msra.mxu0 %v8986
        %9052 = vmatprep.subr.mxu0 %v8989
        %9053 = vmatpush1.msra.mxu0 %v8988
        %9054 = vmatprep.subr.mxu0 %v8991
        %9055 = vmatpush1.msra.mxu0 %v8990
        %9056 = vmatprep.subr.mxu0 %v8993
        %9057 = vmatpush1.msra.mxu0 %v8992
        %9058 = vmatprep.subr.mxu0 %v8995
        %9059 = vmatpush1.msra.mxu0 %v8994
        %9060 = vmatprep.subr.mxu0 %v8997
        %9061 = vmatpush1.msra.mxu0 %v8996
        %9062 = vmatprep.subr.mxu0 %v8999
        %9063 = vmatpush1.msra.mxu0 %v8998
        %9064 = vmatprep.subr.mxu0 %v9001
        %9065 = vmatpush1.msra.mxu0 %v9000
        %9066 = vmatprep.subr.mxu0 %v9003
        %9067 = vmatpush1.msra.mxu0 %v9002
        %9068 = vmatprep.subr.mxu0 %v9005
        %9069 = vmatpush1.msra.mxu0 %v9004
        %9070 = vmatprep.mubr.f32.mxu0 %v8910
        %9071 = vmatmul.mubr.f32.gmra.mrb[0].mxu0 %v8909
        %v9072 = vpop.f32.mrb[0].mxu0
        %v9073 = vadd.f32 0.0, %v9072
        %v9074 = vpop.f32.mrb[0].mxu0
        %v9075 = vadd.f32 0.0, %v9074
        %9076 = vmatprep.mubr.f32.mxu0 %v8912
        %9077 = vmatmul.mubr.f32.gmra.mrb[0].mxu0 %v8911
        %v9078 = vpop.f32.mrb[0].mxu0
        %v9079 = vadd.f32 0.0, %v9078
        %v9080 = vpop.f32.mrb[0].mxu0
        %v9081 = vadd.f32 0.0, %v9080
        %9082 = vmatprep.mubr.f32.mxu0 %v8914
        %9083 = vmatmul.mubr.f32.gmra.mrb[0].mxu0 %v8913
        %v9084 = vpop.f32.mrb[0].mxu0
        %v9085 = vadd.f32 0.0, %v9084
        %v9086 = vpop.f32.mrb[0].mxu0
        %v9087 = vadd.f32 0.0, %v9086
        %9088 = vmatprep.mubr.f32.mxu0 %v8916
        %9089 = vmatmul.mubr.f32.gmra.mrb[0].mxu0 %v8915
        %v9090 = vpop.f32.mrb[0].mxu0
        %v9091 = vadd.f32 0.0, %v9090
        %v9092 = vpop.f32.mrb[0].mxu0
        %v9093 = vadd.f32 0.0, %v9092
        %9094 = vmatprep.mubr.f32.mxu0 %v8918
        %9095 = vmatmul.mubr.f32.gmra.mrb[0].mxu0 %v8917
        %v9096 = vpop.f32.mrb[0].mxu0
        %v9097 = vadd.f32 0.0, %v9096
        %v9098 = vpop.f32.mrb[0].mxu0
        %v9099 = vadd.f32 0.0, %v9098
        %9100 = vmatprep.mubr.f32.mxu0 %v8920
        %9101 = vmatmul.mubr.f32.gmra.mrb[0].mxu0 %v8919
        %v9102 = vpop.f32.mrb[0].mxu0
        %v9103 = vadd.f32 0.0, %v9102
        %v9104 = vpop.f32.mrb[0].mxu0
        %v9105 = vadd.f32 0.0, %v9104
        %9106 = vmatprep.mubr.f32.mxu0 %v8922
        %9107 = vmatmul.mubr.f32.gmra.mrb[0].mxu0 %v8921
        %v9108 = vpop.f32.mrb[0].mxu0
        %v9109 = vadd.f32 0.0, %v9108
        %v9110 = vpop.f32.mrb[0].mxu0
        %v9111 = vadd.f32 0.0, %v9110
        %9112 = vmatprep.mubr.f32.mxu0 %v8924
        %9113 = vmatmul.mubr.f32.gmra.mrb[0].mxu0 %v8923
        %v9114 = vpop.f32.mrb[0].mxu0
        %v9115 = vadd.f32 0.0, %v9114
        %v9116 = vpop.f32.mrb[0].mxu0
        %v9117 = vadd.f32 0.0, %v9116
        %9118 = vmatprep.mubr.f32.mxu0 %v8926
        %9119 = vmatmul.mubr.f32.gmra.mrb[0].mxu0 %v8925
        %v9120 = vpop.f32.mrb[0].mxu0
        %v9121 = vadd.f32 0.0, %v9120
        %v9122 = vpop.f32.mrb[0].mxu0
        %v9123 = vadd.f32 0.0, %v9122
        %9124 = vmatprep.mubr.f32.mxu0 %v8928
        %9125 = vmatmul.mubr.f32.gmra.mrb[0].mxu0 %v8927
        %v9126 = vpop.f32.mrb[0].mxu0
        %v9127 = vadd.f32 0.0, %v9126
        %v9128 = vpop.f32.mrb[0].mxu0
        %v9129 = vadd.f32 0.0, %v9128
        %9130 = vmatprep.mubr.f32.mxu0 %v8930
        %9131 = vmatmul.mubr.f32.gmra.mrb[0].mxu0 %v8929
        %v9132 = vpop.f32.mrb[0].mxu0
        %v9133 = vadd.f32 0.0, %v9132
        %v9134 = vpop.f32.mrb[0].mxu0
        %v9135 = vadd.f32 0.0, %v9134
        %9136 = vmatprep.mubr.f32.mxu0 %v8932
        %9137 = vmatmul.mubr.f32.gmra.mrb[0].mxu0 %v8931
        %v9138 = vpop.f32.mrb[0].mxu0
        %v9139 = vadd.f32 0.0, %v9138
        %v9140 = vpop.f32.mrb[0].mxu0
        %v9141 = vadd.f32 0.0, %v9140
        %9142 = vmatprep.mubr.f32.mxu0 %v8934
        %9143 = vmatmul.mubr.f32.gmra.mrb[0].mxu0 %v8933
        %v9144 = vpop.f32.mrb[0].mxu0
        %v9145 = vadd.f32 0.0, %v9144
        %v9146 = vpop.f32.mrb[0].mxu0
        %v9147 = vadd.f32 0.0, %v9146
        %9148 = vmatprep.mubr.f32.mxu0 %v8936
        %9149 = vmatmul.mubr.f32.gmra.mrb[0].mxu0 %v8935
        %v9150 = vpop.f32.mrb[0].mxu0
        %v9151 = vadd.f32 0.0, %v9150
        %v9152 = vpop.f32.mrb[0].mxu0
        %v9153 = vadd.f32 0.0, %v9152
        %9154 = vmatprep.mubr.f32.mxu0 %v8938
        %9155 = vmatmul.mubr.f32.gmra.mrb[0].mxu0 %v8937
        %v9156 = vpop.f32.mrb[0].mxu0
        %v9157 = vadd.f32 0.0, %v9156
        %v9158 = vpop.f32.mrb[0].mxu0
        %v9159 = vadd.f32 0.0, %v9158
        %9160 = vmatprep.mubr.f32.mxu0 %v8940
        %9161 = vmatmul.mubr.f32.gmra.mrb[0].mxu0 %v8939
        %v9162 = vpop.f32.mrb[0].mxu0
        %v9163 = vadd.f32 0.0, %v9162
        %v9164 = vpop.f32.mrb[0].mxu0
        %v9165 = vadd.f32 0.0, %v9164
        %9166 = vdwg.mxu0
        %v9167 = vld [vmem:[#allocation2] sm:$0xff]
        %v9168 = vld [vmem:[#allocation2 + $0x8] sm:$0xff]
        %v9169 = vld [vmem:[#allocation2 + $0x10] sm:$0xff]
        %v9170 = vld [vmem:[#allocation2 + $0x18] sm:$0xff]
        %v9171 = vld [vmem:[#allocation2 + $0x20] sm:$0xff]
        %v9172 = vld [vmem:[#allocation2 + $0x28] sm:$0xff]
        %v9173 = vld [vmem:[#allocation2 + $0x30] sm:$0xff]
        %v9174 = vld [vmem:[#allocation2 + $0x38] sm:$0xff]
        %v9175 = vld [vmem:[#allocation2 + $0x40] sm:$0xff]
        %v9176 = vld [vmem:[#allocation2 + $0x48] sm:$0xff]
        %v9177 = vld [vmem:[#allocation2 + $0x50] sm:$0xff]
        %v9178 = vld [vmem:[#allocation2 + $0x58] sm:$0xff]
        %v9179 = vld [vmem:[#allocation2 + $0x60] sm:$0xff]
        %v9180 = vld [vmem:[#allocation2 + $0x68] sm:$0xff]
        %v9181 = vld [vmem:[#allocation2 + $0x70] sm:$0xff]
        %v9182 = vld [vmem:[#allocation2 + $0x78] sm:$0xff]
        %v9183 = vld [vmem:[#allocation2 + $0x80] sm:$0xff]
        %v9184 = vld [vmem:[#allocation2 + $0x88] sm:$0xff]
        %v9185 = vld [vmem:[#allocation2 + $0x90] sm:$0xff]
        %v9186 = vld [vmem:[#allocation2 + $0x98] sm:$0xff]
        %v9187 = vld [vmem:[#allocation2 + $0xa0] sm:$0xff]
        %v9188 = vld [vmem:[#allocation2 + $0xa8] sm:$0xff]
        %v9189 = vld [vmem:[#allocation2 + $0xb0] sm:$0xff]
        %v9190 = vld [vmem:[#allocation2 + $0xb8] sm:$0xff]
        %v9191 = vld [vmem:[#allocation2 + $0xc0] sm:$0xff]
        %v9192 = vld [vmem:[#allocation2 + $0xc8] sm:$0xff]
        %v9193 = vld [vmem:[#allocation2 + $0xd0] sm:$0xff]
        %v9194 = vld [vmem:[#allocation2 + $0xd8] sm:$0xff]
        %v9195 = vld [vmem:[#allocation2 + $0xe0] sm:$0xff]
        %v9196 = vld [vmem:[#allocation2 + $0xe8] sm:$0xff]
        %v9197 = vld [vmem:[#allocation2 + $0xf0] sm:$0xff]
        %v9198 = vld [vmem:[#allocation2 + $0xf8] sm:$0xff]
        %v9199 = vadd.f32 %v9167, %v9073
        %v9200 = vadd.f32 %v9168, %v9075
        %v9201 = vadd.f32 %v9169, %v9079
        %v9202 = vadd.f32 %v9170, %v9081
        %v9203 = vadd.f32 %v9171, %v9085
        %v9204 = vadd.f32 %v9172, %v9087
        %v9205 = vadd.f32 %v9173, %v9091
        %v9206 = vadd.f32 %v9174, %v9093
        %v9207 = vadd.f32 %v9175, %v9097
        %v9208 = vadd.f32 %v9176, %v9099
        %v9209 = vadd.f32 %v9177, %v9103
        %v9210 = vadd.f32 %v9178, %v9105
        %v9211 = vadd.f32 %v9179, %v9109
        %v9212 = vadd.f32 %v9180, %v9111
        %v9213 = vadd.f32 %v9181, %v9115
        %v9214 = vadd.f32 %v9182, %v9117
        %v9215 = vadd.f32 %v9183, %v9121
        %v9216 = vadd.f32 %v9184, %v9123
        %v9217 = vadd.f32 %v9185, %v9127
        %v9218 = vadd.f32 %v9186, %v9129
        %v9219 = vadd.f32 %v9187, %v9133
        %v9220 = vadd.f32 %v9188, %v9135
        %v9221 = vadd.f32 %v9189, %v9139
        %v9222 = vadd.f32 %v9190, %v9141
        %v9223 = vadd.f32 %v9191, %v9145
        %v9224 = vadd.f32 %v9192, %v9147
        %v9225 = vadd.f32 %v9193, %v9151
        %v9226 = vadd.f32 %v9194, %v9153
        %v9227 = vadd.f32 %v9195, %v9157
        %v9228 = vadd.f32 %v9196, %v9159
        %v9229 = vadd.f32 %v9197, %v9163
        %v9230 = vadd.f32 %v9198, %v9165
        %9231 = vst [vmem:[#allocation2] sm:$0xff] %v9199
        %9232 = vst [vmem:[#allocation2 + $0x8] sm:$0xff] %v9200
        %9233 = vst [vmem:[#allocation2 + $0x10] sm:$0xff] %v9201
        %9234 = vst [vmem:[#allocation2 + $0x18] sm:$0xff] %v9202
        %9235 = vst [vmem:[#allocation2 + $0x20] sm:$0xff] %v9203
        %9236 = vst [vmem:[#allocation2 + $0x28] sm:$0xff] %v9204
        %9237 = vst [vmem:[#allocation2 + $0x30] sm:$0xff] %v9205
        %9238 = vst [vmem:[#allocation2 + $0x38] sm:$0xff] %v9206
        %9239 = vst [vmem:[#allocation2 + $0x40] sm:$0xff] %v9207
        %9240 = vst [vmem:[#allocation2 + $0x48] sm:$0xff] %v9208
        %9241 = vst [vmem:[#allocation2 + $0x50] sm:$0xff] %v9209
        %9242 = vst [vmem:[#allocation2 + $0x58] sm:$0xff] %v9210
        %9243 = vst [vmem:[#allocation2 + $0x60] sm:$0xff] %v9211
        %9244 = vst [vmem:[#allocation2 + $0x68] sm:$0xff] %v9212
        %9245 = vst [vmem:[#allocation2 + $0x70] sm:$0xff] %v9213
        %9246 = vst [vmem:[#allocation2 + $0x78] sm:$0xff] %v9214
        %9247 = vst [vmem:[#allocation2 + $0x80] sm:$0xff] %v9215
        %9248 = vst [vmem:[#allocation2 + $0x88] sm:$0xff] %v9216
        %9249 = vst [vmem:[#allocation2 + $0x90] sm:$0xff] %v9217
        %9250 = vst [vmem:[#allocation2 + $0x98] sm:$0xff] %v9218
        %9251 = vst [vmem:[#allocation2 + $0xa0] sm:$0xff] %v9219
        %9252 = vst [vmem:[#allocation2 + $0xa8] sm:$0xff] %v9220
        %9253 = vst [vmem:[#allocation2 + $0xb0] sm:$0xff] %v9221
        %9254 = vst [vmem:[#allocation2 + $0xb8] sm:$0xff] %v9222
        %9255 = vst [vmem:[#allocation2 + $0xc0] sm:$0xff] %v9223
        %9256 = vst [vmem:[#allocation2 + $0xc8] sm:$0xff] %v9224
        %9257 = vst [vmem:[#allocation2 + $0xd0] sm:$0xff] %v9225
        %9258 = vst [vmem:[#allocation2 + $0xd8] sm:$0xff] %v9226
        %9259 = vst [vmem:[#allocation2 + $0xe0] sm:$0xff] %v9227
        %9260 = vst [vmem:[#allocation2 + $0xe8] sm:$0xff] %v9228
        %9261 = vst [vmem:[#allocation2 + $0xf0] sm:$0xff] %v9229
        %9262 = vst [vmem:[#allocation2 + $0xf8] sm:$0xff] %v9230
        %v9263 = vld [vmem:[#allocation2] sm:$0xff]
        %v9264 = vld [vmem:[#allocation2 + $0x8] sm:$0xff]
        %v9265 = vld [vmem:[#allocation2 + $0x10] sm:$0xff]
        %v9266 = vld [vmem:[#allocation2 + $0x18] sm:$0xff]
        %v9267 = vld [vmem:[#allocation2 + $0x20] sm:$0xff]
        %v9268 = vld [vmem:[#allocation2 + $0x28] sm:$0xff]
        %v9269 = vld [vmem:[#allocation2 + $0x30] sm:$0xff]
        %v9270 = vld [vmem:[#allocation2 + $0x38] sm:$0xff]
        %v9271 = vld [vmem:[#allocation2 + $0x40] sm:$0xff]
        %v9272 = vld [vmem:[#allocation2 + $0x48] sm:$0xff]
        %v9273 = vld [vmem:[#allocation2 + $0x50] sm:$0xff]
        %v9274 = vld [vmem:[#allocation2 + $0x58] sm:$0xff]
        %v9275 = vld [vmem:[#allocation2 + $0x60] sm:$0xff]
        %v9276 = vld [vmem:[#allocation2 + $0x68] sm:$0xff]
        %v9277 = vld [vmem:[#allocation2 + $0x70] sm:$0xff]
        %v9278 = vld [vmem:[#allocation2 + $0x78] sm:$0xff]
        %v9279 = vld [vmem:[#allocation2 + $0x80] sm:$0xff]
        %v9280 = vld [vmem:[#allocation2 + $0x88] sm:$0xff]
        %v9281 = vld [vmem:[#allocation2 + $0x90] sm:$0xff]
        %v9282 = vld [vmem:[#allocation2 + $0x98] sm:$0xff]
        %v9283 = vld [vmem:[#allocation2 + $0xa0] sm:$0xff]
        %v9284 = vld [vmem:[#allocation2 + $0xa8] sm:$0xff]
        %v9285 = vld [vmem:[#allocation2 + $0xb0] sm:$0xff]
        %v9286 = vld [vmem:[#allocation2 + $0xb8] sm:$0xff]
        %v9287 = vld [vmem:[#allocation2 + $0xc0] sm:$0xff]
        %v9288 = vld [vmem:[#allocation2 + $0xc8] sm:$0xff]
        %v9289 = vld [vmem:[#allocation2 + $0xd0] sm:$0xff]
        %v9290 = vld [vmem:[#allocation2 + $0xd8] sm:$0xff]
        %v9291 = vld [vmem:[#allocation2 + $0xe0] sm:$0xff]
        %v9292 = vld [vmem:[#allocation2 + $0xe8] sm:$0xff]
        %v9293 = vld [vmem:[#allocation2 + $0xf0] sm:$0xff]
        %v9294 = vld [vmem:[#allocation2 + $0xf8] sm:$0xff]
        %v9295 = vld [vmem:[%s5] sm:$0x3]
        %v9297 = vlaneseq
        %v9298 = vshrl.u32 %v9297, 7
        %v9299 = vsub.s32 0, %v9298
        %v9300 = vrot.slane %v9295, %v9299
        %v9301 = vlaneseq
        %v9302 = vshrl.u32 %v9301, 7
        %v9303 = vsub.s32 1, %v9302
        %v9304 = vrot.slane %v9295, %v9303
        %v9307 = vmul.f32 %v9263, %v9300
        %v9308 = vmul.f32 %v9264, %v9304
        %v9309 = vmul.f32 %v9265, %v9300
        %v9310 = vmul.f32 %v9266, %v9304
        %v9311 = vmul.f32 %v9267, %v9300
        %v9312 = vmul.f32 %v9268, %v9304
        %v9313 = vmul.f32 %v9269, %v9300
        %v9314 = vmul.f32 %v9270, %v9304
        %v9315 = vmul.f32 %v9271, %v9300
        %v9316 = vmul.f32 %v9272, %v9304
        %v9317 = vmul.f32 %v9273, %v9300
        %v9318 = vmul.f32 %v9274, %v9304
        %v9319 = vmul.f32 %v9275, %v9300
        %v9320 = vmul.f32 %v9276, %v9304
        %v9321 = vmul.f32 %v9277, %v9300
        %v9322 = vmul.f32 %v9278, %v9304
        %v9323 = vmul.f32 %v9279, %v9300
        %v9324 = vmul.f32 %v9280, %v9304
        %v9325 = vmul.f32 %v9281, %v9300
        %v9326 = vmul.f32 %v9282, %v9304
        %v9327 = vmul.f32 %v9283, %v9300
        %v9328 = vmul.f32 %v9284, %v9304
        %v9329 = vmul.f32 %v9285, %v9300
        %v9330 = vmul.f32 %v9286, %v9304
        %v9331 = vmul.f32 %v9287, %v9300
        %v9332 = vmul.f32 %v9288, %v9304
        %v9333 = vmul.f32 %v9289, %v9300
        %v9334 = vmul.f32 %v9290, %v9304
        %v9335 = vmul.f32 %v9291, %v9300
        %v9336 = vmul.f32 %v9292, %v9304
        %v9337 = vmul.f32 %v9293, %v9300
        %v9338 = vmul.f32 %v9294, %v9304
        %v9339 = vld [vmem:[%s307] sm:$0x3]
        %v9341 = vlaneseq
        %v9342 = vshrl.u32 %v9341, 7
        %v9343 = vsub.s32 0, %v9342
        %v9344 = vrot.slane %v9339, %v9343
        %v9345 = vlaneseq
        %v9346 = vshrl.u32 %v9345, 7
        %v9347 = vsub.s32 1, %v9346
        %v9348 = vrot.slane %v9339, %v9347
        %v9351 = vadd.f32 %v9307, %v9344
        %v9352 = vadd.f32 %v9308, %v9348
        %v9353 = vadd.f32 %v9309, %v9344
        %v9354 = vadd.f32 %v9310, %v9348
        %v9355 = vadd.f32 %v9311, %v9344
        %v9356 = vadd.f32 %v9312, %v9348
        %v9357 = vadd.f32 %v9313, %v9344
        %v9358 = vadd.f32 %v9314, %v9348
        %v9359 = vadd.f32 %v9315, %v9344
        %v9360 = vadd.f32 %v9316, %v9348
        %v9361 = vadd.f32 %v9317, %v9344
        %v9362 = vadd.f32 %v9318, %v9348
        %v9363 = vadd.f32 %v9319, %v9344
        %v9364 = vadd.f32 %v9320, %v9348
        %v9365 = vadd.f32 %v9321, %v9344
        %v9366 = vadd.f32 %v9322, %v9348
        %v9367 = vadd.f32 %v9323, %v9344
        %v9368 = vadd.f32 %v9324, %v9348
        %v9369 = vadd.f32 %v9325, %v9344
        %v9370 = vadd.f32 %v9326, %v9348
        %v9371 = vadd.f32 %v9327, %v9344
        %v9372 = vadd.f32 %v9328, %v9348
        %v9373 = vadd.f32 %v9329, %v9344
        %v9374 = vadd.f32 %v9330, %v9348
        %v9375 = vadd.f32 %v9331, %v9344
        %v9376 = vadd.f32 %v9332, %v9348
        %v9377 = vadd.f32 %v9333, %v9344
        %v9378 = vadd.f32 %v9334, %v9348
        %v9379 = vadd.f32 %v9335, %v9344
        %v9380 = vadd.f32 %v9336, %v9348
        %v9381 = vadd.f32 %v9337, %v9344
        %v9382 = vadd.f32 %v9338, %v9348
        %v9383 = vmax.f32 %v9351, 0.0
        %v9384 = vmax.f32 %v9352, 0.0
        %v9385 = vmax.f32 %v9353, 0.0
        %v9386 = vmax.f32 %v9354, 0.0
        %v9387 = vmax.f32 %v9355, 0.0
        %v9388 = vmax.f32 %v9356, 0.0
        %v9389 = vmax.f32 %v9357, 0.0
        %v9390 = vmax.f32 %v9358, 0.0
        %v9391 = vmax.f32 %v9359, 0.0
        %v9392 = vmax.f32 %v9360, 0.0
        %v9393 = vmax.f32 %v9361, 0.0
        %v9394 = vmax.f32 %v9362, 0.0
        %v9395 = vmax.f32 %v9363, 0.0
        %v9396 = vmax.f32 %v9364, 0.0
        %v9397 = vmax.f32 %v9365, 0.0
        %v9398 = vmax.f32 %v9366, 0.0
        %v9399 = vmax.f32 %v9367, 0.0
        %v9400 = vmax.f32 %v9368, 0.0
        %v9401 = vmax.f32 %v9369, 0.0
        %v9402 = vmax.f32 %v9370, 0.0
        %v9403 = vmax.f32 %v9371, 0.0
        %v9404 = vmax.f32 %v9372, 0.0
        %v9405 = vmax.f32 %v9373, 0.0
        %v9406 = vmax.f32 %v9374, 0.0
        %v9407 = vmax.f32 %v9375, 0.0
        %v9408 = vmax.f32 %v9376, 0.0
        %v9409 = vmax.f32 %v9377, 0.0
        %v9410 = vmax.f32 %v9378, 0.0
        %v9411 = vmax.f32 %v9379, 0.0
        %v9412 = vmax.f32 %v9380, 0.0
        %v9413 = vmax.f32 %v9381, 0.0
        %v9414 = vmax.f32 %v9382, 0.0
        %9415 = vst [vmem:[%s298] sm:$0xff] %v9383
        %9416 = vst [vmem:[%s298 + $0x8] sm:$0xff] %v9384
        %9417 = vst [vmem:[%s298 + $0x10] sm:$0xff] %v9385
        %9418 = vst [vmem:[%s298 + $0x18] sm:$0xff] %v9386
        %9419 = vst [vmem:[%s298 + $0x20] sm:$0xff] %v9387
        %9420 = vst [vmem:[%s298 + $0x28] sm:$0xff] %v9388
        %9421 = vst [vmem:[%s298 + $0x30] sm:$0xff] %v9389
        %9422 = vst [vmem:[%s298 + $0x38] sm:$0xff] %v9390
        %9423 = vst [vmem:[%s298 + $0x40] sm:$0xff] %v9391
        %9424 = vst [vmem:[%s298 + $0x48] sm:$0xff] %v9392
        %9425 = vst [vmem:[%s298 + $0x50] sm:$0xff] %v9393
        %9426 = vst [vmem:[%s298 + $0x58] sm:$0xff] %v9394
        %9427 = vst [vmem:[%s298 + $0x60] sm:$0xff] %v9395
        %9428 = vst [vmem:[%s298 + $0x68] sm:$0xff] %v9396
        %9429 = vst [vmem:[%s298 + $0x70] sm:$0xff] %v9397
        %9430 = vst [vmem:[%s298 + $0x78] sm:$0xff] %v9398
        %9431 = vst [vmem:[%s298 + $0x80] sm:$0xff] %v9399
        %9432 = vst [vmem:[%s298 + $0x88] sm:$0xff] %v9400
        %9433 = vst [vmem:[%s298 + $0x90] sm:$0xff] %v9401
        %9434 = vst [vmem:[%s298 + $0x98] sm:$0xff] %v9402
        %9435 = vst [vmem:[%s298 + $0xa0] sm:$0xff] %v9403
        %9436 = vst [vmem:[%s298 + $0xa8] sm:$0xff] %v9404
        %9437 = vst [vmem:[%s298 + $0xb0] sm:$0xff] %v9405
        %9438 = vst [vmem:[%s298 + $0xb8] sm:$0xff] %v9406
        %9439 = vst [vmem:[%s298 + $0xc0] sm:$0xff] %v9407
        %9440 = vst [vmem:[%s298 + $0xc8] sm:$0xff] %v9408
        %9441 = vst [vmem:[%s298 + $0xd0] sm:$0xff] %v9409
        %9442 = vst [vmem:[%s298 + $0xd8] sm:$0xff] %v9410
        %9443 = vst [vmem:[%s298 + $0xe0] sm:$0xff] %v9411
        %9444 = vst [vmem:[%s298 + $0xe8] sm:$0xff] %v9412
        %9445 = vst [vmem:[%s298 + $0xf0] sm:$0xff] %v9413
        %9446 = vst [vmem:[%s298 + $0xf8] sm:$0xff] %v9414
        %s9447 = sand.u32 %s200, 1
        %s9448 = scalar_lea.sflag [#allocation4], %s9447
        %s9449 = sand.u32 %s200, 1
        %s9450 = smul.addr %s9449, 256
        %s9451 = scalar_lea.vmem [#allocation3], %s9450
        // Predicated region
        $region49: #{aspp_forward.1} parent=47 // pred_check
          %p9452 = pneg %p210
        $region50: #{aspp_forward.1} parent=47 // pred_check_branch
          %9454 = sbr.rel (%p9452) target = $region52
        $region51: #{aspp_forward.1} parent=47 // pred_region
          %s9455 = smul.u32 16, %s26
          %s9457 = ssub.s32 4096, 4096
          %9458 = vsyncadd %s9448, %s9457
          %s9459 = smul.addr %s9455, 2
          %s9460 = smul.addr %s25, 64
          %s9461 = sadd.s32 %s9459, %s9460
          %s9462 = smul.addr %s9461, 128
          %s9463 = scalar_lea.hbm %s7, %s9462
          %s9464 = sshll.u32 %s9451, 4
          %s9465 = int_to_ptr.vmem [resolvable:$true] %s9464
          %9470 = dma.vmem_to_hbm [thread:$0]  %s9465, 4096, %s9463, %s9448, 256, 256, 16
        $region52: #{aspp_forward.1} parent=47 // pred_fallthru
          _
      $region48: #{aspp_forward.1} parent=5 // pred_fallthru
        _
      %p9471 = scmp.le.s32.totalorder 2, %s16
      // Predicated region
      $region53: #{aspp_forward.1} parent=5 // pred_check
        %p9472 = pneg %p9471
      $region54: #{aspp_forward.1} parent=5 // pred_check_branch
        %9474 = sbr.rel (%p9472) target = $region56
      $region55: #{aspp_forward.1} parent=5 // pred_region
        %s9475 = ssub.s32 %s16, 2
        // Predicated region
        $region57: #{aspp_forward.1} parent=55 // pred_check
          %p9476 = pneg %p216
        $region58: #{aspp_forward.1} parent=55 // pred_check_branch
          %9478 = sbr.rel (%p9476) target = $region60
        $region59: #{aspp_forward.1} parent=55 // pred_region
          %s9479 = sand.u32 %s201, 1
          %s9480 = scalar_lea.sflag [#allocation4], %s9479
          %s9481 = sand.u32 %s201, 1
          %s9482 = smul.addr %s9481, 256
          %s9483 = scalar_lea.vmem [#allocation3], %s9482
          %9484 = dma.done %s9480, 4096
        $region60: #{aspp_forward.1} parent=55 // pred_fallthru
          _
      $region56: #{aspp_forward.1} parent=5 // pred_fallthru
        _
    $region6: #{aspp_forward.1} parent=1 // loop_footer
      %s20 = sadd.s32 1, %s16
    $region7: #{aspp_forward.1} parent=1 // loop_footer_branch
      %15 = sbr.rel target = $region3
    $region8: #{aspp_forward.1} parent=1 // loop_exit
      _
    %9485 = vsyncpa [#allocation4], 1
    %s9486 = scalar_lea.sflag [#allocation4], 1
    %9487 = vsyncpa %s9486, 1

</llo_original>
